<compile_context>
chip_gen: v7x
topology: tpu7x:2x2x1
jax: 0.10.0
libtpu: 0.0.40
codegen_flags: <defaults>
</compile_context>

<pallas_src>
import functools

import jax
import jax.numpy as jnp
from jax import lax
from jax.experimental import pallas as pl
from jax.experimental.pallas import tpu as pltpu

BN_EPS = 1e-5  # nn.BatchNorm2d default
EXPANSION = 4  # BottleNeck.expansion


# ----------------------------------------------------------------------------
# helpers
# ----------------------------------------------------------------------------
def _pick_row_tile(ho, wo, n, target_rows=2048):
    """Largest divisor of `ho` whose tile has <= target_rows matmul rows.
    Keeps >=2 row tiles when batch==1 so both v7x TensorCores get work."""
    best = 1
    for d in range(1, ho + 1):
        if ho % d:
            continue
        if d * wo > target_rows:
            continue
        if n == 1 and ho >= 2 and ho // d < 2:
            continue
        best = d
    return best


# ----------------------------------------------------------------------------
# fused Pallas kernel: conv1x1+BN+ReLU -> conv3x3+BN+ReLU -> conv1x1+BN
#                      -> (+ projection/identity shortcut) -> ReLU
# ----------------------------------------------------------------------------
def _bottleneck_fused_kernel(*refs, stride, has_proj):
    if has_proj:
        (x_ref, w1_ref, t1_ref, w2_ref, t2_ref, w3_ref, t3_ref,
         ws_ref, ts_ref, o_ref, a1p_ref) = refs
    else:
        (x_ref, w1_ref, t1_ref, w2_ref, t2_ref, w3_ref, t3_ref,
         o_ref, a1p_ref) = refs
        ws_ref = ts_ref = None

    h, w, cin = x_ref.shape
    th, wo, cout = o_ref.shape
    cmid = w1_ref.shape[1]
    hrows = a1p_ref.shape[0]          # (th-1)*stride + 3 padded rows
    s = stride
    j = pl.program_id(1)
    m = th * wo

    # ---- stage 1 recomputed per row-tile (1-row halo) into padded VMEM scratch
    a1p_ref[...] = jnp.zeros_like(a1p_ref)   # zero pad cols + possibly-invalid halo rows

    def conv1_rows(row_start, nrows):
        xr = x_ref[pl.ds(row_start, nrows), :, :].reshape(nrows * w, cin)
        a = jnp.dot(xr, w1_ref[...], preferred_element_type=jnp.float32)
        a = jnp.maximum(a + t1_ref[...], 0.0)
        return a.astype(jnp.bfloat16).reshape(nrows, w, cmid)

    r_mid0 = j * (th * s)             # first input row needed by the middle block
    nmid = (th - 1) * s + 1           # == hrows - 2, always in-bounds rows
    a1p_ref[1:1 + nmid, 1:1 + w, :] = conv1_rows(r_mid0, nmid)

    @pl.when(j > 0)                   # top halo row (padded row 0); zero pad when j==0
    def _():
        a1p_ref[0:1, 1:1 + w, :] = conv1_rows(r_mid0 - 1, 1)

    r_bot = r_mid0 + nmid             # bottom halo row; zero pad when out of range
    @pl.when(r_bot < h)
    def _():
        a1p_ref[hrows - 1:hrows, 1:1 + w, :] = conv1_rows(r_bot, 1)

    # ---- 3x3 conv + BN2 + ReLU: 9 accumulating dots (no wide-K im2col slab)
    acc = None
    for ky in range(3):
        row_sl = pl.ds(ky, th) if s == 1 else pl.ds(ky, th, stride=s)
        for kx in range(3):
            if s == 1:
                tap = a1p_ref[row_sl, kx:kx + wo, :]
            else:
                tap = a1p_ref[row_sl, pl.ds(kx, wo, stride=s), :]
            t = ky * 3 + kx
            d = jnp.dot(tap.reshape(m, cmid), w2_ref[t * cmid:(t + 1) * cmid, :],
                        preferred_element_type=jnp.float32)
            acc = d if acc is None else acc + d
    a2 = jnp.maximum(acc + t2_ref[...], 0.0).astype(jnp.bfloat16)

    # ---- expansion 1x1 conv + BN3
    a3 = jnp.dot(a2, w3_ref[...], preferred_element_type=jnp.float32) + t3_ref[...]

    # ---- shortcut (projection matmul or identity) + add + final ReLU
    if s == 1:
        xs = x_ref[pl.ds(r_mid0, th), :, :]
    else:
        xs = x_ref[pl.ds(r_mid0, th, stride=s), pl.ds(0, wo, stride=s), :]
    xs2 = xs.reshape(m, xs.shape[-1])
    if has_proj:
        sc = jnp.dot(xs2, ws_ref[...], preferred_element_type=jnp.float32) + ts_ref[...]
    else:
        sc = xs2.astype(jnp.float32)

    out = jnp.maximum(a3 + sc, 0.0)
    o_ref[...] = out.reshape(th, wo, cout).astype(o_ref.dtype)


# ----------------------------------------------------------------------------
# wrapper
# ----------------------------------------------------------------------------
def bottleneck_forward(x_nhwc, p, *, stride=1, row_tile=None):
    """BottleNeck eval forward. x_nhwc: (N,H,W,Cin) -> (N,Ho,Wo,4*Cmid) bf16."""
    n, h, w, cin = x_nhwc.shape
    cmid = p['w1'].shape[1]
    cout = p['w3'].shape[1]
    has_proj = (stride != 1) or (cin != cout)
    ho = (h - 1) // stride + 1
    wo = (w - 1) // stride + 1

    th = row_tile or _pick_row_tile(ho, wo, n)
    assert ho % th == 0, (ho, th)     # TODO(synk): pad ho / remainder tile for non-divisible sizes
    hrows = (th - 1) * stride + 3

    xb = x_nhwc.astype(jnp.bfloat16)

    # fold BN scales into the conv weights (eval mode); only shifts remain in-kernel
    w1 = (p['w1'] * p['s1'][None, :]).astype(jnp.bfloat16)
    w2 = (p['w2'] * p['s2'][None, None, None, :]).reshape(9 * cmid, cmid).astype(jnp.bfloat16)
    w3 = (p['w3'] * p['s3'][None, :]).astype(jnp.bfloat16)
    t1 = p['t1'].reshape(1, cmid).astype(jnp.float32)
    t2 = p['t2'].reshape(1, cmid).astype(jnp.float32)
    t3 = p['t3'].reshape(1, cout).astype(jnp.float32)

    in_arrays = [xb, w1, t1, w2, t2, w3, t3]
    in_specs = [
        pl.BlockSpec((None, h, w, cin), lambda nn, j: (nn, 0, 0, 0)),
        pl.BlockSpec((cin, cmid), lambda nn, j: (0, 0)),
        pl.BlockSpec((1, cmid), lambda nn, j: (0, 0)),
        pl.BlockSpec((9 * cmid, cmid), lambda nn, j: (0, 0)),
        pl.BlockSpec((1, cmid), lambda nn, j: (0, 0)),
        pl.BlockSpec((cmid, cout), lambda nn, j: (0, 0)),
        pl.BlockSpec((1, cout), lambda nn, j: (0, 0)),
    ]
    proj_bytes = 0
    if has_proj:
        ws = (p['ws'] * p['ss'][None, :]).astype(jnp.bfloat16)
        ts = p['ts'].reshape(1, cout).astype(jnp.float32)
        in_arrays += [ws, ts]
        in_specs += [pl.BlockSpec((cin, cout), lambda nn, j: (0, 0)),
                     pl.BlockSpec((1, cout), lambda nn, j: (0, 0))]
        proj_bytes = ws.size * 2

    # right-size the VMEM budget (double-buffered blocks + scratch + f32 temporaries),
    # capped at 64 MiB so it is valid on v7x as well as v5e/v6e.
    est = (2 * h * w * cin * 2                       # resident input plane (x2 buffers)
           + 2 * th * wo * cout * 2                  # bf16 output tile (x2 buffers)
           + 2 * (w1.size + w2.size + w3.size) * 2 + 2 * proj_bytes
           + hrows * (w + 2) * cmid * 2              # a1 halo scratch
           + 3 * th * wo * max(cmid, cout) * 4)      # live f32 accumulators
    vmem_limit = int(min(64 * 1024 * 1024, max(2 * est, 16 * 1024 * 1024)))

    kern = functools.partial(_bottleneck_fused_kernel, stride=stride, has_proj=has_proj)
    out = pl.pallas_call(
        kern,
        out_shape=jax.ShapeDtypeStruct((n, ho, wo, cout), jnp.bfloat16),
        grid=(n, ho // th),
        in_specs=in_specs,
        out_specs=pl.BlockSpec((None, th, wo, cout), lambda nn, j: (nn, j, 0, 0)),
        scratch_shapes=[pltpu.VMEM((hrows, w + 2, cmid), jnp.bfloat16)],
        compiler_params=pltpu.CompilerParams(
            dimension_semantics=("parallel", "parallel"),
            vmem_limit_bytes=vmem_limit),
    )(*in_arrays)
    return out


# ----------------------------------------------------------------------------
# parameters (deterministic) + pure-JAX reference
# ----------------------------------------------------------------------------
class KeyGen:
    def __init__(self, key):
        self.key = key

    def __call__(self):
        self.key, sub = jax.random.split(self.key)
        return sub


def init_bottleneck_params(key, cin, cmid, *, stride=1):
    cout = cmid * EXPANSION
    kg = KeyGen(key)

    def bn(c):
        gamma = 1.0 + 0.1 * jax.random.normal(kg(), (c,), jnp.float32)
        beta = 0.1 * jax.random.normal(kg(), (c,), jnp.float32)
        rm = 0.1 * jax.random.normal(kg(), (c,), jnp.float32)
        rv = 1.0 + 0.1 * jax.random.uniform(kg(), (c,), jnp.float32)
        scale = gamma / jnp.sqrt(rv + BN_EPS)
        return scale, beta - rm * scale

    p = {}
    p['w1'] = jax.random.normal(kg(), (cin, cmid), jnp.float32) / (cin ** 0.5)
    p['s1'], p['t1'] = bn(cmid)
    p['w2'] = jax.random.normal(kg(), (3, 3, cmid, cmid), jnp.float32) / ((9 * cmid) ** 0.5)
    p['s2'], p['t2'] = bn(cmid)
    p['w3'] = jax.random.normal(kg(), (cmid, cout), jnp.float32) / (cmid ** 0.5)
    p['s3'], p['t3'] = bn(cout)
    if stride != 1 or cin != cout:
        p['ws'] = jax.random.normal(kg(), (cin, cout), jnp.float32) / (cin ** 0.5)
        p['ss'], p['ts'] = bn(cout)
    return p


def bottleneck_ref(x, p, stride=1):
    """Pure-JAX f32 reference (matches PyTorch eval semantics)."""
    a = jnp.einsum('nhwc,cd->nhwd', x, p['w1'])
    a = jnp.maximum(a * p['s1'] + p['t1'], 0.0)
    a = lax.conv_general_dilated(a, p['w2'], (stride, stride), ((1, 1), (1, 1)),
                                 dimension_numbers=('NHWC', 'HWIO', 'NHWC'))
    a = jnp.maximum(a * p['s2'] + p['t2'], 0.0)
    a = jnp.einsum('nhwc,cd->nhwd', a, p['w3']) * p['s3'] + p['t3']
    if stride != 1 or x.shape[-1] != p['w3'].shape[1]:
        sc = x[:, ::stride, ::stride, :]
        sc = jnp.einsum('nhwc,cd->nhwd', sc, p['ws']) * p['ss'] + p['ts']
    else:
        sc = x
    return jnp.maximum(a + sc, 0.0)


# ----------------------------------------------------------------------------
if __name__ == "__main__":
    N, H, W = 2, 16, 16
    CIN, CMID = 32, 16          # output channels = CMID * 4 = 64

    key = jax.random.PRNGKey(0)
    kx, k1, k2 = jax.random.split(key, 3)
    x_nchw = jax.random.normal(kx, (N, CIN, H, W), jnp.float32)
    x = jnp.transpose(x_nchw, (0, 2, 3, 1))                       # NHWC

    p1 = init_bottleneck_params(k1, CIN, CMID)                    # projection shortcut
    p2 = init_bottleneck_params(k2, CMID * EXPANSION, CMID)       # identity shortcut

    def run(xin):
        # row_tile=8 -> 2 row tiles per image (exercises top/bottom halo branches)
        y = bottleneck_forward(xin, p1, stride=1, row_tile=8)
        y = bottleneck_forward(y, p2, stride=1, row_tile=8)
        return y

    y = jax.jit(run)(x)
    jax.block_until_ready(y)

    ref = bottleneck_ref(bottleneck_ref(x, p1, 1), p2, 1)
    yf = y.astype(jnp.float32)
    err = jnp.linalg.norm(yf - ref) / (jnp.linalg.norm(ref) + 1e-6)

    y_nchw = jnp.transpose(yf, (0, 3, 1, 2))                      # back to NCHW
    assert y_nchw.shape == (N, CMID * EXPANSION, H, W), y_nchw.shape
    assert bool(jnp.all(jnp.isfinite(yf)))
    assert float(err) < 5e-2, float(err)
    print("KERNEL_OK")
</pallas_src>

<mosaic_0001>
module attributes {stable_mosaic.version = 11 : i64} {
  func.func @_bottleneck_fused_kernel(%arg0: i32, %arg1: i32, %arg2: memref<1x16x16x32xbf16, #tpu.memory_space<vmem>>, %arg3: memref<32x16xbf16, #tpu.memory_space<vmem>>, %arg4: memref<1x16xf32, #tpu.memory_space<vmem>>, %arg5: memref<144x16xbf16, #tpu.memory_space<vmem>>, %arg6: memref<1x16xf32, #tpu.memory_space<vmem>>, %arg7: memref<16x64xbf16, #tpu.memory_space<vmem>>, %arg8: memref<1x64xf32, #tpu.memory_space<vmem>>, %arg9: memref<32x64xbf16, #tpu.memory_space<vmem>>, %arg10: memref<1x64xf32, #tpu.memory_space<vmem>>, %arg11: memref<1x8x16x64xbf16, #tpu.memory_space<vmem>>, %arg12: memref<10x18x16xbf16, #tpu.memory_space<vmem>>) attributes {dimension_semantics = [#tpu.dimension_semantics<parallel>, #tpu.dimension_semantics<parallel>], iteration_bounds = array<i64: 2, 2>, scalar_prefetch = 0 : i64, scratch_operands = 1 : i64, tpu.core_type = #tpu.core_type<tc>, window_params = [{transform_indices = @transform_0, window_bounds = array<i64: 1, 16, 16, 32>}, {pipeline_mode = #tpu.pipeline_mode<synchronous>, transform_indices = @transform_1, window_bounds = array<i64: 32, 16>}, {pipeline_mode = #tpu.pipeline_mode<synchronous>, transform_indices = @transform_2, window_bounds = array<i64: 1, 16>}, {pipeline_mode = #tpu.pipeline_mode<synchronous>, transform_indices = @transform_3, window_bounds = array<i64: 144, 16>}, {pipeline_mode = #tpu.pipeline_mode<synchronous>, transform_indices = @transform_4, window_bounds = array<i64: 1, 16>}, {pipeline_mode = #tpu.pipeline_mode<synchronous>, transform_indices = @transform_5, window_bounds = array<i64: 16, 64>}, {pipeline_mode = #tpu.pipeline_mode<synchronous>, transform_indices = @transform_6, window_bounds = array<i64: 1, 64>}, {pipeline_mode = #tpu.pipeline_mode<synchronous>, transform_indices = @transform_7, window_bounds = array<i64: 32, 64>}, {pipeline_mode = #tpu.pipeline_mode<synchronous>, transform_indices = @transform_8, window_bounds = array<i64: 1, 64>}, {transform_indices = @transform_9, window_bounds = array<i64: 1, 8, 16, 64>}]} {
    %cst = arith.constant 0.000000e+00 : bf16
    %0 = vector.broadcast %cst : bf16 to vector<10x18x16xbf16>
    %c0 = arith.constant 0 : index
    %c0_0 = arith.constant 0 : index
    %c0_1 = arith.constant 0 : index
    %1 = vector.load %arg12[%c0, %c0_0, %c0_1] : memref<10x18x16xbf16, #tpu.memory_space<vmem>>, vector<10x18x16xbf16>
    tpu.vector_store %arg12[%c0, %c0_0, %c0_1], %0 {strides = array<i32>} : memref<10x18x16xbf16, #tpu.memory_space<vmem>>, vector<10x18x16xbf16>,
    %c8_i32 = arith.constant 8 : i32
    %2 = arith.muli %arg1, %c8_i32 : i32
    %c0_2 = arith.constant 0 : index
    %3 = arith.index_cast %2 : i32 to index
    %c0_3 = arith.constant 0 : index
    %c0_4 = arith.constant 0 : index
    %4 = vector.load %arg2[%c0_2, %3, %c0_3, %c0_4] : memref<1x16x16x32xbf16, #tpu.memory_space<vmem>>, vector<1x8x16x32xbf16>
    %5 = vector.shape_cast %4 : vector<1x8x16x32xbf16> to vector<8x16x32xbf16>
    %6 = vector.shape_cast %5 : vector<8x16x32xbf16> to vector<128x32xbf16>
    %c0_5 = arith.constant 0 : index
    %c0_6 = arith.constant 0 : index
    %7 = vector.load %arg3[%c0_5, %c0_6] : memref<32x16xbf16, #tpu.memory_space<vmem>>, vector<32x16xbf16>
    %cst_7 = arith.constant dense<0.000000e+00> : vector<128x16xf32>
    %8 = tpu.matmul %6, %7, %cst_7 {dimension_numbers = #tpu.dot_dimension_numbers<[1], [0], [0], [1], [0, 0, 1, 1], [], []>} : vector<128x32xbf16>, vector<32x16xbf16>, vector<128x16xf32> -> vector<128x16xf32>
    %c0_8 = arith.constant 0 : index
    %c0_9 = arith.constant 0 : index
    %9 = vector.load %arg4[%c0_8, %c0_9] : memref<1x16xf32, #tpu.memory_space<vmem>>, vector<1x16xf32>
    %10 = vector.broadcast %9 : vector<1x16xf32> to vector<128x16xf32>
    %11 = arith.addf %8, %10 : vector<128x16xf32>
    %cst_10 = arith.constant 0.000000e+00 : f32
    %12 = vector.broadcast %cst_10 : f32 to vector<128x16xf32>
    %13 = arith.maximumf %11, %12 : vector<128x16xf32>
    %14 = arith.truncf %13 : vector<128x16xf32> to vector<128x16xbf16>
    %15 = vector.shape_cast %14 : vector<128x16xbf16> to vector<8x16x16xbf16>
    %c1 = arith.constant 1 : index
    %c1_11 = arith.constant 1 : index
    %c0_12 = arith.constant 0 : index
    %16 = vector.load %arg12[%c1, %c1_11, %c0_12] : memref<10x18x16xbf16, #tpu.memory_space<vmem>>, vector<8x16x16xbf16>
    tpu.vector_store %arg12[%c1, %c1_11, %c0_12], %15 {strides = array<i32>} : memref<10x18x16xbf16, #tpu.memory_space<vmem>>, vector<8x16x16xbf16>,
    %c0_i32 = arith.constant 0 : i32
    %17 = arith.cmpi sgt, %arg1, %c0_i32 : i32
    %18 = arith.extui %17 : i1 to i32
    %c0_i32_13 = arith.constant 0 : i32
    %19 = arith.cmpi ne, %18, %c0_i32_13 : i32
    scf.if %19 {
      %c1_i32 = arith.constant 1 : i32
      %96 = arith.subi %2, %c1_i32 : i32
      %c0_82 = arith.constant 0 : index
      %97 = arith.index_cast %96 : i32 to index
      %c0_83 = arith.constant 0 : index
      %c0_84 = arith.constant 0 : index
      %98 = vector.load %arg2[%c0_82, %97, %c0_83, %c0_84] : memref<1x16x16x32xbf16, #tpu.memory_space<vmem>>, vector<1x1x16x32xbf16>
      %99 = vector.shape_cast %98 : vector<1x1x16x32xbf16> to vector<1x16x32xbf16>
      %100 = vector.shape_cast %99 : vector<1x16x32xbf16> to vector<16x32xbf16>
      %c0_85 = arith.constant 0 : index
      %c0_86 = arith.constant 0 : index
      %101 = vector.load %arg3[%c0_85, %c0_86] : memref<32x16xbf16, #tpu.memory_space<vmem>>, vector<32x16xbf16>
      %cst_87 = arith.constant dense<0.000000e+00> : vector<16x16xf32>
      %102 = tpu.matmul %100, %101, %cst_87 {dimension_numbers = #tpu.dot_dimension_numbers<[1], [0], [0], [1], [0, 0, 1, 1], [], []>} : vector<16x32xbf16>, vector<32x16xbf16>, vector<16x16xf32> -> vector<16x16xf32>
      %c0_88 = arith.constant 0 : index
      %c0_89 = arith.constant 0 : index
      %103 = vector.load %arg4[%c0_88, %c0_89] : memref<1x16xf32, #tpu.memory_space<vmem>>, vector<1x16xf32>
      %104 = vector.broadcast %103 : vector<1x16xf32> to vector<16x16xf32>
      %105 = arith.addf %102, %104 : vector<16x16xf32>
      %cst_90 = arith.constant 0.000000e+00 : f32
      %106 = vector.broadcast %cst_90 : f32 to vector<16x16xf32>
      %107 = arith.maximumf %105, %106 : vector<16x16xf32>
      %108 = arith.truncf %107 : vector<16x16xf32> to vector<16x16xbf16>
      %109 = vector.shape_cast %108 : vector<16x16xbf16> to vector<1x16x16xbf16>
      %c0_91 = arith.constant 0 : index
      %c1_92 = arith.constant 1 : index
      %c0_93 = arith.constant 0 : index
      %110 = vector.load %arg12[%c0_91, %c1_92, %c0_93] : memref<10x18x16xbf16, #tpu.memory_space<vmem>>, vector<1x16x16xbf16>
      tpu.vector_store %arg12[%c0_91, %c1_92, %c0_93], %109 {strides = array<i32>} : memref<10x18x16xbf16, #tpu.memory_space<vmem>>, vector<1x16x16xbf16>,
    } else {
    }
    %c8_i32_14 = arith.constant 8 : i32
    %20 = arith.addi %2, %c8_i32_14 : i32
    %c16_i32 = arith.constant 16 : i32
    %21 = arith.cmpi slt, %20, %c16_i32 : i32
    %22 = arith.extui %21 : i1 to i32
    %c0_i32_15 = arith.constant 0 : i32
    %23 = arith.cmpi ne, %22, %c0_i32_15 : i32
    scf.if %23 {
      %c0_82 = arith.constant 0 : index
      %96 = arith.index_cast %20 : i32 to index
      %c0_83 = arith.constant 0 : index
      %c0_84 = arith.constant 0 : index
      %97 = vector.load %arg2[%c0_82, %96, %c0_83, %c0_84] : memref<1x16x16x32xbf16, #tpu.memory_space<vmem>>, vector<1x1x16x32xbf16>
      %98 = vector.shape_cast %97 : vector<1x1x16x32xbf16> to vector<1x16x32xbf16>
      %99 = vector.shape_cast %98 : vector<1x16x32xbf16> to vector<16x32xbf16>
      %c0_85 = arith.constant 0 : index
      %c0_86 = arith.constant 0 : index
      %100 = vector.load %arg3[%c0_85, %c0_86] : memref<32x16xbf16, #tpu.memory_space<vmem>>, vector<32x16xbf16>
      %cst_87 = arith.constant dense<0.000000e+00> : vector<16x16xf32>
      %101 = tpu.matmul %99, %100, %cst_87 {dimension_numbers = #tpu.dot_dimension_numbers<[1], [0], [0], [1], [0, 0, 1, 1], [], []>} : vector<16x32xbf16>, vector<32x16xbf16>, vector<16x16xf32> -> vector<16x16xf32>
      %c0_88 = arith.constant 0 : index
      %c0_89 = arith.constant 0 : index
      %102 = vector.load %arg4[%c0_88, %c0_89] : memref<1x16xf32, #tpu.memory_space<vmem>>, vector<1x16xf32>
      %103 = vector.broadcast %102 : vector<1x16xf32> to vector<16x16xf32>
      %104 = arith.addf %101, %103 : vector<16x16xf32>
      %cst_90 = arith.constant 0.000000e+00 : f32
      %105 = vector.broadcast %cst_90 : f32 to vector<16x16xf32>
      %106 = arith.maximumf %104, %105 : vector<16x16xf32>
      %107 = arith.truncf %106 : vector<16x16xf32> to vector<16x16xbf16>
      %108 = vector.shape_cast %107 : vector<16x16xbf16> to vector<1x16x16xbf16>
      %c9 = arith.constant 9 : index
      %c1_91 = arith.constant 1 : index
      %c0_92 = arith.constant 0 : index
      %109 = vector.load %arg12[%c9, %c1_91, %c0_92] : memref<10x18x16xbf16, #tpu.memory_space<vmem>>, vector<1x16x16xbf16>
      tpu.vector_store %arg12[%c9, %c1_91, %c0_92], %108 {strides = array<i32>} : memref<10x18x16xbf16, #tpu.memory_space<vmem>>, vector<1x16x16xbf16>,
    } else {
    }
    %c0_16 = arith.constant 0 : index
    %c0_17 = arith.constant 0 : index
    %c0_18 = arith.constant 0 : index
    %24 = vector.load %arg12[%c0_16, %c0_17, %c0_18] : memref<10x18x16xbf16, #tpu.memory_space<vmem>>, vector<8x16x16xbf16>
    %25 = vector.shape_cast %24 : vector<8x16x16xbf16> to vector<128x16xbf16>
    %c0_19 = arith.constant 0 : index
    %c0_20 = arith.constant 0 : index
    %26 = vector.load %arg5[%c0_19, %c0_20] : memref<144x16xbf16, #tpu.memory_space<vmem>>, vector<16x16xbf16>
    %cst_21 = arith.constant dense<0.000000e+00> : vector<128x16xf32>
    %27 = tpu.matmul %25, %26, %cst_21 {dimension_numbers = #tpu.dot_dimension_numbers<[1], [0], [0], [1], [0, 0, 1, 1], [], []>} : vector<128x16xbf16>, vector<16x16xbf16>, vector<128x16xf32> -> vector<128x16xf32>
    %c0_22 = arith.constant 0 : index
    %c1_23 = arith.constant 1 : index
    %c0_24 = arith.constant 0 : index
    %28 = vector.load %arg12[%c0_22, %c1_23, %c0_24] : memref<10x18x16xbf16, #tpu.memory_space<vmem>>, vector<8x16x16xbf16>
    %29 = vector.shape_cast %28 : vector<8x16x16xbf16> to vector<128x16xbf16>
    %c16 = arith.constant 16 : index
    %c0_25 = arith.constant 0 : index
    %30 = vector.load %arg5[%c16, %c0_25] : memref<144x16xbf16, #tpu.memory_space<vmem>>, vector<16x16xbf16>
    %cst_26 = arith.constant dense<0.000000e+00> : vector<128x16xf32>
    %31 = tpu.matmul %29, %30, %cst_26 {dimension_numbers = #tpu.dot_dimension_numbers<[1], [0], [0], [1], [0, 0, 1, 1], [], []>} : vector<128x16xbf16>, vector<16x16xbf16>, vector<128x16xf32> -> vector<128x16xf32>
    %32 = arith.addf %27, %31 : vector<128x16xf32>
    %c0_27 = arith.constant 0 : index
    %c2 = arith.constant 2 : index
    %c0_28 = arith.constant 0 : index
    %33 = vector.load %arg12[%c0_27, %c2, %c0_28] : memref<10x18x16xbf16, #tpu.memory_space<vmem>>, vector<8x16x16xbf16>
    %34 = vector.shape_cast %33 : vector<8x16x16xbf16> to vector<128x16xbf16>
    %c32 = arith.constant 32 : index
    %c0_29 = arith.constant 0 : index
    %35 = vector.load %arg5[%c32, %c0_29] : memref<144x16xbf16, #tpu.memory_space<vmem>>, vector<16x16xbf16>
    %cst_30 = arith.constant dense<0.000000e+00> : vector<128x16xf32>
    %36 = tpu.matmul %34, %35, %cst_30 {dimension_numbers = #tpu.dot_dimension_numbers<[1], [0], [0], [1], [0, 0, 1, 1], [], []>} : vector<128x16xbf16>, vector<16x16xbf16>, vector<128x16xf32> -> vector<128x16xf32>
    %37 = arith.addf %32, %36 : vector<128x16xf32>
    %c1_31 = arith.constant 1 : index
    %c0_32 = arith.constant 0 : index
    %c0_33 = arith.constant 0 : index
    %38 = vector.load %arg12[%c1_31, %c0_32, %c0_33] : memref<10x18x16xbf16, #tpu.memory_space<vmem>>, vector<8x16x16xbf16>
    %39 = vector.shape_cast %38 : vector<8x16x16xbf16> to vector<128x16xbf16>
    %c48 = arith.constant 48 : index
    %c0_34 = arith.constant 0 : index
    %40 = vector.load %arg5[%c48, %c0_34] : memref<144x16xbf16, #tpu.memory_space<vmem>>, vector<16x16xbf16>
    %cst_35 = arith.constant dense<0.000000e+00> : vector<128x16xf32>
    %41 = tpu.matmul %39, %40, %cst_35 {dimension_numbers = #tpu.dot_dimension_numbers<[1], [0], [0], [1], [0, 0, 1, 1], [], []>} : vector<128x16xbf16>, vector<16x16xbf16>, vector<128x16xf32> -> vector<128x16xf32>
    %42 = arith.addf %37, %41 : vector<128x16xf32>
    %c1_36 = arith.constant 1 : index
    %c1_37 = arith.constant 1 : index
    %c0_38 = arith.constant 0 : index
    %43 = vector.load %arg12[%c1_36, %c1_37, %c0_38] : memref<10x18x16xbf16, #tpu.memory_space<vmem>>, vector<8x16x16xbf16>
    %44 = vector.shape_cast %43 : vector<8x16x16xbf16> to vector<128x16xbf16>
    %c64 = arith.constant 64 : index
    %c0_39 = arith.constant 0 : index
    %45 = vector.load %arg5[%c64, %c0_39] : memref<144x16xbf16, #tpu.memory_space<vmem>>, vector<16x16xbf16>
    %cst_40 = arith.constant dense<0.000000e+00> : vector<128x16xf32>
    %46 = tpu.matmul %44, %45, %cst_40 {dimension_numbers = #tpu.dot_dimension_numbers<[1], [0], [0], [1], [0, 0, 1, 1], [], []>} : vector<128x16xbf16>, vector<16x16xbf16>, vector<128x16xf32> -> vector<128x16xf32>
    %47 = arith.addf %42, %46 : vector<128x16xf32>
    %c1_41 = arith.constant 1 : index
    %c2_42 = arith.constant 2 : index
    %c0_43 = arith.constant 0 : index
    %48 = vector.load %arg12[%c1_41, %c2_42, %c0_43] : memref<10x18x16xbf16, #tpu.memory_space<vmem>>, vector<8x16x16xbf16>
    %49 = vector.shape_cast %48 : vector<8x16x16xbf16> to vector<128x16xbf16>
    %c80 = arith.constant 80 : index
    %c0_44 = arith.constant 0 : index
    %50 = vector.load %arg5[%c80, %c0_44] : memref<144x16xbf16, #tpu.memory_space<vmem>>, vector<16x16xbf16>
    %cst_45 = arith.constant dense<0.000000e+00> : vector<128x16xf32>
    %51 = tpu.matmul %49, %50, %cst_45 {dimension_numbers = #tpu.dot_dimension_numbers<[1], [0], [0], [1], [0, 0, 1, 1], [], []>} : vector<128x16xbf16>, vector<16x16xbf16>, vector<128x16xf32> -> vector<128x16xf32>
    %52 = arith.addf %47, %51 : vector<128x16xf32>
    %c2_46 = arith.constant 2 : index
    %c0_47 = arith.constant 0 : index
    %c0_48 = arith.constant 0 : index
    %53 = vector.load %arg12[%c2_46, %c0_47, %c0_48] : memref<10x18x16xbf16, #tpu.memory_space<vmem>>, vector<8x16x16xbf16>
    %54 = vector.shape_cast %53 : vector<8x16x16xbf16> to vector<128x16xbf16>
    %c96 = arith.constant 96 : index
    %c0_49 = arith.constant 0 : index
    %55 = vector.load %arg5[%c96, %c0_49] : memref<144x16xbf16, #tpu.memory_space<vmem>>, vector<16x16xbf16>
    %cst_50 = arith.constant dense<0.000000e+00> : vector<128x16xf32>
    %56 = tpu.matmul %54, %55, %cst_50 {dimension_numbers = #tpu.dot_dimension_numbers<[1], [0], [0], [1], [0, 0, 1, 1], [], []>} : vector<128x16xbf16>, vector<16x16xbf16>, vector<128x16xf32> -> vector<128x16xf32>
    %57 = arith.addf %52, %56 : vector<128x16xf32>
    %c2_51 = arith.constant 2 : index
    %c1_52 = arith.constant 1 : index
    %c0_53 = arith.constant 0 : index
    %58 = vector.load %arg12[%c2_51, %c1_52, %c0_53] : memref<10x18x16xbf16, #tpu.memory_space<vmem>>, vector<8x16x16xbf16>
    %59 = vector.shape_cast %58 : vector<8x16x16xbf16> to vector<128x16xbf16>
    %c112 = arith.constant 112 : index
    %c0_54 = arith.constant 0 : index
    %60 = vector.load %arg5[%c112, %c0_54] : memref<144x16xbf16, #tpu.memory_space<vmem>>, vector<16x16xbf16>
    %cst_55 = arith.constant dense<0.000000e+00> : vector<128x16xf32>
    %61 = tpu.matmul %59, %60, %cst_55 {dimension_numbers = #tpu.dot_dimension_numbers<[1], [0], [0], [1], [0, 0, 1, 1], [], []>} : vector<128x16xbf16>, vector<16x16xbf16>, vector<128x16xf32> -> vector<128x16xf32>
    %62 = arith.addf %57, %61 : vector<128x16xf32>
    %c2_56 = arith.constant 2 : index
    %c2_57 = arith.constant 2 : index
    %c0_58 = arith.constant 0 : index
    %63 = vector.load %arg12[%c2_56, %c2_57, %c0_58] : memref<10x18x16xbf16, #tpu.memory_space<vmem>>, vector<8x16x16xbf16>
    %64 = vector.shape_cast %63 : vector<8x16x16xbf16> to vector<128x16xbf16>
    %c128 = arith.constant 128 : index
    %c0_59 = arith.constant 0 : index
    %65 = vector.load %arg5[%c128, %c0_59] : memref<144x16xbf16, #tpu.memory_space<vmem>>, vector<16x16xbf16>
    %cst_60 = arith.constant dense<0.000000e+00> : vector<128x16xf32>
    %66 = tpu.matmul %64, %65, %cst_60 {dimension_numbers = #tpu.dot_dimension_numbers<[1], [0], [0], [1], [0, 0, 1, 1], [], []>} : vector<128x16xbf16>, vector<16x16xbf16>, vector<128x16xf32> -> vector<128x16xf32>
    %67 = arith.addf %62, %66 : vector<128x16xf32>
    %c0_61 = arith.constant 0 : index
    %c0_62 = arith.constant 0 : index
    %68 = vector.load %arg6[%c0_61, %c0_62] : memref<1x16xf32, #tpu.memory_space<vmem>>, vector<1x16xf32>
    %69 = vector.broadcast %68 : vector<1x16xf32> to vector<128x16xf32>
    %70 = arith.addf %67, %69 : vector<128x16xf32>
    %cst_63 = arith.constant 0.000000e+00 : f32
    %71 = vector.broadcast %cst_63 : f32 to vector<128x16xf32>
    %72 = arith.maximumf %70, %71 : vector<128x16xf32>
    %73 = arith.truncf %72 : vector<128x16xf32> to vector<128x16xbf16>
    %c0_64 = arith.constant 0 : index
    %c0_65 = arith.constant 0 : index
    %74 = vector.load %arg7[%c0_64, %c0_65] : memref<16x64xbf16, #tpu.memory_space<vmem>>, vector<16x64xbf16>
    %cst_66 = arith.constant dense<0.000000e+00> : vector<128x64xf32>
    %75 = tpu.matmul %73, %74, %cst_66 {dimension_numbers = #tpu.dot_dimension_numbers<[1], [0], [0], [1], [0, 0, 1, 1], [], []>} : vector<128x16xbf16>, vector<16x64xbf16>, vector<128x64xf32> -> vector<128x64xf32>
    %c0_67 = arith.constant 0 : index
    %c0_68 = arith.constant 0 : index
    %76 = vector.load %arg8[%c0_67, %c0_68] : memref<1x64xf32, #tpu.memory_space<vmem>>, vector<1x64xf32>
    %77 = vector.broadcast %76 : vector<1x64xf32> to vector<128x64xf32>
    %78 = arith.addf %75, %77 : vector<128x64xf32>
    %c0_69 = arith.constant 0 : index
    %79 = arith.index_cast %2 : i32 to index
    %c0_70 = arith.constant 0 : index
    %c0_71 = arith.constant 0 : index
    %80 = vector.load %arg2[%c0_69, %79, %c0_70, %c0_71] : memref<1x16x16x32xbf16, #tpu.memory_space<vmem>>, vector<1x8x16x32xbf16>
    %81 = vector.shape_cast %80 : vector<1x8x16x32xbf16> to vector<8x16x32xbf16>
    %82 = vector.shape_cast %81 : vector<8x16x32xbf16> to vector<128x32xbf16>
    %c0_72 = arith.constant 0 : index
    %c0_73 = arith.constant 0 : index
    %83 = vector.load %arg9[%c0_72, %c0_73] : memref<32x64xbf16, #tpu.memory_space<vmem>>, vector<32x64xbf16>
    %cst_74 = arith.constant dense<0.000000e+00> : vector<128x64xf32>
    %84 = tpu.matmul %82, %83, %cst_74 {dimension_numbers = #tpu.dot_dimension_numbers<[1], [0], [0], [1], [0, 0, 1, 1], [], []>} : vector<128x32xbf16>, vector<32x64xbf16>, vector<128x64xf32> -> vector<128x64xf32>
    %c0_75 = arith.constant 0 : index
    %c0_76 = arith.constant 0 : index
    %85 = vector.load %arg10[%c0_75, %c0_76] : memref<1x64xf32, #tpu.memory_space<vmem>>, vector<1x64xf32>
    %86 = vector.broadcast %85 : vector<1x64xf32> to vector<128x64xf32>
    %87 = arith.addf %84, %86 : vector<128x64xf32>
    %88 = arith.addf %78, %87 : vector<128x64xf32>
    %cst_77 = arith.constant 0.000000e+00 : f32
    %89 = vector.broadcast %cst_77 : f32 to vector<128x64xf32>
    %90 = arith.maximumf %88, %89 : vector<128x64xf32>
    %91 = vector.shape_cast %90 : vector<128x64xf32> to vector<8x16x64xf32>
    %92 = arith.truncf %91 : vector<8x16x64xf32> to vector<8x16x64xbf16>
    %c0_78 = arith.constant 0 : index
    %c0_79 = arith.constant 0 : index
    %c0_80 = arith.constant 0 : index
    %c0_81 = arith.constant 0 : index
    %93 = vector.load %arg11[%c0_78, %c0_79, %c0_80, %c0_81] : memref<1x8x16x64xbf16, #tpu.memory_space<vmem>>, vector<1x8x16x64xbf16>
    %94 = vector.shape_cast %93 : vector<1x8x16x64xbf16> to vector<8x16x64xbf16>
    %95 = vector.shape_cast %92 : vector<8x16x64xbf16> to vector<1x8x16x64xbf16>
    tpu.vector_store %arg11[%c0_78, %c0_79, %c0_80, %c0_81], %95 {strides = array<i32>} : memref<1x8x16x64xbf16, #tpu.memory_space<vmem>>, vector<1x8x16x64xbf16>,
    return
  }
  func.func @transform_0(%arg0: i32, %arg1: i32) -> (i32, i32, i32, i32) {
    %c0_i32 = arith.constant 0 : i32
    %c0_i32_0 = arith.constant 0 : i32
    %c0_i32_1 = arith.constant 0 : i32
    %c0_i32_2 = arith.constant 0 : i32
    return %arg0, %c0_i32, %c0_i32_0, %c0_i32_1 : i32, i32, i32, i32
  }
  func.func @transform_1(%arg0: i32, %arg1: i32) -> (i32, i32) {
    %c0_i32 = arith.constant 0 : i32
    %c0_i32_0 = arith.constant 0 : i32
    %c0_i32_1 = arith.constant 0 : i32
    return %c0_i32, %c0_i32_0 : i32, i32
  }
  func.func @transform_2(%arg0: i32, %arg1: i32) -> (i32, i32) {
    %c0_i32 = arith.constant 0 : i32
    %c0_i32_0 = arith.constant 0 : i32
    %c0_i32_1 = arith.constant 0 : i32
    return %c0_i32, %c0_i32_0 : i32, i32
  }
  func.func @transform_3(%arg0: i32, %arg1: i32) -> (i32, i32) {
    %c0_i32 = arith.constant 0 : i32
    %c0_i32_0 = arith.constant 0 : i32
    %c0_i32_1 = arith.constant 0 : i32
    return %c0_i32, %c0_i32_0 : i32, i32
  }
  func.func @transform_4(%arg0: i32, %arg1: i32) -> (i32, i32) {
    %c0_i32 = arith.constant 0 : i32
    %c0_i32_0 = arith.constant 0 : i32
    %c0_i32_1 = arith.constant 0 : i32
    return %c0_i32, %c0_i32_0 : i32, i32
  }
  func.func @transform_5(%arg0: i32, %arg1: i32) -> (i32, i32) {
    %c0_i32 = arith.constant 0 : i32
    %c0_i32_0 = arith.constant 0 : i32
    %c0_i32_1 = arith.constant 0 : i32
    return %c0_i32, %c0_i32_0 : i32, i32
  }
  func.func @transform_6(%arg0: i32, %arg1: i32) -> (i32, i32) {
    %c0_i32 = arith.constant 0 : i32
    %c0_i32_0 = arith.constant 0 : i32
    %c0_i32_1 = arith.constant 0 : i32
    return %c0_i32, %c0_i32_0 : i32, i32
  }
  func.func @transform_7(%arg0: i32, %arg1: i32) -> (i32, i32) {
    %c0_i32 = arith.constant 0 : i32
    %c0_i32_0 = arith.constant 0 : i32
    %c0_i32_1 = arith.constant 0 : i32
    return %c0_i32, %c0_i32_0 : i32, i32
  }
  func.func @transform_8(%arg0: i32, %arg1: i32) -> (i32, i32) {
    %c0_i32 = arith.constant 0 : i32
    %c0_i32_0 = arith.constant 0 : i32
    %c0_i32_1 = arith.constant 0 : i32
    return %c0_i32, %c0_i32_0 : i32, i32
  }
  func.func @transform_9(%arg0: i32, %arg1: i32) -> (i32, i32, i32, i32) {
    %c0_i32 = arith.constant 0 : i32
    %c0_i32_0 = arith.constant 0 : i32
    %c0_i32_1 = arith.constant 0 : i32
    return %arg0, %arg1, %c0_i32, %c0_i32_0 : i32, i32, i32, i32
  }
}

module attributes {stable_mosaic.version = 11 : i64} {
  func.func @_bottleneck_fused_kernel(%arg0: i32, %arg1: i32, %arg2: memref<1x16x16x64xbf16, #tpu.memory_space<vmem>>, %arg3: memref<64x16xbf16, #tpu.memory_space<vmem>>, %arg4: memref<1x16xf32, #tpu.memory_space<vmem>>, %arg5: memref<144x16xbf16, #tpu.memory_space<vmem>>, %arg6: memref<1x16xf32, #tpu.memory_space<vmem>>, %arg7: memref<16x64xbf16, #tpu.memory_space<vmem>>, %arg8: memref<1x64xf32, #tpu.memory_space<vmem>>, %arg9: memref<1x8x16x64xbf16, #tpu.memory_space<vmem>>, %arg10: memref<10x18x16xbf16, #tpu.memory_space<vmem>>) attributes {dimension_semantics = [#tpu.dimension_semantics<parallel>, #tpu.dimension_semantics<parallel>], iteration_bounds = array<i64: 2, 2>, scalar_prefetch = 0 : i64, scratch_operands = 1 : i64, tpu.core_type = #tpu.core_type<tc>, window_params = [{transform_indices = @transform_0, window_bounds = array<i64: 1, 16, 16, 64>}, {pipeline_mode = #tpu.pipeline_mode<synchronous>, transform_indices = @transform_1, window_bounds = array<i64: 64, 16>}, {pipeline_mode = #tpu.pipeline_mode<synchronous>, transform_indices = @transform_2, window_bounds = array<i64: 1, 16>}, {pipeline_mode = #tpu.pipeline_mode<synchronous>, transform_indices = @transform_3, window_bounds = array<i64: 144, 16>}, {pipeline_mode = #tpu.pipeline_mode<synchronous>, transform_indices = @transform_4, window_bounds = array<i64: 1, 16>}, {pipeline_mode = #tpu.pipeline_mode<synchronous>, transform_indices = @transform_5, window_bounds = array<i64: 16, 64>}, {pipeline_mode = #tpu.pipeline_mode<synchronous>, transform_indices = @transform_6, window_bounds = array<i64: 1, 64>}, {transform_indices = @transform_7, window_bounds = array<i64: 1, 8, 16, 64>}]} {
    %cst = arith.constant 0.000000e+00 : bf16
    %0 = vector.broadcast %cst : bf16 to vector<10x18x16xbf16>
    %c0 = arith.constant 0 : index
    %c0_0 = arith.constant 0 : index
    %c0_1 = arith.constant 0 : index
    %1 = vector.load %arg10[%c0, %c0_0, %c0_1] : memref<10x18x16xbf16, #tpu.memory_space<vmem>>, vector<10x18x16xbf16>
    tpu.vector_store %arg10[%c0, %c0_0, %c0_1], %0 {strides = array<i32>} : memref<10x18x16xbf16, #tpu.memory_space<vmem>>, vector<10x18x16xbf16>,
    %c8_i32 = arith.constant 8 : i32
    %2 = arith.muli %arg1, %c8_i32 : i32
    %c0_2 = arith.constant 0 : index
    %3 = arith.index_cast %2 : i32 to index
    %c0_3 = arith.constant 0 : index
    %c0_4 = arith.constant 0 : index
    %4 = vector.load %arg2[%c0_2, %3, %c0_3, %c0_4] : memref<1x16x16x64xbf16, #tpu.memory_space<vmem>>, vector<1x8x16x64xbf16>
    %5 = vector.shape_cast %4 : vector<1x8x16x64xbf16> to vector<8x16x64xbf16>
    %6 = vector.shape_cast %5 : vector<8x16x64xbf16> to vector<128x64xbf16>
    %c0_5 = arith.constant 0 : index
    %c0_6 = arith.constant 0 : index
    %7 = vector.load %arg3[%c0_5, %c0_6] : memref<64x16xbf16, #tpu.memory_space<vmem>>, vector<64x16xbf16>
    %cst_7 = arith.constant dense<0.000000e+00> : vector<128x16xf32>
    %8 = tpu.matmul %6, %7, %cst_7 {dimension_numbers = #tpu.dot_dimension_numbers<[1], [0], [0], [1], [0, 0, 1, 1], [], []>} : vector<128x64xbf16>, vector<64x16xbf16>, vector<128x16xf32> -> vector<128x16xf32>
    %c0_8 = arith.constant 0 : index
    %c0_9 = arith.constant 0 : index
    %9 = vector.load %arg4[%c0_8, %c0_9] : memref<1x16xf32, #tpu.memory_space<vmem>>, vector<1x16xf32>
    %10 = vector.broadcast %9 : vector<1x16xf32> to vector<128x16xf32>
    %11 = arith.addf %8, %10 : vector<128x16xf32>
    %cst_10 = arith.constant 0.000000e+00 : f32
    %12 = vector.broadcast %cst_10 : f32 to vector<128x16xf32>
    %13 = arith.maximumf %11, %12 : vector<128x16xf32>
    %14 = arith.truncf %13 : vector<128x16xf32> to vector<128x16xbf16>
    %15 = vector.shape_cast %14 : vector<128x16xbf16> to vector<8x16x16xbf16>
    %c1 = arith.constant 1 : index
    %c1_11 = arith.constant 1 : index
    %c0_12 = arith.constant 0 : index
    %16 = vector.load %arg10[%c1, %c1_11, %c0_12] : memref<10x18x16xbf16, #tpu.memory_space<vmem>>, vector<8x16x16xbf16>
    tpu.vector_store %arg10[%c1, %c1_11, %c0_12], %15 {strides = array<i32>} : memref<10x18x16xbf16, #tpu.memory_space<vmem>>, vector<8x16x16xbf16>,
    %c0_i32 = arith.constant 0 : i32
    %17 = arith.cmpi sgt, %arg1, %c0_i32 : i32
    %18 = arith.extui %17 : i1 to i32
    %c0_i32_13 = arith.constant 0 : i32
    %19 = arith.cmpi ne, %18, %c0_i32_13 : i32
    scf.if %19 {
      %c1_i32 = arith.constant 1 : i32
      %92 = arith.subi %2, %c1_i32 : i32
      %c0_77 = arith.constant 0 : index
      %93 = arith.index_cast %92 : i32 to index
      %c0_78 = arith.constant 0 : index
      %c0_79 = arith.constant 0 : index
      %94 = vector.load %arg2[%c0_77, %93, %c0_78, %c0_79] : memref<1x16x16x64xbf16, #tpu.memory_space<vmem>>, vector<1x1x16x64xbf16>
      %95 = vector.shape_cast %94 : vector<1x1x16x64xbf16> to vector<1x16x64xbf16>
      %96 = vector.shape_cast %95 : vector<1x16x64xbf16> to vector<16x64xbf16>
      %c0_80 = arith.constant 0 : index
      %c0_81 = arith.constant 0 : index
      %97 = vector.load %arg3[%c0_80, %c0_81] : memref<64x16xbf16, #tpu.memory_space<vmem>>, vector<64x16xbf16>
      %cst_82 = arith.constant dense<0.000000e+00> : vector<16x16xf32>
      %98 = tpu.matmul %96, %97, %cst_82 {dimension_numbers = #tpu.dot_dimension_numbers<[1], [0], [0], [1], [0, 0, 1, 1], [], []>} : vector<16x64xbf16>, vector<64x16xbf16>, vector<16x16xf32> -> vector<16x16xf32>
      %c0_83 = arith.constant 0 : index
      %c0_84 = arith.constant 0 : index
      %99 = vector.load %arg4[%c0_83, %c0_84] : memref<1x16xf32, #tpu.memory_space<vmem>>, vector<1x16xf32>
      %100 = vector.broadcast %99 : vector<1x16xf32> to vector<16x16xf32>
      %101 = arith.addf %98, %100 : vector<16x16xf32>
      %cst_85 = arith.constant 0.000000e+00 : f32
      %102 = vector.broadcast %cst_85 : f32 to vector<16x16xf32>
      %103 = arith.maximumf %101, %102 : vector<16x16xf32>
      %104 = arith.truncf %103 : vector<16x16xf32> to vector<16x16xbf16>
      %105 = vector.shape_cast %104 : vector<16x16xbf16> to vector<1x16x16xbf16>
      %c0_86 = arith.constant 0 : index
      %c1_87 = arith.constant 1 : index
      %c0_88 = arith.constant 0 : index
      %106 = vector.load %arg10[%c0_86, %c1_87, %c0_88] : memref<10x18x16xbf16, #tpu.memory_space<vmem>>, vector<1x16x16xbf16>
      tpu.vector_store %arg10[%c0_86, %c1_87, %c0_88], %105 {strides = array<i32>} : memref<10x18x16xbf16, #tpu.memory_space<vmem>>, vector<1x16x16xbf16>,
    } else {
    }
    %c8_i32_14 = arith.constant 8 : i32
    %20 = arith.addi %2, %c8_i32_14 : i32
    %c16_i32 = arith.constant 16 : i32
    %21 = arith.cmpi slt, %20, %c16_i32 : i32
    %22 = arith.extui %21 : i1 to i32
    %c0_i32_15 = arith.constant 0 : i32
    %23 = arith.cmpi ne, %22, %c0_i32_15 : i32
    scf.if %23 {
      %c0_77 = arith.constant 0 : index
      %92 = arith.index_cast %20 : i32 to index
      %c0_78 = arith.constant 0 : index
      %c0_79 = arith.constant 0 : index
      %93 = vector.load %arg2[%c0_77, %92, %c0_78, %c0_79] : memref<1x16x16x64xbf16, #tpu.memory_space<vmem>>, vector<1x1x16x64xbf16>
      %94 = vector.shape_cast %93 : vector<1x1x16x64xbf16> to vector<1x16x64xbf16>
      %95 = vector.shape_cast %94 : vector<1x16x64xbf16> to vector<16x64xbf16>
      %c0_80 = arith.constant 0 : index
      %c0_81 = arith.constant 0 : index
      %96 = vector.load %arg3[%c0_80, %c0_81] : memref<64x16xbf16, #tpu.memory_space<vmem>>, vector<64x16xbf16>
      %cst_82 = arith.constant dense<0.000000e+00> : vector<16x16xf32>
      %97 = tpu.matmul %95, %96, %cst_82 {dimension_numbers = #tpu.dot_dimension_numbers<[1], [0], [0], [1], [0, 0, 1, 1], [], []>} : vector<16x64xbf16>, vector<64x16xbf16>, vector<16x16xf32> -> vector<16x16xf32>
      %c0_83 = arith.constant 0 : index
      %c0_84 = arith.constant 0 : index
      %98 = vector.load %arg4[%c0_83, %c0_84] : memref<1x16xf32, #tpu.memory_space<vmem>>, vector<1x16xf32>
      %99 = vector.broadcast %98 : vector<1x16xf32> to vector<16x16xf32>
      %100 = arith.addf %97, %99 : vector<16x16xf32>
      %cst_85 = arith.constant 0.000000e+00 : f32
      %101 = vector.broadcast %cst_85 : f32 to vector<16x16xf32>
      %102 = arith.maximumf %100, %101 : vector<16x16xf32>
      %103 = arith.truncf %102 : vector<16x16xf32> to vector<16x16xbf16>
      %104 = vector.shape_cast %103 : vector<16x16xbf16> to vector<1x16x16xbf16>
      %c9 = arith.constant 9 : index
      %c1_86 = arith.constant 1 : index
      %c0_87 = arith.constant 0 : index
      %105 = vector.load %arg10[%c9, %c1_86, %c0_87] : memref<10x18x16xbf16, #tpu.memory_space<vmem>>, vector<1x16x16xbf16>
      tpu.vector_store %arg10[%c9, %c1_86, %c0_87], %104 {strides = array<i32>} : memref<10x18x16xbf16, #tpu.memory_space<vmem>>, vector<1x16x16xbf16>,
    } else {
    }
    %c0_16 = arith.constant 0 : index
    %c0_17 = arith.constant 0 : index
    %c0_18 = arith.constant 0 : index
    %24 = vector.load %arg10[%c0_16, %c0_17, %c0_18] : memref<10x18x16xbf16, #tpu.memory_space<vmem>>, vector<8x16x16xbf16>
    %25 = vector.shape_cast %24 : vector<8x16x16xbf16> to vector<128x16xbf16>
    %c0_19 = arith.constant 0 : index
    %c0_20 = arith.constant 0 : index
    %26 = vector.load %arg5[%c0_19, %c0_20] : memref<144x16xbf16, #tpu.memory_space<vmem>>, vector<16x16xbf16>
    %cst_21 = arith.constant dense<0.000000e+00> : vector<128x16xf32>
    %27 = tpu.matmul %25, %26, %cst_21 {dimension_numbers = #tpu.dot_dimension_numbers<[1], [0], [0], [1], [0, 0, 1, 1], [], []>} : vector<128x16xbf16>, vector<16x16xbf16>, vector<128x16xf32> -> vector<128x16xf32>
    %c0_22 = arith.constant 0 : index
    %c1_23 = arith.constant 1 : index
    %c0_24 = arith.constant 0 : index
    %28 = vector.load %arg10[%c0_22, %c1_23, %c0_24] : memref<10x18x16xbf16, #tpu.memory_space<vmem>>, vector<8x16x16xbf16>
    %29 = vector.shape_cast %28 : vector<8x16x16xbf16> to vector<128x16xbf16>
    %c16 = arith.constant 16 : index
    %c0_25 = arith.constant 0 : index
    %30 = vector.load %arg5[%c16, %c0_25] : memref<144x16xbf16, #tpu.memory_space<vmem>>, vector<16x16xbf16>
    %cst_26 = arith.constant dense<0.000000e+00> : vector<128x16xf32>
    %31 = tpu.matmul %29, %30, %cst_26 {dimension_numbers = #tpu.dot_dimension_numbers<[1], [0], [0], [1], [0, 0, 1, 1], [], []>} : vector<128x16xbf16>, vector<16x16xbf16>, vector<128x16xf32> -> vector<128x16xf32>
    %32 = arith.addf %27, %31 : vector<128x16xf32>
    %c0_27 = arith.constant 0 : index
    %c2 = arith.constant 2 : index
    %c0_28 = arith.constant 0 : index
    %33 = vector.load %arg10[%c0_27, %c2, %c0_28] : memref<10x18x16xbf16, #tpu.memory_space<vmem>>, vector<8x16x16xbf16>
    %34 = vector.shape_cast %33 : vector<8x16x16xbf16> to vector<128x16xbf16>
    %c32 = arith.constant 32 : index
    %c0_29 = arith.constant 0 : index
    %35 = vector.load %arg5[%c32, %c0_29] : memref<144x16xbf16, #tpu.memory_space<vmem>>, vector<16x16xbf16>
    %cst_30 = arith.constant dense<0.000000e+00> : vector<128x16xf32>
    %36 = tpu.matmul %34, %35, %cst_30 {dimension_numbers = #tpu.dot_dimension_numbers<[1], [0], [0], [1], [0, 0, 1, 1], [], []>} : vector<128x16xbf16>, vector<16x16xbf16>, vector<128x16xf32> -> vector<128x16xf32>
    %37 = arith.addf %32, %36 : vector<128x16xf32>
    %c1_31 = arith.constant 1 : index
    %c0_32 = arith.constant 0 : index
    %c0_33 = arith.constant 0 : index
    %38 = vector.load %arg10[%c1_31, %c0_32, %c0_33] : memref<10x18x16xbf16, #tpu.memory_space<vmem>>, vector<8x16x16xbf16>
    %39 = vector.shape_cast %38 : vector<8x16x16xbf16> to vector<128x16xbf16>
    %c48 = arith.constant 48 : index
    %c0_34 = arith.constant 0 : index
    %40 = vector.load %arg5[%c48, %c0_34] : memref<144x16xbf16, #tpu.memory_space<vmem>>, vector<16x16xbf16>
    %cst_35 = arith.constant dense<0.000000e+00> : vector<128x16xf32>
    %41 = tpu.matmul %39, %40, %cst_35 {dimension_numbers = #tpu.dot_dimension_numbers<[1], [0], [0], [1], [0, 0, 1, 1], [], []>} : vector<128x16xbf16>, vector<16x16xbf16>, vector<128x16xf32> -> vector<128x16xf32>
    %42 = arith.addf %37, %41 : vector<128x16xf32>
    %c1_36 = arith.constant 1 : index
    %c1_37 = arith.constant 1 : index
    %c0_38 = arith.constant 0 : index
    %43 = vector.load %arg10[%c1_36, %c1_37, %c0_38] : memref<10x18x16xbf16, #tpu.memory_space<vmem>>, vector<8x16x16xbf16>
    %44 = vector.shape_cast %43 : vector<8x16x16xbf16> to vector<128x16xbf16>
    %c64 = arith.constant 64 : index
    %c0_39 = arith.constant 0 : index
    %45 = vector.load %arg5[%c64, %c0_39] : memref<144x16xbf16, #tpu.memory_space<vmem>>, vector<16x16xbf16>
    %cst_40 = arith.constant dense<0.000000e+00> : vector<128x16xf32>
    %46 = tpu.matmul %44, %45, %cst_40 {dimension_numbers = #tpu.dot_dimension_numbers<[1], [0], [0], [1], [0, 0, 1, 1], [], []>} : vector<128x16xbf16>, vector<16x16xbf16>, vector<128x16xf32> -> vector<128x16xf32>
    %47 = arith.addf %42, %46 : vector<128x16xf32>
    %c1_41 = arith.constant 1 : index
    %c2_42 = arith.constant 2 : index
    %c0_43 = arith.constant 0 : index
    %48 = vector.load %arg10[%c1_41, %c2_42, %c0_43] : memref<10x18x16xbf16, #tpu.memory_space<vmem>>, vector<8x16x16xbf16>
    %49 = vector.shape_cast %48 : vector<8x16x16xbf16> to vector<128x16xbf16>
    %c80 = arith.constant 80 : index
    %c0_44 = arith.constant 0 : index
    %50 = vector.load %arg5[%c80, %c0_44] : memref<144x16xbf16, #tpu.memory_space<vmem>>, vector<16x16xbf16>
    %cst_45 = arith.constant dense<0.000000e+00> : vector<128x16xf32>
    %51 = tpu.matmul %49, %50, %cst_45 {dimension_numbers = #tpu.dot_dimension_numbers<[1], [0], [0], [1], [0, 0, 1, 1], [], []>} : vector<128x16xbf16>, vector<16x16xbf16>, vector<128x16xf32> -> vector<128x16xf32>
    %52 = arith.addf %47, %51 : vector<128x16xf32>
    %c2_46 = arith.constant 2 : index
    %c0_47 = arith.constant 0 : index
    %c0_48 = arith.constant 0 : index
    %53 = vector.load %arg10[%c2_46, %c0_47, %c0_48] : memref<10x18x16xbf16, #tpu.memory_space<vmem>>, vector<8x16x16xbf16>
    %54 = vector.shape_cast %53 : vector<8x16x16xbf16> to vector<128x16xbf16>
    %c96 = arith.constant 96 : index
    %c0_49 = arith.constant 0 : index
    %55 = vector.load %arg5[%c96, %c0_49] : memref<144x16xbf16, #tpu.memory_space<vmem>>, vector<16x16xbf16>
    %cst_50 = arith.constant dense<0.000000e+00> : vector<128x16xf32>
    %56 = tpu.matmul %54, %55, %cst_50 {dimension_numbers = #tpu.dot_dimension_numbers<[1], [0], [0], [1], [0, 0, 1, 1], [], []>} : vector<128x16xbf16>, vector<16x16xbf16>, vector<128x16xf32> -> vector<128x16xf32>
    %57 = arith.addf %52, %56 : vector<128x16xf32>
    %c2_51 = arith.constant 2 : index
    %c1_52 = arith.constant 1 : index
    %c0_53 = arith.constant 0 : index
    %58 = vector.load %arg10[%c2_51, %c1_52, %c0_53] : memref<10x18x16xbf16, #tpu.memory_space<vmem>>, vector<8x16x16xbf16>
    %59 = vector.shape_cast %58 : vector<8x16x16xbf16> to vector<128x16xbf16>
    %c112 = arith.constant 112 : index
    %c0_54 = arith.constant 0 : index
    %60 = vector.load %arg5[%c112, %c0_54] : memref<144x16xbf16, #tpu.memory_space<vmem>>, vector<16x16xbf16>
    %cst_55 = arith.constant dense<0.000000e+00> : vector<128x16xf32>
    %61 = tpu.matmul %59, %60, %cst_55 {dimension_numbers = #tpu.dot_dimension_numbers<[1], [0], [0], [1], [0, 0, 1, 1], [], []>} : vector<128x16xbf16>, vector<16x16xbf16>, vector<128x16xf32> -> vector<128x16xf32>
    %62 = arith.addf %57, %61 : vector<128x16xf32>
    %c2_56 = arith.constant 2 : index
    %c2_57 = arith.constant 2 : index
    %c0_58 = arith.constant 0 : index
    %63 = vector.load %arg10[%c2_56, %c2_57, %c0_58] : memref<10x18x16xbf16, #tpu.memory_space<vmem>>, vector<8x16x16xbf16>
    %64 = vector.shape_cast %63 : vector<8x16x16xbf16> to vector<128x16xbf16>
    %c128 = arith.constant 128 : index
    %c0_59 = arith.constant 0 : index
    %65 = vector.load %arg5[%c128, %c0_59] : memref<144x16xbf16, #tpu.memory_space<vmem>>, vector<16x16xbf16>
    %cst_60 = arith.constant dense<0.000000e+00> : vector<128x16xf32>
    %66 = tpu.matmul %64, %65, %cst_60 {dimension_numbers = #tpu.dot_dimension_numbers<[1], [0], [0], [1], [0, 0, 1, 1], [], []>} : vector<128x16xbf16>, vector<16x16xbf16>, vector<128x16xf32> -> vector<128x16xf32>
    %67 = arith.addf %62, %66 : vector<128x16xf32>
    %c0_61 = arith.constant 0 : index
    %c0_62 = arith.constant 0 : index
    %68 = vector.load %arg6[%c0_61, %c0_62] : memref<1x16xf32, #tpu.memory_space<vmem>>, vector<1x16xf32>
    %69 = vector.broadcast %68 : vector<1x16xf32> to vector<128x16xf32>
    %70 = arith.addf %67, %69 : vector<128x16xf32>
    %cst_63 = arith.constant 0.000000e+00 : f32
    %71 = vector.broadcast %cst_63 : f32 to vector<128x16xf32>
    %72 = arith.maximumf %70, %71 : vector<128x16xf32>
    %73 = arith.truncf %72 : vector<128x16xf32> to vector<128x16xbf16>
    %c0_64 = arith.constant 0 : index
    %c0_65 = arith.constant 0 : index
    %74 = vector.load %arg7[%c0_64, %c0_65] : memref<16x64xbf16, #tpu.memory_space<vmem>>, vector<16x64xbf16>
    %cst_66 = arith.constant dense<0.000000e+00> : vector<128x64xf32>
    %75 = tpu.matmul %73, %74, %cst_66 {dimension_numbers = #tpu.dot_dimension_numbers<[1], [0], [0], [1], [0, 0, 1, 1], [], []>} : vector<128x16xbf16>, vector<16x64xbf16>, vector<128x64xf32> -> vector<128x64xf32>
    %c0_67 = arith.constant 0 : index
    %c0_68 = arith.constant 0 : index
    %76 = vector.load %arg8[%c0_67, %c0_68] : memref<1x64xf32, #tpu.memory_space<vmem>>, vector<1x64xf32>
    %77 = vector.broadcast %76 : vector<1x64xf32> to vector<128x64xf32>
    %78 = arith.addf %75, %77 : vector<128x64xf32>
    %c0_69 = arith.constant 0 : index
    %79 = arith.index_cast %2 : i32 to index
    %c0_70 = arith.constant 0 : index
    %c0_71 = arith.constant 0 : index
    %80 = vector.load %arg2[%c0_69, %79, %c0_70, %c0_71] : memref<1x16x16x64xbf16, #tpu.memory_space<vmem>>, vector<1x8x16x64xbf16>
    %81 = vector.shape_cast %80 : vector<1x8x16x64xbf16> to vector<8x16x64xbf16>
    %82 = vector.shape_cast %81 : vector<8x16x64xbf16> to vector<128x64xbf16>
    %83 = arith.extf %82 : vector<128x64xbf16> to vector<128x64xf32>
    %84 = arith.addf %78, %83 : vector<128x64xf32>
    %cst_72 = arith.constant 0.000000e+00 : f32
    %85 = vector.broadcast %cst_72 : f32 to vector<128x64xf32>
    %86 = arith.maximumf %84, %85 : vector<128x64xf32>
    %87 = vector.shape_cast %86 : vector<128x64xf32> to vector<8x16x64xf32>
    %88 = arith.truncf %87 : vector<8x16x64xf32> to vector<8x16x64xbf16>
    %c0_73 = arith.constant 0 : index
    %c0_74 = arith.constant 0 : index
    %c0_75 = arith.constant 0 : index
    %c0_76 = arith.constant 0 : index
    %89 = vector.load %arg9[%c0_73, %c0_74, %c0_75, %c0_76] : memref<1x8x16x64xbf16, #tpu.memory_space<vmem>>, vector<1x8x16x64xbf16>
    %90 = vector.shape_cast %89 : vector<1x8x16x64xbf16> to vector<8x16x64xbf16>
    %91 = vector.shape_cast %88 : vector<8x16x64xbf16> to vector<1x8x16x64xbf16>
    tpu.vector_store %arg9[%c0_73, %c0_74, %c0_75, %c0_76], %91 {strides = array<i32>} : memref<1x8x16x64xbf16, #tpu.memory_space<vmem>>, vector<1x8x16x64xbf16>,
    return
  }
  func.func @transform_0(%arg0: i32, %arg1: i32) -> (i32, i32, i32, i32) {
    %c0_i32 = arith.constant 0 : i32
    %c0_i32_0 = arith.constant 0 : i32
    %c0_i32_1 = arith.constant 0 : i32
    %c0_i32_2 = arith.constant 0 : i32
    return %arg0, %c0_i32, %c0_i32_0, %c0_i32_1 : i32, i32, i32, i32
  }
  func.func @transform_1(%arg0: i32, %arg1: i32) -> (i32, i32) {
    %c0_i32 = arith.constant 0 : i32
    %c0_i32_0 = arith.constant 0 : i32
    %c0_i32_1 = arith.constant 0 : i32
    return %c0_i32, %c0_i32_0 : i32, i32
  }
  func.func @transform_2(%arg0: i32, %arg1: i32) -> (i32, i32) {
    %c0_i32 = arith.constant 0 : i32
    %c0_i32_0 = arith.constant 0 : i32
    %c0_i32_1 = arith.constant 0 : i32
    return %c0_i32, %c0_i32_0 : i32, i32
  }
  func.func @transform_3(%arg0: i32, %arg1: i32) -> (i32, i32) {
    %c0_i32 = arith.constant 0 : i32
    %c0_i32_0 = arith.constant 0 : i32
    %c0_i32_1 = arith.constant 0 : i32
    return %c0_i32, %c0_i32_0 : i32, i32
  }
  func.func @transform_4(%arg0: i32, %arg1: i32) -> (i32, i32) {
    %c0_i32 = arith.constant 0 : i32
    %c0_i32_0 = arith.constant 0 : i32
    %c0_i32_1 = arith.constant 0 : i32
    return %c0_i32, %c0_i32_0 : i32, i32
  }
  func.func @transform_5(%arg0: i32, %arg1: i32) -> (i32, i32) {
    %c0_i32 = arith.constant 0 : i32
    %c0_i32_0 = arith.constant 0 : i32
    %c0_i32_1 = arith.constant 0 : i32
    return %c0_i32, %c0_i32_0 : i32, i32
  }
  func.func @transform_6(%arg0: i32, %arg1: i32) -> (i32, i32) {
    %c0_i32 = arith.constant 0 : i32
    %c0_i32_0 = arith.constant 0 : i32
    %c0_i32_1 = arith.constant 0 : i32
    return %c0_i32, %c0_i32_0 : i32, i32
  }
  func.func @transform_7(%arg0: i32, %arg1: i32) -> (i32, i32, i32, i32) {
    %c0_i32 = arith.constant 0 : i32
    %c0_i32_0 = arith.constant 0 : i32
    %c0_i32_1 = arith.constant 0 : i32
    return %arg0, %arg1, %c0_i32, %c0_i32_0 : i32, i32, i32, i32
  }
}

</mosaic_0001>

<llo_original>
// kernel: run.3
$region0: #{run.3}
  #allocation0 [shape = 'u32[]', space=smem, size = 0x4, offset = 0x4, fixed_abs, tag = 'smem constant byte address 0x4 - core index']
  #allocation1 [shape = 'u32[144,128]{1,0:T(1,128)}', space=vmem, size = 0x12000, scoped, tag = 'internal scratch']
  #allocation2 [shape = 'bf16[10,18,16]{2,1,0:T(8,128)(2,1)}', space=vmem, size = 0xf000, scoped, tag = 'scratch operand']
  %s0 = inlined_call_operand.vmem [shape: bf16[2,16,16,64], index: 0, kind: input, shape index: {}]
  %s1 = inlined_call_operand.vmem [shape: bf16[64,16], index: 1, kind: input, shape index: {}]
  %s2 = inlined_call_operand.vmem [shape: f32[1,16], index: 2, kind: input, shape index: {}]
  %s3 = inlined_call_operand.vmem [shape: bf16[144,16], index: 3, kind: input, shape index: {}]
  %s4 = inlined_call_operand.vmem [shape: f32[1,16], index: 4, kind: input, shape index: {}]
  %s5 = inlined_call_operand.vmem [shape: bf16[16,64], index: 5, kind: input, shape index: {}]
  %s6 = inlined_call_operand.vmem [shape: f32[1,64], index: 6, kind: input, shape index: {}]
  %s7 = inlined_call_operand.hbm [shape: bf16[2,16,16,64], index: 7, kind: output, shape index: {}]
  %s8 = sld [smem:[#allocation0]]
  $region69: #{run.3} parent=0
    _
  %s10 = ssub.s32 1, %s8
  %s11 = scalar_select 0, %s10, %s8
  $region1: #{run.3} parent=0
    #allocation3 [shape = 'u8[65536]{0}', space=vmem, size = 0x10000, scoped, tag = 'output window, operand 0']
    #allocation4 [shape = 's32[2]{0}', space=sflag, size = 0x8, scoped, tag = 'scoped memory for run.3']
    %12 = vsyncpa [#allocation4], 0
    %s13 = scalar_lea.sflag [#allocation4], 1
    %14 = vsyncpa %s13, 0
    loop: start=0, step=1, limit=6
    $region2: #{run.3} parent=1 // loop_pre_header
      _
    $region3: #{run.3} parent=1 // loop_header
      %s16 = sphi 0, %s20
      %p17 = scmp.ge.s32.totalorder %s16, 6
      %s23 = sphi 0, %s35
      %s24 = sphi 0, %s31
      %s25 = sphi 0, %s23
      %s26 = sphi 0, %s24
      %s27 = sphi 0, %s25
      %s28 = sphi 0, %s26
      %s38 = sphi 0, %s40
      %s41 = sphi 0, %s38
      %s42 = sphi 0, %s41
      %s58 = sphi 0, %s42
      %s62 = sphi 0, %s62
      %s64 = sphi 0, %s62
      %s65 = sphi 0, %s64
      %s79 = sphi 0, %s65
      %s83 = sphi 0, %s83
      %s85 = sphi 0, %s83
      %s86 = sphi 0, %s85
      %s100 = sphi 0, %s86
      %s104 = sphi 0, %s104
      %s106 = sphi 0, %s104
      %s107 = sphi 0, %s106
      %s121 = sphi 0, %s107
      %s125 = sphi 0, %s125
      %s127 = sphi 0, %s125
      %s128 = sphi 0, %s127
      %s142 = sphi 0, %s128
      %s146 = sphi 0, %s146
      %s148 = sphi 0, %s146
      %s149 = sphi 0, %s148
      %s163 = sphi 0, %s149
      %s167 = sphi 0, %s167
      %s169 = sphi 0, %s167
      %s170 = sphi 0, %s169
      %s184 = sphi 0, %s170
      %s192 = sphi 0, %s194
      %s195 = sphi 0, %s192
      %s196 = sphi 0, %s195
      %s212 = sphi 0, %s196
    $region4: #{run.3} parent=1 // loop_header_branch
      %19 = sbr.rel (%p17) target = $region8
    $region5: #{run.3} parent=1 // loop_body
      %s21 = ssub.s32 %s16, 1
      %s22 = ssub.s32 %s16, 2
      %s29 = sadd.s32 1, %s24
      %p30 = scmp.ge.s32.totalorder %s29, 2
      %s31 = scalar_select %p30, 0, %s29
      %s32 = sadd.s32 1, %s23
      %s33 = scalar_select %p30, %s32, %s23
      %p34 = scmp.ge.s32.totalorder %s33, 2
      %s35 = scalar_select %p34, 0, %s33
      %s36 = ssub.s32 %s23, %s35
      %p37 = scmp.eq.s32.totalorder %s36, 0
      %s39 = sadd.s32 %s38, 1
      %s40 = scalar_select %p37, %s38, %s39
      %p43 = pneg %p37
      %p44 = scmp.eq.s32.totalorder %s16, 3
      %p45 = por %p43, %p44
      %p46 = scmp.ne.s32.totalorder %s38, %s41
      %p47 = scmp.eq.s32.totalorder %s16, 0
      %p48 = por %p46, %p47
      %p49 = scmp.ne.s32.totalorder %s38, %s41
      %p50 = scmp.eq.s32.totalorder %s21, 3
      %p51 = por %p49, %p50
      %p52 = scmp.ne.s32.totalorder %s41, %s42
      %p53 = scmp.eq.s32.totalorder %s21, 0
      %p54 = por %p52, %p53
      %p55 = scmp.ne.s32.totalorder %s41, %s42
      %p56 = scmp.eq.s32.totalorder %s22, 3
      %p57 = por %p55, %p56
      %p59 = scmp.ne.s32.totalorder %s42, %s58
      %p60 = scmp.eq.s32.totalorder %s22, 0
      %p61 = por %p59, %p60
      %s63 = sadd.s32 %s62, 1
      %p66 = scmp.eq.s32.totalorder %s16, 3
      %p67 = scmp.ne.s32.totalorder %s62, %s64
      %p68 = scmp.eq.s32.totalorder %s16, 0
      %p69 = por %p67, %p68
      %p70 = scmp.ne.s32.totalorder %s62, %s64
      %p71 = scmp.eq.s32.totalorder %s21, 3
      %p72 = por %p70, %p71
      %p73 = scmp.ne.s32.totalorder %s64, %s65
      %p74 = scmp.eq.s32.totalorder %s21, 0
      %p75 = por %p73, %p74
      %p76 = scmp.ne.s32.totalorder %s64, %s65
      %p77 = scmp.eq.s32.totalorder %s22, 3
      %p78 = por %p76, %p77
      %p80 = scmp.ne.s32.totalorder %s65, %s79
      %p81 = scmp.eq.s32.totalorder %s22, 0
      %p82 = por %p80, %p81
      %s84 = sadd.s32 %s83, 1
      %p87 = scmp.eq.s32.totalorder %s16, 3
      %p88 = scmp.ne.s32.totalorder %s83, %s85
      %p89 = scmp.eq.s32.totalorder %s16, 0
      %p90 = por %p88, %p89
      %p91 = scmp.ne.s32.totalorder %s83, %s85
      %p92 = scmp.eq.s32.totalorder %s21, 3
      %p93 = por %p91, %p92
      %p94 = scmp.ne.s32.totalorder %s85, %s86
      %p95 = scmp.eq.s32.totalorder %s21, 0
      %p96 = por %p94, %p95
      %p97 = scmp.ne.s32.totalorder %s85, %s86
      %p98 = scmp.eq.s32.totalorder %s22, 3
      %p99 = por %p97, %p98
      %p101 = scmp.ne.s32.totalorder %s86, %s100
      %p102 = scmp.eq.s32.totalorder %s22, 0
      %p103 = por %p101, %p102
      %s105 = sadd.s32 %s104, 1
      %p108 = scmp.eq.s32.totalorder %s16, 3
      %p109 = scmp.ne.s32.totalorder %s104, %s106
      %p110 = scmp.eq.s32.totalorder %s16, 0
      %p111 = por %p109, %p110
      %p112 = scmp.ne.s32.totalorder %s104, %s106
      %p113 = scmp.eq.s32.totalorder %s21, 3
      %p114 = por %p112, %p113
      %p115 = scmp.ne.s32.totalorder %s106, %s107
      %p116 = scmp.eq.s32.totalorder %s21, 0
      %p117 = por %p115, %p116
      %p118 = scmp.ne.s32.totalorder %s106, %s107
      %p119 = scmp.eq.s32.totalorder %s22, 3
      %p120 = por %p118, %p119
      %p122 = scmp.ne.s32.totalorder %s107, %s121
      %p123 = scmp.eq.s32.totalorder %s22, 0
      %p124 = por %p122, %p123
      %s126 = sadd.s32 %s125, 1
      %p129 = scmp.eq.s32.totalorder %s16, 3
      %p130 = scmp.ne.s32.totalorder %s125, %s127
      %p131 = scmp.eq.s32.totalorder %s16, 0
      %p132 = por %p130, %p131
      %p133 = scmp.ne.s32.totalorder %s125, %s127
      %p134 = scmp.eq.s32.totalorder %s21, 3
      %p135 = por %p133, %p134
      %p136 = scmp.ne.s32.totalorder %s127, %s128
      %p137 = scmp.eq.s32.totalorder %s21, 0
      %p138 = por %p136, %p137
      %p139 = scmp.ne.s32.totalorder %s127, %s128
      %p140 = scmp.eq.s32.totalorder %s22, 3
      %p141 = por %p139, %p140
      %p143 = scmp.ne.s32.totalorder %s128, %s142
      %p144 = scmp.eq.s32.totalorder %s22, 0
      %p145 = por %p143, %p144
      %s147 = sadd.s32 %s146, 1
      %p150 = scmp.eq.s32.totalorder %s16, 3
      %p151 = scmp.ne.s32.totalorder %s146, %s148
      %p152 = scmp.eq.s32.totalorder %s16, 0
      %p153 = por %p151, %p152
      %p154 = scmp.ne.s32.totalorder %s146, %s148
      %p155 = scmp.eq.s32.totalorder %s21, 3
      %p156 = por %p154, %p155
      %p157 = scmp.ne.s32.totalorder %s148, %s149
      %p158 = scmp.eq.s32.totalorder %s21, 0
      %p159 = por %p157, %p158
      %p160 = scmp.ne.s32.totalorder %s148, %s149
      %p161 = scmp.eq.s32.totalorder %s22, 3
      %p162 = por %p160, %p161
      %p164 = scmp.ne.s32.totalorder %s149, %s163
      %p165 = scmp.eq.s32.totalorder %s22, 0
      %p166 = por %p164, %p165
      %s168 = sadd.s32 %s167, 1
      %p171 = scmp.eq.s32.totalorder %s16, 3
      %p172 = scmp.ne.s32.totalorder %s167, %s169
      %p173 = scmp.eq.s32.totalorder %s16, 0
      %p174 = por %p172, %p173
      %p175 = scmp.ne.s32.totalorder %s167, %s169
      %p176 = scmp.eq.s32.totalorder %s21, 3
      %p177 = por %p175, %p176
      %p178 = scmp.ne.s32.totalorder %s169, %s170
      %p179 = scmp.eq.s32.totalorder %s21, 0
      %p180 = por %p178, %p179
      %p181 = scmp.ne.s32.totalorder %s169, %s170
      %p182 = scmp.eq.s32.totalorder %s22, 3
      %p183 = por %p181, %p182
      %p185 = scmp.ne.s32.totalorder %s170, %s184
      %p186 = scmp.eq.s32.totalorder %s22, 0
      %p187 = por %p185, %p186
      %s188 = ssub.s32 %s23, %s35
      %s189 = ssub.s32 %s24, %s31
      %s190 = sor.u32 %s188, %s189
      %p191 = scmp.eq.s32.totalorder %s190, 0
      %s193 = sadd.s32 %s192, 1
      %s194 = scalar_select %p191, %s192, %s193
      %p197 = pneg %p191
      %p198 = scmp.eq.s32.totalorder %s16, 3
      %p199 = por %p197, %p198
      %p200 = scmp.ne.s32.totalorder %s192, %s195
      %p201 = scmp.eq.s32.totalorder %s16, 0
      %p202 = por %p200, %p201
      %p203 = scmp.ne.s32.totalorder %s192, %s195
      %p204 = scmp.eq.s32.totalorder %s21, 3
      %p205 = por %p203, %p204
      %p206 = scmp.ne.s32.totalorder %s195, %s196
      %p207 = scmp.eq.s32.totalorder %s21, 0
      %p208 = por %p206, %p207
      %p209 = scmp.ne.s32.totalorder %s195, %s196
      %p210 = scmp.eq.s32.totalorder %s22, 3
      %p211 = por %p209, %p210
      %p213 = scmp.ne.s32.totalorder %s196, %s212
      %p214 = scmp.eq.s32.totalorder %s22, 0
      %p215 = por %p213, %p214
      %p216 = scmp.le.s32.totalorder 1, %s16
      %p217 = scmp.lt.s32.totalorder %s16, 5
      %p218 = pnand %p216, %p217
      %p219 = pneg %p218
      // Predicated region
      $region9: #{run.3} parent=5 // pred_check
        _
      $region10: #{run.3} parent=5 // pred_check_branch
        %221 = sbr.rel (%p218) target = $region12
      $region11: #{run.3} parent=5 // pred_region
        %s222 = ssub.s32 %s16, 1
        // Predicated region
        $region13: #{run.3} parent=11 // pred_check
          %p223 = pneg %p75
        $region14: #{run.3} parent=11 // pred_check_branch
          %225 = sbr.rel (%p223) target = $region16
        $region15: #{run.3} parent=11 // pred_region
          _
        $region16: #{run.3} parent=11 // pred_fallthru
          _
        // Predicated region
        $region17: #{run.3} parent=11 // pred_check
          %p226 = pneg %p96
        $region18: #{run.3} parent=11 // pred_check_branch
          %228 = sbr.rel (%p226) target = $region20
        $region19: #{run.3} parent=11 // pred_region
          _
        $region20: #{run.3} parent=11 // pred_fallthru
          _
        // Predicated region
        $region21: #{run.3} parent=11 // pred_check
          %p229 = pneg %p117
        $region22: #{run.3} parent=11 // pred_check_branch
          %231 = sbr.rel (%p229) target = $region24
        $region23: #{run.3} parent=11 // pred_region
          _
        $region24: #{run.3} parent=11 // pred_fallthru
          _
        // Predicated region
        $region25: #{run.3} parent=11 // pred_check
          %p232 = pneg %p138
        $region26: #{run.3} parent=11 // pred_check_branch
          %234 = sbr.rel (%p232) target = $region28
        $region27: #{run.3} parent=11 // pred_region
          _
        $region28: #{run.3} parent=11 // pred_fallthru
          _
        // Predicated region
        $region29: #{run.3} parent=11 // pred_check
          %p235 = pneg %p159
        $region30: #{run.3} parent=11 // pred_check_branch
          %237 = sbr.rel (%p235) target = $region32
        $region31: #{run.3} parent=11 // pred_region
          _
        $region32: #{run.3} parent=11 // pred_fallthru
          _
        // Predicated region
        $region33: #{run.3} parent=11 // pred_check
          %p238 = pneg %p180
        $region34: #{run.3} parent=11 // pred_check_branch
          %240 = sbr.rel (%p238) target = $region36
        $region35: #{run.3} parent=11 // pred_region
          _
        $region36: #{run.3} parent=11 // pred_fallthru
          _
      $region12: #{run.3} parent=5 // pred_fallthru
        _
      %p241 = scmp.lt.s32.totalorder %s16, 4
      // Predicated region
      $region37: #{run.3} parent=5 // pred_check
        %p242 = pneg %p241
      $region38: #{run.3} parent=5 // pred_check_branch
        %244 = sbr.rel (%p242) target = $region40
      $region39: #{run.3} parent=5 // pred_region
        // Predicated region
        $region41: #{run.3} parent=39 // pred_check
          %p245 = pneg %p48
        $region42: #{run.3} parent=39 // pred_check_branch
          %247 = sbr.rel (%p245) target = $region44
        $region43: #{run.3} parent=39 // pred_region
          %p248 = scmp.lt.s32.totalorder %s23, 1
          %s249 = scalar_select %p248, %s23, 1
          %s250 = smul.addr %s249, 32
          %s251 = smul.addr %s250, 4
          %s252 = scalar_lea.vmem %s0, %s251
        $region44: #{run.3} parent=39 // pred_fallthru
          _
      $region40: #{run.3} parent=5 // pred_fallthru
        _
      %p253 = scmp.le.s32.totalorder 1, %s16
      %p254 = scmp.lt.s32.totalorder %s16, 5
      %p255 = pnand %p253, %p254
      %p256 = pneg %p255
      // Predicated region
      $region45: #{run.3} parent=5 // pred_check
        _
      $region46: #{run.3} parent=5 // pred_check_branch
        %258 = sbr.rel (%p255) target = $region48
      $region47: #{run.3} parent=5 // pred_region
        %s259 = ssub.s32 %s16, 1
        %p260 = scmp.lt.s32.totalorder %s25, 1
        %s261 = scalar_select %p260, %s25, 1
        %s262 = smul.addr %s261, 32
        %s263 = smul.addr %s262, 4
        %s264 = scalar_lea.vmem %s0, %s263
        %p265 = pneg %p54
        %p266 = pneg %p51
        %p267 = pneg %p75
        %p268 = pneg %p72
        %p269 = pneg %p96
        %p270 = pneg %p93
        %p271 = pneg %p117
        %p272 = pneg %p114
        %p273 = pneg %p138
        %p274 = pneg %p135
        %p275 = pneg %p159
        %p276 = pneg %p156
        %p277 = pneg %p180
        %p278 = pneg %p177
        %p279 = pneg %p208
        %p280 = pneg %p205
        %s281 = sand.u32 %s195, 1
        %s282 = scalar_lea.sflag [#allocation4], %s281
        %s283 = sand.u32 %s195, 1
        %s284 = smul.addr %s283, 64
        %s285 = scalar_lea.vmem [#allocation3], %s284
        %p286 = scmp.lt.s32.totalorder %s25, 1
        %s287 = scalar_select %p286, %s25, 1
        %s288 = smul.addr %s287, 32
        %s289 = smul.addr %s288, 4
        %s290 = scalar_lea.vmem %s0, %s289
        %s291 = smul.u32 8, %s26
        %vm293 = vcmask 125952
        %294 = vst.msk [vmem:[#allocation2] sm:$0xf] %vm293, 0
        %295 = vst.msk [vmem:[#allocation2 + $0x4] sm:$0xf] %vm293, 0
        %vm296 = vcmask 122880
        %297 = vst.msk [vmem:[#allocation2 + $0x8] sm:$0x1] %vm296, 0
        %298 = vst.msk [vmem:[#allocation2 + $0xc] sm:$0xf] %vm293, 0
        %299 = vst.msk [vmem:[#allocation2 + $0x10] sm:$0xf] %vm293, 0
        %300 = vst.msk [vmem:[#allocation2 + $0x14] sm:$0x1] %vm296, 0
        %301 = vst.msk [vmem:[#allocation2 + $0x18] sm:$0xf] %vm293, 0
        %302 = vst.msk [vmem:[#allocation2 + $0x1c] sm:$0xf] %vm293, 0
        %303 = vst.msk [vmem:[#allocation2 + $0x20] sm:$0x1] %vm296, 0
        %304 = vst.msk [vmem:[#allocation2 + $0x24] sm:$0xf] %vm293, 0
        %305 = vst.msk [vmem:[#allocation2 + $0x28] sm:$0xf] %vm293, 0
        %306 = vst.msk [vmem:[#allocation2 + $0x2c] sm:$0x1] %vm296, 0
        %307 = vst.msk [vmem:[#allocation2 + $0x30] sm:$0xf] %vm293, 0
        %308 = vst.msk [vmem:[#allocation2 + $0x34] sm:$0xf] %vm293, 0
        %309 = vst.msk [vmem:[#allocation2 + $0x38] sm:$0x1] %vm296, 0
        %310 = vst.msk [vmem:[#allocation2 + $0x3c] sm:$0xf] %vm293, 0
        %311 = vst.msk [vmem:[#allocation2 + $0x40] sm:$0xf] %vm293, 0
        %312 = vst.msk [vmem:[#allocation2 + $0x44] sm:$0x1] %vm296, 0
        %313 = vst.msk [vmem:[#allocation2 + $0x48] sm:$0xf] %vm293, 0
        %314 = vst.msk [vmem:[#allocation2 + $0x4c] sm:$0xf] %vm293, 0
        %315 = vst.msk [vmem:[#allocation2 + $0x50] sm:$0x1] %vm296, 0
        %316 = vst.msk [vmem:[#allocation2 + $0x54] sm:$0xf] %vm293, 0
        %317 = vst.msk [vmem:[#allocation2 + $0x58] sm:$0xf] %vm293, 0
        %318 = vst.msk [vmem:[#allocation2 + $0x5c] sm:$0x1] %vm296, 0
        %319 = vst.msk [vmem:[#allocation2 + $0x60] sm:$0xf] %vm293, 0
        %320 = vst.msk [vmem:[#allocation2 + $0x64] sm:$0xf] %vm293, 0
        %321 = vst.msk [vmem:[#allocation2 + $0x68] sm:$0x1] %vm296, 0
        %322 = vst.msk [vmem:[#allocation2 + $0x6c] sm:$0xf] %vm293, 0
        %323 = vst.msk [vmem:[#allocation2 + $0x70] sm:$0xf] %vm293, 0
        %324 = vst.msk [vmem:[#allocation2 + $0x74] sm:$0x1] %vm296, 0
        %s325 = smul.u32 %s26, 8
        %s326 = smul.u32 %s325, 2
        %s327 = smul.addr %s326, 4
        %s328 = scalar_lea.vmem %s290, %s327
        %v329 = vld [vmem:[%s328] sm:$0xf]
        %v330 = vld [vmem:[%s328 + $0x4] sm:$0xf]
        %v331 = vld [vmem:[%s328 + $0x8] sm:$0xf]
        %v332 = vld [vmem:[%s328 + $0xc] sm:$0xf]
        %v333 = vld [vmem:[%s328 + $0x10] sm:$0xf]
        %v334 = vld [vmem:[%s328 + $0x14] sm:$0xf]
        %v335 = vld [vmem:[%s328 + $0x18] sm:$0xf]
        %v336 = vld [vmem:[%s328 + $0x1c] sm:$0xf]
        %v337 = vld [vmem:[%s328 + $0x20] sm:$0xf]
        %v338 = vld [vmem:[%s328 + $0x24] sm:$0xf]
        %v339 = vld [vmem:[%s328 + $0x28] sm:$0xf]
        %v340 = vld [vmem:[%s328 + $0x2c] sm:$0xf]
        %v341 = vld [vmem:[%s328 + $0x30] sm:$0xf]
        %v342 = vld [vmem:[%s328 + $0x34] sm:$0xf]
        %v343 = vld [vmem:[%s328 + $0x38] sm:$0xf]
        %v344 = vld [vmem:[%s328 + $0x3c] sm:$0xf]
        %v345 = vld [vmem:[%s1] sm:$0xf]
        %v346 = vld [vmem:[%s1 + $0x4] sm:$0xf]
        %v347 = vld [vmem:[%s1 + $0x8] sm:$0xf]
        %v348 = vld [vmem:[%s1 + $0xc] sm:$0xf]
        %v349 = vld [vmem:[%s1 + $0x10] sm:$0xf]
        %v350 = vld [vmem:[%s1 + $0x14] sm:$0xf]
        %v351 = vld [vmem:[%s1 + $0x18] sm:$0xf]
        %v352 = vld [vmem:[%s1 + $0x1c] sm:$0xf]
        %v353 = vld [vmem:[%s2] sm:$0x1]
        %v355 = vlaneseq
        %v356 = vshrl.u32 %v355, 7
        %v357 = vsub.s32 0, %v356
        %v358 = vrot.slane %v353, %v357
        %v376 = vunpack.c.l.b16 %v329
        %v377 = vunpack.c.l.b16 %v330
        %v378 = vunpack.c.l.b16 %v331
        %v379 = vunpack.c.l.b16 %v332
        %v380 = vunpack.c.l.b16 %v333
        %v381 = vunpack.c.l.b16 %v334
        %v382 = vunpack.c.l.b16 %v335
        %v383 = vunpack.c.l.b16 %v336
        %v384 = vunpack.c.l.b16 %v337
        %v385 = vunpack.c.l.b16 %v338
        %v386 = vunpack.c.l.b16 %v339
        %v387 = vunpack.c.l.b16 %v340
        %v388 = vunpack.c.l.b16 %v341
        %v389 = vunpack.c.l.b16 %v342
        %v390 = vunpack.c.l.b16 %v343
        %v391 = vunpack.c.l.b16 %v344
        %v392 = vpack.c.b16 %v377, %v376
        %v393 = vpack.c.b16 %v379, %v378
        %v394 = vpack.c.b16 %v381, %v380
        %v395 = vpack.c.b16 %v383, %v382
        %v396 = vpack.c.b16 %v385, %v384
        %v397 = vpack.c.b16 %v387, %v386
        %v398 = vpack.c.b16 %v389, %v388
        %v399 = vpack.c.b16 %v391, %v390
        %v408 = vunpack.c.l.b16 %v345
        %v409 = vunpack.c.l.b16 %v346
        %v410 = vunpack.c.l.b16 %v347
        %v411 = vunpack.c.l.b16 %v348
        %v412 = vunpack.c.l.b16 %v349
        %v413 = vunpack.c.l.b16 %v350
        %v414 = vunpack.c.l.b16 %v351
        %v415 = vunpack.c.l.b16 %v352
        %v416 = vpack.c.b16 %v409, %v408
        %v417 = vpack.c.b16 %v411, %v410
        %v418 = vpack.c.b16 %v413, %v412
        %v419 = vpack.c.b16 %v415, %v414
        %vm424 = vcmask 523264
        %v426 = vsel %vm424, %v392, 0
        %v429 = vsel %vm424, %v393, 0
        %v432 = vsel %vm424, %v394, 0
        %v435 = vsel %vm424, %v395, 0
        %v438 = vsel %vm424, %v396, 0
        %v441 = vsel %vm424, %v397, 0
        %v444 = vsel %vm424, %v398, 0
        %v447 = vsel %vm424, %v399, 0
        %449 = vmatprep.subr.bf16.mxu0 0
        %450 = vmatpush1.bf16.msra.mxu0 %v416
        %451 = vmatprep.subr.bf16.mxu0 0
        %452 = vmatpush1.bf16.msra.mxu0 %v417
        %453 = vmatprep.subr.bf16.mxu0 0
        %454 = vmatpush1.bf16.msra.mxu0 %v418
        %455 = vmatprep.subr.bf16.mxu0 0
        %456 = vmatpush1.bf16.msra.mxu0 %v419
        %457 = vmatprep.subr.bf16.mxu0 0
        %458 = vmatpush1.bf16.msra.mxu0 0
        %459 = vmatprep.subr.bf16.mxu0 0
        %460 = vmatpush1.bf16.msra.mxu0 0
        %461 = vmatprep.subr.bf16.mxu0 0
        %462 = vmatpush1.bf16.msra.mxu0 0
        %463 = vmatprep.subr.bf16.mxu0 0
        %464 = vmatpush1.bf16.msra.mxu0 0
        %465 = vmatprep.subr.bf16.mxu0 0
        %466 = vmatpush1.bf16.msra.mxu0 0
        %467 = vmatprep.subr.bf16.mxu0 0
        %468 = vmatpush1.bf16.msra.mxu0 0
        %469 = vmatprep.subr.bf16.mxu0 0
        %470 = vmatpush1.bf16.msra.mxu0 0
        %471 = vmatprep.subr.bf16.mxu0 0
        %472 = vmatpush1.bf16.msra.mxu0 0
        %473 = vmatprep.subr.bf16.mxu0 0
        %474 = vmatpush1.bf16.msra.mxu0 0
        %475 = vmatprep.subr.bf16.mxu0 0
        %476 = vmatpush1.bf16.msra.mxu0 0
        %477 = vmatprep.subr.bf16.mxu0 0
        %478 = vmatpush1.bf16.msra.mxu0 0
        %479 = vmatprep.subr.bf16.mxu0 0
        %480 = vmatpush1.bf16.msra.mxu0 0
        %481 = vmatprep.mubr.bf16.mxu0 0
        %482 = vmatmul.mubr.bf16.gmra.mrb[0].mxu0 %v426
        %v483 = vpop.f32.mrb[0].mxu0
        %v484 = vadd.f32 %v358, %v483
        %v485 = vpop.f32.mrb[0].mxu0
        %v486 = vpop.f32.mrb[0].mxu0
        %v487 = vadd.f32 %v358, %v486
        %v488 = vpop.f32.mrb[0].mxu0
        %489 = vmatprep.mubr.bf16.mxu0 0
        %490 = vmatmul.mubr.bf16.gmra.mrb[0].mxu0 %v429
        %v491 = vpop.f32.mrb[0].mxu0
        %v492 = vadd.f32 %v358, %v491
        %v493 = vpop.f32.mrb[0].mxu0
        %v494 = vpop.f32.mrb[0].mxu0
        %v495 = vadd.f32 %v358, %v494
        %v496 = vpop.f32.mrb[0].mxu0
        %497 = vmatprep.mubr.bf16.mxu0 0
        %498 = vmatmul.mubr.bf16.gmra.mrb[0].mxu0 %v432
        %v499 = vpop.f32.mrb[0].mxu0
        %v500 = vadd.f32 %v358, %v499
        %v501 = vpop.f32.mrb[0].mxu0
        %v502 = vpop.f32.mrb[0].mxu0
        %v503 = vadd.f32 %v358, %v502
        %v504 = vpop.f32.mrb[0].mxu0
        %505 = vmatprep.mubr.bf16.mxu0 0
        %506 = vmatmul.mubr.bf16.gmra.mrb[0].mxu0 %v435
        %v507 = vpop.f32.mrb[0].mxu0
        %v508 = vadd.f32 %v358, %v507
        %v509 = vpop.f32.mrb[0].mxu0
        %v510 = vpop.f32.mrb[0].mxu0
        %v511 = vadd.f32 %v358, %v510
        %v512 = vpop.f32.mrb[0].mxu0
        %513 = vmatprep.mubr.bf16.mxu0 0
        %514 = vmatmul.mubr.bf16.gmra.mrb[0].mxu0 %v438
        %v515 = vpop.f32.mrb[0].mxu0
        %v516 = vadd.f32 %v358, %v515
        %v517 = vpop.f32.mrb[0].mxu0
        %v518 = vpop.f32.mrb[0].mxu0
        %v519 = vadd.f32 %v358, %v518
        %v520 = vpop.f32.mrb[0].mxu0
        %521 = vmatprep.mubr.bf16.mxu0 0
        %522 = vmatmul.mubr.bf16.gmra.mrb[0].mxu0 %v441
        %v523 = vpop.f32.mrb[0].mxu0
        %v524 = vadd.f32 %v358, %v523
        %v525 = vpop.f32.mrb[0].mxu0
        %v526 = vpop.f32.mrb[0].mxu0
        %v527 = vadd.f32 %v358, %v526
        %v528 = vpop.f32.mrb[0].mxu0
        %529 = vmatprep.mubr.bf16.mxu0 0
        %530 = vmatmul.mubr.bf16.gmra.mrb[0].mxu0 %v444
        %v531 = vpop.f32.mrb[0].mxu0
        %v532 = vadd.f32 %v358, %v531
        %v533 = vpop.f32.mrb[0].mxu0
        %v534 = vpop.f32.mrb[0].mxu0
        %v535 = vadd.f32 %v358, %v534
        %v536 = vpop.f32.mrb[0].mxu0
        %537 = vmatprep.mubr.bf16.mxu0 0
        %538 = vmatmul.mubr.bf16.gmra.mrb[0].mxu0 %v447
        %v539 = vpop.f32.mrb[0].mxu0
        %v540 = vadd.f32 %v358, %v539
        %v541 = vpop.f32.mrb[0].mxu0
        %v542 = vpop.f32.mrb[0].mxu0
        %v543 = vadd.f32 %v358, %v542
        %v544 = vpop.f32.mrb[0].mxu0
        %545 = vdwg.mxu0
        %v546 = vmax.f32 %v484, 0.0
        %v547 = vmax.f32 %v487, 0.0
        %v548 = vmax.f32 %v492, 0.0
        %v549 = vmax.f32 %v495, 0.0
        %v550 = vmax.f32 %v500, 0.0
        %v551 = vmax.f32 %v503, 0.0
        %v552 = vmax.f32 %v508, 0.0
        %v553 = vmax.f32 %v511, 0.0
        %v554 = vmax.f32 %v516, 0.0
        %v555 = vmax.f32 %v519, 0.0
        %v556 = vmax.f32 %v524, 0.0
        %v557 = vmax.f32 %v527, 0.0
        %v558 = vmax.f32 %v532, 0.0
        %v559 = vmax.f32 %v535, 0.0
        %v560 = vmax.f32 %v540, 0.0
        %v561 = vmax.f32 %v543, 0.0
        %v562 = vpack.c.bf16 %v547, %v546
        %v563 = vpack.c.bf16 %v549, %v548
        %v564 = vpack.c.bf16 %v551, %v550
        %v565 = vpack.c.bf16 %v553, %v552
        %v566 = vpack.c.bf16 %v555, %v554
        %v567 = vpack.c.bf16 %v557, %v556
        %v568 = vpack.c.bf16 %v559, %v558
        %v569 = vpack.c.bf16 %v561, %v560
        %v578 = vunpack.c.l.b16 %v562
        %v579 = vunpack.c.h.b16 %v562
        %v580 = vunpack.c.l.b16 %v563
        %v581 = vunpack.c.h.b16 %v563
        %v582 = vunpack.c.l.b16 %v564
        %v583 = vunpack.c.h.b16 %v564
        %v584 = vunpack.c.l.b16 %v565
        %v585 = vunpack.c.h.b16 %v565
        %v586 = vunpack.c.l.b16 %v566
        %v587 = vunpack.c.h.b16 %v566
        %v588 = vunpack.c.l.b16 %v567
        %v589 = vunpack.c.h.b16 %v567
        %v590 = vunpack.c.l.b16 %v568
        %v591 = vunpack.c.h.b16 %v568
        %v592 = vunpack.c.l.b16 %v569
        %v593 = vunpack.c.h.b16 %v569
        %v594 = vpack.c.b16 %v578, %v578
        %v595 = vpack.c.b16 %v579, %v579
        %v596 = vpack.c.b16 %v580, %v580
        %v597 = vpack.c.b16 %v581, %v581
        %v598 = vpack.c.b16 %v582, %v582
        %v599 = vpack.c.b16 %v583, %v583
        %v600 = vpack.c.b16 %v584, %v584
        %v601 = vpack.c.b16 %v585, %v585
        %v602 = vpack.c.b16 %v586, %v586
        %v603 = vpack.c.b16 %v587, %v587
        %v604 = vpack.c.b16 %v588, %v588
        %v605 = vpack.c.b16 %v589, %v589
        %v606 = vpack.c.b16 %v590, %v590
        %v607 = vpack.c.b16 %v591, %v591
        %v608 = vpack.c.b16 %v592, %v592
        %v609 = vpack.c.b16 %v593, %v593
        %vm610 = vsmask.f32 256
        %vm611 = vsmask.f32 4368
        %vm612 = vmor %vm610, %vm611
        %v614 = vshrl.u32 %v594, 16
        %v616 = vrot.slane %v614, 7
        %v617 = vshll.u32 %v594, 16
        %v619 = vor.u32 %v616, %v617
        %v620 = vrot.slane %v616, 4
        %v622 = vshrl.u32 %v595, 16
        %v624 = vrot.slane %v622, 7
        %v625 = vshll.u32 %v595, 16
        %v627 = vor.u32 %v624, %v625
        %v628 = vsel %vm612, %v620, %v627
        %v629 = vrot.slane %v624, 4
        %v631 = vshrl.u32 %v596, 16
        %v633 = vrot.slane %v631, 7
        %v634 = vshll.u32 %v596, 16
        %v636 = vor.u32 %v633, %v634
        %v637 = vrot.slane %v633, 4
        %v639 = vshrl.u32 %v597, 16
        %v641 = vrot.slane %v639, 7
        %v642 = vshll.u32 %v597, 16
        %v644 = vor.u32 %v641, %v642
        %v645 = vsel %vm612, %v637, %v644
        %v646 = vrot.slane %v641, 4
        %v648 = vshrl.u32 %v598, 16
        %v650 = vrot.slane %v648, 7
        %v651 = vshll.u32 %v598, 16
        %v653 = vor.u32 %v650, %v651
        %v654 = vrot.slane %v650, 4
        %v656 = vshrl.u32 %v599, 16
        %v658 = vrot.slane %v656, 7
        %v659 = vshll.u32 %v599, 16
        %v661 = vor.u32 %v658, %v659
        %v662 = vsel %vm612, %v654, %v661
        %v663 = vrot.slane %v658, 4
        %v665 = vshrl.u32 %v600, 16
        %v667 = vrot.slane %v665, 7
        %v668 = vshll.u32 %v600, 16
        %v670 = vor.u32 %v667, %v668
        %v671 = vrot.slane %v667, 4
        %v673 = vshrl.u32 %v601, 16
        %v675 = vrot.slane %v673, 7
        %v676 = vshll.u32 %v601, 16
        %v678 = vor.u32 %v675, %v676
        %v679 = vsel %vm612, %v671, %v678
        %v680 = vrot.slane %v675, 4
        %v682 = vshrl.u32 %v602, 16
        %v684 = vrot.slane %v682, 7
        %v685 = vshll.u32 %v602, 16
        %v687 = vor.u32 %v684, %v685
        %v688 = vrot.slane %v684, 4
        %v690 = vshrl.u32 %v603, 16
        %v692 = vrot.slane %v690, 7
        %v693 = vshll.u32 %v603, 16
        %v695 = vor.u32 %v692, %v693
        %v696 = vsel %vm612, %v688, %v695
        %v697 = vrot.slane %v692, 4
        %v699 = vshrl.u32 %v604, 16
        %v701 = vrot.slane %v699, 7
        %v702 = vshll.u32 %v604, 16
        %v704 = vor.u32 %v701, %v702
        %v705 = vrot.slane %v701, 4
        %v707 = vshrl.u32 %v605, 16
        %v709 = vrot.slane %v707, 7
        %v710 = vshll.u32 %v605, 16
        %v712 = vor.u32 %v709, %v710
        %v713 = vsel %vm612, %v705, %v712
        %v714 = vrot.slane %v709, 4
        %v716 = vshrl.u32 %v606, 16
        %v718 = vrot.slane %v716, 7
        %v719 = vshll.u32 %v606, 16
        %v721 = vor.u32 %v718, %v719
        %v722 = vrot.slane %v718, 4
        %v724 = vshrl.u32 %v607, 16
        %v726 = vrot.slane %v724, 7
        %v727 = vshll.u32 %v607, 16
        %v729 = vor.u32 %v726, %v727
        %v730 = vsel %vm612, %v722, %v729
        %v731 = vrot.slane %v726, 4
        %v733 = vshrl.u32 %v608, 16
        %v735 = vrot.slane %v733, 7
        %v736 = vshll.u32 %v608, 16
        %v738 = vor.u32 %v735, %v736
        %v739 = vrot.slane %v735, 4
        %v741 = vshrl.u32 %v609, 16
        %v743 = vrot.slane %v741, 7
        %v744 = vshll.u32 %v609, 16
        %v746 = vor.u32 %v743, %v744
        %v747 = vsel %vm612, %v739, %v746
        %v748 = vrot.slane %v743, 4
        %s773 = scalar_lea.vmem [#allocation2], 12
        %vm774 = vcmask 125952
        %vm775 = vsmask.f32 7938
        %vm776 = vmand %vm774, %vm775
        %v777 = vld [vmem:[%s773] sm:$0xf]
        %v778 = vsel %vm776, %v619, %v777
        %779 = vst [vmem:[%s773] sm:$0xf] %v778
        %780 = vst.msk [vmem:[%s773 + $0x4] sm:$0xf] %vm293, %v628
        %vm781 = vcmask 122880
        %vm782 = vmand %vm781, %vm610
        %v783 = vld [vmem:[%s773 + $0x8] sm:$0x1]
        %v784 = vsel %vm782, %v629, %v783
        %785 = vst [vmem:[%s773 + $0x8] sm:$0x1] %v784
        %v786 = vld [vmem:[%s773 + $0xc] sm:$0xf]
        %v787 = vsel %vm776, %v636, %v786
        %788 = vst [vmem:[%s773 + $0xc] sm:$0xf] %v787
        %789 = vst.msk [vmem:[%s773 + $0x10] sm:$0xf] %vm293, %v645
        %v790 = vld [vmem:[%s773 + $0x14] sm:$0x1]
        %v791 = vsel %vm782, %v646, %v790
        %792 = vst [vmem:[%s773 + $0x14] sm:$0x1] %v791
        %v793 = vld [vmem:[%s773 + $0x18] sm:$0xf]
        %v794 = vsel %vm776, %v653, %v793
        %795 = vst [vmem:[%s773 + $0x18] sm:$0xf] %v794
        %796 = vst.msk [vmem:[%s773 + $0x1c] sm:$0xf] %vm293, %v662
        %v797 = vld [vmem:[%s773 + $0x20] sm:$0x1]
        %v798 = vsel %vm782, %v663, %v797
        %799 = vst [vmem:[%s773 + $0x20] sm:$0x1] %v798
        %v800 = vld [vmem:[%s773 + $0x24] sm:$0xf]
        %v801 = vsel %vm776, %v670, %v800
        %802 = vst [vmem:[%s773 + $0x24] sm:$0xf] %v801
        %803 = vst.msk [vmem:[%s773 + $0x28] sm:$0xf] %vm293, %v679
        %v804 = vld [vmem:[%s773 + $0x2c] sm:$0x1]
        %v805 = vsel %vm782, %v680, %v804
        %806 = vst [vmem:[%s773 + $0x2c] sm:$0x1] %v805
        %v807 = vld [vmem:[%s773 + $0x30] sm:$0xf]
        %v808 = vsel %vm776, %v687, %v807
        %809 = vst [vmem:[%s773 + $0x30] sm:$0xf] %v808
        %810 = vst.msk [vmem:[%s773 + $0x34] sm:$0xf] %vm293, %v696
        %v811 = vld [vmem:[%s773 + $0x38] sm:$0x1]
        %v812 = vsel %vm782, %v697, %v811
        %813 = vst [vmem:[%s773 + $0x38] sm:$0x1] %v812
        %v814 = vld [vmem:[%s773 + $0x3c] sm:$0xf]
        %v815 = vsel %vm776, %v704, %v814
        %816 = vst [vmem:[%s773 + $0x3c] sm:$0xf] %v815
        %817 = vst.msk [vmem:[%s773 + $0x40] sm:$0xf] %vm293, %v713
        %v818 = vld [vmem:[%s773 + $0x44] sm:$0x1]
        %v819 = vsel %vm782, %v714, %v818
        %820 = vst [vmem:[%s773 + $0x44] sm:$0x1] %v819
        %v821 = vld [vmem:[%s773 + $0x48] sm:$0xf]
        %v822 = vsel %vm776, %v721, %v821
        %823 = vst [vmem:[%s773 + $0x48] sm:$0xf] %v822
        %824 = vst.msk [vmem:[%s773 + $0x4c] sm:$0xf] %vm293, %v730
        %v825 = vld [vmem:[%s773 + $0x50] sm:$0x1]
        %v826 = vsel %vm782, %v731, %v825
        %827 = vst [vmem:[%s773 + $0x50] sm:$0x1] %v826
        %v828 = vld [vmem:[%s773 + $0x54] sm:$0xf]
        %v829 = vsel %vm776, %v738, %v828
        %830 = vst [vmem:[%s773 + $0x54] sm:$0xf] %v829
        %831 = vst.msk [vmem:[%s773 + $0x58] sm:$0xf] %vm293, %v747
        %v832 = vld [vmem:[%s773 + $0x5c] sm:$0x1]
        %v833 = vsel %vm782, %v748, %v832
        %834 = vst [vmem:[%s773 + $0x5c] sm:$0x1] %v833
        %p835 = scmp.gt.s32.totalorder %s26, 0
        // Predicated region
        $region49: #{run.3} parent=47 // pred_check
          %p836 = pneg %p835
        $region50: #{run.3} parent=47 // pred_check_branch
          %838 = sbr.rel (%p836) target = $region52
        $region51: #{run.3} parent=47 // pred_region
          %s839 = ssub.s32 %s325, 1
          %s840 = smul.u32 %s839, 2
          %s841 = smul.addr %s840, 4
          %s842 = scalar_lea.vmem %s290, %s841
          %v843 = vld [vmem:[%s842] sm:$0xf]
          %v844 = vld [vmem:[%s842 + $0x4] sm:$0xf]
          %v845 = vld [vmem:[%s1] sm:$0xf]
          %v846 = vld [vmem:[%s1 + $0x4] sm:$0xf]
          %v847 = vld [vmem:[%s1 + $0x8] sm:$0xf]
          %v848 = vld [vmem:[%s1 + $0xc] sm:$0xf]
          %v849 = vld [vmem:[%s1 + $0x10] sm:$0xf]
          %v850 = vld [vmem:[%s1 + $0x14] sm:$0xf]
          %v851 = vld [vmem:[%s1 + $0x18] sm:$0xf]
          %v852 = vld [vmem:[%s1 + $0x1c] sm:$0xf]
          %v853 = vld [vmem:[%s2] sm:$0x1]
          %v855 = vlaneseq
          %v856 = vshrl.u32 %v855, 7
          %v857 = vsub.s32 0, %v856
          %v858 = vrot.slane %v853, %v857
          %v862 = vunpack.c.l.b16 %v843
          %v863 = vunpack.c.l.b16 %v844
          %v864 = vpack.c.b16 %v863, %v862
          %v873 = vunpack.c.l.b16 %v845
          %v874 = vunpack.c.l.b16 %v846
          %v875 = vunpack.c.l.b16 %v847
          %v876 = vunpack.c.l.b16 %v848
          %v877 = vunpack.c.l.b16 %v849
          %v878 = vunpack.c.l.b16 %v850
          %v879 = vunpack.c.l.b16 %v851
          %v880 = vunpack.c.l.b16 %v852
          %v881 = vpack.c.b16 %v874, %v873
          %v882 = vpack.c.b16 %v876, %v875
          %v883 = vpack.c.b16 %v878, %v877
          %v884 = vpack.c.b16 %v880, %v879
          %v890 = vsel %vm424, %v864, 0
          %892 = vmatprep.subr.bf16.mxu0 0
          %893 = vmatpush1.bf16.msra.mxu0 %v881
          %894 = vmatprep.subr.bf16.mxu0 0
          %895 = vmatpush1.bf16.msra.mxu0 %v882
          %896 = vmatprep.subr.bf16.mxu0 0
          %897 = vmatpush1.bf16.msra.mxu0 %v883
          %898 = vmatprep.subr.bf16.mxu0 0
          %899 = vmatpush1.bf16.msra.mxu0 %v884
          %900 = vmatprep.subr.bf16.mxu0 0
          %901 = vmatpush1.bf16.msra.mxu0 0
          %902 = vmatprep.subr.bf16.mxu0 0
          %903 = vmatpush1.bf16.msra.mxu0 0
          %904 = vmatprep.subr.bf16.mxu0 0
          %905 = vmatpush1.bf16.msra.mxu0 0
          %906 = vmatprep.subr.bf16.mxu0 0
          %907 = vmatpush1.bf16.msra.mxu0 0
          %908 = vmatprep.subr.bf16.mxu0 0
          %909 = vmatpush1.bf16.msra.mxu0 0
          %910 = vmatprep.subr.bf16.mxu0 0
          %911 = vmatpush1.bf16.msra.mxu0 0
          %912 = vmatprep.subr.bf16.mxu0 0
          %913 = vmatpush1.bf16.msra.mxu0 0
          %914 = vmatprep.subr.bf16.mxu0 0
          %915 = vmatpush1.bf16.msra.mxu0 0
          %916 = vmatprep.subr.bf16.mxu0 0
          %917 = vmatpush1.bf16.msra.mxu0 0
          %918 = vmatprep.subr.bf16.mxu0 0
          %919 = vmatpush1.bf16.msra.mxu0 0
          %920 = vmatprep.subr.bf16.mxu0 0
          %921 = vmatpush1.bf16.msra.mxu0 0
          %922 = vmatprep.subr.bf16.mxu0 0
          %923 = vmatpush1.bf16.msra.mxu0 0
          %924 = vmatprep.mubr.bf16.mxu0 0
          %925 = vmatmul.mubr.bf16.gmra.mrb[0].mxu0 %v890
          %v926 = vpop.f32.mrb[0].mxu0
          %v927 = vadd.f32 %v858, %v926
          %v928 = vpop.f32.mrb[0].mxu0
          %v929 = vpop.f32.mrb[0].mxu0
          %v930 = vadd.f32 %v858, %v929
          %v931 = vpop.f32.mrb[0].mxu0
          %932 = vdwg.mxu0
          %v933 = vmax.f32 %v927, 0.0
          %v934 = vmax.f32 %v930, 0.0
          %v935 = vpack.c.bf16 %v934, %v933
          %v937 = vunpack.c.l.b16 %v935
          %v938 = vunpack.c.h.b16 %v935
          %v939 = vpack.c.b16 %v937, %v937
          %v940 = vpack.c.b16 %v938, %v938
          %v942 = vshrl.u32 %v939, 16
          %v944 = vrot.slane %v942, 7
          %v945 = vshll.u32 %v939, 16
          %v947 = vor.u32 %v944, %v945
          %v948 = vrot.slane %v944, 4
          %v950 = vshrl.u32 %v940, 16
          %v952 = vrot.slane %v950, 7
          %v953 = vshll.u32 %v940, 16
          %v955 = vor.u32 %v952, %v953
          %v956 = vsel %vm612, %v948, %v955
          %v957 = vrot.slane %v952, 4
          %v961 = vld [vmem:[#allocation2] sm:$0xf]
          %v962 = vsel %vm776, %v947, %v961
          %963 = vst [vmem:[#allocation2] sm:$0xf] %v962
          %964 = vst.msk [vmem:[#allocation2 + $0x4] sm:$0xf] %vm293, %v956
          %v965 = vld [vmem:[#allocation2 + $0x8] sm:$0x1]
          %v966 = vsel %vm782, %v957, %v965
          %967 = vst [vmem:[#allocation2 + $0x8] sm:$0x1] %v966
        $region52: #{run.3} parent=47 // pred_fallthru
          _
        %s968 = sadd.s32 %s325, 8
        %p969 = scmp.lt.s32.totalorder %s968, 16
        // Predicated region
        $region53: #{run.3} parent=47 // pred_check
          %p970 = pneg %p969
        $region54: #{run.3} parent=47 // pred_check_branch
          %972 = sbr.rel (%p970) target = $region56
        $region55: #{run.3} parent=47 // pred_region
          %s973 = smul.u32 %s968, 2
          %s974 = smul.addr %s973, 4
          %s975 = scalar_lea.vmem %s290, %s974
          %v976 = vld [vmem:[%s975] sm:$0xf]
          %v977 = vld [vmem:[%s975 + $0x4] sm:$0xf]
          %v978 = vld [vmem:[%s1] sm:$0xf]
          %v979 = vld [vmem:[%s1 + $0x4] sm:$0xf]
          %v980 = vld [vmem:[%s1 + $0x8] sm:$0xf]
          %v981 = vld [vmem:[%s1 + $0xc] sm:$0xf]
          %v982 = vld [vmem:[%s1 + $0x10] sm:$0xf]
          %v983 = vld [vmem:[%s1 + $0x14] sm:$0xf]
          %v984 = vld [vmem:[%s1 + $0x18] sm:$0xf]
          %v985 = vld [vmem:[%s1 + $0x1c] sm:$0xf]
          %v986 = vld [vmem:[%s2] sm:$0x1]
          %v988 = vlaneseq
          %v989 = vshrl.u32 %v988, 7
          %v990 = vsub.s32 0, %v989
          %v991 = vrot.slane %v986, %v990
          %v995 = vunpack.c.l.b16 %v976
          %v996 = vunpack.c.l.b16 %v977
          %v997 = vpack.c.b16 %v996, %v995
          %v1006 = vunpack.c.l.b16 %v978
          %v1007 = vunpack.c.l.b16 %v979
          %v1008 = vunpack.c.l.b16 %v980
          %v1009 = vunpack.c.l.b16 %v981
          %v1010 = vunpack.c.l.b16 %v982
          %v1011 = vunpack.c.l.b16 %v983
          %v1012 = vunpack.c.l.b16 %v984
          %v1013 = vunpack.c.l.b16 %v985
          %v1014 = vpack.c.b16 %v1007, %v1006
          %v1015 = vpack.c.b16 %v1009, %v1008
          %v1016 = vpack.c.b16 %v1011, %v1010
          %v1017 = vpack.c.b16 %v1013, %v1012
          %v1023 = vsel %vm424, %v997, 0
          %1025 = vmatprep.subr.bf16.mxu0 0
          %1026 = vmatpush1.bf16.msra.mxu0 %v1014
          %1027 = vmatprep.subr.bf16.mxu0 0
          %1028 = vmatpush1.bf16.msra.mxu0 %v1015
          %1029 = vmatprep.subr.bf16.mxu0 0
          %1030 = vmatpush1.bf16.msra.mxu0 %v1016
          %1031 = vmatprep.subr.bf16.mxu0 0
          %1032 = vmatpush1.bf16.msra.mxu0 %v1017
          %1033 = vmatprep.subr.bf16.mxu0 0
          %1034 = vmatpush1.bf16.msra.mxu0 0
          %1035 = vmatprep.subr.bf16.mxu0 0
          %1036 = vmatpush1.bf16.msra.mxu0 0
          %1037 = vmatprep.subr.bf16.mxu0 0
          %1038 = vmatpush1.bf16.msra.mxu0 0
          %1039 = vmatprep.subr.bf16.mxu0 0
          %1040 = vmatpush1.bf16.msra.mxu0 0
          %1041 = vmatprep.subr.bf16.mxu0 0
          %1042 = vmatpush1.bf16.msra.mxu0 0
          %1043 = vmatprep.subr.bf16.mxu0 0
          %1044 = vmatpush1.bf16.msra.mxu0 0
          %1045 = vmatprep.subr.bf16.mxu0 0
          %1046 = vmatpush1.bf16.msra.mxu0 0
          %1047 = vmatprep.subr.bf16.mxu0 0
          %1048 = vmatpush1.bf16.msra.mxu0 0
          %1049 = vmatprep.subr.bf16.mxu0 0
          %1050 = vmatpush1.bf16.msra.mxu0 0
          %1051 = vmatprep.subr.bf16.mxu0 0
          %1052 = vmatpush1.bf16.msra.mxu0 0
          %1053 = vmatprep.subr.bf16.mxu0 0
          %1054 = vmatpush1.bf16.msra.mxu0 0
          %1055 = vmatprep.subr.bf16.mxu0 0
          %1056 = vmatpush1.bf16.msra.mxu0 0
          %1057 = vmatprep.mubr.bf16.mxu0 0
          %1058 = vmatmul.mubr.bf16.gmra.mrb[0].mxu0 %v1023
          %v1059 = vpop.f32.mrb[0].mxu0
          %v1060 = vadd.f32 %v991, %v1059
          %v1061 = vpop.f32.mrb[0].mxu0
          %v1062 = vpop.f32.mrb[0].mxu0
          %v1063 = vadd.f32 %v991, %v1062
          %v1064 = vpop.f32.mrb[0].mxu0
          %1065 = vdwg.mxu0
          %v1066 = vmax.f32 %v1060, 0.0
          %v1067 = vmax.f32 %v1063, 0.0
          %v1068 = vpack.c.bf16 %v1067, %v1066
          %v1070 = vunpack.c.l.b16 %v1068
          %v1071 = vunpack.c.h.b16 %v1068
          %v1072 = vpack.c.b16 %v1070, %v1070
          %v1073 = vpack.c.b16 %v1071, %v1071
          %v1075 = vshrl.u32 %v1072, 16
          %v1077 = vrot.slane %v1075, 7
          %v1078 = vshll.u32 %v1072, 16
          %v1080 = vor.u32 %v1077, %v1078
          %v1081 = vrot.slane %v1077, 4
          %v1083 = vshrl.u32 %v1073, 16
          %v1085 = vrot.slane %v1083, 7
          %v1086 = vshll.u32 %v1073, 16
          %v1088 = vor.u32 %v1085, %v1086
          %v1089 = vsel %vm612, %v1081, %v1088
          %v1090 = vrot.slane %v1085, 4
          %s1094 = scalar_lea.vmem [#allocation2], 108
          %v1095 = vld [vmem:[%s1094] sm:$0xf]
          %v1096 = vsel %vm776, %v1080, %v1095
          %1097 = vst [vmem:[%s1094] sm:$0xf] %v1096
          %1098 = vst.msk [vmem:[%s1094 + $0x4] sm:$0xf] %vm293, %v1089
          %v1099 = vld [vmem:[%s1094 + $0x8] sm:$0x1]
          %v1100 = vsel %vm782, %v1090, %v1099
          %1101 = vst [vmem:[%s1094 + $0x8] sm:$0x1] %v1100
        $region56: #{run.3} parent=47 // pred_fallthru
          _
        %v1102 = vld [vmem:[#allocation2] sm:$0xf]
        %v1103 = vld [vmem:[#allocation2 + $0x4] sm:$0xf]
        %v1104 = vld [vmem:[#allocation2 + $0xc] sm:$0xf]
        %v1105 = vld [vmem:[#allocation2 + $0x10] sm:$0xf]
        %v1106 = vld [vmem:[#allocation2 + $0x18] sm:$0xf]
        %v1107 = vld [vmem:[#allocation2 + $0x1c] sm:$0xf]
        %v1108 = vld [vmem:[#allocation2 + $0x24] sm:$0xf]
        %v1109 = vld [vmem:[#allocation2 + $0x28] sm:$0xf]
        %v1110 = vld [vmem:[#allocation2 + $0x30] sm:$0xf]
        %v1111 = vld [vmem:[#allocation2 + $0x34] sm:$0xf]
        %v1112 = vld [vmem:[#allocation2 + $0x3c] sm:$0xf]
        %v1113 = vld [vmem:[#allocation2 + $0x40] sm:$0xf]
        %v1114 = vld [vmem:[#allocation2 + $0x48] sm:$0xf]
        %v1115 = vld [vmem:[#allocation2 + $0x4c] sm:$0xf]
        %v1116 = vld [vmem:[#allocation2 + $0x54] sm:$0xf]
        %v1117 = vld [vmem:[#allocation2 + $0x58] sm:$0xf]
        %v1118 = vld [vmem:[%s3] sm:$0xf]
        %v1119 = vld [vmem:[%s3 + $0x4] sm:$0xf]
        %v1120 = vld [vmem:[#allocation2 + $0x8] sm:$0x1]
        %v1121 = vld [vmem:[#allocation2 + $0x14] sm:$0x1]
        %v1122 = vld [vmem:[#allocation2 + $0x20] sm:$0x1]
        %v1123 = vld [vmem:[#allocation2 + $0x2c] sm:$0x1]
        %v1124 = vld [vmem:[#allocation2 + $0x38] sm:$0x1]
        %v1125 = vld [vmem:[#allocation2 + $0x44] sm:$0x1]
        %v1126 = vld [vmem:[#allocation2 + $0x50] sm:$0x1]
        %v1127 = vld [vmem:[#allocation2 + $0x5c] sm:$0x1]
        %vm1128 = vsmask.f32 3328
        %vm1129 = vsmask.f32 7440
        %vm1130 = vmor %vm1128, %vm1129
        %v1132 = vshrl.u32 %v1102, 16
        %v1134 = vrot.slane %v1132, 4
        %v1135 = vshll.u32 %v1102, 16
        %v1137 = vrot.slane %v1135, 5
        %v1138 = vor.u32 %v1134, %v1137
        %v1139 = vrot.slane %v1138, 4
        %v1141 = vshll.u32 %v1103, 16
        %v1143 = vrot.slane %v1141, 5
        %v1144 = vsel %vm1130, %v1139, %v1143
        %v1145 = vshrl.u32 %v1103, 16
        %v1147 = vrot.slane %v1145, 4
        %v1148 = vor.u32 %v1147, %v1143
        %v1149 = vrot.slane %v1148, 4
        %v1151 = vshll.u32 %v1120, 16
        %v1153 = vrot.slane %v1151, 5
        %v1154 = vsel %vm1130, %v1149, %v1153
        %v1156 = vshrl.u32 %v1104, 16
        %v1158 = vrot.slane %v1156, 4
        %v1159 = vshll.u32 %v1104, 16
        %v1161 = vrot.slane %v1159, 5
        %v1162 = vor.u32 %v1158, %v1161
        %v1163 = vrot.slane %v1162, 4
        %v1165 = vshll.u32 %v1105, 16
        %v1167 = vrot.slane %v1165, 5
        %v1168 = vsel %vm1130, %v1163, %v1167
        %v1169 = vshrl.u32 %v1105, 16
        %v1171 = vrot.slane %v1169, 4
        %v1172 = vor.u32 %v1171, %v1167
        %v1173 = vrot.slane %v1172, 4
        %v1175 = vshll.u32 %v1121, 16
        %v1177 = vrot.slane %v1175, 5
        %v1178 = vsel %vm1130, %v1173, %v1177
        %v1180 = vshrl.u32 %v1106, 16
        %v1182 = vrot.slane %v1180, 4
        %v1183 = vshll.u32 %v1106, 16
        %v1185 = vrot.slane %v1183, 5
        %v1186 = vor.u32 %v1182, %v1185
        %v1187 = vrot.slane %v1186, 4
        %v1189 = vshll.u32 %v1107, 16
        %v1191 = vrot.slane %v1189, 5
        %v1192 = vsel %vm1130, %v1187, %v1191
        %v1193 = vshrl.u32 %v1107, 16
        %v1195 = vrot.slane %v1193, 4
        %v1196 = vor.u32 %v1195, %v1191
        %v1197 = vrot.slane %v1196, 4
        %v1199 = vshll.u32 %v1122, 16
        %v1201 = vrot.slane %v1199, 5
        %v1202 = vsel %vm1130, %v1197, %v1201
        %v1204 = vshrl.u32 %v1108, 16
        %v1206 = vrot.slane %v1204, 4
        %v1207 = vshll.u32 %v1108, 16
        %v1209 = vrot.slane %v1207, 5
        %v1210 = vor.u32 %v1206, %v1209
        %v1211 = vrot.slane %v1210, 4
        %v1213 = vshll.u32 %v1109, 16
        %v1215 = vrot.slane %v1213, 5
        %v1216 = vsel %vm1130, %v1211, %v1215
        %v1217 = vshrl.u32 %v1109, 16
        %v1219 = vrot.slane %v1217, 4
        %v1220 = vor.u32 %v1219, %v1215
        %v1221 = vrot.slane %v1220, 4
        %v1223 = vshll.u32 %v1123, 16
        %v1225 = vrot.slane %v1223, 5
        %v1226 = vsel %vm1130, %v1221, %v1225
        %v1228 = vshrl.u32 %v1110, 16
        %v1230 = vrot.slane %v1228, 4
        %v1231 = vshll.u32 %v1110, 16
        %v1233 = vrot.slane %v1231, 5
        %v1234 = vor.u32 %v1230, %v1233
        %v1235 = vrot.slane %v1234, 4
        %v1237 = vshll.u32 %v1111, 16
        %v1239 = vrot.slane %v1237, 5
        %v1240 = vsel %vm1130, %v1235, %v1239
        %v1241 = vshrl.u32 %v1111, 16
        %v1243 = vrot.slane %v1241, 4
        %v1244 = vor.u32 %v1243, %v1239
        %v1245 = vrot.slane %v1244, 4
        %v1247 = vshll.u32 %v1124, 16
        %v1249 = vrot.slane %v1247, 5
        %v1250 = vsel %vm1130, %v1245, %v1249
        %v1252 = vshrl.u32 %v1112, 16
        %v1254 = vrot.slane %v1252, 4
        %v1255 = vshll.u32 %v1112, 16
        %v1257 = vrot.slane %v1255, 5
        %v1258 = vor.u32 %v1254, %v1257
        %v1259 = vrot.slane %v1258, 4
        %v1261 = vshll.u32 %v1113, 16
        %v1263 = vrot.slane %v1261, 5
        %v1264 = vsel %vm1130, %v1259, %v1263
        %v1265 = vshrl.u32 %v1113, 16
        %v1267 = vrot.slane %v1265, 4
        %v1268 = vor.u32 %v1267, %v1263
        %v1269 = vrot.slane %v1268, 4
        %v1271 = vshll.u32 %v1125, 16
        %v1273 = vrot.slane %v1271, 5
        %v1274 = vsel %vm1130, %v1269, %v1273
        %v1276 = vshrl.u32 %v1114, 16
        %v1278 = vrot.slane %v1276, 4
        %v1279 = vshll.u32 %v1114, 16
        %v1281 = vrot.slane %v1279, 5
        %v1282 = vor.u32 %v1278, %v1281
        %v1283 = vrot.slane %v1282, 4
        %v1285 = vshll.u32 %v1115, 16
        %v1287 = vrot.slane %v1285, 5
        %v1288 = vsel %vm1130, %v1283, %v1287
        %v1289 = vshrl.u32 %v1115, 16
        %v1291 = vrot.slane %v1289, 4
        %v1292 = vor.u32 %v1291, %v1287
        %v1293 = vrot.slane %v1292, 4
        %v1295 = vshll.u32 %v1126, 16
        %v1297 = vrot.slane %v1295, 5
        %v1298 = vsel %vm1130, %v1293, %v1297
        %v1300 = vshrl.u32 %v1116, 16
        %v1302 = vrot.slane %v1300, 4
        %v1303 = vshll.u32 %v1116, 16
        %v1305 = vrot.slane %v1303, 5
        %v1306 = vor.u32 %v1302, %v1305
        %v1307 = vrot.slane %v1306, 4
        %v1309 = vshll.u32 %v1117, 16
        %v1311 = vrot.slane %v1309, 5
        %v1312 = vsel %vm1130, %v1307, %v1311
        %v1313 = vshrl.u32 %v1117, 16
        %v1315 = vrot.slane %v1313, 4
        %v1316 = vor.u32 %v1315, %v1311
        %v1317 = vrot.slane %v1316, 4
        %v1319 = vshll.u32 %v1127, 16
        %v1321 = vrot.slane %v1319, 5
        %v1322 = vsel %vm1130, %v1317, %v1321
        %v1323 = vld [vmem:[%s3 + $0x8] sm:$0xf]
        %v1324 = vld [vmem:[%s3 + $0xc] sm:$0xf]
        %v1325 = vunpack.c.l.b16 %v1144
        %v1326 = vunpack.c.l.b16 %v1154
        %v1327 = vunpack.c.l.b16 %v1168
        %v1328 = vunpack.c.l.b16 %v1178
        %v1329 = vunpack.c.l.b16 %v1192
        %v1330 = vunpack.c.l.b16 %v1202
        %v1331 = vunpack.c.l.b16 %v1216
        %v1332 = vunpack.c.l.b16 %v1226
        %v1333 = vunpack.c.l.b16 %v1240
        %v1334 = vunpack.c.l.b16 %v1250
        %v1335 = vunpack.c.l.b16 %v1264
        %v1336 = vunpack.c.l.b16 %v1274
        %v1337 = vunpack.c.l.b16 %v1288
        %v1338 = vunpack.c.l.b16 %v1298
        %v1339 = vunpack.c.l.b16 %v1312
        %v1340 = vunpack.c.l.b16 %v1322
        %v1341 = vpack.c.b16 %v1326, %v1325
        %v1342 = vpack.c.b16 %v1328, %v1327
        %v1343 = vpack.c.b16 %v1330, %v1329
        %v1344 = vpack.c.b16 %v1332, %v1331
        %v1345 = vpack.c.b16 %v1334, %v1333
        %v1346 = vpack.c.b16 %v1336, %v1335
        %v1347 = vpack.c.b16 %v1338, %v1337
        %v1348 = vpack.c.b16 %v1340, %v1339
        %v1351 = vunpack.c.l.b16 %v1323
        %v1352 = vunpack.c.l.b16 %v1324
        %v1353 = vpack.c.b16 %v1352, %v1351
        %vm1355 = vcmask 130048
        %v1357 = vsel %vm1355, %v1341, 0
        %v1360 = vsel %vm1355, %v1342, 0
        %v1363 = vsel %vm1355, %v1343, 0
        %v1366 = vsel %vm1355, %v1344, 0
        %v1369 = vsel %vm1355, %v1345, 0
        %v1372 = vsel %vm1355, %v1346, 0
        %v1375 = vsel %vm1355, %v1347, 0
        %v1378 = vsel %vm1355, %v1348, 0
        %1380 = vmatprep.subr.bf16.mxu0 0
        %1381 = vmatpush1.bf16.msra.mxu0 %v1353
        %1382 = vmatprep.subr.bf16.mxu0 0
        %1383 = vmatpush1.bf16.msra.mxu0 0
        %1384 = vmatprep.subr.bf16.mxu0 0
        %1385 = vmatpush1.bf16.msra.mxu0 0
        %1386 = vmatprep.subr.bf16.mxu0 0
        %1387 = vmatpush1.bf16.msra.mxu0 0
        %1388 = vmatprep.subr.bf16.mxu0 0
        %1389 = vmatpush1.bf16.msra.mxu0 0
        %1390 = vmatprep.subr.bf16.mxu0 0
        %1391 = vmatpush1.bf16.msra.mxu0 0
        %1392 = vmatprep.subr.bf16.mxu0 0
        %1393 = vmatpush1.bf16.msra.mxu0 0
        %1394 = vmatprep.subr.bf16.mxu0 0
        %1395 = vmatpush1.bf16.msra.mxu0 0
        %1396 = vmatprep.subr.bf16.mxu0 0
        %1397 = vmatpush1.bf16.msra.mxu0 0
        %1398 = vmatprep.subr.bf16.mxu0 0
        %1399 = vmatpush1.bf16.msra.mxu0 0
        %1400 = vmatprep.subr.bf16.mxu0 0
        %1401 = vmatpush1.bf16.msra.mxu0 0
        %1402 = vmatprep.subr.bf16.mxu0 0
        %1403 = vmatpush1.bf16.msra.mxu0 0
        %1404 = vmatprep.subr.bf16.mxu0 0
        %1405 = vmatpush1.bf16.msra.mxu0 0
        %1406 = vmatprep.subr.bf16.mxu0 0
        %1407 = vmatpush1.bf16.msra.mxu0 0
        %1408 = vmatprep.subr.bf16.mxu0 0
        %1409 = vmatpush1.bf16.msra.mxu0 0
        %1410 = vmatprep.subr.bf16.mxu0 0
        %1411 = vmatpush1.bf16.msra.mxu0 0
        %1412 = vmatprep.mubr.bf16.mxu0 0
        %1413 = vmatmul.mubr.bf16.gmra.mrb[0].mxu0 %v1357
        %v1414 = vpop.f32.mrb[0].mxu0
        %v1415 = vadd.f32 0.0, %v1414
        %v1416 = vpop.f32.mrb[0].mxu0
        %v1417 = vpop.f32.mrb[0].mxu0
        %v1418 = vadd.f32 0.0, %v1417
        %v1419 = vpop.f32.mrb[0].mxu0
        %1420 = vmatprep.mubr.bf16.mxu0 0
        %1421 = vmatmul.mubr.bf16.gmra.mrb[0].mxu0 %v1360
        %v1422 = vpop.f32.mrb[0].mxu0
        %v1423 = vadd.f32 0.0, %v1422
        %v1424 = vpop.f32.mrb[0].mxu0
        %v1425 = vpop.f32.mrb[0].mxu0
        %v1426 = vadd.f32 0.0, %v1425
        %v1427 = vpop.f32.mrb[0].mxu0
        %1428 = vmatprep.mubr.bf16.mxu0 0
        %1429 = vmatmul.mubr.bf16.gmra.mrb[0].mxu0 %v1363
        %v1430 = vpop.f32.mrb[0].mxu0
        %v1431 = vadd.f32 0.0, %v1430
        %v1432 = vpop.f32.mrb[0].mxu0
        %v1433 = vpop.f32.mrb[0].mxu0
        %v1434 = vadd.f32 0.0, %v1433
        %v1435 = vpop.f32.mrb[0].mxu0
        %1436 = vmatprep.mubr.bf16.mxu0 0
        %1437 = vmatmul.mubr.bf16.gmra.mrb[0].mxu0 %v1366
        %v1438 = vpop.f32.mrb[0].mxu0
        %v1439 = vadd.f32 0.0, %v1438
        %v1440 = vpop.f32.mrb[0].mxu0
        %v1441 = vpop.f32.mrb[0].mxu0
        %v1442 = vadd.f32 0.0, %v1441
        %v1443 = vpop.f32.mrb[0].mxu0
        %1444 = vmatprep.mubr.bf16.mxu0 0
        %1445 = vmatmul.mubr.bf16.gmra.mrb[0].mxu0 %v1369
        %v1446 = vpop.f32.mrb[0].mxu0
        %v1447 = vadd.f32 0.0, %v1446
        %v1448 = vpop.f32.mrb[0].mxu0
        %v1449 = vpop.f32.mrb[0].mxu0
        %v1450 = vadd.f32 0.0, %v1449
        %v1451 = vpop.f32.mrb[0].mxu0
        %1452 = vmatprep.mubr.bf16.mxu0 0
        %1453 = vmatmul.mubr.bf16.gmra.mrb[0].mxu0 %v1372
        %v1454 = vpop.f32.mrb[0].mxu0
        %v1455 = vadd.f32 0.0, %v1454
        %v1456 = vpop.f32.mrb[0].mxu0
        %v1457 = vpop.f32.mrb[0].mxu0
        %v1458 = vadd.f32 0.0, %v1457
        %v1459 = vpop.f32.mrb[0].mxu0
        %1460 = vmatprep.mubr.bf16.mxu0 0
        %1461 = vmatmul.mubr.bf16.gmra.mrb[0].mxu0 %v1375
        %v1462 = vpop.f32.mrb[0].mxu0
        %v1463 = vadd.f32 0.0, %v1462
        %v1464 = vpop.f32.mrb[0].mxu0
        %v1465 = vpop.f32.mrb[0].mxu0
        %v1466 = vadd.f32 0.0, %v1465
        %v1467 = vpop.f32.mrb[0].mxu0
        %1468 = vmatprep.mubr.bf16.mxu0 0
        %1469 = vmatmul.mubr.bf16.gmra.mrb[0].mxu0 %v1378
        %v1470 = vpop.f32.mrb[0].mxu0
        %v1471 = vadd.f32 0.0, %v1470
        %v1472 = vpop.f32.mrb[0].mxu0
        %v1473 = vpop.f32.mrb[0].mxu0
        %v1474 = vadd.f32 0.0, %v1473
        %v1475 = vpop.f32.mrb[0].mxu0
        %1476 = vdwg.mxu0
        %v1493 = vunpack.c.l.b16 %v1102
        %v1494 = vunpack.c.l.b16 %v1103
        %v1495 = vunpack.c.l.b16 %v1104
        %v1496 = vunpack.c.l.b16 %v1105
        %v1497 = vunpack.c.l.b16 %v1106
        %v1498 = vunpack.c.l.b16 %v1107
        %v1499 = vunpack.c.l.b16 %v1108
        %v1500 = vunpack.c.l.b16 %v1109
        %v1501 = vunpack.c.l.b16 %v1110
        %v1502 = vunpack.c.l.b16 %v1111
        %v1503 = vunpack.c.l.b16 %v1112
        %v1504 = vunpack.c.l.b16 %v1113
        %v1505 = vunpack.c.l.b16 %v1114
        %v1506 = vunpack.c.l.b16 %v1115
        %v1507 = vunpack.c.l.b16 %v1116
        %v1508 = vunpack.c.l.b16 %v1117
        %v1509 = vpack.c.b16 %v1494, %v1493
        %v1510 = vpack.c.b16 %v1496, %v1495
        %v1511 = vpack.c.b16 %v1498, %v1497
        %v1512 = vpack.c.b16 %v1500, %v1499
        %v1513 = vpack.c.b16 %v1502, %v1501
        %v1514 = vpack.c.b16 %v1504, %v1503
        %v1515 = vpack.c.b16 %v1506, %v1505
        %v1516 = vpack.c.b16 %v1508, %v1507
        %v1519 = vunpack.c.l.b16 %v1118
        %v1520 = vunpack.c.l.b16 %v1119
        %v1521 = vpack.c.b16 %v1520, %v1519
        %v1524 = vsel %vm1355, %v1509, 0
        %v1527 = vsel %vm1355, %v1510, 0
        %v1530 = vsel %vm1355, %v1511, 0
        %v1533 = vsel %vm1355, %v1512, 0
        %v1536 = vsel %vm1355, %v1513, 0
        %v1539 = vsel %vm1355, %v1514, 0
        %v1542 = vsel %vm1355, %v1515, 0
        %v1545 = vsel %vm1355, %v1516, 0
        %1547 = vmatprep.subr.bf16.mxu0 0
        %1548 = vmatpush1.bf16.msra.mxu0 %v1521
        %1549 = vmatprep.subr.bf16.mxu0 0
        %1550 = vmatpush1.bf16.msra.mxu0 0
        %1551 = vmatprep.subr.bf16.mxu0 0
        %1552 = vmatpush1.bf16.msra.mxu0 0
        %1553 = vmatprep.subr.bf16.mxu0 0
        %1554 = vmatpush1.bf16.msra.mxu0 0
        %1555 = vmatprep.subr.bf16.mxu0 0
        %1556 = vmatpush1.bf16.msra.mxu0 0
        %1557 = vmatprep.subr.bf16.mxu0 0
        %1558 = vmatpush1.bf16.msra.mxu0 0
        %1559 = vmatprep.subr.bf16.mxu0 0
        %1560 = vmatpush1.bf16.msra.mxu0 0
        %1561 = vmatprep.subr.bf16.mxu0 0
        %1562 = vmatpush1.bf16.msra.mxu0 0
        %1563 = vmatprep.subr.bf16.mxu0 0
        %1564 = vmatpush1.bf16.msra.mxu0 0
        %1565 = vmatprep.subr.bf16.mxu0 0
        %1566 = vmatpush1.bf16.msra.mxu0 0
        %1567 = vmatprep.subr.bf16.mxu0 0
        %1568 = vmatpush1.bf16.msra.mxu0 0
        %1569 = vmatprep.subr.bf16.mxu0 0
        %1570 = vmatpush1.bf16.msra.mxu0 0
        %1571 = vmatprep.subr.bf16.mxu0 0
        %1572 = vmatpush1.bf16.msra.mxu0 0
        %1573 = vmatprep.subr.bf16.mxu0 0
        %1574 = vmatpush1.bf16.msra.mxu0 0
        %1575 = vmatprep.subr.bf16.mxu0 0
        %1576 = vmatpush1.bf16.msra.mxu0 0
        %1577 = vmatprep.subr.bf16.mxu0 0
        %1578 = vmatpush1.bf16.msra.mxu0 0
        %1579 = vmatprep.mubr.bf16.mxu0 0
        %1580 = vmatmul.mubr.bf16.gmra.mrb[0].mxu0 %v1524
        %v1581 = vpop.f32.mrb[0].mxu0
        %v1582 = vadd.f32 %v1415, %v1581
        %v1583 = vpop.f32.mrb[0].mxu0
        %v1584 = vpop.f32.mrb[0].mxu0
        %v1585 = vadd.f32 %v1418, %v1584
        %v1586 = vpop.f32.mrb[0].mxu0
        %1587 = vmatprep.mubr.bf16.mxu0 0
        %1588 = vmatmul.mubr.bf16.gmra.mrb[0].mxu0 %v1527
        %v1589 = vpop.f32.mrb[0].mxu0
        %v1590 = vadd.f32 %v1423, %v1589
        %v1591 = vpop.f32.mrb[0].mxu0
        %v1592 = vpop.f32.mrb[0].mxu0
        %v1593 = vadd.f32 %v1426, %v1592
        %v1594 = vpop.f32.mrb[0].mxu0
        %1595 = vmatprep.mubr.bf16.mxu0 0
        %1596 = vmatmul.mubr.bf16.gmra.mrb[0].mxu0 %v1530
        %v1597 = vpop.f32.mrb[0].mxu0
        %v1598 = vadd.f32 %v1431, %v1597
        %v1599 = vpop.f32.mrb[0].mxu0
        %v1600 = vpop.f32.mrb[0].mxu0
        %v1601 = vadd.f32 %v1434, %v1600
        %v1602 = vpop.f32.mrb[0].mxu0
        %1603 = vmatprep.mubr.bf16.mxu0 0
        %1604 = vmatmul.mubr.bf16.gmra.mrb[0].mxu0 %v1533
        %v1605 = vpop.f32.mrb[0].mxu0
        %v1606 = vadd.f32 %v1439, %v1605
        %v1607 = vpop.f32.mrb[0].mxu0
        %v1608 = vpop.f32.mrb[0].mxu0
        %v1609 = vadd.f32 %v1442, %v1608
        %v1610 = vpop.f32.mrb[0].mxu0
        %1611 = vmatprep.mubr.bf16.mxu0 0
        %1612 = vmatmul.mubr.bf16.gmra.mrb[0].mxu0 %v1536
        %v1613 = vpop.f32.mrb[0].mxu0
        %v1614 = vadd.f32 %v1447, %v1613
        %v1615 = vpop.f32.mrb[0].mxu0
        %v1616 = vpop.f32.mrb[0].mxu0
        %v1617 = vadd.f32 %v1450, %v1616
        %v1618 = vpop.f32.mrb[0].mxu0
        %1619 = vmatprep.mubr.bf16.mxu0 0
        %1620 = vmatmul.mubr.bf16.gmra.mrb[0].mxu0 %v1539
        %v1621 = vpop.f32.mrb[0].mxu0
        %v1622 = vadd.f32 %v1455, %v1621
        %v1623 = vpop.f32.mrb[0].mxu0
        %v1624 = vpop.f32.mrb[0].mxu0
        %v1625 = vadd.f32 %v1458, %v1624
        %v1626 = vpop.f32.mrb[0].mxu0
        %1627 = vmatprep.mubr.bf16.mxu0 0
        %1628 = vmatmul.mubr.bf16.gmra.mrb[0].mxu0 %v1542
        %v1629 = vpop.f32.mrb[0].mxu0
        %v1630 = vadd.f32 %v1463, %v1629
        %v1631 = vpop.f32.mrb[0].mxu0
        %v1632 = vpop.f32.mrb[0].mxu0
        %v1633 = vadd.f32 %v1466, %v1632
        %v1634 = vpop.f32.mrb[0].mxu0
        %1635 = vmatprep.mubr.bf16.mxu0 0
        %1636 = vmatmul.mubr.bf16.gmra.mrb[0].mxu0 %v1545
        %v1637 = vpop.f32.mrb[0].mxu0
        %v1638 = vadd.f32 %v1471, %v1637
        %v1639 = vpop.f32.mrb[0].mxu0
        %v1640 = vpop.f32.mrb[0].mxu0
        %v1641 = vadd.f32 %v1474, %v1640
        %v1642 = vpop.f32.mrb[0].mxu0
        %1643 = vdwg.mxu0
        %v1644 = vld [vmem:[#allocation2] sm:$0xe]
        %v1645 = vld [vmem:[#allocation2 + $0xc] sm:$0xe]
        %v1646 = vld [vmem:[#allocation2 + $0x18] sm:$0xe]
        %v1647 = vld [vmem:[#allocation2 + $0x24] sm:$0xe]
        %v1648 = vld [vmem:[#allocation2 + $0x30] sm:$0xe]
        %v1649 = vld [vmem:[#allocation2 + $0x3c] sm:$0xe]
        %v1650 = vld [vmem:[#allocation2 + $0x48] sm:$0xe]
        %v1651 = vld [vmem:[#allocation2 + $0x54] sm:$0xe]
        %vm1668 = vcmask 1042432
        %vm1669 = vcmask 1046532
        %vm1670 = vmor %vm1668, %vm1669
        %v1671 = vrot.slane %v1644, 5
        %v1672 = vrot.slane %v1671, 4
        %v1673 = vrot.slane %v1103, 5
        %v1674 = vsel %vm1670, %v1672, %v1673
        %v1675 = vrot.slane %v1673, 4
        %v1676 = vrot.slane %v1120, 5
        %v1677 = vsel %vm1670, %v1675, %v1676
        %v1678 = vrot.slane %v1645, 5
        %v1679 = vrot.slane %v1678, 4
        %v1680 = vrot.slane %v1105, 5
        %v1681 = vsel %vm1670, %v1679, %v1680
        %v1682 = vrot.slane %v1680, 4
        %v1683 = vrot.slane %v1121, 5
        %v1684 = vsel %vm1670, %v1682, %v1683
        %v1685 = vrot.slane %v1646, 5
        %v1686 = vrot.slane %v1685, 4
        %v1687 = vrot.slane %v1107, 5
        %v1688 = vsel %vm1670, %v1686, %v1687
        %v1689 = vrot.slane %v1687, 4
        %v1690 = vrot.slane %v1122, 5
        %v1691 = vsel %vm1670, %v1689, %v1690
        %v1692 = vrot.slane %v1647, 5
        %v1693 = vrot.slane %v1692, 4
        %v1694 = vrot.slane %v1109, 5
        %v1695 = vsel %vm1670, %v1693, %v1694
        %v1696 = vrot.slane %v1694, 4
        %v1697 = vrot.slane %v1123, 5
        %v1698 = vsel %vm1670, %v1696, %v1697
        %v1699 = vrot.slane %v1648, 5
        %v1700 = vrot.slane %v1699, 4
        %v1701 = vrot.slane %v1111, 5
        %v1702 = vsel %vm1670, %v1700, %v1701
        %v1703 = vrot.slane %v1701, 4
        %v1704 = vrot.slane %v1124, 5
        %v1705 = vsel %vm1670, %v1703, %v1704
        %v1706 = vrot.slane %v1649, 5
        %v1707 = vrot.slane %v1706, 4
        %v1708 = vrot.slane %v1113, 5
        %v1709 = vsel %vm1670, %v1707, %v1708
        %v1710 = vrot.slane %v1708, 4
        %v1711 = vrot.slane %v1125, 5
        %v1712 = vsel %vm1670, %v1710, %v1711
        %v1713 = vrot.slane %v1650, 5
        %v1714 = vrot.slane %v1713, 4
        %v1715 = vrot.slane %v1115, 5
        %v1716 = vsel %vm1670, %v1714, %v1715
        %v1717 = vrot.slane %v1715, 4
        %v1718 = vrot.slane %v1126, 5
        %v1719 = vsel %vm1670, %v1717, %v1718
        %v1720 = vrot.slane %v1651, 5
        %v1721 = vrot.slane %v1720, 4
        %v1722 = vrot.slane %v1117, 5
        %v1723 = vsel %vm1670, %v1721, %v1722
        %v1724 = vrot.slane %v1722, 4
        %v1725 = vrot.slane %v1127, 5
        %v1726 = vsel %vm1670, %v1724, %v1725
        %v1727 = vld [vmem:[%s3 + $0x10] sm:$0xf]
        %v1728 = vld [vmem:[%s3 + $0x14] sm:$0xf]
        %v1729 = vunpack.c.l.b16 %v1674
        %v1730 = vunpack.c.l.b16 %v1677
        %v1731 = vunpack.c.l.b16 %v1681
        %v1732 = vunpack.c.l.b16 %v1684
        %v1733 = vunpack.c.l.b16 %v1688
        %v1734 = vunpack.c.l.b16 %v1691
        %v1735 = vunpack.c.l.b16 %v1695
        %v1736 = vunpack.c.l.b16 %v1698
        %v1737 = vunpack.c.l.b16 %v1702
        %v1738 = vunpack.c.l.b16 %v1705
        %v1739 = vunpack.c.l.b16 %v1709
        %v1740 = vunpack.c.l.b16 %v1712
        %v1741 = vunpack.c.l.b16 %v1716
        %v1742 = vunpack.c.l.b16 %v1719
        %v1743 = vunpack.c.l.b16 %v1723
        %v1744 = vunpack.c.l.b16 %v1726
        %v1745 = vpack.c.b16 %v1730, %v1729
        %v1746 = vpack.c.b16 %v1732, %v1731
        %v1747 = vpack.c.b16 %v1734, %v1733
        %v1748 = vpack.c.b16 %v1736, %v1735
        %v1749 = vpack.c.b16 %v1738, %v1737
        %v1750 = vpack.c.b16 %v1740, %v1739
        %v1751 = vpack.c.b16 %v1742, %v1741
        %v1752 = vpack.c.b16 %v1744, %v1743
        %v1755 = vunpack.c.l.b16 %v1727
        %v1756 = vunpack.c.l.b16 %v1728
        %v1757 = vpack.c.b16 %v1756, %v1755
        %v1760 = vsel %vm1355, %v1745, 0
        %v1763 = vsel %vm1355, %v1746, 0
        %v1766 = vsel %vm1355, %v1747, 0
        %v1769 = vsel %vm1355, %v1748, 0
        %v1772 = vsel %vm1355, %v1749, 0
        %v1775 = vsel %vm1355, %v1750, 0
        %v1778 = vsel %vm1355, %v1751, 0
        %v1781 = vsel %vm1355, %v1752, 0
        %1783 = vmatprep.subr.bf16.mxu0 0
        %1784 = vmatpush1.bf16.msra.mxu0 %v1757
        %1785 = vmatprep.subr.bf16.mxu0 0
        %1786 = vmatpush1.bf16.msra.mxu0 0
        %1787 = vmatprep.subr.bf16.mxu0 0
        %1788 = vmatpush1.bf16.msra.mxu0 0
        %1789 = vmatprep.subr.bf16.mxu0 0
        %1790 = vmatpush1.bf16.msra.mxu0 0
        %1791 = vmatprep.subr.bf16.mxu0 0
        %1792 = vmatpush1.bf16.msra.mxu0 0
        %1793 = vmatprep.subr.bf16.mxu0 0
        %1794 = vmatpush1.bf16.msra.mxu0 0
        %1795 = vmatprep.subr.bf16.mxu0 0
        %1796 = vmatpush1.bf16.msra.mxu0 0
        %1797 = vmatprep.subr.bf16.mxu0 0
        %1798 = vmatpush1.bf16.msra.mxu0 0
        %1799 = vmatprep.subr.bf16.mxu0 0
        %1800 = vmatpush1.bf16.msra.mxu0 0
        %1801 = vmatprep.subr.bf16.mxu0 0
        %1802 = vmatpush1.bf16.msra.mxu0 0
        %1803 = vmatprep.subr.bf16.mxu0 0
        %1804 = vmatpush1.bf16.msra.mxu0 0
        %1805 = vmatprep.subr.bf16.mxu0 0
        %1806 = vmatpush1.bf16.msra.mxu0 0
        %1807 = vmatprep.subr.bf16.mxu0 0
        %1808 = vmatpush1.bf16.msra.mxu0 0
        %1809 = vmatprep.subr.bf16.mxu0 0
        %1810 = vmatpush1.bf16.msra.mxu0 0
        %1811 = vmatprep.subr.bf16.mxu0 0
        %1812 = vmatpush1.bf16.msra.mxu0 0
        %1813 = vmatprep.subr.bf16.mxu0 0
        %1814 = vmatpush1.bf16.msra.mxu0 0
        %1815 = vmatprep.mubr.bf16.mxu0 0
        %1816 = vmatmul.mubr.bf16.gmra.mrb[0].mxu0 %v1760
        %v1817 = vpop.f32.mrb[0].mxu0
        %v1818 = vadd.f32 0.0, %v1817
        %v1819 = vpop.f32.mrb[0].mxu0
        %v1820 = vpop.f32.mrb[0].mxu0
        %v1821 = vadd.f32 0.0, %v1820
        %v1822 = vpop.f32.mrb[0].mxu0
        %1823 = vmatprep.mubr.bf16.mxu0 0
        %1824 = vmatmul.mubr.bf16.gmra.mrb[0].mxu0 %v1763
        %v1825 = vpop.f32.mrb[0].mxu0
        %v1826 = vadd.f32 0.0, %v1825
        %v1827 = vpop.f32.mrb[0].mxu0
        %v1828 = vpop.f32.mrb[0].mxu0
        %v1829 = vadd.f32 0.0, %v1828
        %v1830 = vpop.f32.mrb[0].mxu0
        %1831 = vmatprep.mubr.bf16.mxu0 0
        %1832 = vmatmul.mubr.bf16.gmra.mrb[0].mxu0 %v1766
        %v1833 = vpop.f32.mrb[0].mxu0
        %v1834 = vadd.f32 0.0, %v1833
        %v1835 = vpop.f32.mrb[0].mxu0
        %v1836 = vpop.f32.mrb[0].mxu0
        %v1837 = vadd.f32 0.0, %v1836
        %v1838 = vpop.f32.mrb[0].mxu0
        %1839 = vmatprep.mubr.bf16.mxu0 0
        %1840 = vmatmul.mubr.bf16.gmra.mrb[0].mxu0 %v1769
        %v1841 = vpop.f32.mrb[0].mxu0
        %v1842 = vadd.f32 0.0, %v1841
        %v1843 = vpop.f32.mrb[0].mxu0
        %v1844 = vpop.f32.mrb[0].mxu0
        %v1845 = vadd.f32 0.0, %v1844
        %v1846 = vpop.f32.mrb[0].mxu0
        %1847 = vmatprep.mubr.bf16.mxu0 0
        %1848 = vmatmul.mubr.bf16.gmra.mrb[0].mxu0 %v1772
        %v1849 = vpop.f32.mrb[0].mxu0
        %v1850 = vadd.f32 0.0, %v1849
        %v1851 = vpop.f32.mrb[0].mxu0
        %v1852 = vpop.f32.mrb[0].mxu0
        %v1853 = vadd.f32 0.0, %v1852
        %v1854 = vpop.f32.mrb[0].mxu0
        %1855 = vmatprep.mubr.bf16.mxu0 0
        %1856 = vmatmul.mubr.bf16.gmra.mrb[0].mxu0 %v1775
        %v1857 = vpop.f32.mrb[0].mxu0
        %v1858 = vadd.f32 0.0, %v1857
        %v1859 = vpop.f32.mrb[0].mxu0
        %v1860 = vpop.f32.mrb[0].mxu0
        %v1861 = vadd.f32 0.0, %v1860
        %v1862 = vpop.f32.mrb[0].mxu0
        %1863 = vmatprep.mubr.bf16.mxu0 0
        %1864 = vmatmul.mubr.bf16.gmra.mrb[0].mxu0 %v1778
        %v1865 = vpop.f32.mrb[0].mxu0
        %v1866 = vadd.f32 0.0, %v1865
        %v1867 = vpop.f32.mrb[0].mxu0
        %v1868 = vpop.f32.mrb[0].mxu0
        %v1869 = vadd.f32 0.0, %v1868
        %v1870 = vpop.f32.mrb[0].mxu0
        %1871 = vmatprep.mubr.bf16.mxu0 0
        %1872 = vmatmul.mubr.bf16.gmra.mrb[0].mxu0 %v1781
        %v1873 = vpop.f32.mrb[0].mxu0
        %v1874 = vadd.f32 0.0, %v1873
        %v1875 = vpop.f32.mrb[0].mxu0
        %v1876 = vpop.f32.mrb[0].mxu0
        %v1877 = vadd.f32 0.0, %v1876
        %v1878 = vpop.f32.mrb[0].mxu0
        %1879 = vdwg.mxu0
        %v1880 = vadd.f32 %v1582, %v1818
        %v1881 = vadd.f32 %v1585, %v1821
        %v1882 = vadd.f32 %v1590, %v1826
        %v1883 = vadd.f32 %v1593, %v1829
        %v1884 = vadd.f32 %v1598, %v1834
        %v1885 = vadd.f32 %v1601, %v1837
        %v1886 = vadd.f32 %v1606, %v1842
        %v1887 = vadd.f32 %v1609, %v1845
        %v1888 = vadd.f32 %v1614, %v1850
        %v1889 = vadd.f32 %v1617, %v1853
        %v1890 = vadd.f32 %v1622, %v1858
        %v1891 = vadd.f32 %v1625, %v1861
        %v1892 = vadd.f32 %v1630, %v1866
        %v1893 = vadd.f32 %v1633, %v1869
        %v1894 = vadd.f32 %v1638, %v1874
        %v1895 = vadd.f32 %v1641, %v1877
        %v1896 = vld [vmem:[%s773] sm:$0xf]
        %v1897 = vld [vmem:[%s773 + $0x4] sm:$0xf]
        %v1898 = vld [vmem:[%s773 + $0xc] sm:$0xf]
        %v1899 = vld [vmem:[%s773 + $0x10] sm:$0xf]
        %v1900 = vld [vmem:[%s773 + $0x18] sm:$0xf]
        %v1901 = vld [vmem:[%s773 + $0x1c] sm:$0xf]
        %v1902 = vld [vmem:[%s773 + $0x24] sm:$0xf]
        %v1903 = vld [vmem:[%s773 + $0x28] sm:$0xf]
        %v1904 = vld [vmem:[%s773 + $0x30] sm:$0xf]
        %v1905 = vld [vmem:[%s773 + $0x34] sm:$0xf]
        %v1906 = vld [vmem:[%s773 + $0x3c] sm:$0xf]
        %v1907 = vld [vmem:[%s773 + $0x40] sm:$0xf]
        %v1908 = vld [vmem:[%s773 + $0x48] sm:$0xf]
        %v1909 = vld [vmem:[%s773 + $0x4c] sm:$0xf]
        %v1910 = vld [vmem:[%s773 + $0x54] sm:$0xf]
        %v1911 = vld [vmem:[%s773 + $0x58] sm:$0xf]
        %v1912 = vld [vmem:[%s3 + $0x18] sm:$0xf]
        %v1913 = vld [vmem:[%s3 + $0x1c] sm:$0xf]
        %v1930 = vunpack.c.l.b16 %v1896
        %v1931 = vunpack.c.l.b16 %v1897
        %v1932 = vunpack.c.l.b16 %v1898
        %v1933 = vunpack.c.l.b16 %v1899
        %v1934 = vunpack.c.l.b16 %v1900
        %v1935 = vunpack.c.l.b16 %v1901
        %v1936 = vunpack.c.l.b16 %v1902
        %v1937 = vunpack.c.l.b16 %v1903
        %v1938 = vunpack.c.l.b16 %v1904
        %v1939 = vunpack.c.l.b16 %v1905
        %v1940 = vunpack.c.l.b16 %v1906
        %v1941 = vunpack.c.l.b16 %v1907
        %v1942 = vunpack.c.l.b16 %v1908
        %v1943 = vunpack.c.l.b16 %v1909
        %v1944 = vunpack.c.l.b16 %v1910
        %v1945 = vunpack.c.l.b16 %v1911
        %v1946 = vpack.c.b16 %v1931, %v1930
        %v1947 = vpack.c.b16 %v1933, %v1932
        %v1948 = vpack.c.b16 %v1935, %v1934
        %v1949 = vpack.c.b16 %v1937, %v1936
        %v1950 = vpack.c.b16 %v1939, %v1938
        %v1951 = vpack.c.b16 %v1941, %v1940
        %v1952 = vpack.c.b16 %v1943, %v1942
        %v1953 = vpack.c.b16 %v1945, %v1944
        %v1956 = vunpack.c.l.b16 %v1912
        %v1957 = vunpack.c.l.b16 %v1913
        %v1958 = vpack.c.b16 %v1957, %v1956
        %v1961 = vsel %vm1355, %v1946, 0
        %v1964 = vsel %vm1355, %v1947, 0
        %v1967 = vsel %vm1355, %v1948, 0
        %v1970 = vsel %vm1355, %v1949, 0
        %v1973 = vsel %vm1355, %v1950, 0
        %v1976 = vsel %vm1355, %v1951, 0
        %v1979 = vsel %vm1355, %v1952, 0
        %v1982 = vsel %vm1355, %v1953, 0
        %1984 = vmatprep.subr.bf16.mxu0 0
        %1985 = vmatpush1.bf16.msra.mxu0 %v1958
        %1986 = vmatprep.subr.bf16.mxu0 0
        %1987 = vmatpush1.bf16.msra.mxu0 0
        %1988 = vmatprep.subr.bf16.mxu0 0
        %1989 = vmatpush1.bf16.msra.mxu0 0
        %1990 = vmatprep.subr.bf16.mxu0 0
        %1991 = vmatpush1.bf16.msra.mxu0 0
        %1992 = vmatprep.subr.bf16.mxu0 0
        %1993 = vmatpush1.bf16.msra.mxu0 0
        %1994 = vmatprep.subr.bf16.mxu0 0
        %1995 = vmatpush1.bf16.msra.mxu0 0
        %1996 = vmatprep.subr.bf16.mxu0 0
        %1997 = vmatpush1.bf16.msra.mxu0 0
        %1998 = vmatprep.subr.bf16.mxu0 0
        %1999 = vmatpush1.bf16.msra.mxu0 0
        %2000 = vmatprep.subr.bf16.mxu0 0
        %2001 = vmatpush1.bf16.msra.mxu0 0
        %2002 = vmatprep.subr.bf16.mxu0 0
        %2003 = vmatpush1.bf16.msra.mxu0 0
        %2004 = vmatprep.subr.bf16.mxu0 0
        %2005 = vmatpush1.bf16.msra.mxu0 0
        %2006 = vmatprep.subr.bf16.mxu0 0
        %2007 = vmatpush1.bf16.msra.mxu0 0
        %2008 = vmatprep.subr.bf16.mxu0 0
        %2009 = vmatpush1.bf16.msra.mxu0 0
        %2010 = vmatprep.subr.bf16.mxu0 0
        %2011 = vmatpush1.bf16.msra.mxu0 0
        %2012 = vmatprep.subr.bf16.mxu0 0
        %2013 = vmatpush1.bf16.msra.mxu0 0
        %2014 = vmatprep.subr.bf16.mxu0 0
        %2015 = vmatpush1.bf16.msra.mxu0 0
        %2016 = vmatprep.mubr.bf16.mxu0 0
        %2017 = vmatmul.mubr.bf16.gmra.mrb[0].mxu0 %v1961
        %v2018 = vpop.f32.mrb[0].mxu0
        %v2019 = vadd.f32 0.0, %v2018
        %v2020 = vpop.f32.mrb[0].mxu0
        %v2021 = vpop.f32.mrb[0].mxu0
        %v2022 = vadd.f32 0.0, %v2021
        %v2023 = vpop.f32.mrb[0].mxu0
        %2024 = vmatprep.mubr.bf16.mxu0 0
        %2025 = vmatmul.mubr.bf16.gmra.mrb[0].mxu0 %v1964
        %v2026 = vpop.f32.mrb[0].mxu0
        %v2027 = vadd.f32 0.0, %v2026
        %v2028 = vpop.f32.mrb[0].mxu0
        %v2029 = vpop.f32.mrb[0].mxu0
        %v2030 = vadd.f32 0.0, %v2029
        %v2031 = vpop.f32.mrb[0].mxu0
        %2032 = vmatprep.mubr.bf16.mxu0 0
        %2033 = vmatmul.mubr.bf16.gmra.mrb[0].mxu0 %v1967
        %v2034 = vpop.f32.mrb[0].mxu0
        %v2035 = vadd.f32 0.0, %v2034
        %v2036 = vpop.f32.mrb[0].mxu0
        %v2037 = vpop.f32.mrb[0].mxu0
        %v2038 = vadd.f32 0.0, %v2037
        %v2039 = vpop.f32.mrb[0].mxu0
        %2040 = vmatprep.mubr.bf16.mxu0 0
        %2041 = vmatmul.mubr.bf16.gmra.mrb[0].mxu0 %v1970
        %v2042 = vpop.f32.mrb[0].mxu0
        %v2043 = vadd.f32 0.0, %v2042
        %v2044 = vpop.f32.mrb[0].mxu0
        %v2045 = vpop.f32.mrb[0].mxu0
        %v2046 = vadd.f32 0.0, %v2045
        %v2047 = vpop.f32.mrb[0].mxu0
        %2048 = vmatprep.mubr.bf16.mxu0 0
        %2049 = vmatmul.mubr.bf16.gmra.mrb[0].mxu0 %v1973
        %v2050 = vpop.f32.mrb[0].mxu0
        %v2051 = vadd.f32 0.0, %v2050
        %v2052 = vpop.f32.mrb[0].mxu0
        %v2053 = vpop.f32.mrb[0].mxu0
        %v2054 = vadd.f32 0.0, %v2053
        %v2055 = vpop.f32.mrb[0].mxu0
        %2056 = vmatprep.mubr.bf16.mxu0 0
        %2057 = vmatmul.mubr.bf16.gmra.mrb[0].mxu0 %v1976
        %v2058 = vpop.f32.mrb[0].mxu0
        %v2059 = vadd.f32 0.0, %v2058
        %v2060 = vpop.f32.mrb[0].mxu0
        %v2061 = vpop.f32.mrb[0].mxu0
        %v2062 = vadd.f32 0.0, %v2061
        %v2063 = vpop.f32.mrb[0].mxu0
        %2064 = vmatprep.mubr.bf16.mxu0 0
        %2065 = vmatmul.mubr.bf16.gmra.mrb[0].mxu0 %v1979
        %v2066 = vpop.f32.mrb[0].mxu0
        %v2067 = vadd.f32 0.0, %v2066
        %v2068 = vpop.f32.mrb[0].mxu0
        %v2069 = vpop.f32.mrb[0].mxu0
        %v2070 = vadd.f32 0.0, %v2069
        %v2071 = vpop.f32.mrb[0].mxu0
        %2072 = vmatprep.mubr.bf16.mxu0 0
        %2073 = vmatmul.mubr.bf16.gmra.mrb[0].mxu0 %v1982
        %v2074 = vpop.f32.mrb[0].mxu0
        %v2075 = vadd.f32 0.0, %v2074
        %v2076 = vpop.f32.mrb[0].mxu0
        %v2077 = vpop.f32.mrb[0].mxu0
        %v2078 = vadd.f32 0.0, %v2077
        %v2079 = vpop.f32.mrb[0].mxu0
        %2080 = vdwg.mxu0
        %v2081 = vadd.f32 %v1880, %v2019
        %v2082 = vadd.f32 %v1881, %v2022
        %v2083 = vadd.f32 %v1882, %v2027
        %v2084 = vadd.f32 %v1883, %v2030
        %v2085 = vadd.f32 %v1884, %v2035
        %v2086 = vadd.f32 %v1885, %v2038
        %v2087 = vadd.f32 %v1886, %v2043
        %v2088 = vadd.f32 %v1887, %v2046
        %v2089 = vadd.f32 %v1888, %v2051
        %v2090 = vadd.f32 %v1889, %v2054
        %v2091 = vadd.f32 %v1890, %v2059
        %v2092 = vadd.f32 %v1891, %v2062
        %v2093 = vadd.f32 %v1892, %v2067
        %v2094 = vadd.f32 %v1893, %v2070
        %v2095 = vadd.f32 %v1894, %v2075
        %v2096 = vadd.f32 %v1895, %v2078
        %v2097 = vld [vmem:[%s773] sm:$0xf]
        %v2098 = vld [vmem:[%s773 + $0x4] sm:$0xf]
        %v2099 = vld [vmem:[%s773 + $0x8] sm:$0x1]
        %v2100 = vld [vmem:[%s773 + $0xc] sm:$0xf]
        %v2101 = vld [vmem:[%s773 + $0x10] sm:$0xf]
        %v2102 = vld [vmem:[%s773 + $0x14] sm:$0x1]
        %v2103 = vld [vmem:[%s773 + $0x18] sm:$0xf]
        %v2104 = vld [vmem:[%s773 + $0x1c] sm:$0xf]
        %v2105 = vld [vmem:[%s773 + $0x20] sm:$0x1]
        %v2106 = vld [vmem:[%s773 + $0x24] sm:$0xf]
        %v2107 = vld [vmem:[%s773 + $0x28] sm:$0xf]
        %v2108 = vld [vmem:[%s773 + $0x2c] sm:$0x1]
        %v2109 = vld [vmem:[%s773 + $0x30] sm:$0xf]
        %v2110 = vld [vmem:[%s773 + $0x34] sm:$0xf]
        %v2111 = vld [vmem:[%s773 + $0x38] sm:$0x1]
        %v2112 = vld [vmem:[%s773 + $0x3c] sm:$0xf]
        %v2113 = vld [vmem:[%s773 + $0x40] sm:$0xf]
        %v2114 = vld [vmem:[%s773 + $0x44] sm:$0x1]
        %v2115 = vld [vmem:[%s773 + $0x48] sm:$0xf]
        %v2116 = vld [vmem:[%s773 + $0x4c] sm:$0xf]
        %v2117 = vld [vmem:[%s773 + $0x50] sm:$0x1]
        %v2118 = vld [vmem:[%s773 + $0x54] sm:$0xf]
        %v2119 = vld [vmem:[%s773 + $0x58] sm:$0xf]
        %v2120 = vld [vmem:[%s773 + $0x5c] sm:$0x1]
        %v2122 = vshrl.u32 %v2097, 16
        %v2124 = vrot.slane %v2122, 4
        %v2125 = vshll.u32 %v2097, 16
        %v2127 = vrot.slane %v2125, 5
        %v2128 = vor.u32 %v2124, %v2127
        %v2129 = vrot.slane %v2128, 4
        %v2131 = vshll.u32 %v2098, 16
        %v2133 = vrot.slane %v2131, 5
        %v2134 = vsel %vm1130, %v2129, %v2133
        %v2135 = vshrl.u32 %v2098, 16
        %v2137 = vrot.slane %v2135, 4
        %v2138 = vor.u32 %v2137, %v2133
        %v2139 = vrot.slane %v2138, 4
        %v2141 = vshll.u32 %v2099, 16
        %v2143 = vrot.slane %v2141, 5
        %v2144 = vsel %vm1130, %v2139, %v2143
        %v2146 = vshrl.u32 %v2100, 16
        %v2148 = vrot.slane %v2146, 4
        %v2149 = vshll.u32 %v2100, 16
        %v2151 = vrot.slane %v2149, 5
        %v2152 = vor.u32 %v2148, %v2151
        %v2153 = vrot.slane %v2152, 4
        %v2155 = vshll.u32 %v2101, 16
        %v2157 = vrot.slane %v2155, 5
        %v2158 = vsel %vm1130, %v2153, %v2157
        %v2159 = vshrl.u32 %v2101, 16
        %v2161 = vrot.slane %v2159, 4
        %v2162 = vor.u32 %v2161, %v2157
        %v2163 = vrot.slane %v2162, 4
        %v2165 = vshll.u32 %v2102, 16
        %v2167 = vrot.slane %v2165, 5
        %v2168 = vsel %vm1130, %v2163, %v2167
        %v2170 = vshrl.u32 %v2103, 16
        %v2172 = vrot.slane %v2170, 4
        %v2173 = vshll.u32 %v2103, 16
        %v2175 = vrot.slane %v2173, 5
        %v2176 = vor.u32 %v2172, %v2175
        %v2177 = vrot.slane %v2176, 4
        %v2179 = vshll.u32 %v2104, 16
        %v2181 = vrot.slane %v2179, 5
        %v2182 = vsel %vm1130, %v2177, %v2181
        %v2183 = vshrl.u32 %v2104, 16
        %v2185 = vrot.slane %v2183, 4
        %v2186 = vor.u32 %v2185, %v2181
        %v2187 = vrot.slane %v2186, 4
        %v2189 = vshll.u32 %v2105, 16
        %v2191 = vrot.slane %v2189, 5
        %v2192 = vsel %vm1130, %v2187, %v2191
        %v2194 = vshrl.u32 %v2106, 16
        %v2196 = vrot.slane %v2194, 4
        %v2197 = vshll.u32 %v2106, 16
        %v2199 = vrot.slane %v2197, 5
        %v2200 = vor.u32 %v2196, %v2199
        %v2201 = vrot.slane %v2200, 4
        %v2203 = vshll.u32 %v2107, 16
        %v2205 = vrot.slane %v2203, 5
        %v2206 = vsel %vm1130, %v2201, %v2205
        %v2207 = vshrl.u32 %v2107, 16
        %v2209 = vrot.slane %v2207, 4
        %v2210 = vor.u32 %v2209, %v2205
        %v2211 = vrot.slane %v2210, 4
        %v2213 = vshll.u32 %v2108, 16
        %v2215 = vrot.slane %v2213, 5
        %v2216 = vsel %vm1130, %v2211, %v2215
        %v2218 = vshrl.u32 %v2109, 16
        %v2220 = vrot.slane %v2218, 4
        %v2221 = vshll.u32 %v2109, 16
        %v2223 = vrot.slane %v2221, 5
        %v2224 = vor.u32 %v2220, %v2223
        %v2225 = vrot.slane %v2224, 4
        %v2227 = vshll.u32 %v2110, 16
        %v2229 = vrot.slane %v2227, 5
        %v2230 = vsel %vm1130, %v2225, %v2229
        %v2231 = vshrl.u32 %v2110, 16
        %v2233 = vrot.slane %v2231, 4
        %v2234 = vor.u32 %v2233, %v2229
        %v2235 = vrot.slane %v2234, 4
        %v2237 = vshll.u32 %v2111, 16
        %v2239 = vrot.slane %v2237, 5
        %v2240 = vsel %vm1130, %v2235, %v2239
        %v2242 = vshrl.u32 %v2112, 16
        %v2244 = vrot.slane %v2242, 4
        %v2245 = vshll.u32 %v2112, 16
        %v2247 = vrot.slane %v2245, 5
        %v2248 = vor.u32 %v2244, %v2247
        %v2249 = vrot.slane %v2248, 4
        %v2251 = vshll.u32 %v2113, 16
        %v2253 = vrot.slane %v2251, 5
        %v2254 = vsel %vm1130, %v2249, %v2253
        %v2255 = vshrl.u32 %v2113, 16
        %v2257 = vrot.slane %v2255, 4
        %v2258 = vor.u32 %v2257, %v2253
        %v2259 = vrot.slane %v2258, 4
        %v2261 = vshll.u32 %v2114, 16
        %v2263 = vrot.slane %v2261, 5
        %v2264 = vsel %vm1130, %v2259, %v2263
        %v2266 = vshrl.u32 %v2115, 16
        %v2268 = vrot.slane %v2266, 4
        %v2269 = vshll.u32 %v2115, 16
        %v2271 = vrot.slane %v2269, 5
        %v2272 = vor.u32 %v2268, %v2271
        %v2273 = vrot.slane %v2272, 4
        %v2275 = vshll.u32 %v2116, 16
        %v2277 = vrot.slane %v2275, 5
        %v2278 = vsel %vm1130, %v2273, %v2277
        %v2279 = vshrl.u32 %v2116, 16
        %v2281 = vrot.slane %v2279, 4
        %v2282 = vor.u32 %v2281, %v2277
        %v2283 = vrot.slane %v2282, 4
        %v2285 = vshll.u32 %v2117, 16
        %v2287 = vrot.slane %v2285, 5
        %v2288 = vsel %vm1130, %v2283, %v2287
        %v2290 = vshrl.u32 %v2118, 16
        %v2292 = vrot.slane %v2290, 4
        %v2293 = vshll.u32 %v2118, 16
        %v2295 = vrot.slane %v2293, 5
        %v2296 = vor.u32 %v2292, %v2295
        %v2297 = vrot.slane %v2296, 4
        %v2299 = vshll.u32 %v2119, 16
        %v2301 = vrot.slane %v2299, 5
        %v2302 = vsel %vm1130, %v2297, %v2301
        %v2303 = vshrl.u32 %v2119, 16
        %v2305 = vrot.slane %v2303, 4
        %v2306 = vor.u32 %v2305, %v2301
        %v2307 = vrot.slane %v2306, 4
        %v2309 = vshll.u32 %v2120, 16
        %v2311 = vrot.slane %v2309, 5
        %v2312 = vsel %vm1130, %v2307, %v2311
        %v2313 = vld [vmem:[%s3 + $0x20] sm:$0xf]
        %v2314 = vld [vmem:[%s3 + $0x24] sm:$0xf]
        %v2315 = vunpack.c.l.b16 %v2134
        %v2316 = vunpack.c.l.b16 %v2144
        %v2317 = vunpack.c.l.b16 %v2158
        %v2318 = vunpack.c.l.b16 %v2168
        %v2319 = vunpack.c.l.b16 %v2182
        %v2320 = vunpack.c.l.b16 %v2192
        %v2321 = vunpack.c.l.b16 %v2206
        %v2322 = vunpack.c.l.b16 %v2216
        %v2323 = vunpack.c.l.b16 %v2230
        %v2324 = vunpack.c.l.b16 %v2240
        %v2325 = vunpack.c.l.b16 %v2254
        %v2326 = vunpack.c.l.b16 %v2264
        %v2327 = vunpack.c.l.b16 %v2278
        %v2328 = vunpack.c.l.b16 %v2288
        %v2329 = vunpack.c.l.b16 %v2302
        %v2330 = vunpack.c.l.b16 %v2312
        %v2331 = vpack.c.b16 %v2316, %v2315
        %v2332 = vpack.c.b16 %v2318, %v2317
        %v2333 = vpack.c.b16 %v2320, %v2319
        %v2334 = vpack.c.b16 %v2322, %v2321
        %v2335 = vpack.c.b16 %v2324, %v2323
        %v2336 = vpack.c.b16 %v2326, %v2325
        %v2337 = vpack.c.b16 %v2328, %v2327
        %v2338 = vpack.c.b16 %v2330, %v2329
        %v2341 = vunpack.c.l.b16 %v2313
        %v2342 = vunpack.c.l.b16 %v2314
        %v2343 = vpack.c.b16 %v2342, %v2341
        %v2346 = vsel %vm1355, %v2331, 0
        %v2349 = vsel %vm1355, %v2332, 0
        %v2352 = vsel %vm1355, %v2333, 0
        %v2355 = vsel %vm1355, %v2334, 0
        %v2358 = vsel %vm1355, %v2335, 0
        %v2361 = vsel %vm1355, %v2336, 0
        %v2364 = vsel %vm1355, %v2337, 0
        %v2367 = vsel %vm1355, %v2338, 0
        %2369 = vmatprep.subr.bf16.mxu0 0
        %2370 = vmatpush1.bf16.msra.mxu0 %v2343
        %2371 = vmatprep.subr.bf16.mxu0 0
        %2372 = vmatpush1.bf16.msra.mxu0 0
        %2373 = vmatprep.subr.bf16.mxu0 0
        %2374 = vmatpush1.bf16.msra.mxu0 0
        %2375 = vmatprep.subr.bf16.mxu0 0
        %2376 = vmatpush1.bf16.msra.mxu0 0
        %2377 = vmatprep.subr.bf16.mxu0 0
        %2378 = vmatpush1.bf16.msra.mxu0 0
        %2379 = vmatprep.subr.bf16.mxu0 0
        %2380 = vmatpush1.bf16.msra.mxu0 0
        %2381 = vmatprep.subr.bf16.mxu0 0
        %2382 = vmatpush1.bf16.msra.mxu0 0
        %2383 = vmatprep.subr.bf16.mxu0 0
        %2384 = vmatpush1.bf16.msra.mxu0 0
        %2385 = vmatprep.subr.bf16.mxu0 0
        %2386 = vmatpush1.bf16.msra.mxu0 0
        %2387 = vmatprep.subr.bf16.mxu0 0
        %2388 = vmatpush1.bf16.msra.mxu0 0
        %2389 = vmatprep.subr.bf16.mxu0 0
        %2390 = vmatpush1.bf16.msra.mxu0 0
        %2391 = vmatprep.subr.bf16.mxu0 0
        %2392 = vmatpush1.bf16.msra.mxu0 0
        %2393 = vmatprep.subr.bf16.mxu0 0
        %2394 = vmatpush1.bf16.msra.mxu0 0
        %2395 = vmatprep.subr.bf16.mxu0 0
        %2396 = vmatpush1.bf16.msra.mxu0 0
        %2397 = vmatprep.subr.bf16.mxu0 0
        %2398 = vmatpush1.bf16.msra.mxu0 0
        %2399 = vmatprep.subr.bf16.mxu0 0
        %2400 = vmatpush1.bf16.msra.mxu0 0
        %2401 = vmatprep.mubr.bf16.mxu0 0
        %2402 = vmatmul.mubr.bf16.gmra.mrb[0].mxu0 %v2346
        %v2403 = vpop.f32.mrb[0].mxu0
        %v2404 = vadd.f32 0.0, %v2403
        %v2405 = vpop.f32.mrb[0].mxu0
        %v2406 = vpop.f32.mrb[0].mxu0
        %v2407 = vadd.f32 0.0, %v2406
        %v2408 = vpop.f32.mrb[0].mxu0
        %2409 = vmatprep.mubr.bf16.mxu0 0
        %2410 = vmatmul.mubr.bf16.gmra.mrb[0].mxu0 %v2349
        %v2411 = vpop.f32.mrb[0].mxu0
        %v2412 = vadd.f32 0.0, %v2411
        %v2413 = vpop.f32.mrb[0].mxu0
        %v2414 = vpop.f32.mrb[0].mxu0
        %v2415 = vadd.f32 0.0, %v2414
        %v2416 = vpop.f32.mrb[0].mxu0
        %2417 = vmatprep.mubr.bf16.mxu0 0
        %2418 = vmatmul.mubr.bf16.gmra.mrb[0].mxu0 %v2352
        %v2419 = vpop.f32.mrb[0].mxu0
        %v2420 = vadd.f32 0.0, %v2419
        %v2421 = vpop.f32.mrb[0].mxu0
        %v2422 = vpop.f32.mrb[0].mxu0
        %v2423 = vadd.f32 0.0, %v2422
        %v2424 = vpop.f32.mrb[0].mxu0
        %2425 = vmatprep.mubr.bf16.mxu0 0
        %2426 = vmatmul.mubr.bf16.gmra.mrb[0].mxu0 %v2355
        %v2427 = vpop.f32.mrb[0].mxu0
        %v2428 = vadd.f32 0.0, %v2427
        %v2429 = vpop.f32.mrb[0].mxu0
        %v2430 = vpop.f32.mrb[0].mxu0
        %v2431 = vadd.f32 0.0, %v2430
        %v2432 = vpop.f32.mrb[0].mxu0
        %2433 = vmatprep.mubr.bf16.mxu0 0
        %2434 = vmatmul.mubr.bf16.gmra.mrb[0].mxu0 %v2358
        %v2435 = vpop.f32.mrb[0].mxu0
        %v2436 = vadd.f32 0.0, %v2435
        %v2437 = vpop.f32.mrb[0].mxu0
        %v2438 = vpop.f32.mrb[0].mxu0
        %v2439 = vadd.f32 0.0, %v2438
        %v2440 = vpop.f32.mrb[0].mxu0
        %2441 = vmatprep.mubr.bf16.mxu0 0
        %2442 = vmatmul.mubr.bf16.gmra.mrb[0].mxu0 %v2361
        %v2443 = vpop.f32.mrb[0].mxu0
        %v2444 = vadd.f32 0.0, %v2443
        %v2445 = vpop.f32.mrb[0].mxu0
        %v2446 = vpop.f32.mrb[0].mxu0
        %v2447 = vadd.f32 0.0, %v2446
        %v2448 = vpop.f32.mrb[0].mxu0
        %2449 = vmatprep.mubr.bf16.mxu0 0
        %2450 = vmatmul.mubr.bf16.gmra.mrb[0].mxu0 %v2364
        %v2451 = vpop.f32.mrb[0].mxu0
        %v2452 = vadd.f32 0.0, %v2451
        %v2453 = vpop.f32.mrb[0].mxu0
        %v2454 = vpop.f32.mrb[0].mxu0
        %v2455 = vadd.f32 0.0, %v2454
        %v2456 = vpop.f32.mrb[0].mxu0
        %2457 = vmatprep.mubr.bf16.mxu0 0
        %2458 = vmatmul.mubr.bf16.gmra.mrb[0].mxu0 %v2367
        %v2459 = vpop.f32.mrb[0].mxu0
        %v2460 = vadd.f32 0.0, %v2459
        %v2461 = vpop.f32.mrb[0].mxu0
        %v2462 = vpop.f32.mrb[0].mxu0
        %v2463 = vadd.f32 0.0, %v2462
        %v2464 = vpop.f32.mrb[0].mxu0
        %2465 = vdwg.mxu0
        %v2466 = vadd.f32 %v2081, %v2404
        %v2467 = vadd.f32 %v2082, %v2407
        %v2468 = vadd.f32 %v2083, %v2412
        %v2469 = vadd.f32 %v2084, %v2415
        %v2470 = vadd.f32 %v2085, %v2420
        %v2471 = vadd.f32 %v2086, %v2423
        %v2472 = vadd.f32 %v2087, %v2428
        %v2473 = vadd.f32 %v2088, %v2431
        %v2474 = vadd.f32 %v2089, %v2436
        %v2475 = vadd.f32 %v2090, %v2439
        %v2476 = vadd.f32 %v2091, %v2444
        %v2477 = vadd.f32 %v2092, %v2447
        %v2478 = vadd.f32 %v2093, %v2452
        %v2479 = vadd.f32 %v2094, %v2455
        %v2480 = vadd.f32 %v2095, %v2460
        %v2481 = vadd.f32 %v2096, %v2463
        %v2482 = vld [vmem:[%s773] sm:$0xe]
        %v2483 = vld [vmem:[%s773 + $0xc] sm:$0xe]
        %v2484 = vld [vmem:[%s773 + $0x18] sm:$0xe]
        %v2485 = vld [vmem:[%s773 + $0x24] sm:$0xe]
        %v2486 = vld [vmem:[%s773 + $0x30] sm:$0xe]
        %v2487 = vld [vmem:[%s773 + $0x3c] sm:$0xe]
        %v2488 = vld [vmem:[%s773 + $0x48] sm:$0xe]
        %v2489 = vld [vmem:[%s773 + $0x54] sm:$0xe]
        %v2514 = vrot.slane %v2482, 5
        %v2515 = vrot.slane %v2514, 4
        %v2516 = vrot.slane %v2098, 5
        %v2517 = vsel %vm1670, %v2515, %v2516
        %v2518 = vrot.slane %v2516, 4
        %v2519 = vrot.slane %v2099, 5
        %v2520 = vsel %vm1670, %v2518, %v2519
        %v2521 = vrot.slane %v2483, 5
        %v2522 = vrot.slane %v2521, 4
        %v2523 = vrot.slane %v2101, 5
        %v2524 = vsel %vm1670, %v2522, %v2523
        %v2525 = vrot.slane %v2523, 4
        %v2526 = vrot.slane %v2102, 5
        %v2527 = vsel %vm1670, %v2525, %v2526
        %v2528 = vrot.slane %v2484, 5
        %v2529 = vrot.slane %v2528, 4
        %v2530 = vrot.slane %v2104, 5
        %v2531 = vsel %vm1670, %v2529, %v2530
        %v2532 = vrot.slane %v2530, 4
        %v2533 = vrot.slane %v2105, 5
        %v2534 = vsel %vm1670, %v2532, %v2533
        %v2535 = vrot.slane %v2485, 5
        %v2536 = vrot.slane %v2535, 4
        %v2537 = vrot.slane %v2107, 5
        %v2538 = vsel %vm1670, %v2536, %v2537
        %v2539 = vrot.slane %v2537, 4
        %v2540 = vrot.slane %v2108, 5
        %v2541 = vsel %vm1670, %v2539, %v2540
        %v2542 = vrot.slane %v2486, 5
        %v2543 = vrot.slane %v2542, 4
        %v2544 = vrot.slane %v2110, 5
        %v2545 = vsel %vm1670, %v2543, %v2544
        %v2546 = vrot.slane %v2544, 4
        %v2547 = vrot.slane %v2111, 5
        %v2548 = vsel %vm1670, %v2546, %v2547
        %v2549 = vrot.slane %v2487, 5
        %v2550 = vrot.slane %v2549, 4
        %v2551 = vrot.slane %v2113, 5
        %v2552 = vsel %vm1670, %v2550, %v2551
        %v2553 = vrot.slane %v2551, 4
        %v2554 = vrot.slane %v2114, 5
        %v2555 = vsel %vm1670, %v2553, %v2554
        %v2556 = vrot.slane %v2488, 5
        %v2557 = vrot.slane %v2556, 4
        %v2558 = vrot.slane %v2116, 5
        %v2559 = vsel %vm1670, %v2557, %v2558
        %v2560 = vrot.slane %v2558, 4
        %v2561 = vrot.slane %v2117, 5
        %v2562 = vsel %vm1670, %v2560, %v2561
        %v2563 = vrot.slane %v2489, 5
        %v2564 = vrot.slane %v2563, 4
        %v2565 = vrot.slane %v2119, 5
        %v2566 = vsel %vm1670, %v2564, %v2565
        %v2567 = vrot.slane %v2565, 4
        %v2568 = vrot.slane %v2120, 5
        %v2569 = vsel %vm1670, %v2567, %v2568
        %v2570 = vld [vmem:[%s3 + $0x28] sm:$0xf]
        %v2571 = vld [vmem:[%s3 + $0x2c] sm:$0xf]
        %v2572 = vunpack.c.l.b16 %v2517
        %v2573 = vunpack.c.l.b16 %v2520
        %v2574 = vunpack.c.l.b16 %v2524
        %v2575 = vunpack.c.l.b16 %v2527
        %v2576 = vunpack.c.l.b16 %v2531
        %v2577 = vunpack.c.l.b16 %v2534
        %v2578 = vunpack.c.l.b16 %v2538
        %v2579 = vunpack.c.l.b16 %v2541
        %v2580 = vunpack.c.l.b16 %v2545
        %v2581 = vunpack.c.l.b16 %v2548
        %v2582 = vunpack.c.l.b16 %v2552
        %v2583 = vunpack.c.l.b16 %v2555
        %v2584 = vunpack.c.l.b16 %v2559
        %v2585 = vunpack.c.l.b16 %v2562
        %v2586 = vunpack.c.l.b16 %v2566
        %v2587 = vunpack.c.l.b16 %v2569
        %v2588 = vpack.c.b16 %v2573, %v2572
        %v2589 = vpack.c.b16 %v2575, %v2574
        %v2590 = vpack.c.b16 %v2577, %v2576
        %v2591 = vpack.c.b16 %v2579, %v2578
        %v2592 = vpack.c.b16 %v2581, %v2580
        %v2593 = vpack.c.b16 %v2583, %v2582
        %v2594 = vpack.c.b16 %v2585, %v2584
        %v2595 = vpack.c.b16 %v2587, %v2586
        %v2598 = vunpack.c.l.b16 %v2570
        %v2599 = vunpack.c.l.b16 %v2571
        %v2600 = vpack.c.b16 %v2599, %v2598
        %v2603 = vsel %vm1355, %v2588, 0
        %v2606 = vsel %vm1355, %v2589, 0
        %v2609 = vsel %vm1355, %v2590, 0
        %v2612 = vsel %vm1355, %v2591, 0
        %v2615 = vsel %vm1355, %v2592, 0
        %v2618 = vsel %vm1355, %v2593, 0
        %v2621 = vsel %vm1355, %v2594, 0
        %v2624 = vsel %vm1355, %v2595, 0
        %2626 = vmatprep.subr.bf16.mxu0 0
        %2627 = vmatpush1.bf16.msra.mxu0 %v2600
        %2628 = vmatprep.subr.bf16.mxu0 0
        %2629 = vmatpush1.bf16.msra.mxu0 0
        %2630 = vmatprep.subr.bf16.mxu0 0
        %2631 = vmatpush1.bf16.msra.mxu0 0
        %2632 = vmatprep.subr.bf16.mxu0 0
        %2633 = vmatpush1.bf16.msra.mxu0 0
        %2634 = vmatprep.subr.bf16.mxu0 0
        %2635 = vmatpush1.bf16.msra.mxu0 0
        %2636 = vmatprep.subr.bf16.mxu0 0
        %2637 = vmatpush1.bf16.msra.mxu0 0
        %2638 = vmatprep.subr.bf16.mxu0 0
        %2639 = vmatpush1.bf16.msra.mxu0 0
        %2640 = vmatprep.subr.bf16.mxu0 0
        %2641 = vmatpush1.bf16.msra.mxu0 0
        %2642 = vmatprep.subr.bf16.mxu0 0
        %2643 = vmatpush1.bf16.msra.mxu0 0
        %2644 = vmatprep.subr.bf16.mxu0 0
        %2645 = vmatpush1.bf16.msra.mxu0 0
        %2646 = vmatprep.subr.bf16.mxu0 0
        %2647 = vmatpush1.bf16.msra.mxu0 0
        %2648 = vmatprep.subr.bf16.mxu0 0
        %2649 = vmatpush1.bf16.msra.mxu0 0
        %2650 = vmatprep.subr.bf16.mxu0 0
        %2651 = vmatpush1.bf16.msra.mxu0 0
        %2652 = vmatprep.subr.bf16.mxu0 0
        %2653 = vmatpush1.bf16.msra.mxu0 0
        %2654 = vmatprep.subr.bf16.mxu0 0
        %2655 = vmatpush1.bf16.msra.mxu0 0
        %2656 = vmatprep.subr.bf16.mxu0 0
        %2657 = vmatpush1.bf16.msra.mxu0 0
        %2658 = vmatprep.mubr.bf16.mxu0 0
        %2659 = vmatmul.mubr.bf16.gmra.mrb[0].mxu0 %v2603
        %v2660 = vpop.f32.mrb[0].mxu0
        %v2661 = vadd.f32 0.0, %v2660
        %v2662 = vpop.f32.mrb[0].mxu0
        %v2663 = vpop.f32.mrb[0].mxu0
        %v2664 = vadd.f32 0.0, %v2663
        %v2665 = vpop.f32.mrb[0].mxu0
        %2666 = vmatprep.mubr.bf16.mxu0 0
        %2667 = vmatmul.mubr.bf16.gmra.mrb[0].mxu0 %v2606
        %v2668 = vpop.f32.mrb[0].mxu0
        %v2669 = vadd.f32 0.0, %v2668
        %v2670 = vpop.f32.mrb[0].mxu0
        %v2671 = vpop.f32.mrb[0].mxu0
        %v2672 = vadd.f32 0.0, %v2671
        %v2673 = vpop.f32.mrb[0].mxu0
        %2674 = vmatprep.mubr.bf16.mxu0 0
        %2675 = vmatmul.mubr.bf16.gmra.mrb[0].mxu0 %v2609
        %v2676 = vpop.f32.mrb[0].mxu0
        %v2677 = vadd.f32 0.0, %v2676
        %v2678 = vpop.f32.mrb[0].mxu0
        %v2679 = vpop.f32.mrb[0].mxu0
        %v2680 = vadd.f32 0.0, %v2679
        %v2681 = vpop.f32.mrb[0].mxu0
        %2682 = vmatprep.mubr.bf16.mxu0 0
        %2683 = vmatmul.mubr.bf16.gmra.mrb[0].mxu0 %v2612
        %v2684 = vpop.f32.mrb[0].mxu0
        %v2685 = vadd.f32 0.0, %v2684
        %v2686 = vpop.f32.mrb[0].mxu0
        %v2687 = vpop.f32.mrb[0].mxu0
        %v2688 = vadd.f32 0.0, %v2687
        %v2689 = vpop.f32.mrb[0].mxu0
        %2690 = vmatprep.mubr.bf16.mxu0 0
        %2691 = vmatmul.mubr.bf16.gmra.mrb[0].mxu0 %v2615
        %v2692 = vpop.f32.mrb[0].mxu0
        %v2693 = vadd.f32 0.0, %v2692
        %v2694 = vpop.f32.mrb[0].mxu0
        %v2695 = vpop.f32.mrb[0].mxu0
        %v2696 = vadd.f32 0.0, %v2695
        %v2697 = vpop.f32.mrb[0].mxu0
        %2698 = vmatprep.mubr.bf16.mxu0 0
        %2699 = vmatmul.mubr.bf16.gmra.mrb[0].mxu0 %v2618
        %v2700 = vpop.f32.mrb[0].mxu0
        %v2701 = vadd.f32 0.0, %v2700
        %v2702 = vpop.f32.mrb[0].mxu0
        %v2703 = vpop.f32.mrb[0].mxu0
        %v2704 = vadd.f32 0.0, %v2703
        %v2705 = vpop.f32.mrb[0].mxu0
        %2706 = vmatprep.mubr.bf16.mxu0 0
        %2707 = vmatmul.mubr.bf16.gmra.mrb[0].mxu0 %v2621
        %v2708 = vpop.f32.mrb[0].mxu0
        %v2709 = vadd.f32 0.0, %v2708
        %v2710 = vpop.f32.mrb[0].mxu0
        %v2711 = vpop.f32.mrb[0].mxu0
        %v2712 = vadd.f32 0.0, %v2711
        %v2713 = vpop.f32.mrb[0].mxu0
        %2714 = vmatprep.mubr.bf16.mxu0 0
        %2715 = vmatmul.mubr.bf16.gmra.mrb[0].mxu0 %v2624
        %v2716 = vpop.f32.mrb[0].mxu0
        %v2717 = vadd.f32 0.0, %v2716
        %v2718 = vpop.f32.mrb[0].mxu0
        %v2719 = vpop.f32.mrb[0].mxu0
        %v2720 = vadd.f32 0.0, %v2719
        %v2721 = vpop.f32.mrb[0].mxu0
        %2722 = vdwg.mxu0
        %v2723 = vadd.f32 %v2466, %v2661
        %v2724 = vadd.f32 %v2467, %v2664
        %v2725 = vadd.f32 %v2468, %v2669
        %v2726 = vadd.f32 %v2469, %v2672
        %v2727 = vadd.f32 %v2470, %v2677
        %v2728 = vadd.f32 %v2471, %v2680
        %v2729 = vadd.f32 %v2472, %v2685
        %v2730 = vadd.f32 %v2473, %v2688
        %v2731 = vadd.f32 %v2474, %v2693
        %v2732 = vadd.f32 %v2475, %v2696
        %v2733 = vadd.f32 %v2476, %v2701
        %v2734 = vadd.f32 %v2477, %v2704
        %v2735 = vadd.f32 %v2478, %v2709
        %v2736 = vadd.f32 %v2479, %v2712
        %v2737 = vadd.f32 %v2480, %v2717
        %v2738 = vadd.f32 %v2481, %v2720
        %s2739 = scalar_lea.vmem [#allocation2], 24
        %v2740 = vld [vmem:[%s2739] sm:$0xf]
        %v2741 = vld [vmem:[%s2739 + $0x4] sm:$0xf]
        %v2742 = vld [vmem:[%s2739 + $0xc] sm:$0xf]
        %v2743 = vld [vmem:[%s2739 + $0x10] sm:$0xf]
        %v2744 = vld [vmem:[%s2739 + $0x18] sm:$0xf]
        %v2745 = vld [vmem:[%s2739 + $0x1c] sm:$0xf]
        %v2746 = vld [vmem:[%s2739 + $0x24] sm:$0xf]
        %v2747 = vld [vmem:[%s2739 + $0x28] sm:$0xf]
        %v2748 = vld [vmem:[%s2739 + $0x30] sm:$0xf]
        %v2749 = vld [vmem:[%s2739 + $0x34] sm:$0xf]
        %v2750 = vld [vmem:[%s2739 + $0x3c] sm:$0xf]
        %v2751 = vld [vmem:[%s2739 + $0x40] sm:$0xf]
        %v2752 = vld [vmem:[%s2739 + $0x48] sm:$0xf]
        %v2753 = vld [vmem:[%s2739 + $0x4c] sm:$0xf]
        %v2754 = vld [vmem:[%s2739 + $0x54] sm:$0xf]
        %v2755 = vld [vmem:[%s2739 + $0x58] sm:$0xf]
        %v2756 = vld [vmem:[%s3 + $0x30] sm:$0xf]
        %v2757 = vld [vmem:[%s3 + $0x34] sm:$0xf]
        %v2774 = vunpack.c.l.b16 %v2740
        %v2775 = vunpack.c.l.b16 %v2741
        %v2776 = vunpack.c.l.b16 %v2742
        %v2777 = vunpack.c.l.b16 %v2743
        %v2778 = vunpack.c.l.b16 %v2744
        %v2779 = vunpack.c.l.b16 %v2745
        %v2780 = vunpack.c.l.b16 %v2746
        %v2781 = vunpack.c.l.b16 %v2747
        %v2782 = vunpack.c.l.b16 %v2748
        %v2783 = vunpack.c.l.b16 %v2749
        %v2784 = vunpack.c.l.b16 %v2750
        %v2785 = vunpack.c.l.b16 %v2751
        %v2786 = vunpack.c.l.b16 %v2752
        %v2787 = vunpack.c.l.b16 %v2753
        %v2788 = vunpack.c.l.b16 %v2754
        %v2789 = vunpack.c.l.b16 %v2755
        %v2790 = vpack.c.b16 %v2775, %v2774
        %v2791 = vpack.c.b16 %v2777, %v2776
        %v2792 = vpack.c.b16 %v2779, %v2778
        %v2793 = vpack.c.b16 %v2781, %v2780
        %v2794 = vpack.c.b16 %v2783, %v2782
        %v2795 = vpack.c.b16 %v2785, %v2784
        %v2796 = vpack.c.b16 %v2787, %v2786
        %v2797 = vpack.c.b16 %v2789, %v2788
        %v2800 = vunpack.c.l.b16 %v2756
        %v2801 = vunpack.c.l.b16 %v2757
        %v2802 = vpack.c.b16 %v2801, %v2800
        %v2805 = vsel %vm1355, %v2790, 0
        %v2808 = vsel %vm1355, %v2791, 0
        %v2811 = vsel %vm1355, %v2792, 0
        %v2814 = vsel %vm1355, %v2793, 0
        %v2817 = vsel %vm1355, %v2794, 0
        %v2820 = vsel %vm1355, %v2795, 0
        %v2823 = vsel %vm1355, %v2796, 0
        %v2826 = vsel %vm1355, %v2797, 0
        %2828 = vmatprep.subr.bf16.mxu0 0
        %2829 = vmatpush1.bf16.msra.mxu0 %v2802
        %2830 = vmatprep.subr.bf16.mxu0 0
        %2831 = vmatpush1.bf16.msra.mxu0 0
        %2832 = vmatprep.subr.bf16.mxu0 0
        %2833 = vmatpush1.bf16.msra.mxu0 0
        %2834 = vmatprep.subr.bf16.mxu0 0
        %2835 = vmatpush1.bf16.msra.mxu0 0
        %2836 = vmatprep.subr.bf16.mxu0 0
        %2837 = vmatpush1.bf16.msra.mxu0 0
        %2838 = vmatprep.subr.bf16.mxu0 0
        %2839 = vmatpush1.bf16.msra.mxu0 0
        %2840 = vmatprep.subr.bf16.mxu0 0
        %2841 = vmatpush1.bf16.msra.mxu0 0
        %2842 = vmatprep.subr.bf16.mxu0 0
        %2843 = vmatpush1.bf16.msra.mxu0 0
        %2844 = vmatprep.subr.bf16.mxu0 0
        %2845 = vmatpush1.bf16.msra.mxu0 0
        %2846 = vmatprep.subr.bf16.mxu0 0
        %2847 = vmatpush1.bf16.msra.mxu0 0
        %2848 = vmatprep.subr.bf16.mxu0 0
        %2849 = vmatpush1.bf16.msra.mxu0 0
        %2850 = vmatprep.subr.bf16.mxu0 0
        %2851 = vmatpush1.bf16.msra.mxu0 0
        %2852 = vmatprep.subr.bf16.mxu0 0
        %2853 = vmatpush1.bf16.msra.mxu0 0
        %2854 = vmatprep.subr.bf16.mxu0 0
        %2855 = vmatpush1.bf16.msra.mxu0 0
        %2856 = vmatprep.subr.bf16.mxu0 0
        %2857 = vmatpush1.bf16.msra.mxu0 0
        %2858 = vmatprep.subr.bf16.mxu0 0
        %2859 = vmatpush1.bf16.msra.mxu0 0
        %2860 = vmatprep.mubr.bf16.mxu0 0
        %2861 = vmatmul.mubr.bf16.gmra.mrb[0].mxu0 %v2805
        %v2862 = vpop.f32.mrb[0].mxu0
        %v2863 = vadd.f32 0.0, %v2862
        %v2864 = vpop.f32.mrb[0].mxu0
        %v2865 = vpop.f32.mrb[0].mxu0
        %v2866 = vadd.f32 0.0, %v2865
        %v2867 = vpop.f32.mrb[0].mxu0
        %2868 = vmatprep.mubr.bf16.mxu0 0
        %2869 = vmatmul.mubr.bf16.gmra.mrb[0].mxu0 %v2808
        %v2870 = vpop.f32.mrb[0].mxu0
        %v2871 = vadd.f32 0.0, %v2870
        %v2872 = vpop.f32.mrb[0].mxu0
        %v2873 = vpop.f32.mrb[0].mxu0
        %v2874 = vadd.f32 0.0, %v2873
        %v2875 = vpop.f32.mrb[0].mxu0
        %2876 = vmatprep.mubr.bf16.mxu0 0
        %2877 = vmatmul.mubr.bf16.gmra.mrb[0].mxu0 %v2811
        %v2878 = vpop.f32.mrb[0].mxu0
        %v2879 = vadd.f32 0.0, %v2878
        %v2880 = vpop.f32.mrb[0].mxu0
        %v2881 = vpop.f32.mrb[0].mxu0
        %v2882 = vadd.f32 0.0, %v2881
        %v2883 = vpop.f32.mrb[0].mxu0
        %2884 = vmatprep.mubr.bf16.mxu0 0
        %2885 = vmatmul.mubr.bf16.gmra.mrb[0].mxu0 %v2814
        %v2886 = vpop.f32.mrb[0].mxu0
        %v2887 = vadd.f32 0.0, %v2886
        %v2888 = vpop.f32.mrb[0].mxu0
        %v2889 = vpop.f32.mrb[0].mxu0
        %v2890 = vadd.f32 0.0, %v2889
        %v2891 = vpop.f32.mrb[0].mxu0
        %2892 = vmatprep.mubr.bf16.mxu0 0
        %2893 = vmatmul.mubr.bf16.gmra.mrb[0].mxu0 %v2817
        %v2894 = vpop.f32.mrb[0].mxu0
        %v2895 = vadd.f32 0.0, %v2894
        %v2896 = vpop.f32.mrb[0].mxu0
        %v2897 = vpop.f32.mrb[0].mxu0
        %v2898 = vadd.f32 0.0, %v2897
        %v2899 = vpop.f32.mrb[0].mxu0
        %2900 = vmatprep.mubr.bf16.mxu0 0
        %2901 = vmatmul.mubr.bf16.gmra.mrb[0].mxu0 %v2820
        %v2902 = vpop.f32.mrb[0].mxu0
        %v2903 = vadd.f32 0.0, %v2902
        %v2904 = vpop.f32.mrb[0].mxu0
        %v2905 = vpop.f32.mrb[0].mxu0
        %v2906 = vadd.f32 0.0, %v2905
        %v2907 = vpop.f32.mrb[0].mxu0
        %2908 = vmatprep.mubr.bf16.mxu0 0
        %2909 = vmatmul.mubr.bf16.gmra.mrb[0].mxu0 %v2823
        %v2910 = vpop.f32.mrb[0].mxu0
        %v2911 = vadd.f32 0.0, %v2910
        %v2912 = vpop.f32.mrb[0].mxu0
        %v2913 = vpop.f32.mrb[0].mxu0
        %v2914 = vadd.f32 0.0, %v2913
        %v2915 = vpop.f32.mrb[0].mxu0
        %2916 = vmatprep.mubr.bf16.mxu0 0
        %2917 = vmatmul.mubr.bf16.gmra.mrb[0].mxu0 %v2826
        %v2918 = vpop.f32.mrb[0].mxu0
        %v2919 = vadd.f32 0.0, %v2918
        %v2920 = vpop.f32.mrb[0].mxu0
        %v2921 = vpop.f32.mrb[0].mxu0
        %v2922 = vadd.f32 0.0, %v2921
        %v2923 = vpop.f32.mrb[0].mxu0
        %2924 = vdwg.mxu0
        %v2925 = vadd.f32 %v2723, %v2863
        %v2926 = vadd.f32 %v2724, %v2866
        %v2927 = vadd.f32 %v2725, %v2871
        %v2928 = vadd.f32 %v2726, %v2874
        %v2929 = vadd.f32 %v2727, %v2879
        %v2930 = vadd.f32 %v2728, %v2882
        %v2931 = vadd.f32 %v2729, %v2887
        %v2932 = vadd.f32 %v2730, %v2890
        %v2933 = vadd.f32 %v2731, %v2895
        %v2934 = vadd.f32 %v2732, %v2898
        %v2935 = vadd.f32 %v2733, %v2903
        %v2936 = vadd.f32 %v2734, %v2906
        %v2937 = vadd.f32 %v2735, %v2911
        %v2938 = vadd.f32 %v2736, %v2914
        %v2939 = vadd.f32 %v2737, %v2919
        %v2940 = vadd.f32 %v2738, %v2922
        %v2941 = vld [vmem:[%s2739] sm:$0xf]
        %v2942 = vld [vmem:[%s2739 + $0x4] sm:$0xf]
        %v2943 = vld [vmem:[%s2739 + $0x8] sm:$0x1]
        %v2944 = vld [vmem:[%s2739 + $0xc] sm:$0xf]
        %v2945 = vld [vmem:[%s2739 + $0x10] sm:$0xf]
        %v2946 = vld [vmem:[%s2739 + $0x14] sm:$0x1]
        %v2947 = vld [vmem:[%s2739 + $0x18] sm:$0xf]
        %v2948 = vld [vmem:[%s2739 + $0x1c] sm:$0xf]
        %v2949 = vld [vmem:[%s2739 + $0x20] sm:$0x1]
        %v2950 = vld [vmem:[%s2739 + $0x24] sm:$0xf]
        %v2951 = vld [vmem:[%s2739 + $0x28] sm:$0xf]
        %v2952 = vld [vmem:[%s2739 + $0x2c] sm:$0x1]
        %v2953 = vld [vmem:[%s2739 + $0x30] sm:$0xf]
        %v2954 = vld [vmem:[%s2739 + $0x34] sm:$0xf]
        %v2955 = vld [vmem:[%s2739 + $0x38] sm:$0x1]
        %v2956 = vld [vmem:[%s2739 + $0x3c] sm:$0xf]
        %v2957 = vld [vmem:[%s2739 + $0x40] sm:$0xf]
        %v2958 = vld [vmem:[%s2739 + $0x44] sm:$0x1]
        %v2959 = vld [vmem:[%s2739 + $0x48] sm:$0xf]
        %v2960 = vld [vmem:[%s2739 + $0x4c] sm:$0xf]
        %v2961 = vld [vmem:[%s2739 + $0x50] sm:$0x1]
        %v2962 = vld [vmem:[%s2739 + $0x54] sm:$0xf]
        %v2963 = vld [vmem:[%s2739 + $0x58] sm:$0xf]
        %v2964 = vld [vmem:[%s2739 + $0x5c] sm:$0x1]
        %v2966 = vshrl.u32 %v2941, 16
        %v2968 = vrot.slane %v2966, 4
        %v2969 = vshll.u32 %v2941, 16
        %v2971 = vrot.slane %v2969, 5
        %v2972 = vor.u32 %v2968, %v2971
        %v2973 = vrot.slane %v2972, 4
        %v2975 = vshll.u32 %v2942, 16
        %v2977 = vrot.slane %v2975, 5
        %v2978 = vsel %vm1130, %v2973, %v2977
        %v2979 = vshrl.u32 %v2942, 16
        %v2981 = vrot.slane %v2979, 4
        %v2982 = vor.u32 %v2981, %v2977
        %v2983 = vrot.slane %v2982, 4
        %v2985 = vshll.u32 %v2943, 16
        %v2987 = vrot.slane %v2985, 5
        %v2988 = vsel %vm1130, %v2983, %v2987
        %v2990 = vshrl.u32 %v2944, 16
        %v2992 = vrot.slane %v2990, 4
        %v2993 = vshll.u32 %v2944, 16
        %v2995 = vrot.slane %v2993, 5
        %v2996 = vor.u32 %v2992, %v2995
        %v2997 = vrot.slane %v2996, 4
        %v2999 = vshll.u32 %v2945, 16
        %v3001 = vrot.slane %v2999, 5
        %v3002 = vsel %vm1130, %v2997, %v3001
        %v3003 = vshrl.u32 %v2945, 16
        %v3005 = vrot.slane %v3003, 4
        %v3006 = vor.u32 %v3005, %v3001
        %v3007 = vrot.slane %v3006, 4
        %v3009 = vshll.u32 %v2946, 16
        %v3011 = vrot.slane %v3009, 5
        %v3012 = vsel %vm1130, %v3007, %v3011
        %v3014 = vshrl.u32 %v2947, 16
        %v3016 = vrot.slane %v3014, 4
        %v3017 = vshll.u32 %v2947, 16
        %v3019 = vrot.slane %v3017, 5
        %v3020 = vor.u32 %v3016, %v3019
        %v3021 = vrot.slane %v3020, 4
        %v3023 = vshll.u32 %v2948, 16
        %v3025 = vrot.slane %v3023, 5
        %v3026 = vsel %vm1130, %v3021, %v3025
        %v3027 = vshrl.u32 %v2948, 16
        %v3029 = vrot.slane %v3027, 4
        %v3030 = vor.u32 %v3029, %v3025
        %v3031 = vrot.slane %v3030, 4
        %v3033 = vshll.u32 %v2949, 16
        %v3035 = vrot.slane %v3033, 5
        %v3036 = vsel %vm1130, %v3031, %v3035
        %v3038 = vshrl.u32 %v2950, 16
        %v3040 = vrot.slane %v3038, 4
        %v3041 = vshll.u32 %v2950, 16
        %v3043 = vrot.slane %v3041, 5
        %v3044 = vor.u32 %v3040, %v3043
        %v3045 = vrot.slane %v3044, 4
        %v3047 = vshll.u32 %v2951, 16
        %v3049 = vrot.slane %v3047, 5
        %v3050 = vsel %vm1130, %v3045, %v3049
        %v3051 = vshrl.u32 %v2951, 16
        %v3053 = vrot.slane %v3051, 4
        %v3054 = vor.u32 %v3053, %v3049
        %v3055 = vrot.slane %v3054, 4
        %v3057 = vshll.u32 %v2952, 16
        %v3059 = vrot.slane %v3057, 5
        %v3060 = vsel %vm1130, %v3055, %v3059
        %v3062 = vshrl.u32 %v2953, 16
        %v3064 = vrot.slane %v3062, 4
        %v3065 = vshll.u32 %v2953, 16
        %v3067 = vrot.slane %v3065, 5
        %v3068 = vor.u32 %v3064, %v3067
        %v3069 = vrot.slane %v3068, 4
        %v3071 = vshll.u32 %v2954, 16
        %v3073 = vrot.slane %v3071, 5
        %v3074 = vsel %vm1130, %v3069, %v3073
        %v3075 = vshrl.u32 %v2954, 16
        %v3077 = vrot.slane %v3075, 4
        %v3078 = vor.u32 %v3077, %v3073
        %v3079 = vrot.slane %v3078, 4
        %v3081 = vshll.u32 %v2955, 16
        %v3083 = vrot.slane %v3081, 5
        %v3084 = vsel %vm1130, %v3079, %v3083
        %v3086 = vshrl.u32 %v2956, 16
        %v3088 = vrot.slane %v3086, 4
        %v3089 = vshll.u32 %v2956, 16
        %v3091 = vrot.slane %v3089, 5
        %v3092 = vor.u32 %v3088, %v3091
        %v3093 = vrot.slane %v3092, 4
        %v3095 = vshll.u32 %v2957, 16
        %v3097 = vrot.slane %v3095, 5
        %v3098 = vsel %vm1130, %v3093, %v3097
        %v3099 = vshrl.u32 %v2957, 16
        %v3101 = vrot.slane %v3099, 4
        %v3102 = vor.u32 %v3101, %v3097
        %v3103 = vrot.slane %v3102, 4
        %v3105 = vshll.u32 %v2958, 16
        %v3107 = vrot.slane %v3105, 5
        %v3108 = vsel %vm1130, %v3103, %v3107
        %v3110 = vshrl.u32 %v2959, 16
        %v3112 = vrot.slane %v3110, 4
        %v3113 = vshll.u32 %v2959, 16
        %v3115 = vrot.slane %v3113, 5
        %v3116 = vor.u32 %v3112, %v3115
        %v3117 = vrot.slane %v3116, 4
        %v3119 = vshll.u32 %v2960, 16
        %v3121 = vrot.slane %v3119, 5
        %v3122 = vsel %vm1130, %v3117, %v3121
        %v3123 = vshrl.u32 %v2960, 16
        %v3125 = vrot.slane %v3123, 4
        %v3126 = vor.u32 %v3125, %v3121
        %v3127 = vrot.slane %v3126, 4
        %v3129 = vshll.u32 %v2961, 16
        %v3131 = vrot.slane %v3129, 5
        %v3132 = vsel %vm1130, %v3127, %v3131
        %v3134 = vshrl.u32 %v2962, 16
        %v3136 = vrot.slane %v3134, 4
        %v3137 = vshll.u32 %v2962, 16
        %v3139 = vrot.slane %v3137, 5
        %v3140 = vor.u32 %v3136, %v3139
        %v3141 = vrot.slane %v3140, 4
        %v3143 = vshll.u32 %v2963, 16
        %v3145 = vrot.slane %v3143, 5
        %v3146 = vsel %vm1130, %v3141, %v3145
        %v3147 = vshrl.u32 %v2963, 16
        %v3149 = vrot.slane %v3147, 4
        %v3150 = vor.u32 %v3149, %v3145
        %v3151 = vrot.slane %v3150, 4
        %v3153 = vshll.u32 %v2964, 16
        %v3155 = vrot.slane %v3153, 5
        %v3156 = vsel %vm1130, %v3151, %v3155
        %v3157 = vld [vmem:[%s3 + $0x38] sm:$0xf]
        %v3158 = vld [vmem:[%s3 + $0x3c] sm:$0xf]
        %v3159 = vunpack.c.l.b16 %v2978
        %v3160 = vunpack.c.l.b16 %v2988
        %v3161 = vunpack.c.l.b16 %v3002
        %v3162 = vunpack.c.l.b16 %v3012
        %v3163 = vunpack.c.l.b16 %v3026
        %v3164 = vunpack.c.l.b16 %v3036
        %v3165 = vunpack.c.l.b16 %v3050
        %v3166 = vunpack.c.l.b16 %v3060
        %v3167 = vunpack.c.l.b16 %v3074
        %v3168 = vunpack.c.l.b16 %v3084
        %v3169 = vunpack.c.l.b16 %v3098
        %v3170 = vunpack.c.l.b16 %v3108
        %v3171 = vunpack.c.l.b16 %v3122
        %v3172 = vunpack.c.l.b16 %v3132
        %v3173 = vunpack.c.l.b16 %v3146
        %v3174 = vunpack.c.l.b16 %v3156
        %v3175 = vpack.c.b16 %v3160, %v3159
        %v3176 = vpack.c.b16 %v3162, %v3161
        %v3177 = vpack.c.b16 %v3164, %v3163
        %v3178 = vpack.c.b16 %v3166, %v3165
        %v3179 = vpack.c.b16 %v3168, %v3167
        %v3180 = vpack.c.b16 %v3170, %v3169
        %v3181 = vpack.c.b16 %v3172, %v3171
        %v3182 = vpack.c.b16 %v3174, %v3173
        %v3185 = vunpack.c.l.b16 %v3157
        %v3186 = vunpack.c.l.b16 %v3158
        %v3187 = vpack.c.b16 %v3186, %v3185
        %v3190 = vsel %vm1355, %v3175, 0
        %v3193 = vsel %vm1355, %v3176, 0
        %v3196 = vsel %vm1355, %v3177, 0
        %v3199 = vsel %vm1355, %v3178, 0
        %v3202 = vsel %vm1355, %v3179, 0
        %v3205 = vsel %vm1355, %v3180, 0
        %v3208 = vsel %vm1355, %v3181, 0
        %v3211 = vsel %vm1355, %v3182, 0
        %3213 = vmatprep.subr.bf16.mxu0 0
        %3214 = vmatpush1.bf16.msra.mxu0 %v3187
        %3215 = vmatprep.subr.bf16.mxu0 0
        %3216 = vmatpush1.bf16.msra.mxu0 0
        %3217 = vmatprep.subr.bf16.mxu0 0
        %3218 = vmatpush1.bf16.msra.mxu0 0
        %3219 = vmatprep.subr.bf16.mxu0 0
        %3220 = vmatpush1.bf16.msra.mxu0 0
        %3221 = vmatprep.subr.bf16.mxu0 0
        %3222 = vmatpush1.bf16.msra.mxu0 0
        %3223 = vmatprep.subr.bf16.mxu0 0
        %3224 = vmatpush1.bf16.msra.mxu0 0
        %3225 = vmatprep.subr.bf16.mxu0 0
        %3226 = vmatpush1.bf16.msra.mxu0 0
        %3227 = vmatprep.subr.bf16.mxu0 0
        %3228 = vmatpush1.bf16.msra.mxu0 0
        %3229 = vmatprep.subr.bf16.mxu0 0
        %3230 = vmatpush1.bf16.msra.mxu0 0
        %3231 = vmatprep.subr.bf16.mxu0 0
        %3232 = vmatpush1.bf16.msra.mxu0 0
        %3233 = vmatprep.subr.bf16.mxu0 0
        %3234 = vmatpush1.bf16.msra.mxu0 0
        %3235 = vmatprep.subr.bf16.mxu0 0
        %3236 = vmatpush1.bf16.msra.mxu0 0
        %3237 = vmatprep.subr.bf16.mxu0 0
        %3238 = vmatpush1.bf16.msra.mxu0 0
        %3239 = vmatprep.subr.bf16.mxu0 0
        %3240 = vmatpush1.bf16.msra.mxu0 0
        %3241 = vmatprep.subr.bf16.mxu0 0
        %3242 = vmatpush1.bf16.msra.mxu0 0
        %3243 = vmatprep.subr.bf16.mxu0 0
        %3244 = vmatpush1.bf16.msra.mxu0 0
        %3245 = vmatprep.mubr.bf16.mxu0 0
        %3246 = vmatmul.mubr.bf16.gmra.mrb[0].mxu0 %v3190
        %v3247 = vpop.f32.mrb[0].mxu0
        %v3248 = vadd.f32 0.0, %v3247
        %v3249 = vpop.f32.mrb[0].mxu0
        %v3250 = vpop.f32.mrb[0].mxu0
        %v3251 = vadd.f32 0.0, %v3250
        %v3252 = vpop.f32.mrb[0].mxu0
        %3253 = vmatprep.mubr.bf16.mxu0 0
        %3254 = vmatmul.mubr.bf16.gmra.mrb[0].mxu0 %v3193
        %v3255 = vpop.f32.mrb[0].mxu0
        %v3256 = vadd.f32 0.0, %v3255
        %v3257 = vpop.f32.mrb[0].mxu0
        %v3258 = vpop.f32.mrb[0].mxu0
        %v3259 = vadd.f32 0.0, %v3258
        %v3260 = vpop.f32.mrb[0].mxu0
        %3261 = vmatprep.mubr.bf16.mxu0 0
        %3262 = vmatmul.mubr.bf16.gmra.mrb[0].mxu0 %v3196
        %v3263 = vpop.f32.mrb[0].mxu0
        %v3264 = vadd.f32 0.0, %v3263
        %v3265 = vpop.f32.mrb[0].mxu0
        %v3266 = vpop.f32.mrb[0].mxu0
        %v3267 = vadd.f32 0.0, %v3266
        %v3268 = vpop.f32.mrb[0].mxu0
        %3269 = vmatprep.mubr.bf16.mxu0 0
        %3270 = vmatmul.mubr.bf16.gmra.mrb[0].mxu0 %v3199
        %v3271 = vpop.f32.mrb[0].mxu0
        %v3272 = vadd.f32 0.0, %v3271
        %v3273 = vpop.f32.mrb[0].mxu0
        %v3274 = vpop.f32.mrb[0].mxu0
        %v3275 = vadd.f32 0.0, %v3274
        %v3276 = vpop.f32.mrb[0].mxu0
        %3277 = vmatprep.mubr.bf16.mxu0 0
        %3278 = vmatmul.mubr.bf16.gmra.mrb[0].mxu0 %v3202
        %v3279 = vpop.f32.mrb[0].mxu0
        %v3280 = vadd.f32 0.0, %v3279
        %v3281 = vpop.f32.mrb[0].mxu0
        %v3282 = vpop.f32.mrb[0].mxu0
        %v3283 = vadd.f32 0.0, %v3282
        %v3284 = vpop.f32.mrb[0].mxu0
        %3285 = vmatprep.mubr.bf16.mxu0 0
        %3286 = vmatmul.mubr.bf16.gmra.mrb[0].mxu0 %v3205
        %v3287 = vpop.f32.mrb[0].mxu0
        %v3288 = vadd.f32 0.0, %v3287
        %v3289 = vpop.f32.mrb[0].mxu0
        %v3290 = vpop.f32.mrb[0].mxu0
        %v3291 = vadd.f32 0.0, %v3290
        %v3292 = vpop.f32.mrb[0].mxu0
        %3293 = vmatprep.mubr.bf16.mxu0 0
        %3294 = vmatmul.mubr.bf16.gmra.mrb[0].mxu0 %v3208
        %v3295 = vpop.f32.mrb[0].mxu0
        %v3296 = vadd.f32 0.0, %v3295
        %v3297 = vpop.f32.mrb[0].mxu0
        %v3298 = vpop.f32.mrb[0].mxu0
        %v3299 = vadd.f32 0.0, %v3298
        %v3300 = vpop.f32.mrb[0].mxu0
        %3301 = vmatprep.mubr.bf16.mxu0 0
        %3302 = vmatmul.mubr.bf16.gmra.mrb[0].mxu0 %v3211
        %v3303 = vpop.f32.mrb[0].mxu0
        %v3304 = vadd.f32 0.0, %v3303
        %v3305 = vpop.f32.mrb[0].mxu0
        %v3306 = vpop.f32.mrb[0].mxu0
        %v3307 = vadd.f32 0.0, %v3306
        %v3308 = vpop.f32.mrb[0].mxu0
        %3309 = vdwg.mxu0
        %v3310 = vadd.f32 %v2925, %v3248
        %v3311 = vadd.f32 %v2926, %v3251
        %v3312 = vadd.f32 %v2927, %v3256
        %v3313 = vadd.f32 %v2928, %v3259
        %v3314 = vadd.f32 %v2929, %v3264
        %v3315 = vadd.f32 %v2930, %v3267
        %v3316 = vadd.f32 %v2931, %v3272
        %v3317 = vadd.f32 %v2932, %v3275
        %v3318 = vadd.f32 %v2933, %v3280
        %v3319 = vadd.f32 %v2934, %v3283
        %v3320 = vadd.f32 %v2935, %v3288
        %v3321 = vadd.f32 %v2936, %v3291
        %v3322 = vadd.f32 %v2937, %v3296
        %v3323 = vadd.f32 %v2938, %v3299
        %v3324 = vadd.f32 %v2939, %v3304
        %v3325 = vadd.f32 %v2940, %v3307
        %v3326 = vld [vmem:[%s2739] sm:$0xe]
        %v3327 = vld [vmem:[%s2739 + $0xc] sm:$0xe]
        %v3328 = vld [vmem:[%s2739 + $0x18] sm:$0xe]
        %v3329 = vld [vmem:[%s2739 + $0x24] sm:$0xe]
        %v3330 = vld [vmem:[%s2739 + $0x30] sm:$0xe]
        %v3331 = vld [vmem:[%s2739 + $0x3c] sm:$0xe]
        %v3332 = vld [vmem:[%s2739 + $0x48] sm:$0xe]
        %v3333 = vld [vmem:[%s2739 + $0x54] sm:$0xe]
        %v3358 = vrot.slane %v3326, 5
        %v3359 = vrot.slane %v3358, 4
        %v3360 = vrot.slane %v2942, 5
        %v3361 = vsel %vm1670, %v3359, %v3360
        %v3362 = vrot.slane %v3360, 4
        %v3363 = vrot.slane %v2943, 5
        %v3364 = vsel %vm1670, %v3362, %v3363
        %v3365 = vrot.slane %v3327, 5
        %v3366 = vrot.slane %v3365, 4
        %v3367 = vrot.slane %v2945, 5
        %v3368 = vsel %vm1670, %v3366, %v3367
        %v3369 = vrot.slane %v3367, 4
        %v3370 = vrot.slane %v2946, 5
        %v3371 = vsel %vm1670, %v3369, %v3370
        %v3372 = vrot.slane %v3328, 5
        %v3373 = vrot.slane %v3372, 4
        %v3374 = vrot.slane %v2948, 5
        %v3375 = vsel %vm1670, %v3373, %v3374
        %v3376 = vrot.slane %v3374, 4
        %v3377 = vrot.slane %v2949, 5
        %v3378 = vsel %vm1670, %v3376, %v3377
        %v3379 = vrot.slane %v3329, 5
        %v3380 = vrot.slane %v3379, 4
        %v3381 = vrot.slane %v2951, 5
        %v3382 = vsel %vm1670, %v3380, %v3381
        %v3383 = vrot.slane %v3381, 4
        %v3384 = vrot.slane %v2952, 5
        %v3385 = vsel %vm1670, %v3383, %v3384
        %v3386 = vrot.slane %v3330, 5
        %v3387 = vrot.slane %v3386, 4
        %v3388 = vrot.slane %v2954, 5
        %v3389 = vsel %vm1670, %v3387, %v3388
        %v3390 = vrot.slane %v3388, 4
        %v3391 = vrot.slane %v2955, 5
        %v3392 = vsel %vm1670, %v3390, %v3391
        %v3393 = vrot.slane %v3331, 5
        %v3394 = vrot.slane %v3393, 4
        %v3395 = vrot.slane %v2957, 5
        %v3396 = vsel %vm1670, %v3394, %v3395
        %v3397 = vrot.slane %v3395, 4
        %v3398 = vrot.slane %v2958, 5
        %v3399 = vsel %vm1670, %v3397, %v3398
        %v3400 = vrot.slane %v3332, 5
        %v3401 = vrot.slane %v3400, 4
        %v3402 = vrot.slane %v2960, 5
        %v3403 = vsel %vm1670, %v3401, %v3402
        %v3404 = vrot.slane %v3402, 4
        %v3405 = vrot.slane %v2961, 5
        %v3406 = vsel %vm1670, %v3404, %v3405
        %v3407 = vrot.slane %v3333, 5
        %v3408 = vrot.slane %v3407, 4
        %v3409 = vrot.slane %v2963, 5
        %v3410 = vsel %vm1670, %v3408, %v3409
        %v3411 = vrot.slane %v3409, 4
        %v3412 = vrot.slane %v2964, 5
        %v3413 = vsel %vm1670, %v3411, %v3412
        %v3414 = vld [vmem:[%s3 + $0x40] sm:$0xf]
        %v3415 = vld [vmem:[%s3 + $0x44] sm:$0xf]
        %v3416 = vunpack.c.l.b16 %v3361
        %v3417 = vunpack.c.l.b16 %v3364
        %v3418 = vunpack.c.l.b16 %v3368
        %v3419 = vunpack.c.l.b16 %v3371
        %v3420 = vunpack.c.l.b16 %v3375
        %v3421 = vunpack.c.l.b16 %v3378
        %v3422 = vunpack.c.l.b16 %v3382
        %v3423 = vunpack.c.l.b16 %v3385
        %v3424 = vunpack.c.l.b16 %v3389
        %v3425 = vunpack.c.l.b16 %v3392
        %v3426 = vunpack.c.l.b16 %v3396
        %v3427 = vunpack.c.l.b16 %v3399
        %v3428 = vunpack.c.l.b16 %v3403
        %v3429 = vunpack.c.l.b16 %v3406
        %v3430 = vunpack.c.l.b16 %v3410
        %v3431 = vunpack.c.l.b16 %v3413
        %v3432 = vpack.c.b16 %v3417, %v3416
        %v3433 = vpack.c.b16 %v3419, %v3418
        %v3434 = vpack.c.b16 %v3421, %v3420
        %v3435 = vpack.c.b16 %v3423, %v3422
        %v3436 = vpack.c.b16 %v3425, %v3424
        %v3437 = vpack.c.b16 %v3427, %v3426
        %v3438 = vpack.c.b16 %v3429, %v3428
        %v3439 = vpack.c.b16 %v3431, %v3430
        %v3442 = vunpack.c.l.b16 %v3414
        %v3443 = vunpack.c.l.b16 %v3415
        %v3444 = vpack.c.b16 %v3443, %v3442
        %v3447 = vsel %vm1355, %v3432, 0
        %v3450 = vsel %vm1355, %v3433, 0
        %v3453 = vsel %vm1355, %v3434, 0
        %v3456 = vsel %vm1355, %v3435, 0
        %v3459 = vsel %vm1355, %v3436, 0
        %v3462 = vsel %vm1355, %v3437, 0
        %v3465 = vsel %vm1355, %v3438, 0
        %v3468 = vsel %vm1355, %v3439, 0
        %3470 = vmatprep.subr.bf16.mxu0 0
        %3471 = vmatpush1.bf16.msra.mxu0 %v3444
        %3472 = vmatprep.subr.bf16.mxu0 0
        %3473 = vmatpush1.bf16.msra.mxu0 0
        %3474 = vmatprep.subr.bf16.mxu0 0
        %3475 = vmatpush1.bf16.msra.mxu0 0
        %3476 = vmatprep.subr.bf16.mxu0 0
        %3477 = vmatpush1.bf16.msra.mxu0 0
        %3478 = vmatprep.subr.bf16.mxu0 0
        %3479 = vmatpush1.bf16.msra.mxu0 0
        %3480 = vmatprep.subr.bf16.mxu0 0
        %3481 = vmatpush1.bf16.msra.mxu0 0
        %3482 = vmatprep.subr.bf16.mxu0 0
        %3483 = vmatpush1.bf16.msra.mxu0 0
        %3484 = vmatprep.subr.bf16.mxu0 0
        %3485 = vmatpush1.bf16.msra.mxu0 0
        %3486 = vmatprep.subr.bf16.mxu0 0
        %3487 = vmatpush1.bf16.msra.mxu0 0
        %3488 = vmatprep.subr.bf16.mxu0 0
        %3489 = vmatpush1.bf16.msra.mxu0 0
        %3490 = vmatprep.subr.bf16.mxu0 0
        %3491 = vmatpush1.bf16.msra.mxu0 0
        %3492 = vmatprep.subr.bf16.mxu0 0
        %3493 = vmatpush1.bf16.msra.mxu0 0
        %3494 = vmatprep.subr.bf16.mxu0 0
        %3495 = vmatpush1.bf16.msra.mxu0 0
        %3496 = vmatprep.subr.bf16.mxu0 0
        %3497 = vmatpush1.bf16.msra.mxu0 0
        %3498 = vmatprep.subr.bf16.mxu0 0
        %3499 = vmatpush1.bf16.msra.mxu0 0
        %3500 = vmatprep.subr.bf16.mxu0 0
        %3501 = vmatpush1.bf16.msra.mxu0 0
        %3502 = vmatprep.mubr.bf16.mxu0 0
        %3503 = vmatmul.mubr.bf16.gmra.mrb[0].mxu0 %v3447
        %v3504 = vpop.f32.mrb[0].mxu0
        %v3505 = vadd.f32 0.0, %v3504
        %v3506 = vpop.f32.mrb[0].mxu0
        %v3507 = vpop.f32.mrb[0].mxu0
        %v3508 = vadd.f32 0.0, %v3507
        %v3509 = vpop.f32.mrb[0].mxu0
        %3510 = vmatprep.mubr.bf16.mxu0 0
        %3511 = vmatmul.mubr.bf16.gmra.mrb[0].mxu0 %v3450
        %v3512 = vpop.f32.mrb[0].mxu0
        %v3513 = vadd.f32 0.0, %v3512
        %v3514 = vpop.f32.mrb[0].mxu0
        %v3515 = vpop.f32.mrb[0].mxu0
        %v3516 = vadd.f32 0.0, %v3515
        %v3517 = vpop.f32.mrb[0].mxu0
        %3518 = vmatprep.mubr.bf16.mxu0 0
        %3519 = vmatmul.mubr.bf16.gmra.mrb[0].mxu0 %v3453
        %v3520 = vpop.f32.mrb[0].mxu0
        %v3521 = vadd.f32 0.0, %v3520
        %v3522 = vpop.f32.mrb[0].mxu0
        %v3523 = vpop.f32.mrb[0].mxu0
        %v3524 = vadd.f32 0.0, %v3523
        %v3525 = vpop.f32.mrb[0].mxu0
        %3526 = vmatprep.mubr.bf16.mxu0 0
        %3527 = vmatmul.mubr.bf16.gmra.mrb[0].mxu0 %v3456
        %v3528 = vpop.f32.mrb[0].mxu0
        %v3529 = vadd.f32 0.0, %v3528
        %v3530 = vpop.f32.mrb[0].mxu0
        %v3531 = vpop.f32.mrb[0].mxu0
        %v3532 = vadd.f32 0.0, %v3531
        %v3533 = vpop.f32.mrb[0].mxu0
        %3534 = vmatprep.mubr.bf16.mxu0 0
        %3535 = vmatmul.mubr.bf16.gmra.mrb[0].mxu0 %v3459
        %v3536 = vpop.f32.mrb[0].mxu0
        %v3537 = vadd.f32 0.0, %v3536
        %v3538 = vpop.f32.mrb[0].mxu0
        %v3539 = vpop.f32.mrb[0].mxu0
        %v3540 = vadd.f32 0.0, %v3539
        %v3541 = vpop.f32.mrb[0].mxu0
        %3542 = vmatprep.mubr.bf16.mxu0 0
        %3543 = vmatmul.mubr.bf16.gmra.mrb[0].mxu0 %v3462
        %v3544 = vpop.f32.mrb[0].mxu0
        %v3545 = vadd.f32 0.0, %v3544
        %v3546 = vpop.f32.mrb[0].mxu0
        %v3547 = vpop.f32.mrb[0].mxu0
        %v3548 = vadd.f32 0.0, %v3547
        %v3549 = vpop.f32.mrb[0].mxu0
        %3550 = vmatprep.mubr.bf16.mxu0 0
        %3551 = vmatmul.mubr.bf16.gmra.mrb[0].mxu0 %v3465
        %v3552 = vpop.f32.mrb[0].mxu0
        %v3553 = vadd.f32 0.0, %v3552
        %v3554 = vpop.f32.mrb[0].mxu0
        %v3555 = vpop.f32.mrb[0].mxu0
        %v3556 = vadd.f32 0.0, %v3555
        %v3557 = vpop.f32.mrb[0].mxu0
        %3558 = vmatprep.mubr.bf16.mxu0 0
        %3559 = vmatmul.mubr.bf16.gmra.mrb[0].mxu0 %v3468
        %v3560 = vpop.f32.mrb[0].mxu0
        %v3561 = vadd.f32 0.0, %v3560
        %v3562 = vpop.f32.mrb[0].mxu0
        %v3563 = vpop.f32.mrb[0].mxu0
        %v3564 = vadd.f32 0.0, %v3563
        %v3565 = vpop.f32.mrb[0].mxu0
        %3566 = vdwg.mxu0
        %v3567 = vadd.f32 %v3310, %v3505
        %v3568 = vadd.f32 %v3311, %v3508
        %v3569 = vadd.f32 %v3312, %v3513
        %v3570 = vadd.f32 %v3313, %v3516
        %v3571 = vadd.f32 %v3314, %v3521
        %v3572 = vadd.f32 %v3315, %v3524
        %v3573 = vadd.f32 %v3316, %v3529
        %v3574 = vadd.f32 %v3317, %v3532
        %v3575 = vadd.f32 %v3318, %v3537
        %v3576 = vadd.f32 %v3319, %v3540
        %v3577 = vadd.f32 %v3320, %v3545
        %v3578 = vadd.f32 %v3321, %v3548
        %v3579 = vadd.f32 %v3322, %v3553
        %v3580 = vadd.f32 %v3323, %v3556
        %v3581 = vadd.f32 %v3324, %v3561
        %v3582 = vadd.f32 %v3325, %v3564
        %v3583 = vld [vmem:[%s4] sm:$0x1]
        %v3585 = vlaneseq
        %v3586 = vshrl.u32 %v3585, 7
        %v3587 = vsub.s32 0, %v3586
        %v3588 = vrot.slane %v3583, %v3587
        %v3590 = vadd.f32 %v3567, %v3588
        %v3591 = vadd.f32 %v3568, %v3588
        %v3592 = vadd.f32 %v3569, %v3588
        %v3593 = vadd.f32 %v3570, %v3588
        %v3594 = vadd.f32 %v3571, %v3588
        %v3595 = vadd.f32 %v3572, %v3588
        %v3596 = vadd.f32 %v3573, %v3588
        %v3597 = vadd.f32 %v3574, %v3588
        %v3598 = vadd.f32 %v3575, %v3588
        %v3599 = vadd.f32 %v3576, %v3588
        %v3600 = vadd.f32 %v3577, %v3588
        %v3601 = vadd.f32 %v3578, %v3588
        %v3602 = vadd.f32 %v3579, %v3588
        %v3603 = vadd.f32 %v3580, %v3588
        %v3604 = vadd.f32 %v3581, %v3588
        %v3605 = vadd.f32 %v3582, %v3588
        %v3606 = vmax.f32 %v3590, 0.0
        %v3607 = vmax.f32 %v3591, 0.0
        %v3608 = vmax.f32 %v3592, 0.0
        %v3609 = vmax.f32 %v3593, 0.0
        %v3610 = vmax.f32 %v3594, 0.0
        %v3611 = vmax.f32 %v3595, 0.0
        %v3612 = vmax.f32 %v3596, 0.0
        %v3613 = vmax.f32 %v3597, 0.0
        %v3614 = vmax.f32 %v3598, 0.0
        %v3615 = vmax.f32 %v3599, 0.0
        %v3616 = vmax.f32 %v3600, 0.0
        %v3617 = vmax.f32 %v3601, 0.0
        %v3618 = vmax.f32 %v3602, 0.0
        %v3619 = vmax.f32 %v3603, 0.0
        %v3620 = vmax.f32 %v3604, 0.0
        %v3621 = vmax.f32 %v3605, 0.0
        %v3622 = vpack.c.bf16 %v3607, %v3606
        %v3623 = vpack.c.bf16 %v3609, %v3608
        %v3624 = vpack.c.bf16 %v3611, %v3610
        %v3625 = vpack.c.bf16 %v3613, %v3612
        %v3626 = vpack.c.bf16 %v3615, %v3614
        %v3627 = vpack.c.bf16 %v3617, %v3616
        %v3628 = vpack.c.bf16 %v3619, %v3618
        %v3629 = vpack.c.bf16 %v3621, %v3620
        %v3630 = vld [vmem:[%s5] sm:$0xf]
        %v3631 = vld [vmem:[%s5 + $0x4] sm:$0xf]
        %v3632 = vld [vmem:[%s6] sm:$0x1]
        %v3634 = vlaneseq
        %v3635 = vshrl.u32 %v3634, 7
        %v3636 = vsub.s32 0, %v3635
        %v3637 = vrot.slane %v3632, %v3636
        %v3641 = vunpack.c.l.b16 %v3630
        %v3642 = vunpack.c.l.b16 %v3631
        %v3643 = vpack.c.b16 %v3642, %v3641
        %v3646 = vsel %vm1355, %v3622, 0
        %v3649 = vsel %vm1355, %v3623, 0
        %v3652 = vsel %vm1355, %v3624, 0
        %v3655 = vsel %vm1355, %v3625, 0
        %v3658 = vsel %vm1355, %v3626, 0
        %v3661 = vsel %vm1355, %v3627, 0
        %v3664 = vsel %vm1355, %v3628, 0
        %v3667 = vsel %vm1355, %v3629, 0
        %3669 = vmatprep.subr.bf16.mxu0 0
        %3670 = vmatpush1.bf16.msra.mxu0 %v3643
        %3671 = vmatprep.subr.bf16.mxu0 0
        %3672 = vmatpush1.bf16.msra.mxu0 0
        %3673 = vmatprep.subr.bf16.mxu0 0
        %3674 = vmatpush1.bf16.msra.mxu0 0
        %3675 = vmatprep.subr.bf16.mxu0 0
        %3676 = vmatpush1.bf16.msra.mxu0 0
        %3677 = vmatprep.subr.bf16.mxu0 0
        %3678 = vmatpush1.bf16.msra.mxu0 0
        %3679 = vmatprep.subr.bf16.mxu0 0
        %3680 = vmatpush1.bf16.msra.mxu0 0
        %3681 = vmatprep.subr.bf16.mxu0 0
        %3682 = vmatpush1.bf16.msra.mxu0 0
        %3683 = vmatprep.subr.bf16.mxu0 0
        %3684 = vmatpush1.bf16.msra.mxu0 0
        %3685 = vmatprep.subr.bf16.mxu0 0
        %3686 = vmatpush1.bf16.msra.mxu0 0
        %3687 = vmatprep.subr.bf16.mxu0 0
        %3688 = vmatpush1.bf16.msra.mxu0 0
        %3689 = vmatprep.subr.bf16.mxu0 0
        %3690 = vmatpush1.bf16.msra.mxu0 0
        %3691 = vmatprep.subr.bf16.mxu0 0
        %3692 = vmatpush1.bf16.msra.mxu0 0
        %3693 = vmatprep.subr.bf16.mxu0 0
        %3694 = vmatpush1.bf16.msra.mxu0 0
        %3695 = vmatprep.subr.bf16.mxu0 0
        %3696 = vmatpush1.bf16.msra.mxu0 0
        %3697 = vmatprep.subr.bf16.mxu0 0
        %3698 = vmatpush1.bf16.msra.mxu0 0
        %3699 = vmatprep.subr.bf16.mxu0 0
        %3700 = vmatpush1.bf16.msra.mxu0 0
        %3701 = vmatprep.mubr.bf16.mxu0 0
        %3702 = vmatmul.mubr.bf16.gmra.mrb[0].mxu0 %v3646
        %v3703 = vpop.f32.mrb[0].mxu0
        %v3704 = vadd.f32 %v3637, %v3703
        %v3705 = vpop.f32.mrb[0].mxu0
        %v3706 = vpop.f32.mrb[0].mxu0
        %v3707 = vadd.f32 %v3637, %v3706
        %v3708 = vpop.f32.mrb[0].mxu0
        %3709 = vmatprep.mubr.bf16.mxu0 0
        %3710 = vmatmul.mubr.bf16.gmra.mrb[0].mxu0 %v3649
        %v3711 = vpop.f32.mrb[0].mxu0
        %v3712 = vadd.f32 %v3637, %v3711
        %v3713 = vpop.f32.mrb[0].mxu0
        %v3714 = vpop.f32.mrb[0].mxu0
        %v3715 = vadd.f32 %v3637, %v3714
        %v3716 = vpop.f32.mrb[0].mxu0
        %3717 = vmatprep.mubr.bf16.mxu0 0
        %3718 = vmatmul.mubr.bf16.gmra.mrb[0].mxu0 %v3652
        %v3719 = vpop.f32.mrb[0].mxu0
        %v3720 = vadd.f32 %v3637, %v3719
        %v3721 = vpop.f32.mrb[0].mxu0
        %v3722 = vpop.f32.mrb[0].mxu0
        %v3723 = vadd.f32 %v3637, %v3722
        %v3724 = vpop.f32.mrb[0].mxu0
        %3725 = vmatprep.mubr.bf16.mxu0 0
        %3726 = vmatmul.mubr.bf16.gmra.mrb[0].mxu0 %v3655
        %v3727 = vpop.f32.mrb[0].mxu0
        %v3728 = vadd.f32 %v3637, %v3727
        %v3729 = vpop.f32.mrb[0].mxu0
        %v3730 = vpop.f32.mrb[0].mxu0
        %v3731 = vadd.f32 %v3637, %v3730
        %v3732 = vpop.f32.mrb[0].mxu0
        %3733 = vmatprep.mubr.bf16.mxu0 0
        %3734 = vmatmul.mubr.bf16.gmra.mrb[0].mxu0 %v3658
        %v3735 = vpop.f32.mrb[0].mxu0
        %v3736 = vadd.f32 %v3637, %v3735
        %v3737 = vpop.f32.mrb[0].mxu0
        %v3738 = vpop.f32.mrb[0].mxu0
        %v3739 = vadd.f32 %v3637, %v3738
        %v3740 = vpop.f32.mrb[0].mxu0
        %3741 = vmatprep.mubr.bf16.mxu0 0
        %3742 = vmatmul.mubr.bf16.gmra.mrb[0].mxu0 %v3661
        %v3743 = vpop.f32.mrb[0].mxu0
        %v3744 = vadd.f32 %v3637, %v3743
        %v3745 = vpop.f32.mrb[0].mxu0
        %v3746 = vpop.f32.mrb[0].mxu0
        %v3747 = vadd.f32 %v3637, %v3746
        %v3748 = vpop.f32.mrb[0].mxu0
        %3749 = vmatprep.mubr.bf16.mxu0 0
        %3750 = vmatmul.mubr.bf16.gmra.mrb[0].mxu0 %v3664
        %v3751 = vpop.f32.mrb[0].mxu0
        %v3752 = vadd.f32 %v3637, %v3751
        %v3753 = vpop.f32.mrb[0].mxu0
        %v3754 = vpop.f32.mrb[0].mxu0
        %v3755 = vadd.f32 %v3637, %v3754
        %v3756 = vpop.f32.mrb[0].mxu0
        %3757 = vmatprep.mubr.bf16.mxu0 0
        %3758 = vmatmul.mubr.bf16.gmra.mrb[0].mxu0 %v3667
        %v3759 = vpop.f32.mrb[0].mxu0
        %v3760 = vadd.f32 %v3637, %v3759
        %v3761 = vpop.f32.mrb[0].mxu0
        %v3762 = vpop.f32.mrb[0].mxu0
        %v3763 = vadd.f32 %v3637, %v3762
        %v3764 = vpop.f32.mrb[0].mxu0
        %3765 = vdwg.mxu0
        %v3766 = vld [vmem:[%s328] sm:$0xf]
        %v3767 = vld [vmem:[%s328 + $0x4] sm:$0xf]
        %v3768 = vld [vmem:[%s328 + $0x8] sm:$0xf]
        %v3769 = vld [vmem:[%s328 + $0xc] sm:$0xf]
        %v3770 = vld [vmem:[%s328 + $0x10] sm:$0xf]
        %v3771 = vld [vmem:[%s328 + $0x14] sm:$0xf]
        %v3772 = vld [vmem:[%s328 + $0x18] sm:$0xf]
        %v3773 = vld [vmem:[%s328 + $0x1c] sm:$0xf]
        %v3774 = vld [vmem:[%s328 + $0x20] sm:$0xf]
        %v3775 = vld [vmem:[%s328 + $0x24] sm:$0xf]
        %v3776 = vld [vmem:[%s328 + $0x28] sm:$0xf]
        %v3777 = vld [vmem:[%s328 + $0x2c] sm:$0xf]
        %v3778 = vld [vmem:[%s328 + $0x30] sm:$0xf]
        %v3779 = vld [vmem:[%s328 + $0x34] sm:$0xf]
        %v3780 = vld [vmem:[%s328 + $0x38] sm:$0xf]
        %v3781 = vld [vmem:[%s328 + $0x3c] sm:$0xf]
        %v3782 = vunpack.c.l.bf16 %v3766
        %v3783 = vunpack.c.l.bf16 %v3767
        %v3784 = vunpack.c.l.bf16 %v3768
        %v3785 = vunpack.c.l.bf16 %v3769
        %v3786 = vunpack.c.l.bf16 %v3770
        %v3787 = vunpack.c.l.bf16 %v3771
        %v3788 = vunpack.c.l.bf16 %v3772
        %v3789 = vunpack.c.l.bf16 %v3773
        %v3790 = vunpack.c.l.bf16 %v3774
        %v3791 = vunpack.c.l.bf16 %v3775
        %v3792 = vunpack.c.l.bf16 %v3776
        %v3793 = vunpack.c.l.bf16 %v3777
        %v3794 = vunpack.c.l.bf16 %v3778
        %v3795 = vunpack.c.l.bf16 %v3779
        %v3796 = vunpack.c.l.bf16 %v3780
        %v3797 = vunpack.c.l.bf16 %v3781
        %v3798 = vadd.f32 %v3704, %v3782
        %v3799 = vadd.f32 %v3707, %v3783
        %v3800 = vadd.f32 %v3712, %v3784
        %v3801 = vadd.f32 %v3715, %v3785
        %v3802 = vadd.f32 %v3720, %v3786
        %v3803 = vadd.f32 %v3723, %v3787
        %v3804 = vadd.f32 %v3728, %v3788
        %v3805 = vadd.f32 %v3731, %v3789
        %v3806 = vadd.f32 %v3736, %v3790
        %v3807 = vadd.f32 %v3739, %v3791
        %v3808 = vadd.f32 %v3744, %v3792
        %v3809 = vadd.f32 %v3747, %v3793
        %v3810 = vadd.f32 %v3752, %v3794
        %v3811 = vadd.f32 %v3755, %v3795
        %v3812 = vadd.f32 %v3760, %v3796
        %v3813 = vadd.f32 %v3763, %v3797
        %v3814 = vmax.f32 %v3798, 0.0
        %v3815 = vmax.f32 %v3799, 0.0
        %v3816 = vmax.f32 %v3800, 0.0
        %v3817 = vmax.f32 %v3801, 0.0
        %v3818 = vmax.f32 %v3802, 0.0
        %v3819 = vmax.f32 %v3803, 0.0
        %v3820 = vmax.f32 %v3804, 0.0
        %v3821 = vmax.f32 %v3805, 0.0
        %v3822 = vmax.f32 %v3806, 0.0
        %v3823 = vmax.f32 %v3807, 0.0
        %v3824 = vmax.f32 %v3808, 0.0
        %v3825 = vmax.f32 %v3809, 0.0
        %v3826 = vmax.f32 %v3810, 0.0
        %v3827 = vmax.f32 %v3811, 0.0
        %v3828 = vmax.f32 %v3812, 0.0
        %v3829 = vmax.f32 %v3813, 0.0
        %v3830 = vpack.c.bf16 %v3815, %v3814
        %v3831 = vpack.c.bf16 %v3817, %v3816
        %v3832 = vpack.c.bf16 %v3819, %v3818
        %v3833 = vpack.c.bf16 %v3821, %v3820
        %v3834 = vpack.c.bf16 %v3823, %v3822
        %v3835 = vpack.c.bf16 %v3825, %v3824
        %v3836 = vpack.c.bf16 %v3827, %v3826
        %v3837 = vpack.c.bf16 %v3829, %v3828
        %v3846 = vunpack.c.l.b16 %v3830
        %v3847 = vunpack.c.h.b16 %v3830
        %v3848 = vunpack.c.l.b16 %v3831
        %v3849 = vunpack.c.h.b16 %v3831
        %v3850 = vunpack.c.l.b16 %v3832
        %v3851 = vunpack.c.h.b16 %v3832
        %v3852 = vunpack.c.l.b16 %v3833
        %v3853 = vunpack.c.h.b16 %v3833
        %v3854 = vunpack.c.l.b16 %v3834
        %v3855 = vunpack.c.h.b16 %v3834
        %v3856 = vunpack.c.l.b16 %v3835
        %v3857 = vunpack.c.h.b16 %v3835
        %v3858 = vunpack.c.l.b16 %v3836
        %v3859 = vunpack.c.h.b16 %v3836
        %v3860 = vunpack.c.l.b16 %v3837
        %v3861 = vunpack.c.h.b16 %v3837
        %v3862 = vpack.c.b16 %v3846, %v3846
        %v3863 = vpack.c.b16 %v3847, %v3847
        %v3864 = vpack.c.b16 %v3848, %v3848
        %v3865 = vpack.c.b16 %v3849, %v3849
        %v3866 = vpack.c.b16 %v3850, %v3850
        %v3867 = vpack.c.b16 %v3851, %v3851
        %v3868 = vpack.c.b16 %v3852, %v3852
        %v3869 = vpack.c.b16 %v3853, %v3853
        %v3870 = vpack.c.b16 %v3854, %v3854
        %v3871 = vpack.c.b16 %v3855, %v3855
        %v3872 = vpack.c.b16 %v3856, %v3856
        %v3873 = vpack.c.b16 %v3857, %v3857
        %v3874 = vpack.c.b16 %v3858, %v3858
        %v3875 = vpack.c.b16 %v3859, %v3859
        %v3876 = vpack.c.b16 %v3860, %v3860
        %v3877 = vpack.c.b16 %v3861, %v3861
        %vm3894 = vcmask 519168
        %3895 = vst.msk [vmem:[%s285] sm:$0xf] %vm3894, %v3862
        %3896 = vst.msk [vmem:[%s285 + $0x4] sm:$0xf] %vm3894, %v3863
        %3897 = vst.msk [vmem:[%s285 + $0x8] sm:$0xf] %vm3894, %v3864
        %3898 = vst.msk [vmem:[%s285 + $0xc] sm:$0xf] %vm3894, %v3865
        %3899 = vst.msk [vmem:[%s285 + $0x10] sm:$0xf] %vm3894, %v3866
        %3900 = vst.msk [vmem:[%s285 + $0x14] sm:$0xf] %vm3894, %v3867
        %3901 = vst.msk [vmem:[%s285 + $0x18] sm:$0xf] %vm3894, %v3868
        %3902 = vst.msk [vmem:[%s285 + $0x1c] sm:$0xf] %vm3894, %v3869
        %3903 = vst.msk [vmem:[%s285 + $0x20] sm:$0xf] %vm3894, %v3870
        %3904 = vst.msk [vmem:[%s285 + $0x24] sm:$0xf] %vm3894, %v3871
        %3905 = vst.msk [vmem:[%s285 + $0x28] sm:$0xf] %vm3894, %v3872
        %3906 = vst.msk [vmem:[%s285 + $0x2c] sm:$0xf] %vm3894, %v3873
        %3907 = vst.msk [vmem:[%s285 + $0x30] sm:$0xf] %vm3894, %v3874
        %3908 = vst.msk [vmem:[%s285 + $0x34] sm:$0xf] %vm3894, %v3875
        %3909 = vst.msk [vmem:[%s285 + $0x38] sm:$0xf] %vm3894, %v3876
        %3910 = vst.msk [vmem:[%s285 + $0x3c] sm:$0xf] %vm3894, %v3877
        %s3911 = sand.u32 %s195, 1
        %s3912 = scalar_lea.sflag [#allocation4], %s3911
        %s3913 = sand.u32 %s195, 1
        %s3914 = smul.addr %s3913, 64
        %s3915 = scalar_lea.vmem [#allocation3], %s3914
        // Predicated region
        $region57: #{run.3} parent=47 // pred_check
          %p3916 = pneg %p205
        $region58: #{run.3} parent=47 // pred_check_branch
          %3918 = sbr.rel (%p3916) target = $region60
        $region59: #{run.3} parent=47 // pred_region
          %s3919 = smul.u32 8, %s26
          %s3921 = ssub.s32 1024, 1024
          %3922 = vsyncadd %s3912, %s3921
          %s3923 = smul.addr %s3919, 2
          %s3924 = smul.addr %s25, 32
          %s3925 = sadd.s32 %s3923, %s3924
          %s3926 = smul.addr %s3925, 64
          %s3927 = scalar_lea.hbm %s7, %s3926
          %s3928 = sshll.u32 %s3915, 4
          %s3929 = int_to_ptr.vmem [resolvable:$true] %s3928
          %3934 = dma.vmem_to_hbm [thread:$0]  %s3929, 1024, %s3927, %s3912, 64, 64, 4
        $region60: #{run.3} parent=47 // pred_fallthru
          _
      $region48: #{run.3} parent=5 // pred_fallthru
        _
      %p3935 = scmp.le.s32.totalorder 2, %s16
      // Predicated region
      $region61: #{run.3} parent=5 // pred_check
        %p3936 = pneg %p3935
      $region62: #{run.3} parent=5 // pred_check_branch
        %3938 = sbr.rel (%p3936) target = $region64
      $region63: #{run.3} parent=5 // pred_region
        %s3939 = ssub.s32 %s16, 2
        // Predicated region
        $region65: #{run.3} parent=63 // pred_check
          %p3940 = pneg %p211
        $region66: #{run.3} parent=63 // pred_check_branch
          %3942 = sbr.rel (%p3940) target = $region68
        $region67: #{run.3} parent=63 // pred_region
          %s3943 = sand.u32 %s196, 1
          %s3944 = scalar_lea.sflag [#allocation4], %s3943
          %s3945 = sand.u32 %s196, 1
          %s3946 = smul.addr %s3945, 64
          %s3947 = scalar_lea.vmem [#allocation3], %s3946
          %3948 = dma.done %s3944, 1024
        $region68: #{run.3} parent=63 // pred_fallthru
          _
      $region64: #{run.3} parent=5 // pred_fallthru
        _
    $region6: #{run.3} parent=1 // loop_footer
      %s20 = sadd.s32 1, %s16
    $region7: #{run.3} parent=1 // loop_footer_branch
      %15 = sbr.rel target = $region3
    $region8: #{run.3} parent=1 // loop_exit
      _
    %3949 = vsyncpa [#allocation4], 1
    %s3950 = scalar_lea.sflag [#allocation4], 1
    %3951 = vsyncpa %s3950, 1

// kernel: run.2
$region0: #{run.2}
  #allocation0 [shape = 'u32[]', space=smem, size = 0x4, offset = 0x4, fixed_abs, tag = 'smem constant byte address 0x4 - core index']
  #allocation1 [shape = 'u32[144,128]{1,0:T(1,128)}', space=vmem, size = 0x12000, scoped, tag = 'internal scratch']
  #allocation2 [shape = 'bf16[10,18,16]{2,1,0:T(8,128)(2,1)}', space=vmem, size = 0xf000, scoped, tag = 'scratch operand']
  %s0 = inlined_call_operand.vmem [shape: bf16[2,16,16,32], index: 0, kind: input, shape index: {}]
  %s1 = inlined_call_operand.vmem [shape: bf16[32,16], index: 1, kind: input, shape index: {}]
  %s2 = inlined_call_operand.vmem [shape: f32[1,16], index: 2, kind: input, shape index: {}]
  %s3 = inlined_call_operand.vmem [shape: bf16[144,16], index: 3, kind: input, shape index: {}]
  %s4 = inlined_call_operand.vmem [shape: f32[1,16], index: 4, kind: input, shape index: {}]
  %s5 = inlined_call_operand.vmem [shape: bf16[16,64], index: 5, kind: input, shape index: {}]
  %s6 = inlined_call_operand.vmem [shape: f32[1,64], index: 6, kind: input, shape index: {}]
  %s7 = inlined_call_operand.vmem [shape: bf16[32,64], index: 7, kind: input, shape index: {}]
  %s8 = inlined_call_operand.vmem [shape: f32[1,64], index: 8, kind: input, shape index: {}]
  %s9 = inlined_call_operand.vmem [shape: bf16[2,16,16,64], index: 9, kind: output, shape index: {}]
  %s10 = sld [smem:[#allocation0]]
  $region77: #{run.2} parent=0
    _
  %s12 = ssub.s32 1, %s10
  %s13 = scalar_select 0, %s12, %s10
  loop: start=0, step=1, limit=6
  $region2: #{run.2} parent=0 // loop_pre_header
    _
  $region3: #{run.2} parent=0 // loop_header
    %s15 = sphi 0, %s19
    %p16 = scmp.ge.s32.totalorder %s15, 6
    %s22 = sphi 0, %s34
    %s23 = sphi 0, %s30
    %s24 = sphi 0, %s22
    %s25 = sphi 0, %s23
    %s26 = sphi 0, %s24
    %s27 = sphi 0, %s25
    %s37 = sphi 0, %s39
    %s40 = sphi 0, %s37
    %s41 = sphi 0, %s40
    %s57 = sphi 0, %s41
    %s61 = sphi 0, %s61
    %s63 = sphi 0, %s61
    %s64 = sphi 0, %s63
    %s78 = sphi 0, %s64
    %s82 = sphi 0, %s82
    %s84 = sphi 0, %s82
    %s85 = sphi 0, %s84
    %s99 = sphi 0, %s85
    %s103 = sphi 0, %s103
    %s105 = sphi 0, %s103
    %s106 = sphi 0, %s105
    %s120 = sphi 0, %s106
    %s124 = sphi 0, %s124
    %s126 = sphi 0, %s124
    %s127 = sphi 0, %s126
    %s141 = sphi 0, %s127
    %s145 = sphi 0, %s145
    %s147 = sphi 0, %s145
    %s148 = sphi 0, %s147
    %s162 = sphi 0, %s148
    %s166 = sphi 0, %s166
    %s168 = sphi 0, %s166
    %s169 = sphi 0, %s168
    %s183 = sphi 0, %s169
    %s187 = sphi 0, %s187
    %s189 = sphi 0, %s187
    %s190 = sphi 0, %s189
    %s204 = sphi 0, %s190
    %s208 = sphi 0, %s208
    %s210 = sphi 0, %s208
    %s211 = sphi 0, %s210
    %s225 = sphi 0, %s211
    %s233 = sphi 0, %s235
    %s236 = sphi 0, %s233
    %s237 = sphi 0, %s236
    %s253 = sphi 0, %s237
  $region4: #{run.2} parent=0 // loop_header_branch
    %18 = sbr.rel (%p16) target = $region8
  $region5: #{run.2} parent=0 // loop_body
    %s20 = ssub.s32 %s15, 1
    %s21 = ssub.s32 %s15, 2
    %s28 = sadd.s32 1, %s23
    %p29 = scmp.ge.s32.totalorder %s28, 2
    %s30 = scalar_select %p29, 0, %s28
    %s31 = sadd.s32 1, %s22
    %s32 = scalar_select %p29, %s31, %s22
    %p33 = scmp.ge.s32.totalorder %s32, 2
    %s34 = scalar_select %p33, 0, %s32
    %s35 = ssub.s32 %s22, %s34
    %p36 = scmp.eq.s32.totalorder %s35, 0
    %s38 = sadd.s32 %s37, 1
    %s39 = scalar_select %p36, %s37, %s38
    %p42 = pneg %p36
    %p43 = scmp.eq.s32.totalorder %s15, 3
    %p44 = por %p42, %p43
    %p45 = scmp.ne.s32.totalorder %s37, %s40
    %p46 = scmp.eq.s32.totalorder %s15, 0
    %p47 = por %p45, %p46
    %p48 = scmp.ne.s32.totalorder %s37, %s40
    %p49 = scmp.eq.s32.totalorder %s20, 3
    %p50 = por %p48, %p49
    %p51 = scmp.ne.s32.totalorder %s40, %s41
    %p52 = scmp.eq.s32.totalorder %s20, 0
    %p53 = por %p51, %p52
    %p54 = scmp.ne.s32.totalorder %s40, %s41
    %p55 = scmp.eq.s32.totalorder %s21, 3
    %p56 = por %p54, %p55
    %p58 = scmp.ne.s32.totalorder %s41, %s57
    %p59 = scmp.eq.s32.totalorder %s21, 0
    %p60 = por %p58, %p59
    %s62 = sadd.s32 %s61, 1
    %p65 = scmp.eq.s32.totalorder %s15, 3
    %p66 = scmp.ne.s32.totalorder %s61, %s63
    %p67 = scmp.eq.s32.totalorder %s15, 0
    %p68 = por %p66, %p67
    %p69 = scmp.ne.s32.totalorder %s61, %s63
    %p70 = scmp.eq.s32.totalorder %s20, 3
    %p71 = por %p69, %p70
    %p72 = scmp.ne.s32.totalorder %s63, %s64
    %p73 = scmp.eq.s32.totalorder %s20, 0
    %p74 = por %p72, %p73
    %p75 = scmp.ne.s32.totalorder %s63, %s64
    %p76 = scmp.eq.s32.totalorder %s21, 3
    %p77 = por %p75, %p76
    %p79 = scmp.ne.s32.totalorder %s64, %s78
    %p80 = scmp.eq.s32.totalorder %s21, 0
    %p81 = por %p79, %p80
    %s83 = sadd.s32 %s82, 1
    %p86 = scmp.eq.s32.totalorder %s15, 3
    %p87 = scmp.ne.s32.totalorder %s82, %s84
    %p88 = scmp.eq.s32.totalorder %s15, 0
    %p89 = por %p87, %p88
    %p90 = scmp.ne.s32.totalorder %s82, %s84
    %p91 = scmp.eq.s32.totalorder %s20, 3
    %p92 = por %p90, %p91
    %p93 = scmp.ne.s32.totalorder %s84, %s85
    %p94 = scmp.eq.s32.totalorder %s20, 0
    %p95 = por %p93, %p94
    %p96 = scmp.ne.s32.totalorder %s84, %s85
    %p97 = scmp.eq.s32.totalorder %s21, 3
    %p98 = por %p96, %p97
    %p100 = scmp.ne.s32.totalorder %s85, %s99
    %p101 = scmp.eq.s32.totalorder %s21, 0
    %p102 = por %p100, %p101
    %s104 = sadd.s32 %s103, 1
    %p107 = scmp.eq.s32.totalorder %s15, 3
    %p108 = scmp.ne.s32.totalorder %s103, %s105
    %p109 = scmp.eq.s32.totalorder %s15, 0
    %p110 = por %p108, %p109
    %p111 = scmp.ne.s32.totalorder %s103, %s105
    %p112 = scmp.eq.s32.totalorder %s20, 3
    %p113 = por %p111, %p112
    %p114 = scmp.ne.s32.totalorder %s105, %s106
    %p115 = scmp.eq.s32.totalorder %s20, 0
    %p116 = por %p114, %p115
    %p117 = scmp.ne.s32.totalorder %s105, %s106
    %p118 = scmp.eq.s32.totalorder %s21, 3
    %p119 = por %p117, %p118
    %p121 = scmp.ne.s32.totalorder %s106, %s120
    %p122 = scmp.eq.s32.totalorder %s21, 0
    %p123 = por %p121, %p122
    %s125 = sadd.s32 %s124, 1
    %p128 = scmp.eq.s32.totalorder %s15, 3
    %p129 = scmp.ne.s32.totalorder %s124, %s126
    %p130 = scmp.eq.s32.totalorder %s15, 0
    %p131 = por %p129, %p130
    %p132 = scmp.ne.s32.totalorder %s124, %s126
    %p133 = scmp.eq.s32.totalorder %s20, 3
    %p134 = por %p132, %p133
    %p135 = scmp.ne.s32.totalorder %s126, %s127
    %p136 = scmp.eq.s32.totalorder %s20, 0
    %p137 = por %p135, %p136
    %p138 = scmp.ne.s32.totalorder %s126, %s127
    %p139 = scmp.eq.s32.totalorder %s21, 3
    %p140 = por %p138, %p139
    %p142 = scmp.ne.s32.totalorder %s127, %s141
    %p143 = scmp.eq.s32.totalorder %s21, 0
    %p144 = por %p142, %p143
    %s146 = sadd.s32 %s145, 1
    %p149 = scmp.eq.s32.totalorder %s15, 3
    %p150 = scmp.ne.s32.totalorder %s145, %s147
    %p151 = scmp.eq.s32.totalorder %s15, 0
    %p152 = por %p150, %p151
    %p153 = scmp.ne.s32.totalorder %s145, %s147
    %p154 = scmp.eq.s32.totalorder %s20, 3
    %p155 = por %p153, %p154
    %p156 = scmp.ne.s32.totalorder %s147, %s148
    %p157 = scmp.eq.s32.totalorder %s20, 0
    %p158 = por %p156, %p157
    %p159 = scmp.ne.s32.totalorder %s147, %s148
    %p160 = scmp.eq.s32.totalorder %s21, 3
    %p161 = por %p159, %p160
    %p163 = scmp.ne.s32.totalorder %s148, %s162
    %p164 = scmp.eq.s32.totalorder %s21, 0
    %p165 = por %p163, %p164
    %s167 = sadd.s32 %s166, 1
    %p170 = scmp.eq.s32.totalorder %s15, 3
    %p171 = scmp.ne.s32.totalorder %s166, %s168
    %p172 = scmp.eq.s32.totalorder %s15, 0
    %p173 = por %p171, %p172
    %p174 = scmp.ne.s32.totalorder %s166, %s168
    %p175 = scmp.eq.s32.totalorder %s20, 3
    %p176 = por %p174, %p175
    %p177 = scmp.ne.s32.totalorder %s168, %s169
    %p178 = scmp.eq.s32.totalorder %s20, 0
    %p179 = por %p177, %p178
    %p180 = scmp.ne.s32.totalorder %s168, %s169
    %p181 = scmp.eq.s32.totalorder %s21, 3
    %p182 = por %p180, %p181
    %p184 = scmp.ne.s32.totalorder %s169, %s183
    %p185 = scmp.eq.s32.totalorder %s21, 0
    %p186 = por %p184, %p185
    %s188 = sadd.s32 %s187, 1
    %p191 = scmp.eq.s32.totalorder %s15, 3
    %p192 = scmp.ne.s32.totalorder %s187, %s189
    %p193 = scmp.eq.s32.totalorder %s15, 0
    %p194 = por %p192, %p193
    %p195 = scmp.ne.s32.totalorder %s187, %s189
    %p196 = scmp.eq.s32.totalorder %s20, 3
    %p197 = por %p195, %p196
    %p198 = scmp.ne.s32.totalorder %s189, %s190
    %p199 = scmp.eq.s32.totalorder %s20, 0
    %p200 = por %p198, %p199
    %p201 = scmp.ne.s32.totalorder %s189, %s190
    %p202 = scmp.eq.s32.totalorder %s21, 3
    %p203 = por %p201, %p202
    %p205 = scmp.ne.s32.totalorder %s190, %s204
    %p206 = scmp.eq.s32.totalorder %s21, 0
    %p207 = por %p205, %p206
    %s209 = sadd.s32 %s208, 1
    %p212 = scmp.eq.s32.totalorder %s15, 3
    %p213 = scmp.ne.s32.totalorder %s208, %s210
    %p214 = scmp.eq.s32.totalorder %s15, 0
    %p215 = por %p213, %p214
    %p216 = scmp.ne.s32.totalorder %s208, %s210
    %p217 = scmp.eq.s32.totalorder %s20, 3
    %p218 = por %p216, %p217
    %p219 = scmp.ne.s32.totalorder %s210, %s211
    %p220 = scmp.eq.s32.totalorder %s20, 0
    %p221 = por %p219, %p220
    %p222 = scmp.ne.s32.totalorder %s210, %s211
    %p223 = scmp.eq.s32.totalorder %s21, 3
    %p224 = por %p222, %p223
    %p226 = scmp.ne.s32.totalorder %s211, %s225
    %p227 = scmp.eq.s32.totalorder %s21, 0
    %p228 = por %p226, %p227
    %s229 = ssub.s32 %s22, %s34
    %s230 = ssub.s32 %s23, %s30
    %s231 = sor.u32 %s229, %s230
    %p232 = scmp.eq.s32.totalorder %s231, 0
    %s234 = sadd.s32 %s233, 1
    %s235 = scalar_select %p232, %s233, %s234
    %p238 = pneg %p232
    %p239 = scmp.eq.s32.totalorder %s15, 3
    %p240 = por %p238, %p239
    %p241 = scmp.ne.s32.totalorder %s233, %s236
    %p242 = scmp.eq.s32.totalorder %s15, 0
    %p243 = por %p241, %p242
    %p244 = scmp.ne.s32.totalorder %s233, %s236
    %p245 = scmp.eq.s32.totalorder %s20, 3
    %p246 = por %p244, %p245
    %p247 = scmp.ne.s32.totalorder %s236, %s237
    %p248 = scmp.eq.s32.totalorder %s20, 0
    %p249 = por %p247, %p248
    %p250 = scmp.ne.s32.totalorder %s236, %s237
    %p251 = scmp.eq.s32.totalorder %s21, 3
    %p252 = por %p250, %p251
    %p254 = scmp.ne.s32.totalorder %s237, %s253
    %p255 = scmp.eq.s32.totalorder %s21, 0
    %p256 = por %p254, %p255
    %p257 = scmp.le.s32.totalorder 1, %s15
    %p258 = scmp.lt.s32.totalorder %s15, 5
    %p259 = pnand %p257, %p258
    %p260 = pneg %p259
    // Predicated region
    $region9: #{run.2} parent=5 // pred_check
      _
    $region10: #{run.2} parent=5 // pred_check_branch
      %262 = sbr.rel (%p259) target = $region12
    $region11: #{run.2} parent=5 // pred_region
      %s263 = ssub.s32 %s15, 1
      // Predicated region
      $region13: #{run.2} parent=11 // pred_check
        %p264 = pneg %p74
      $region14: #{run.2} parent=11 // pred_check_branch
        %266 = sbr.rel (%p264) target = $region16
      $region15: #{run.2} parent=11 // pred_region
        _
      $region16: #{run.2} parent=11 // pred_fallthru
        _
      // Predicated region
      $region17: #{run.2} parent=11 // pred_check
        %p267 = pneg %p95
      $region18: #{run.2} parent=11 // pred_check_branch
        %269 = sbr.rel (%p267) target = $region20
      $region19: #{run.2} parent=11 // pred_region
        _
      $region20: #{run.2} parent=11 // pred_fallthru
        _
      // Predicated region
      $region21: #{run.2} parent=11 // pred_check
        %p270 = pneg %p116
      $region22: #{run.2} parent=11 // pred_check_branch
        %272 = sbr.rel (%p270) target = $region24
      $region23: #{run.2} parent=11 // pred_region
        _
      $region24: #{run.2} parent=11 // pred_fallthru
        _
      // Predicated region
      $region25: #{run.2} parent=11 // pred_check
        %p273 = pneg %p137
      $region26: #{run.2} parent=11 // pred_check_branch
        %275 = sbr.rel (%p273) target = $region28
      $region27: #{run.2} parent=11 // pred_region
        _
      $region28: #{run.2} parent=11 // pred_fallthru
        _
      // Predicated region
      $region29: #{run.2} parent=11 // pred_check
        %p276 = pneg %p158
      $region30: #{run.2} parent=11 // pred_check_branch
        %278 = sbr.rel (%p276) target = $region32
      $region31: #{run.2} parent=11 // pred_region
        _
      $region32: #{run.2} parent=11 // pred_fallthru
        _
      // Predicated region
      $region33: #{run.2} parent=11 // pred_check
        %p279 = pneg %p179
      $region34: #{run.2} parent=11 // pred_check_branch
        %281 = sbr.rel (%p279) target = $region36
      $region35: #{run.2} parent=11 // pred_region
        _
      $region36: #{run.2} parent=11 // pred_fallthru
        _
      // Predicated region
      $region37: #{run.2} parent=11 // pred_check
        %p282 = pneg %p200
      $region38: #{run.2} parent=11 // pred_check_branch
        %284 = sbr.rel (%p282) target = $region40
      $region39: #{run.2} parent=11 // pred_region
        _
      $region40: #{run.2} parent=11 // pred_fallthru
        _
      // Predicated region
      $region41: #{run.2} parent=11 // pred_check
        %p285 = pneg %p221
      $region42: #{run.2} parent=11 // pred_check_branch
        %287 = sbr.rel (%p285) target = $region44
      $region43: #{run.2} parent=11 // pred_region
        _
      $region44: #{run.2} parent=11 // pred_fallthru
        _
    $region12: #{run.2} parent=5 // pred_fallthru
      _
    %p288 = scmp.lt.s32.totalorder %s15, 4
    // Predicated region
    $region45: #{run.2} parent=5 // pred_check
      %p289 = pneg %p288
    $region46: #{run.2} parent=5 // pred_check_branch
      %291 = sbr.rel (%p289) target = $region48
    $region47: #{run.2} parent=5 // pred_region
      // Predicated region
      $region49: #{run.2} parent=47 // pred_check
        %p292 = pneg %p47
      $region50: #{run.2} parent=47 // pred_check_branch
        %294 = sbr.rel (%p292) target = $region52
      $region51: #{run.2} parent=47 // pred_region
        %p295 = scmp.lt.s32.totalorder %s22, 1
        %s296 = scalar_select %p295, %s22, 1
        %s297 = smul.addr %s296, 32
        %s298 = smul.addr %s297, 4
        %s299 = scalar_lea.vmem %s0, %s298
      $region52: #{run.2} parent=47 // pred_fallthru
        _
    $region48: #{run.2} parent=5 // pred_fallthru
      _
    %p300 = scmp.le.s32.totalorder 1, %s15
    %p301 = scmp.lt.s32.totalorder %s15, 5
    %p302 = pnand %p300, %p301
    %p303 = pneg %p302
    // Predicated region
    $region53: #{run.2} parent=5 // pred_check
      _
    $region54: #{run.2} parent=5 // pred_check_branch
      %305 = sbr.rel (%p302) target = $region56
    $region55: #{run.2} parent=5 // pred_region
      %s306 = ssub.s32 %s15, 1
      %p307 = scmp.lt.s32.totalorder %s24, 1
      %s308 = scalar_select %p307, %s24, 1
      %s309 = smul.addr %s308, 32
      %s310 = smul.addr %s309, 4
      %s311 = scalar_lea.vmem %s0, %s310
      %p312 = pneg %p53
      %p313 = pneg %p50
      %p314 = pneg %p74
      %p315 = pneg %p71
      %p316 = pneg %p95
      %p317 = pneg %p92
      %p318 = pneg %p116
      %p319 = pneg %p113
      %p320 = pneg %p137
      %p321 = pneg %p134
      %p322 = pneg %p158
      %p323 = pneg %p155
      %p324 = pneg %p179
      %p325 = pneg %p176
      %p326 = pneg %p200
      %p327 = pneg %p197
      %p328 = pneg %p221
      %p329 = pneg %p218
      %p330 = pneg %p249
      %p331 = pneg %p246
      %s332 = smul.u32 8, %s25
      %p333 = scmp.lt.s32.totalorder %s24, 1
      %s334 = scalar_select %p333, %s24, 1
      %p335 = scmp.lt.s32.totalorder %s332, 15
      %s336 = scalar_select %p335, %s332, 15
      %s337 = smul.addr %s336, 2
      %s338 = smul.addr %s334, 32
      %s339 = sadd.s32 %s337, %s338
      %s340 = smul.addr %s339, 4
      %s341 = scalar_lea.vmem %s9, %s340
      %p342 = scmp.lt.s32.totalorder %s24, 1
      %s343 = scalar_select %p342, %s24, 1
      %s344 = smul.addr %s343, 32
      %s345 = smul.addr %s344, 4
      %s346 = scalar_lea.vmem %s0, %s345
      %s347 = smul.u32 8, %s25
      %p348 = scmp.lt.s32.totalorder %s24, 1
      %s349 = scalar_select %p348, %s24, 1
      %p350 = scmp.lt.s32.totalorder %s347, 15
      %s351 = scalar_select %p350, %s347, 15
      %s352 = smul.addr %s351, 2
      %s353 = smul.addr %s349, 32
      %s354 = sadd.s32 %s352, %s353
      %s355 = smul.addr %s354, 4
      %s356 = scalar_lea.vmem %s9, %s355
      %s357 = smul.u32 8, %s25
      %vm359 = vcmask 125952
      %360 = vst.msk [vmem:[#allocation2] sm:$0xf] %vm359, 0
      %361 = vst.msk [vmem:[#allocation2 + $0x4] sm:$0xf] %vm359, 0
      %vm362 = vcmask 122880
      %363 = vst.msk [vmem:[#allocation2 + $0x8] sm:$0x1] %vm362, 0
      %364 = vst.msk [vmem:[#allocation2 + $0xc] sm:$0xf] %vm359, 0
      %365 = vst.msk [vmem:[#allocation2 + $0x10] sm:$0xf] %vm359, 0
      %366 = vst.msk [vmem:[#allocation2 + $0x14] sm:$0x1] %vm362, 0
      %367 = vst.msk [vmem:[#allocation2 + $0x18] sm:$0xf] %vm359, 0
      %368 = vst.msk [vmem:[#allocation2 + $0x1c] sm:$0xf] %vm359, 0
      %369 = vst.msk [vmem:[#allocation2 + $0x20] sm:$0x1] %vm362, 0
      %370 = vst.msk [vmem:[#allocation2 + $0x24] sm:$0xf] %vm359, 0
      %371 = vst.msk [vmem:[#allocation2 + $0x28] sm:$0xf] %vm359, 0
      %372 = vst.msk [vmem:[#allocation2 + $0x2c] sm:$0x1] %vm362, 0
      %373 = vst.msk [vmem:[#allocation2 + $0x30] sm:$0xf] %vm359, 0
      %374 = vst.msk [vmem:[#allocation2 + $0x34] sm:$0xf] %vm359, 0
      %375 = vst.msk [vmem:[#allocation2 + $0x38] sm:$0x1] %vm362, 0
      %376 = vst.msk [vmem:[#allocation2 + $0x3c] sm:$0xf] %vm359, 0
      %377 = vst.msk [vmem:[#allocation2 + $0x40] sm:$0xf] %vm359, 0
      %378 = vst.msk [vmem:[#allocation2 + $0x44] sm:$0x1] %vm362, 0
      %379 = vst.msk [vmem:[#allocation2 + $0x48] sm:$0xf] %vm359, 0
      %380 = vst.msk [vmem:[#allocation2 + $0x4c] sm:$0xf] %vm359, 0
      %381 = vst.msk [vmem:[#allocation2 + $0x50] sm:$0x1] %vm362, 0
      %382 = vst.msk [vmem:[#allocation2 + $0x54] sm:$0xf] %vm359, 0
      %383 = vst.msk [vmem:[#allocation2 + $0x58] sm:$0xf] %vm359, 0
      %384 = vst.msk [vmem:[#allocation2 + $0x5c] sm:$0x1] %vm362, 0
      %385 = vst.msk [vmem:[#allocation2 + $0x60] sm:$0xf] %vm359, 0
      %386 = vst.msk [vmem:[#allocation2 + $0x64] sm:$0xf] %vm359, 0
      %387 = vst.msk [vmem:[#allocation2 + $0x68] sm:$0x1] %vm362, 0
      %388 = vst.msk [vmem:[#allocation2 + $0x6c] sm:$0xf] %vm359, 0
      %389 = vst.msk [vmem:[#allocation2 + $0x70] sm:$0xf] %vm359, 0
      %390 = vst.msk [vmem:[#allocation2 + $0x74] sm:$0x1] %vm362, 0
      %s391 = smul.u32 %s25, 8
      %s392 = smul.u32 %s391, 2
      %s393 = smul.addr %s392, 4
      %s394 = scalar_lea.vmem %s346, %s393
      %v395 = vld [vmem:[%s394] sm:$0xf]
      %v396 = vld [vmem:[%s394 + $0x4] sm:$0xf]
      %v397 = vld [vmem:[%s394 + $0x8] sm:$0xf]
      %v398 = vld [vmem:[%s394 + $0xc] sm:$0xf]
      %v399 = vld [vmem:[%s394 + $0x10] sm:$0xf]
      %v400 = vld [vmem:[%s394 + $0x14] sm:$0xf]
      %v401 = vld [vmem:[%s394 + $0x18] sm:$0xf]
      %v402 = vld [vmem:[%s394 + $0x1c] sm:$0xf]
      %v403 = vld [vmem:[%s394 + $0x20] sm:$0xf]
      %v404 = vld [vmem:[%s394 + $0x24] sm:$0xf]
      %v405 = vld [vmem:[%s394 + $0x28] sm:$0xf]
      %v406 = vld [vmem:[%s394 + $0x2c] sm:$0xf]
      %v407 = vld [vmem:[%s394 + $0x30] sm:$0xf]
      %v408 = vld [vmem:[%s394 + $0x34] sm:$0xf]
      %v409 = vld [vmem:[%s394 + $0x38] sm:$0xf]
      %v410 = vld [vmem:[%s394 + $0x3c] sm:$0xf]
      %v411 = vld [vmem:[%s1] sm:$0xf]
      %v412 = vld [vmem:[%s1 + $0x4] sm:$0xf]
      %v413 = vld [vmem:[%s1 + $0x8] sm:$0xf]
      %v414 = vld [vmem:[%s1 + $0xc] sm:$0xf]
      %v415 = vld [vmem:[%s2] sm:$0x1]
      %v417 = vlaneseq
      %v418 = vshrl.u32 %v417, 7
      %v419 = vsub.s32 0, %v418
      %v420 = vrot.slane %v415, %v419
      %v438 = vunpack.c.l.b16 %v395
      %v439 = vunpack.c.l.b16 %v396
      %v440 = vunpack.c.l.b16 %v397
      %v441 = vunpack.c.l.b16 %v398
      %v442 = vunpack.c.l.b16 %v399
      %v443 = vunpack.c.l.b16 %v400
      %v444 = vunpack.c.l.b16 %v401
      %v445 = vunpack.c.l.b16 %v402
      %v446 = vunpack.c.l.b16 %v403
      %v447 = vunpack.c.l.b16 %v404
      %v448 = vunpack.c.l.b16 %v405
      %v449 = vunpack.c.l.b16 %v406
      %v450 = vunpack.c.l.b16 %v407
      %v451 = vunpack.c.l.b16 %v408
      %v452 = vunpack.c.l.b16 %v409
      %v453 = vunpack.c.l.b16 %v410
      %v454 = vpack.c.b16 %v439, %v438
      %v455 = vpack.c.b16 %v441, %v440
      %v456 = vpack.c.b16 %v443, %v442
      %v457 = vpack.c.b16 %v445, %v444
      %v458 = vpack.c.b16 %v447, %v446
      %v459 = vpack.c.b16 %v449, %v448
      %v460 = vpack.c.b16 %v451, %v450
      %v461 = vpack.c.b16 %v453, %v452
      %v466 = vunpack.c.l.b16 %v411
      %v467 = vunpack.c.l.b16 %v412
      %v468 = vunpack.c.l.b16 %v413
      %v469 = vunpack.c.l.b16 %v414
      %v470 = vpack.c.b16 %v467, %v466
      %v471 = vpack.c.b16 %v469, %v468
      %vm474 = vcmask 261120
      %v476 = vsel %vm474, %v454, 0
      %v479 = vsel %vm474, %v455, 0
      %v482 = vsel %vm474, %v456, 0
      %v485 = vsel %vm474, %v457, 0
      %v488 = vsel %vm474, %v458, 0
      %v491 = vsel %vm474, %v459, 0
      %v494 = vsel %vm474, %v460, 0
      %v497 = vsel %vm474, %v461, 0
      %499 = vmatprep.subr.bf16.mxu0 0
      %500 = vmatpush1.bf16.msra.mxu0 %v470
      %501 = vmatprep.subr.bf16.mxu0 0
      %502 = vmatpush1.bf16.msra.mxu0 %v471
      %503 = vmatprep.subr.bf16.mxu0 0
      %504 = vmatpush1.bf16.msra.mxu0 0
      %505 = vmatprep.subr.bf16.mxu0 0
      %506 = vmatpush1.bf16.msra.mxu0 0
      %507 = vmatprep.subr.bf16.mxu0 0
      %508 = vmatpush1.bf16.msra.mxu0 0
      %509 = vmatprep.subr.bf16.mxu0 0
      %510 = vmatpush1.bf16.msra.mxu0 0
      %511 = vmatprep.subr.bf16.mxu0 0
      %512 = vmatpush1.bf16.msra.mxu0 0
      %513 = vmatprep.subr.bf16.mxu0 0
      %514 = vmatpush1.bf16.msra.mxu0 0
      %515 = vmatprep.subr.bf16.mxu0 0
      %516 = vmatpush1.bf16.msra.mxu0 0
      %517 = vmatprep.subr.bf16.mxu0 0
      %518 = vmatpush1.bf16.msra.mxu0 0
      %519 = vmatprep.subr.bf16.mxu0 0
      %520 = vmatpush1.bf16.msra.mxu0 0
      %521 = vmatprep.subr.bf16.mxu0 0
      %522 = vmatpush1.bf16.msra.mxu0 0
      %523 = vmatprep.subr.bf16.mxu0 0
      %524 = vmatpush1.bf16.msra.mxu0 0
      %525 = vmatprep.subr.bf16.mxu0 0
      %526 = vmatpush1.bf16.msra.mxu0 0
      %527 = vmatprep.subr.bf16.mxu0 0
      %528 = vmatpush1.bf16.msra.mxu0 0
      %529 = vmatprep.subr.bf16.mxu0 0
      %530 = vmatpush1.bf16.msra.mxu0 0
      %531 = vmatprep.mubr.bf16.mxu0 0
      %532 = vmatmul.mubr.bf16.gmra.mrb[0].mxu0 %v476
      %v533 = vpop.f32.mrb[0].mxu0
      %v534 = vadd.f32 %v420, %v533
      %v535 = vpop.f32.mrb[0].mxu0
      %v536 = vpop.f32.mrb[0].mxu0
      %v537 = vadd.f32 %v420, %v536
      %v538 = vpop.f32.mrb[0].mxu0
      %539 = vmatprep.mubr.bf16.mxu0 0
      %540 = vmatmul.mubr.bf16.gmra.mrb[0].mxu0 %v479
      %v541 = vpop.f32.mrb[0].mxu0
      %v542 = vadd.f32 %v420, %v541
      %v543 = vpop.f32.mrb[0].mxu0
      %v544 = vpop.f32.mrb[0].mxu0
      %v545 = vadd.f32 %v420, %v544
      %v546 = vpop.f32.mrb[0].mxu0
      %547 = vmatprep.mubr.bf16.mxu0 0
      %548 = vmatmul.mubr.bf16.gmra.mrb[0].mxu0 %v482
      %v549 = vpop.f32.mrb[0].mxu0
      %v550 = vadd.f32 %v420, %v549
      %v551 = vpop.f32.mrb[0].mxu0
      %v552 = vpop.f32.mrb[0].mxu0
      %v553 = vadd.f32 %v420, %v552
      %v554 = vpop.f32.mrb[0].mxu0
      %555 = vmatprep.mubr.bf16.mxu0 0
      %556 = vmatmul.mubr.bf16.gmra.mrb[0].mxu0 %v485
      %v557 = vpop.f32.mrb[0].mxu0
      %v558 = vadd.f32 %v420, %v557
      %v559 = vpop.f32.mrb[0].mxu0
      %v560 = vpop.f32.mrb[0].mxu0
      %v561 = vadd.f32 %v420, %v560
      %v562 = vpop.f32.mrb[0].mxu0
      %563 = vmatprep.mubr.bf16.mxu0 0
      %564 = vmatmul.mubr.bf16.gmra.mrb[0].mxu0 %v488
      %v565 = vpop.f32.mrb[0].mxu0
      %v566 = vadd.f32 %v420, %v565
      %v567 = vpop.f32.mrb[0].mxu0
      %v568 = vpop.f32.mrb[0].mxu0
      %v569 = vadd.f32 %v420, %v568
      %v570 = vpop.f32.mrb[0].mxu0
      %571 = vmatprep.mubr.bf16.mxu0 0
      %572 = vmatmul.mubr.bf16.gmra.mrb[0].mxu0 %v491
      %v573 = vpop.f32.mrb[0].mxu0
      %v574 = vadd.f32 %v420, %v573
      %v575 = vpop.f32.mrb[0].mxu0
      %v576 = vpop.f32.mrb[0].mxu0
      %v577 = vadd.f32 %v420, %v576
      %v578 = vpop.f32.mrb[0].mxu0
      %579 = vmatprep.mubr.bf16.mxu0 0
      %580 = vmatmul.mubr.bf16.gmra.mrb[0].mxu0 %v494
      %v581 = vpop.f32.mrb[0].mxu0
      %v582 = vadd.f32 %v420, %v581
      %v583 = vpop.f32.mrb[0].mxu0
      %v584 = vpop.f32.mrb[0].mxu0
      %v585 = vadd.f32 %v420, %v584
      %v586 = vpop.f32.mrb[0].mxu0
      %587 = vmatprep.mubr.bf16.mxu0 0
      %588 = vmatmul.mubr.bf16.gmra.mrb[0].mxu0 %v497
      %v589 = vpop.f32.mrb[0].mxu0
      %v590 = vadd.f32 %v420, %v589
      %v591 = vpop.f32.mrb[0].mxu0
      %v592 = vpop.f32.mrb[0].mxu0
      %v593 = vadd.f32 %v420, %v592
      %v594 = vpop.f32.mrb[0].mxu0
      %595 = vdwg.mxu0
      %v596 = vmax.f32 %v534, 0.0
      %v597 = vmax.f32 %v537, 0.0
      %v598 = vmax.f32 %v542, 0.0
      %v599 = vmax.f32 %v545, 0.0
      %v600 = vmax.f32 %v550, 0.0
      %v601 = vmax.f32 %v553, 0.0
      %v602 = vmax.f32 %v558, 0.0
      %v603 = vmax.f32 %v561, 0.0
      %v604 = vmax.f32 %v566, 0.0
      %v605 = vmax.f32 %v569, 0.0
      %v606 = vmax.f32 %v574, 0.0
      %v607 = vmax.f32 %v577, 0.0
      %v608 = vmax.f32 %v582, 0.0
      %v609 = vmax.f32 %v585, 0.0
      %v610 = vmax.f32 %v590, 0.0
      %v611 = vmax.f32 %v593, 0.0
      %v612 = vpack.c.bf16 %v597, %v596
      %v613 = vpack.c.bf16 %v599, %v598
      %v614 = vpack.c.bf16 %v601, %v600
      %v615 = vpack.c.bf16 %v603, %v602
      %v616 = vpack.c.bf16 %v605, %v604
      %v617 = vpack.c.bf16 %v607, %v606
      %v618 = vpack.c.bf16 %v609, %v608
      %v619 = vpack.c.bf16 %v611, %v610
      %v628 = vunpack.c.l.b16 %v612
      %v629 = vunpack.c.h.b16 %v612
      %v630 = vunpack.c.l.b16 %v613
      %v631 = vunpack.c.h.b16 %v613
      %v632 = vunpack.c.l.b16 %v614
      %v633 = vunpack.c.h.b16 %v614
      %v634 = vunpack.c.l.b16 %v615
      %v635 = vunpack.c.h.b16 %v615
      %v636 = vunpack.c.l.b16 %v616
      %v637 = vunpack.c.h.b16 %v616
      %v638 = vunpack.c.l.b16 %v617
      %v639 = vunpack.c.h.b16 %v617
      %v640 = vunpack.c.l.b16 %v618
      %v641 = vunpack.c.h.b16 %v618
      %v642 = vunpack.c.l.b16 %v619
      %v643 = vunpack.c.h.b16 %v619
      %v644 = vpack.c.b16 %v628, %v628
      %v645 = vpack.c.b16 %v629, %v629
      %v646 = vpack.c.b16 %v630, %v630
      %v647 = vpack.c.b16 %v631, %v631
      %v648 = vpack.c.b16 %v632, %v632
      %v649 = vpack.c.b16 %v633, %v633
      %v650 = vpack.c.b16 %v634, %v634
      %v651 = vpack.c.b16 %v635, %v635
      %v652 = vpack.c.b16 %v636, %v636
      %v653 = vpack.c.b16 %v637, %v637
      %v654 = vpack.c.b16 %v638, %v638
      %v655 = vpack.c.b16 %v639, %v639
      %v656 = vpack.c.b16 %v640, %v640
      %v657 = vpack.c.b16 %v641, %v641
      %v658 = vpack.c.b16 %v642, %v642
      %v659 = vpack.c.b16 %v643, %v643
      %vm660 = vsmask.f32 256
      %vm661 = vsmask.f32 4368
      %vm662 = vmor %vm660, %vm661
      %v664 = vshrl.u32 %v644, 16
      %v666 = vrot.slane %v664, 7
      %v667 = vshll.u32 %v644, 16
      %v669 = vor.u32 %v666, %v667
      %v670 = vrot.slane %v666, 4
      %v672 = vshrl.u32 %v645, 16
      %v674 = vrot.slane %v672, 7
      %v675 = vshll.u32 %v645, 16
      %v677 = vor.u32 %v674, %v675
      %v678 = vsel %vm662, %v670, %v677
      %v679 = vrot.slane %v674, 4
      %v681 = vshrl.u32 %v646, 16
      %v683 = vrot.slane %v681, 7
      %v684 = vshll.u32 %v646, 16
      %v686 = vor.u32 %v683, %v684
      %v687 = vrot.slane %v683, 4
      %v689 = vshrl.u32 %v647, 16
      %v691 = vrot.slane %v689, 7
      %v692 = vshll.u32 %v647, 16
      %v694 = vor.u32 %v691, %v692
      %v695 = vsel %vm662, %v687, %v694
      %v696 = vrot.slane %v691, 4
      %v698 = vshrl.u32 %v648, 16
      %v700 = vrot.slane %v698, 7
      %v701 = vshll.u32 %v648, 16
      %v703 = vor.u32 %v700, %v701
      %v704 = vrot.slane %v700, 4
      %v706 = vshrl.u32 %v649, 16
      %v708 = vrot.slane %v706, 7
      %v709 = vshll.u32 %v649, 16
      %v711 = vor.u32 %v708, %v709
      %v712 = vsel %vm662, %v704, %v711
      %v713 = vrot.slane %v708, 4
      %v715 = vshrl.u32 %v650, 16
      %v717 = vrot.slane %v715, 7
      %v718 = vshll.u32 %v650, 16
      %v720 = vor.u32 %v717, %v718
      %v721 = vrot.slane %v717, 4
      %v723 = vshrl.u32 %v651, 16
      %v725 = vrot.slane %v723, 7
      %v726 = vshll.u32 %v651, 16
      %v728 = vor.u32 %v725, %v726
      %v729 = vsel %vm662, %v721, %v728
      %v730 = vrot.slane %v725, 4
      %v732 = vshrl.u32 %v652, 16
      %v734 = vrot.slane %v732, 7
      %v735 = vshll.u32 %v652, 16
      %v737 = vor.u32 %v734, %v735
      %v738 = vrot.slane %v734, 4
      %v740 = vshrl.u32 %v653, 16
      %v742 = vrot.slane %v740, 7
      %v743 = vshll.u32 %v653, 16
      %v745 = vor.u32 %v742, %v743
      %v746 = vsel %vm662, %v738, %v745
      %v747 = vrot.slane %v742, 4
      %v749 = vshrl.u32 %v654, 16
      %v751 = vrot.slane %v749, 7
      %v752 = vshll.u32 %v654, 16
      %v754 = vor.u32 %v751, %v752
      %v755 = vrot.slane %v751, 4
      %v757 = vshrl.u32 %v655, 16
      %v759 = vrot.slane %v757, 7
      %v760 = vshll.u32 %v655, 16
      %v762 = vor.u32 %v759, %v760
      %v763 = vsel %vm662, %v755, %v762
      %v764 = vrot.slane %v759, 4
      %v766 = vshrl.u32 %v656, 16
      %v768 = vrot.slane %v766, 7
      %v769 = vshll.u32 %v656, 16
      %v771 = vor.u32 %v768, %v769
      %v772 = vrot.slane %v768, 4
      %v774 = vshrl.u32 %v657, 16
      %v776 = vrot.slane %v774, 7
      %v777 = vshll.u32 %v657, 16
      %v779 = vor.u32 %v776, %v777
      %v780 = vsel %vm662, %v772, %v779
      %v781 = vrot.slane %v776, 4
      %v783 = vshrl.u32 %v658, 16
      %v785 = vrot.slane %v783, 7
      %v786 = vshll.u32 %v658, 16
      %v788 = vor.u32 %v785, %v786
      %v789 = vrot.slane %v785, 4
      %v791 = vshrl.u32 %v659, 16
      %v793 = vrot.slane %v791, 7
      %v794 = vshll.u32 %v659, 16
      %v796 = vor.u32 %v793, %v794
      %v797 = vsel %vm662, %v789, %v796
      %v798 = vrot.slane %v793, 4
      %s823 = scalar_lea.vmem [#allocation2], 12
      %vm824 = vcmask 125952
      %vm825 = vsmask.f32 7938
      %vm826 = vmand %vm824, %vm825
      %v827 = vld [vmem:[%s823] sm:$0xf]
      %v828 = vsel %vm826, %v669, %v827
      %829 = vst [vmem:[%s823] sm:$0xf] %v828
      %830 = vst.msk [vmem:[%s823 + $0x4] sm:$0xf] %vm359, %v678
      %vm831 = vcmask 122880
      %vm832 = vmand %vm831, %vm660
      %v833 = vld [vmem:[%s823 + $0x8] sm:$0x1]
      %v834 = vsel %vm832, %v679, %v833
      %835 = vst [vmem:[%s823 + $0x8] sm:$0x1] %v834
      %v836 = vld [vmem:[%s823 + $0xc] sm:$0xf]
      %v837 = vsel %vm826, %v686, %v836
      %838 = vst [vmem:[%s823 + $0xc] sm:$0xf] %v837
      %839 = vst.msk [vmem:[%s823 + $0x10] sm:$0xf] %vm359, %v695
      %v840 = vld [vmem:[%s823 + $0x14] sm:$0x1]
      %v841 = vsel %vm832, %v696, %v840
      %842 = vst [vmem:[%s823 + $0x14] sm:$0x1] %v841
      %v843 = vld [vmem:[%s823 + $0x18] sm:$0xf]
      %v844 = vsel %vm826, %v703, %v843
      %845 = vst [vmem:[%s823 + $0x18] sm:$0xf] %v844
      %846 = vst.msk [vmem:[%s823 + $0x1c] sm:$0xf] %vm359, %v712
      %v847 = vld [vmem:[%s823 + $0x20] sm:$0x1]
      %v848 = vsel %vm832, %v713, %v847
      %849 = vst [vmem:[%s823 + $0x20] sm:$0x1] %v848
      %v850 = vld [vmem:[%s823 + $0x24] sm:$0xf]
      %v851 = vsel %vm826, %v720, %v850
      %852 = vst [vmem:[%s823 + $0x24] sm:$0xf] %v851
      %853 = vst.msk [vmem:[%s823 + $0x28] sm:$0xf] %vm359, %v729
      %v854 = vld [vmem:[%s823 + $0x2c] sm:$0x1]
      %v855 = vsel %vm832, %v730, %v854
      %856 = vst [vmem:[%s823 + $0x2c] sm:$0x1] %v855
      %v857 = vld [vmem:[%s823 + $0x30] sm:$0xf]
      %v858 = vsel %vm826, %v737, %v857
      %859 = vst [vmem:[%s823 + $0x30] sm:$0xf] %v858
      %860 = vst.msk [vmem:[%s823 + $0x34] sm:$0xf] %vm359, %v746
      %v861 = vld [vmem:[%s823 + $0x38] sm:$0x1]
      %v862 = vsel %vm832, %v747, %v861
      %863 = vst [vmem:[%s823 + $0x38] sm:$0x1] %v862
      %v864 = vld [vmem:[%s823 + $0x3c] sm:$0xf]
      %v865 = vsel %vm826, %v754, %v864
      %866 = vst [vmem:[%s823 + $0x3c] sm:$0xf] %v865
      %867 = vst.msk [vmem:[%s823 + $0x40] sm:$0xf] %vm359, %v763
      %v868 = vld [vmem:[%s823 + $0x44] sm:$0x1]
      %v869 = vsel %vm832, %v764, %v868
      %870 = vst [vmem:[%s823 + $0x44] sm:$0x1] %v869
      %v871 = vld [vmem:[%s823 + $0x48] sm:$0xf]
      %v872 = vsel %vm826, %v771, %v871
      %873 = vst [vmem:[%s823 + $0x48] sm:$0xf] %v872
      %874 = vst.msk [vmem:[%s823 + $0x4c] sm:$0xf] %vm359, %v780
      %v875 = vld [vmem:[%s823 + $0x50] sm:$0x1]
      %v876 = vsel %vm832, %v781, %v875
      %877 = vst [vmem:[%s823 + $0x50] sm:$0x1] %v876
      %v878 = vld [vmem:[%s823 + $0x54] sm:$0xf]
      %v879 = vsel %vm826, %v788, %v878
      %880 = vst [vmem:[%s823 + $0x54] sm:$0xf] %v879
      %881 = vst.msk [vmem:[%s823 + $0x58] sm:$0xf] %vm359, %v797
      %v882 = vld [vmem:[%s823 + $0x5c] sm:$0x1]
      %v883 = vsel %vm832, %v798, %v882
      %884 = vst [vmem:[%s823 + $0x5c] sm:$0x1] %v883
      %p885 = scmp.gt.s32.totalorder %s25, 0
      // Predicated region
      $region57: #{run.2} parent=55 // pred_check
        %p886 = pneg %p885
      $region58: #{run.2} parent=55 // pred_check_branch
        %888 = sbr.rel (%p886) target = $region60
      $region59: #{run.2} parent=55 // pred_region
        %s889 = ssub.s32 %s391, 1
        %s890 = smul.u32 %s889, 2
        %s891 = smul.addr %s890, 4
        %s892 = scalar_lea.vmem %s346, %s891
        %v893 = vld [vmem:[%s892] sm:$0xf]
        %v894 = vld [vmem:[%s892 + $0x4] sm:$0xf]
        %v895 = vld [vmem:[%s1] sm:$0xf]
        %v896 = vld [vmem:[%s1 + $0x4] sm:$0xf]
        %v897 = vld [vmem:[%s1 + $0x8] sm:$0xf]
        %v898 = vld [vmem:[%s1 + $0xc] sm:$0xf]
        %v899 = vld [vmem:[%s2] sm:$0x1]
        %v901 = vlaneseq
        %v902 = vshrl.u32 %v901, 7
        %v903 = vsub.s32 0, %v902
        %v904 = vrot.slane %v899, %v903
        %v908 = vunpack.c.l.b16 %v893
        %v909 = vunpack.c.l.b16 %v894
        %v910 = vpack.c.b16 %v909, %v908
        %v915 = vunpack.c.l.b16 %v895
        %v916 = vunpack.c.l.b16 %v896
        %v917 = vunpack.c.l.b16 %v897
        %v918 = vunpack.c.l.b16 %v898
        %v919 = vpack.c.b16 %v916, %v915
        %v920 = vpack.c.b16 %v918, %v917
        %v924 = vsel %vm474, %v910, 0
        %926 = vmatprep.subr.bf16.mxu0 0
        %927 = vmatpush1.bf16.msra.mxu0 %v919
        %928 = vmatprep.subr.bf16.mxu0 0
        %929 = vmatpush1.bf16.msra.mxu0 %v920
        %930 = vmatprep.subr.bf16.mxu0 0
        %931 = vmatpush1.bf16.msra.mxu0 0
        %932 = vmatprep.subr.bf16.mxu0 0
        %933 = vmatpush1.bf16.msra.mxu0 0
        %934 = vmatprep.subr.bf16.mxu0 0
        %935 = vmatpush1.bf16.msra.mxu0 0
        %936 = vmatprep.subr.bf16.mxu0 0
        %937 = vmatpush1.bf16.msra.mxu0 0
        %938 = vmatprep.subr.bf16.mxu0 0
        %939 = vmatpush1.bf16.msra.mxu0 0
        %940 = vmatprep.subr.bf16.mxu0 0
        %941 = vmatpush1.bf16.msra.mxu0 0
        %942 = vmatprep.subr.bf16.mxu0 0
        %943 = vmatpush1.bf16.msra.mxu0 0
        %944 = vmatprep.subr.bf16.mxu0 0
        %945 = vmatpush1.bf16.msra.mxu0 0
        %946 = vmatprep.subr.bf16.mxu0 0
        %947 = vmatpush1.bf16.msra.mxu0 0
        %948 = vmatprep.subr.bf16.mxu0 0
        %949 = vmatpush1.bf16.msra.mxu0 0
        %950 = vmatprep.subr.bf16.mxu0 0
        %951 = vmatpush1.bf16.msra.mxu0 0
        %952 = vmatprep.subr.bf16.mxu0 0
        %953 = vmatpush1.bf16.msra.mxu0 0
        %954 = vmatprep.subr.bf16.mxu0 0
        %955 = vmatpush1.bf16.msra.mxu0 0
        %956 = vmatprep.subr.bf16.mxu0 0
        %957 = vmatpush1.bf16.msra.mxu0 0
        %958 = vmatprep.mubr.bf16.mxu0 0
        %959 = vmatmul.mubr.bf16.gmra.mrb[0].mxu0 %v924
        %v960 = vpop.f32.mrb[0].mxu0
        %v961 = vadd.f32 %v904, %v960
        %v962 = vpop.f32.mrb[0].mxu0
        %v963 = vpop.f32.mrb[0].mxu0
        %v964 = vadd.f32 %v904, %v963
        %v965 = vpop.f32.mrb[0].mxu0
        %966 = vdwg.mxu0
        %v967 = vmax.f32 %v961, 0.0
        %v968 = vmax.f32 %v964, 0.0
        %v969 = vpack.c.bf16 %v968, %v967
        %v971 = vunpack.c.l.b16 %v969
        %v972 = vunpack.c.h.b16 %v969
        %v973 = vpack.c.b16 %v971, %v971
        %v974 = vpack.c.b16 %v972, %v972
        %v976 = vshrl.u32 %v973, 16
        %v978 = vrot.slane %v976, 7
        %v979 = vshll.u32 %v973, 16
        %v981 = vor.u32 %v978, %v979
        %v982 = vrot.slane %v978, 4
        %v984 = vshrl.u32 %v974, 16
        %v986 = vrot.slane %v984, 7
        %v987 = vshll.u32 %v974, 16
        %v989 = vor.u32 %v986, %v987
        %v990 = vsel %vm662, %v982, %v989
        %v991 = vrot.slane %v986, 4
        %v995 = vld [vmem:[#allocation2] sm:$0xf]
        %v996 = vsel %vm826, %v981, %v995
        %997 = vst [vmem:[#allocation2] sm:$0xf] %v996
        %998 = vst.msk [vmem:[#allocation2 + $0x4] sm:$0xf] %vm359, %v990
        %v999 = vld [vmem:[#allocation2 + $0x8] sm:$0x1]
        %v1000 = vsel %vm832, %v991, %v999
        %1001 = vst [vmem:[#allocation2 + $0x8] sm:$0x1] %v1000
      $region60: #{run.2} parent=55 // pred_fallthru
        _
      %s1002 = sadd.s32 %s391, 8
      %p1003 = scmp.lt.s32.totalorder %s1002, 16
      // Predicated region
      $region61: #{run.2} parent=55 // pred_check
        %p1004 = pneg %p1003
      $region62: #{run.2} parent=55 // pred_check_branch
        %1006 = sbr.rel (%p1004) target = $region64
      $region63: #{run.2} parent=55 // pred_region
        %s1007 = smul.u32 %s1002, 2
        %s1008 = smul.addr %s1007, 4
        %s1009 = scalar_lea.vmem %s346, %s1008
        %v1010 = vld [vmem:[%s1009] sm:$0xf]
        %v1011 = vld [vmem:[%s1009 + $0x4] sm:$0xf]
        %v1012 = vld [vmem:[%s1] sm:$0xf]
        %v1013 = vld [vmem:[%s1 + $0x4] sm:$0xf]
        %v1014 = vld [vmem:[%s1 + $0x8] sm:$0xf]
        %v1015 = vld [vmem:[%s1 + $0xc] sm:$0xf]
        %v1016 = vld [vmem:[%s2] sm:$0x1]
        %v1018 = vlaneseq
        %v1019 = vshrl.u32 %v1018, 7
        %v1020 = vsub.s32 0, %v1019
        %v1021 = vrot.slane %v1016, %v1020
        %v1025 = vunpack.c.l.b16 %v1010
        %v1026 = vunpack.c.l.b16 %v1011
        %v1027 = vpack.c.b16 %v1026, %v1025
        %v1032 = vunpack.c.l.b16 %v1012
        %v1033 = vunpack.c.l.b16 %v1013
        %v1034 = vunpack.c.l.b16 %v1014
        %v1035 = vunpack.c.l.b16 %v1015
        %v1036 = vpack.c.b16 %v1033, %v1032
        %v1037 = vpack.c.b16 %v1035, %v1034
        %v1041 = vsel %vm474, %v1027, 0
        %1043 = vmatprep.subr.bf16.mxu0 0
        %1044 = vmatpush1.bf16.msra.mxu0 %v1036
        %1045 = vmatprep.subr.bf16.mxu0 0
        %1046 = vmatpush1.bf16.msra.mxu0 %v1037
        %1047 = vmatprep.subr.bf16.mxu0 0
        %1048 = vmatpush1.bf16.msra.mxu0 0
        %1049 = vmatprep.subr.bf16.mxu0 0
        %1050 = vmatpush1.bf16.msra.mxu0 0
        %1051 = vmatprep.subr.bf16.mxu0 0
        %1052 = vmatpush1.bf16.msra.mxu0 0
        %1053 = vmatprep.subr.bf16.mxu0 0
        %1054 = vmatpush1.bf16.msra.mxu0 0
        %1055 = vmatprep.subr.bf16.mxu0 0
        %1056 = vmatpush1.bf16.msra.mxu0 0
        %1057 = vmatprep.subr.bf16.mxu0 0
        %1058 = vmatpush1.bf16.msra.mxu0 0
        %1059 = vmatprep.subr.bf16.mxu0 0
        %1060 = vmatpush1.bf16.msra.mxu0 0
        %1061 = vmatprep.subr.bf16.mxu0 0
        %1062 = vmatpush1.bf16.msra.mxu0 0
        %1063 = vmatprep.subr.bf16.mxu0 0
        %1064 = vmatpush1.bf16.msra.mxu0 0
        %1065 = vmatprep.subr.bf16.mxu0 0
        %1066 = vmatpush1.bf16.msra.mxu0 0
        %1067 = vmatprep.subr.bf16.mxu0 0
        %1068 = vmatpush1.bf16.msra.mxu0 0
        %1069 = vmatprep.subr.bf16.mxu0 0
        %1070 = vmatpush1.bf16.msra.mxu0 0
        %1071 = vmatprep.subr.bf16.mxu0 0
        %1072 = vmatpush1.bf16.msra.mxu0 0
        %1073 = vmatprep.subr.bf16.mxu0 0
        %1074 = vmatpush1.bf16.msra.mxu0 0
        %1075 = vmatprep.mubr.bf16.mxu0 0
        %1076 = vmatmul.mubr.bf16.gmra.mrb[0].mxu0 %v1041
        %v1077 = vpop.f32.mrb[0].mxu0
        %v1078 = vadd.f32 %v1021, %v1077
        %v1079 = vpop.f32.mrb[0].mxu0
        %v1080 = vpop.f32.mrb[0].mxu0
        %v1081 = vadd.f32 %v1021, %v1080
        %v1082 = vpop.f32.mrb[0].mxu0
        %1083 = vdwg.mxu0
        %v1084 = vmax.f32 %v1078, 0.0
        %v1085 = vmax.f32 %v1081, 0.0
        %v1086 = vpack.c.bf16 %v1085, %v1084
        %v1088 = vunpack.c.l.b16 %v1086
        %v1089 = vunpack.c.h.b16 %v1086
        %v1090 = vpack.c.b16 %v1088, %v1088
        %v1091 = vpack.c.b16 %v1089, %v1089
        %v1093 = vshrl.u32 %v1090, 16
        %v1095 = vrot.slane %v1093, 7
        %v1096 = vshll.u32 %v1090, 16
        %v1098 = vor.u32 %v1095, %v1096
        %v1099 = vrot.slane %v1095, 4
        %v1101 = vshrl.u32 %v1091, 16
        %v1103 = vrot.slane %v1101, 7
        %v1104 = vshll.u32 %v1091, 16
        %v1106 = vor.u32 %v1103, %v1104
        %v1107 = vsel %vm662, %v1099, %v1106
        %v1108 = vrot.slane %v1103, 4
        %s1112 = scalar_lea.vmem [#allocation2], 108
        %v1113 = vld [vmem:[%s1112] sm:$0xf]
        %v1114 = vsel %vm826, %v1098, %v1113
        %1115 = vst [vmem:[%s1112] sm:$0xf] %v1114
        %1116 = vst.msk [vmem:[%s1112 + $0x4] sm:$0xf] %vm359, %v1107
        %v1117 = vld [vmem:[%s1112 + $0x8] sm:$0x1]
        %v1118 = vsel %vm832, %v1108, %v1117
        %1119 = vst [vmem:[%s1112 + $0x8] sm:$0x1] %v1118
      $region64: #{run.2} parent=55 // pred_fallthru
        _
      %v1120 = vld [vmem:[#allocation2] sm:$0xf]
      %v1121 = vld [vmem:[#allocation2 + $0x4] sm:$0xf]
      %v1122 = vld [vmem:[#allocation2 + $0xc] sm:$0xf]
      %v1123 = vld [vmem:[#allocation2 + $0x10] sm:$0xf]
      %v1124 = vld [vmem:[#allocation2 + $0x18] sm:$0xf]
      %v1125 = vld [vmem:[#allocation2 + $0x1c] sm:$0xf]
      %v1126 = vld [vmem:[#allocation2 + $0x24] sm:$0xf]
      %v1127 = vld [vmem:[#allocation2 + $0x28] sm:$0xf]
      %v1128 = vld [vmem:[#allocation2 + $0x30] sm:$0xf]
      %v1129 = vld [vmem:[#allocation2 + $0x34] sm:$0xf]
      %v1130 = vld [vmem:[#allocation2 + $0x3c] sm:$0xf]
      %v1131 = vld [vmem:[#allocation2 + $0x40] sm:$0xf]
      %v1132 = vld [vmem:[#allocation2 + $0x48] sm:$0xf]
      %v1133 = vld [vmem:[#allocation2 + $0x4c] sm:$0xf]
      %v1134 = vld [vmem:[#allocation2 + $0x54] sm:$0xf]
      %v1135 = vld [vmem:[#allocation2 + $0x58] sm:$0xf]
      %v1136 = vld [vmem:[%s3] sm:$0xf]
      %v1137 = vld [vmem:[%s3 + $0x4] sm:$0xf]
      %v1138 = vld [vmem:[#allocation2 + $0x8] sm:$0x1]
      %v1139 = vld [vmem:[#allocation2 + $0x14] sm:$0x1]
      %v1140 = vld [vmem:[#allocation2 + $0x20] sm:$0x1]
      %v1141 = vld [vmem:[#allocation2 + $0x2c] sm:$0x1]
      %v1142 = vld [vmem:[#allocation2 + $0x38] sm:$0x1]
      %v1143 = vld [vmem:[#allocation2 + $0x44] sm:$0x1]
      %v1144 = vld [vmem:[#allocation2 + $0x50] sm:$0x1]
      %v1145 = vld [vmem:[#allocation2 + $0x5c] sm:$0x1]
      %vm1146 = vsmask.f32 3328
      %vm1147 = vsmask.f32 7440
      %vm1148 = vmor %vm1146, %vm1147
      %v1150 = vshrl.u32 %v1120, 16
      %v1152 = vrot.slane %v1150, 4
      %v1153 = vshll.u32 %v1120, 16
      %v1155 = vrot.slane %v1153, 5
      %v1156 = vor.u32 %v1152, %v1155
      %v1157 = vrot.slane %v1156, 4
      %v1159 = vshll.u32 %v1121, 16
      %v1161 = vrot.slane %v1159, 5
      %v1162 = vsel %vm1148, %v1157, %v1161
      %v1163 = vshrl.u32 %v1121, 16
      %v1165 = vrot.slane %v1163, 4
      %v1166 = vor.u32 %v1165, %v1161
      %v1167 = vrot.slane %v1166, 4
      %v1169 = vshll.u32 %v1138, 16
      %v1171 = vrot.slane %v1169, 5
      %v1172 = vsel %vm1148, %v1167, %v1171
      %v1174 = vshrl.u32 %v1122, 16
      %v1176 = vrot.slane %v1174, 4
      %v1177 = vshll.u32 %v1122, 16
      %v1179 = vrot.slane %v1177, 5
      %v1180 = vor.u32 %v1176, %v1179
      %v1181 = vrot.slane %v1180, 4
      %v1183 = vshll.u32 %v1123, 16
      %v1185 = vrot.slane %v1183, 5
      %v1186 = vsel %vm1148, %v1181, %v1185
      %v1187 = vshrl.u32 %v1123, 16
      %v1189 = vrot.slane %v1187, 4
      %v1190 = vor.u32 %v1189, %v1185
      %v1191 = vrot.slane %v1190, 4
      %v1193 = vshll.u32 %v1139, 16
      %v1195 = vrot.slane %v1193, 5
      %v1196 = vsel %vm1148, %v1191, %v1195
      %v1198 = vshrl.u32 %v1124, 16
      %v1200 = vrot.slane %v1198, 4
      %v1201 = vshll.u32 %v1124, 16
      %v1203 = vrot.slane %v1201, 5
      %v1204 = vor.u32 %v1200, %v1203
      %v1205 = vrot.slane %v1204, 4
      %v1207 = vshll.u32 %v1125, 16
      %v1209 = vrot.slane %v1207, 5
      %v1210 = vsel %vm1148, %v1205, %v1209
      %v1211 = vshrl.u32 %v1125, 16
      %v1213 = vrot.slane %v1211, 4
      %v1214 = vor.u32 %v1213, %v1209
      %v1215 = vrot.slane %v1214, 4
      %v1217 = vshll.u32 %v1140, 16
      %v1219 = vrot.slane %v1217, 5
      %v1220 = vsel %vm1148, %v1215, %v1219
      %v1222 = vshrl.u32 %v1126, 16
      %v1224 = vrot.slane %v1222, 4
      %v1225 = vshll.u32 %v1126, 16
      %v1227 = vrot.slane %v1225, 5
      %v1228 = vor.u32 %v1224, %v1227
      %v1229 = vrot.slane %v1228, 4
      %v1231 = vshll.u32 %v1127, 16
      %v1233 = vrot.slane %v1231, 5
      %v1234 = vsel %vm1148, %v1229, %v1233
      %v1235 = vshrl.u32 %v1127, 16
      %v1237 = vrot.slane %v1235, 4
      %v1238 = vor.u32 %v1237, %v1233
      %v1239 = vrot.slane %v1238, 4
      %v1241 = vshll.u32 %v1141, 16
      %v1243 = vrot.slane %v1241, 5
      %v1244 = vsel %vm1148, %v1239, %v1243
      %v1246 = vshrl.u32 %v1128, 16
      %v1248 = vrot.slane %v1246, 4
      %v1249 = vshll.u32 %v1128, 16
      %v1251 = vrot.slane %v1249, 5
      %v1252 = vor.u32 %v1248, %v1251
      %v1253 = vrot.slane %v1252, 4
      %v1255 = vshll.u32 %v1129, 16
      %v1257 = vrot.slane %v1255, 5
      %v1258 = vsel %vm1148, %v1253, %v1257
      %v1259 = vshrl.u32 %v1129, 16
      %v1261 = vrot.slane %v1259, 4
      %v1262 = vor.u32 %v1261, %v1257
      %v1263 = vrot.slane %v1262, 4
      %v1265 = vshll.u32 %v1142, 16
      %v1267 = vrot.slane %v1265, 5
      %v1268 = vsel %vm1148, %v1263, %v1267
      %v1270 = vshrl.u32 %v1130, 16
      %v1272 = vrot.slane %v1270, 4
      %v1273 = vshll.u32 %v1130, 16
      %v1275 = vrot.slane %v1273, 5
      %v1276 = vor.u32 %v1272, %v1275
      %v1277 = vrot.slane %v1276, 4
      %v1279 = vshll.u32 %v1131, 16
      %v1281 = vrot.slane %v1279, 5
      %v1282 = vsel %vm1148, %v1277, %v1281
      %v1283 = vshrl.u32 %v1131, 16
      %v1285 = vrot.slane %v1283, 4
      %v1286 = vor.u32 %v1285, %v1281
      %v1287 = vrot.slane %v1286, 4
      %v1289 = vshll.u32 %v1143, 16
      %v1291 = vrot.slane %v1289, 5
      %v1292 = vsel %vm1148, %v1287, %v1291
      %v1294 = vshrl.u32 %v1132, 16
      %v1296 = vrot.slane %v1294, 4
      %v1297 = vshll.u32 %v1132, 16
      %v1299 = vrot.slane %v1297, 5
      %v1300 = vor.u32 %v1296, %v1299
      %v1301 = vrot.slane %v1300, 4
      %v1303 = vshll.u32 %v1133, 16
      %v1305 = vrot.slane %v1303, 5
      %v1306 = vsel %vm1148, %v1301, %v1305
      %v1307 = vshrl.u32 %v1133, 16
      %v1309 = vrot.slane %v1307, 4
      %v1310 = vor.u32 %v1309, %v1305
      %v1311 = vrot.slane %v1310, 4
      %v1313 = vshll.u32 %v1144, 16
      %v1315 = vrot.slane %v1313, 5
      %v1316 = vsel %vm1148, %v1311, %v1315
      %v1318 = vshrl.u32 %v1134, 16
      %v1320 = vrot.slane %v1318, 4
      %v1321 = vshll.u32 %v1134, 16
      %v1323 = vrot.slane %v1321, 5
      %v1324 = vor.u32 %v1320, %v1323
      %v1325 = vrot.slane %v1324, 4
      %v1327 = vshll.u32 %v1135, 16
      %v1329 = vrot.slane %v1327, 5
      %v1330 = vsel %vm1148, %v1325, %v1329
      %v1331 = vshrl.u32 %v1135, 16
      %v1333 = vrot.slane %v1331, 4
      %v1334 = vor.u32 %v1333, %v1329
      %v1335 = vrot.slane %v1334, 4
      %v1337 = vshll.u32 %v1145, 16
      %v1339 = vrot.slane %v1337, 5
      %v1340 = vsel %vm1148, %v1335, %v1339
      %v1341 = vld [vmem:[%s3 + $0x8] sm:$0xf]
      %v1342 = vld [vmem:[%s3 + $0xc] sm:$0xf]
      %v1343 = vunpack.c.l.b16 %v1162
      %v1344 = vunpack.c.l.b16 %v1172
      %v1345 = vunpack.c.l.b16 %v1186
      %v1346 = vunpack.c.l.b16 %v1196
      %v1347 = vunpack.c.l.b16 %v1210
      %v1348 = vunpack.c.l.b16 %v1220
      %v1349 = vunpack.c.l.b16 %v1234
      %v1350 = vunpack.c.l.b16 %v1244
      %v1351 = vunpack.c.l.b16 %v1258
      %v1352 = vunpack.c.l.b16 %v1268
      %v1353 = vunpack.c.l.b16 %v1282
      %v1354 = vunpack.c.l.b16 %v1292
      %v1355 = vunpack.c.l.b16 %v1306
      %v1356 = vunpack.c.l.b16 %v1316
      %v1357 = vunpack.c.l.b16 %v1330
      %v1358 = vunpack.c.l.b16 %v1340
      %v1359 = vpack.c.b16 %v1344, %v1343
      %v1360 = vpack.c.b16 %v1346, %v1345
      %v1361 = vpack.c.b16 %v1348, %v1347
      %v1362 = vpack.c.b16 %v1350, %v1349
      %v1363 = vpack.c.b16 %v1352, %v1351
      %v1364 = vpack.c.b16 %v1354, %v1353
      %v1365 = vpack.c.b16 %v1356, %v1355
      %v1366 = vpack.c.b16 %v1358, %v1357
      %v1369 = vunpack.c.l.b16 %v1341
      %v1370 = vunpack.c.l.b16 %v1342
      %v1371 = vpack.c.b16 %v1370, %v1369
      %vm1373 = vcmask 130048
      %v1375 = vsel %vm1373, %v1359, 0
      %v1378 = vsel %vm1373, %v1360, 0
      %v1381 = vsel %vm1373, %v1361, 0
      %v1384 = vsel %vm1373, %v1362, 0
      %v1387 = vsel %vm1373, %v1363, 0
      %v1390 = vsel %vm1373, %v1364, 0
      %v1393 = vsel %vm1373, %v1365, 0
      %v1396 = vsel %vm1373, %v1366, 0
      %1398 = vmatprep.subr.bf16.mxu0 0
      %1399 = vmatpush1.bf16.msra.mxu0 %v1371
      %1400 = vmatprep.subr.bf16.mxu0 0
      %1401 = vmatpush1.bf16.msra.mxu0 0
      %1402 = vmatprep.subr.bf16.mxu0 0
      %1403 = vmatpush1.bf16.msra.mxu0 0
      %1404 = vmatprep.subr.bf16.mxu0 0
      %1405 = vmatpush1.bf16.msra.mxu0 0
      %1406 = vmatprep.subr.bf16.mxu0 0
      %1407 = vmatpush1.bf16.msra.mxu0 0
      %1408 = vmatprep.subr.bf16.mxu0 0
      %1409 = vmatpush1.bf16.msra.mxu0 0
      %1410 = vmatprep.subr.bf16.mxu0 0
      %1411 = vmatpush1.bf16.msra.mxu0 0
      %1412 = vmatprep.subr.bf16.mxu0 0
      %1413 = vmatpush1.bf16.msra.mxu0 0
      %1414 = vmatprep.subr.bf16.mxu0 0
      %1415 = vmatpush1.bf16.msra.mxu0 0
      %1416 = vmatprep.subr.bf16.mxu0 0
      %1417 = vmatpush1.bf16.msra.mxu0 0
      %1418 = vmatprep.subr.bf16.mxu0 0
      %1419 = vmatpush1.bf16.msra.mxu0 0
      %1420 = vmatprep.subr.bf16.mxu0 0
      %1421 = vmatpush1.bf16.msra.mxu0 0
      %1422 = vmatprep.subr.bf16.mxu0 0
      %1423 = vmatpush1.bf16.msra.mxu0 0
      %1424 = vmatprep.subr.bf16.mxu0 0
      %1425 = vmatpush1.bf16.msra.mxu0 0
      %1426 = vmatprep.subr.bf16.mxu0 0
      %1427 = vmatpush1.bf16.msra.mxu0 0
      %1428 = vmatprep.subr.bf16.mxu0 0
      %1429 = vmatpush1.bf16.msra.mxu0 0
      %1430 = vmatprep.mubr.bf16.mxu0 0
      %1431 = vmatmul.mubr.bf16.gmra.mrb[0].mxu0 %v1375
      %v1432 = vpop.f32.mrb[0].mxu0
      %v1433 = vadd.f32 0.0, %v1432
      %v1434 = vpop.f32.mrb[0].mxu0
      %v1435 = vpop.f32.mrb[0].mxu0
      %v1436 = vadd.f32 0.0, %v1435
      %v1437 = vpop.f32.mrb[0].mxu0
      %1438 = vmatprep.mubr.bf16.mxu0 0
      %1439 = vmatmul.mubr.bf16.gmra.mrb[0].mxu0 %v1378
      %v1440 = vpop.f32.mrb[0].mxu0
      %v1441 = vadd.f32 0.0, %v1440
      %v1442 = vpop.f32.mrb[0].mxu0
      %v1443 = vpop.f32.mrb[0].mxu0
      %v1444 = vadd.f32 0.0, %v1443
      %v1445 = vpop.f32.mrb[0].mxu0
      %1446 = vmatprep.mubr.bf16.mxu0 0
      %1447 = vmatmul.mubr.bf16.gmra.mrb[0].mxu0 %v1381
      %v1448 = vpop.f32.mrb[0].mxu0
      %v1449 = vadd.f32 0.0, %v1448
      %v1450 = vpop.f32.mrb[0].mxu0
      %v1451 = vpop.f32.mrb[0].mxu0
      %v1452 = vadd.f32 0.0, %v1451
      %v1453 = vpop.f32.mrb[0].mxu0
      %1454 = vmatprep.mubr.bf16.mxu0 0
      %1455 = vmatmul.mubr.bf16.gmra.mrb[0].mxu0 %v1384
      %v1456 = vpop.f32.mrb[0].mxu0
      %v1457 = vadd.f32 0.0, %v1456
      %v1458 = vpop.f32.mrb[0].mxu0
      %v1459 = vpop.f32.mrb[0].mxu0
      %v1460 = vadd.f32 0.0, %v1459
      %v1461 = vpop.f32.mrb[0].mxu0
      %1462 = vmatprep.mubr.bf16.mxu0 0
      %1463 = vmatmul.mubr.bf16.gmra.mrb[0].mxu0 %v1387
      %v1464 = vpop.f32.mrb[0].mxu0
      %v1465 = vadd.f32 0.0, %v1464
      %v1466 = vpop.f32.mrb[0].mxu0
      %v1467 = vpop.f32.mrb[0].mxu0
      %v1468 = vadd.f32 0.0, %v1467
      %v1469 = vpop.f32.mrb[0].mxu0
      %1470 = vmatprep.mubr.bf16.mxu0 0
      %1471 = vmatmul.mubr.bf16.gmra.mrb[0].mxu0 %v1390
      %v1472 = vpop.f32.mrb[0].mxu0
      %v1473 = vadd.f32 0.0, %v1472
      %v1474 = vpop.f32.mrb[0].mxu0
      %v1475 = vpop.f32.mrb[0].mxu0
      %v1476 = vadd.f32 0.0, %v1475
      %v1477 = vpop.f32.mrb[0].mxu0
      %1478 = vmatprep.mubr.bf16.mxu0 0
      %1479 = vmatmul.mubr.bf16.gmra.mrb[0].mxu0 %v1393
      %v1480 = vpop.f32.mrb[0].mxu0
      %v1481 = vadd.f32 0.0, %v1480
      %v1482 = vpop.f32.mrb[0].mxu0
      %v1483 = vpop.f32.mrb[0].mxu0
      %v1484 = vadd.f32 0.0, %v1483
      %v1485 = vpop.f32.mrb[0].mxu0
      %1486 = vmatprep.mubr.bf16.mxu0 0
      %1487 = vmatmul.mubr.bf16.gmra.mrb[0].mxu0 %v1396
      %v1488 = vpop.f32.mrb[0].mxu0
      %v1489 = vadd.f32 0.0, %v1488
      %v1490 = vpop.f32.mrb[0].mxu0
      %v1491 = vpop.f32.mrb[0].mxu0
      %v1492 = vadd.f32 0.0, %v1491
      %v1493 = vpop.f32.mrb[0].mxu0
      %1494 = vdwg.mxu0
      %v1511 = vunpack.c.l.b16 %v1120
      %v1512 = vunpack.c.l.b16 %v1121
      %v1513 = vunpack.c.l.b16 %v1122
      %v1514 = vunpack.c.l.b16 %v1123
      %v1515 = vunpack.c.l.b16 %v1124
      %v1516 = vunpack.c.l.b16 %v1125
      %v1517 = vunpack.c.l.b16 %v1126
      %v1518 = vunpack.c.l.b16 %v1127
      %v1519 = vunpack.c.l.b16 %v1128
      %v1520 = vunpack.c.l.b16 %v1129
      %v1521 = vunpack.c.l.b16 %v1130
      %v1522 = vunpack.c.l.b16 %v1131
      %v1523 = vunpack.c.l.b16 %v1132
      %v1524 = vunpack.c.l.b16 %v1133
      %v1525 = vunpack.c.l.b16 %v1134
      %v1526 = vunpack.c.l.b16 %v1135
      %v1527 = vpack.c.b16 %v1512, %v1511
      %v1528 = vpack.c.b16 %v1514, %v1513
      %v1529 = vpack.c.b16 %v1516, %v1515
      %v1530 = vpack.c.b16 %v1518, %v1517
      %v1531 = vpack.c.b16 %v1520, %v1519
      %v1532 = vpack.c.b16 %v1522, %v1521
      %v1533 = vpack.c.b16 %v1524, %v1523
      %v1534 = vpack.c.b16 %v1526, %v1525
      %v1537 = vunpack.c.l.b16 %v1136
      %v1538 = vunpack.c.l.b16 %v1137
      %v1539 = vpack.c.b16 %v1538, %v1537
      %v1542 = vsel %vm1373, %v1527, 0
      %v1545 = vsel %vm1373, %v1528, 0
      %v1548 = vsel %vm1373, %v1529, 0
      %v1551 = vsel %vm1373, %v1530, 0
      %v1554 = vsel %vm1373, %v1531, 0
      %v1557 = vsel %vm1373, %v1532, 0
      %v1560 = vsel %vm1373, %v1533, 0
      %v1563 = vsel %vm1373, %v1534, 0
      %1565 = vmatprep.subr.bf16.mxu0 0
      %1566 = vmatpush1.bf16.msra.mxu0 %v1539
      %1567 = vmatprep.subr.bf16.mxu0 0
      %1568 = vmatpush1.bf16.msra.mxu0 0
      %1569 = vmatprep.subr.bf16.mxu0 0
      %1570 = vmatpush1.bf16.msra.mxu0 0
      %1571 = vmatprep.subr.bf16.mxu0 0
      %1572 = vmatpush1.bf16.msra.mxu0 0
      %1573 = vmatprep.subr.bf16.mxu0 0
      %1574 = vmatpush1.bf16.msra.mxu0 0
      %1575 = vmatprep.subr.bf16.mxu0 0
      %1576 = vmatpush1.bf16.msra.mxu0 0
      %1577 = vmatprep.subr.bf16.mxu0 0
      %1578 = vmatpush1.bf16.msra.mxu0 0
      %1579 = vmatprep.subr.bf16.mxu0 0
      %1580 = vmatpush1.bf16.msra.mxu0 0
      %1581 = vmatprep.subr.bf16.mxu0 0
      %1582 = vmatpush1.bf16.msra.mxu0 0
      %1583 = vmatprep.subr.bf16.mxu0 0
      %1584 = vmatpush1.bf16.msra.mxu0 0
      %1585 = vmatprep.subr.bf16.mxu0 0
      %1586 = vmatpush1.bf16.msra.mxu0 0
      %1587 = vmatprep.subr.bf16.mxu0 0
      %1588 = vmatpush1.bf16.msra.mxu0 0
      %1589 = vmatprep.subr.bf16.mxu0 0
      %1590 = vmatpush1.bf16.msra.mxu0 0
      %1591 = vmatprep.subr.bf16.mxu0 0
      %1592 = vmatpush1.bf16.msra.mxu0 0
      %1593 = vmatprep.subr.bf16.mxu0 0
      %1594 = vmatpush1.bf16.msra.mxu0 0
      %1595 = vmatprep.subr.bf16.mxu0 0
      %1596 = vmatpush1.bf16.msra.mxu0 0
      %1597 = vmatprep.mubr.bf16.mxu0 0
      %1598 = vmatmul.mubr.bf16.gmra.mrb[0].mxu0 %v1542
      %v1599 = vpop.f32.mrb[0].mxu0
      %v1600 = vadd.f32 %v1433, %v1599
      %v1601 = vpop.f32.mrb[0].mxu0
      %v1602 = vpop.f32.mrb[0].mxu0
      %v1603 = vadd.f32 %v1436, %v1602
      %v1604 = vpop.f32.mrb[0].mxu0
      %1605 = vmatprep.mubr.bf16.mxu0 0
      %1606 = vmatmul.mubr.bf16.gmra.mrb[0].mxu0 %v1545
      %v1607 = vpop.f32.mrb[0].mxu0
      %v1608 = vadd.f32 %v1441, %v1607
      %v1609 = vpop.f32.mrb[0].mxu0
      %v1610 = vpop.f32.mrb[0].mxu0
      %v1611 = vadd.f32 %v1444, %v1610
      %v1612 = vpop.f32.mrb[0].mxu0
      %1613 = vmatprep.mubr.bf16.mxu0 0
      %1614 = vmatmul.mubr.bf16.gmra.mrb[0].mxu0 %v1548
      %v1615 = vpop.f32.mrb[0].mxu0
      %v1616 = vadd.f32 %v1449, %v1615
      %v1617 = vpop.f32.mrb[0].mxu0
      %v1618 = vpop.f32.mrb[0].mxu0
      %v1619 = vadd.f32 %v1452, %v1618
      %v1620 = vpop.f32.mrb[0].mxu0
      %1621 = vmatprep.mubr.bf16.mxu0 0
      %1622 = vmatmul.mubr.bf16.gmra.mrb[0].mxu0 %v1551
      %v1623 = vpop.f32.mrb[0].mxu0
      %v1624 = vadd.f32 %v1457, %v1623
      %v1625 = vpop.f32.mrb[0].mxu0
      %v1626 = vpop.f32.mrb[0].mxu0
      %v1627 = vadd.f32 %v1460, %v1626
      %v1628 = vpop.f32.mrb[0].mxu0
      %1629 = vmatprep.mubr.bf16.mxu0 0
      %1630 = vmatmul.mubr.bf16.gmra.mrb[0].mxu0 %v1554
      %v1631 = vpop.f32.mrb[0].mxu0
      %v1632 = vadd.f32 %v1465, %v1631
      %v1633 = vpop.f32.mrb[0].mxu0
      %v1634 = vpop.f32.mrb[0].mxu0
      %v1635 = vadd.f32 %v1468, %v1634
      %v1636 = vpop.f32.mrb[0].mxu0
      %1637 = vmatprep.mubr.bf16.mxu0 0
      %1638 = vmatmul.mubr.bf16.gmra.mrb[0].mxu0 %v1557
      %v1639 = vpop.f32.mrb[0].mxu0
      %v1640 = vadd.f32 %v1473, %v1639
      %v1641 = vpop.f32.mrb[0].mxu0
      %v1642 = vpop.f32.mrb[0].mxu0
      %v1643 = vadd.f32 %v1476, %v1642
      %v1644 = vpop.f32.mrb[0].mxu0
      %1645 = vmatprep.mubr.bf16.mxu0 0
      %1646 = vmatmul.mubr.bf16.gmra.mrb[0].mxu0 %v1560
      %v1647 = vpop.f32.mrb[0].mxu0
      %v1648 = vadd.f32 %v1481, %v1647
      %v1649 = vpop.f32.mrb[0].mxu0
      %v1650 = vpop.f32.mrb[0].mxu0
      %v1651 = vadd.f32 %v1484, %v1650
      %v1652 = vpop.f32.mrb[0].mxu0
      %1653 = vmatprep.mubr.bf16.mxu0 0
      %1654 = vmatmul.mubr.bf16.gmra.mrb[0].mxu0 %v1563
      %v1655 = vpop.f32.mrb[0].mxu0
      %v1656 = vadd.f32 %v1489, %v1655
      %v1657 = vpop.f32.mrb[0].mxu0
      %v1658 = vpop.f32.mrb[0].mxu0
      %v1659 = vadd.f32 %v1492, %v1658
      %v1660 = vpop.f32.mrb[0].mxu0
      %1661 = vdwg.mxu0
      %v1662 = vld [vmem:[#allocation2] sm:$0xe]
      %v1663 = vld [vmem:[#allocation2 + $0xc] sm:$0xe]
      %v1664 = vld [vmem:[#allocation2 + $0x18] sm:$0xe]
      %v1665 = vld [vmem:[#allocation2 + $0x24] sm:$0xe]
      %v1666 = vld [vmem:[#allocation2 + $0x30] sm:$0xe]
      %v1667 = vld [vmem:[#allocation2 + $0x3c] sm:$0xe]
      %v1668 = vld [vmem:[#allocation2 + $0x48] sm:$0xe]
      %v1669 = vld [vmem:[#allocation2 + $0x54] sm:$0xe]
      %vm1686 = vcmask 1042432
      %vm1687 = vcmask 1046532
      %vm1688 = vmor %vm1686, %vm1687
      %v1689 = vrot.slane %v1662, 5
      %v1690 = vrot.slane %v1689, 4
      %v1691 = vrot.slane %v1121, 5
      %v1692 = vsel %vm1688, %v1690, %v1691
      %v1693 = vrot.slane %v1691, 4
      %v1694 = vrot.slane %v1138, 5
      %v1695 = vsel %vm1688, %v1693, %v1694
      %v1696 = vrot.slane %v1663, 5
      %v1697 = vrot.slane %v1696, 4
      %v1698 = vrot.slane %v1123, 5
      %v1699 = vsel %vm1688, %v1697, %v1698
      %v1700 = vrot.slane %v1698, 4
      %v1701 = vrot.slane %v1139, 5
      %v1702 = vsel %vm1688, %v1700, %v1701
      %v1703 = vrot.slane %v1664, 5
      %v1704 = vrot.slane %v1703, 4
      %v1705 = vrot.slane %v1125, 5
      %v1706 = vsel %vm1688, %v1704, %v1705
      %v1707 = vrot.slane %v1705, 4
      %v1708 = vrot.slane %v1140, 5
      %v1709 = vsel %vm1688, %v1707, %v1708
      %v1710 = vrot.slane %v1665, 5
      %v1711 = vrot.slane %v1710, 4
      %v1712 = vrot.slane %v1127, 5
      %v1713 = vsel %vm1688, %v1711, %v1712
      %v1714 = vrot.slane %v1712, 4
      %v1715 = vrot.slane %v1141, 5
      %v1716 = vsel %vm1688, %v1714, %v1715
      %v1717 = vrot.slane %v1666, 5
      %v1718 = vrot.slane %v1717, 4
      %v1719 = vrot.slane %v1129, 5
      %v1720 = vsel %vm1688, %v1718, %v1719
      %v1721 = vrot.slane %v1719, 4
      %v1722 = vrot.slane %v1142, 5
      %v1723 = vsel %vm1688, %v1721, %v1722
      %v1724 = vrot.slane %v1667, 5
      %v1725 = vrot.slane %v1724, 4
      %v1726 = vrot.slane %v1131, 5
      %v1727 = vsel %vm1688, %v1725, %v1726
      %v1728 = vrot.slane %v1726, 4
      %v1729 = vrot.slane %v1143, 5
      %v1730 = vsel %vm1688, %v1728, %v1729
      %v1731 = vrot.slane %v1668, 5
      %v1732 = vrot.slane %v1731, 4
      %v1733 = vrot.slane %v1133, 5
      %v1734 = vsel %vm1688, %v1732, %v1733
      %v1735 = vrot.slane %v1733, 4
      %v1736 = vrot.slane %v1144, 5
      %v1737 = vsel %vm1688, %v1735, %v1736
      %v1738 = vrot.slane %v1669, 5
      %v1739 = vrot.slane %v1738, 4
      %v1740 = vrot.slane %v1135, 5
      %v1741 = vsel %vm1688, %v1739, %v1740
      %v1742 = vrot.slane %v1740, 4
      %v1743 = vrot.slane %v1145, 5
      %v1744 = vsel %vm1688, %v1742, %v1743
      %v1745 = vld [vmem:[%s3 + $0x10] sm:$0xf]
      %v1746 = vld [vmem:[%s3 + $0x14] sm:$0xf]
      %v1747 = vunpack.c.l.b16 %v1692
      %v1748 = vunpack.c.l.b16 %v1695
      %v1749 = vunpack.c.l.b16 %v1699
      %v1750 = vunpack.c.l.b16 %v1702
      %v1751 = vunpack.c.l.b16 %v1706
      %v1752 = vunpack.c.l.b16 %v1709
      %v1753 = vunpack.c.l.b16 %v1713
      %v1754 = vunpack.c.l.b16 %v1716
      %v1755 = vunpack.c.l.b16 %v1720
      %v1756 = vunpack.c.l.b16 %v1723
      %v1757 = vunpack.c.l.b16 %v1727
      %v1758 = vunpack.c.l.b16 %v1730
      %v1759 = vunpack.c.l.b16 %v1734
      %v1760 = vunpack.c.l.b16 %v1737
      %v1761 = vunpack.c.l.b16 %v1741
      %v1762 = vunpack.c.l.b16 %v1744
      %v1763 = vpack.c.b16 %v1748, %v1747
      %v1764 = vpack.c.b16 %v1750, %v1749
      %v1765 = vpack.c.b16 %v1752, %v1751
      %v1766 = vpack.c.b16 %v1754, %v1753
      %v1767 = vpack.c.b16 %v1756, %v1755
      %v1768 = vpack.c.b16 %v1758, %v1757
      %v1769 = vpack.c.b16 %v1760, %v1759
      %v1770 = vpack.c.b16 %v1762, %v1761
      %v1773 = vunpack.c.l.b16 %v1745
      %v1774 = vunpack.c.l.b16 %v1746
      %v1775 = vpack.c.b16 %v1774, %v1773
      %v1778 = vsel %vm1373, %v1763, 0
      %v1781 = vsel %vm1373, %v1764, 0
      %v1784 = vsel %vm1373, %v1765, 0
      %v1787 = vsel %vm1373, %v1766, 0
      %v1790 = vsel %vm1373, %v1767, 0
      %v1793 = vsel %vm1373, %v1768, 0
      %v1796 = vsel %vm1373, %v1769, 0
      %v1799 = vsel %vm1373, %v1770, 0
      %1801 = vmatprep.subr.bf16.mxu0 0
      %1802 = vmatpush1.bf16.msra.mxu0 %v1775
      %1803 = vmatprep.subr.bf16.mxu0 0
      %1804 = vmatpush1.bf16.msra.mxu0 0
      %1805 = vmatprep.subr.bf16.mxu0 0
      %1806 = vmatpush1.bf16.msra.mxu0 0
      %1807 = vmatprep.subr.bf16.mxu0 0
      %1808 = vmatpush1.bf16.msra.mxu0 0
      %1809 = vmatprep.subr.bf16.mxu0 0
      %1810 = vmatpush1.bf16.msra.mxu0 0
      %1811 = vmatprep.subr.bf16.mxu0 0
      %1812 = vmatpush1.bf16.msra.mxu0 0
      %1813 = vmatprep.subr.bf16.mxu0 0
      %1814 = vmatpush1.bf16.msra.mxu0 0
      %1815 = vmatprep.subr.bf16.mxu0 0
      %1816 = vmatpush1.bf16.msra.mxu0 0
      %1817 = vmatprep.subr.bf16.mxu0 0
      %1818 = vmatpush1.bf16.msra.mxu0 0
      %1819 = vmatprep.subr.bf16.mxu0 0
      %1820 = vmatpush1.bf16.msra.mxu0 0
      %1821 = vmatprep.subr.bf16.mxu0 0
      %1822 = vmatpush1.bf16.msra.mxu0 0
      %1823 = vmatprep.subr.bf16.mxu0 0
      %1824 = vmatpush1.bf16.msra.mxu0 0
      %1825 = vmatprep.subr.bf16.mxu0 0
      %1826 = vmatpush1.bf16.msra.mxu0 0
      %1827 = vmatprep.subr.bf16.mxu0 0
      %1828 = vmatpush1.bf16.msra.mxu0 0
      %1829 = vmatprep.subr.bf16.mxu0 0
      %1830 = vmatpush1.bf16.msra.mxu0 0
      %1831 = vmatprep.subr.bf16.mxu0 0
      %1832 = vmatpush1.bf16.msra.mxu0 0
      %1833 = vmatprep.mubr.bf16.mxu0 0
      %1834 = vmatmul.mubr.bf16.gmra.mrb[0].mxu0 %v1778
      %v1835 = vpop.f32.mrb[0].mxu0
      %v1836 = vadd.f32 0.0, %v1835
      %v1837 = vpop.f32.mrb[0].mxu0
      %v1838 = vpop.f32.mrb[0].mxu0
      %v1839 = vadd.f32 0.0, %v1838
      %v1840 = vpop.f32.mrb[0].mxu0
      %1841 = vmatprep.mubr.bf16.mxu0 0
      %1842 = vmatmul.mubr.bf16.gmra.mrb[0].mxu0 %v1781
      %v1843 = vpop.f32.mrb[0].mxu0
      %v1844 = vadd.f32 0.0, %v1843
      %v1845 = vpop.f32.mrb[0].mxu0
      %v1846 = vpop.f32.mrb[0].mxu0
      %v1847 = vadd.f32 0.0, %v1846
      %v1848 = vpop.f32.mrb[0].mxu0
      %1849 = vmatprep.mubr.bf16.mxu0 0
      %1850 = vmatmul.mubr.bf16.gmra.mrb[0].mxu0 %v1784
      %v1851 = vpop.f32.mrb[0].mxu0
      %v1852 = vadd.f32 0.0, %v1851
      %v1853 = vpop.f32.mrb[0].mxu0
      %v1854 = vpop.f32.mrb[0].mxu0
      %v1855 = vadd.f32 0.0, %v1854
      %v1856 = vpop.f32.mrb[0].mxu0
      %1857 = vmatprep.mubr.bf16.mxu0 0
      %1858 = vmatmul.mubr.bf16.gmra.mrb[0].mxu0 %v1787
      %v1859 = vpop.f32.mrb[0].mxu0
      %v1860 = vadd.f32 0.0, %v1859
      %v1861 = vpop.f32.mrb[0].mxu0
      %v1862 = vpop.f32.mrb[0].mxu0
      %v1863 = vadd.f32 0.0, %v1862
      %v1864 = vpop.f32.mrb[0].mxu0
      %1865 = vmatprep.mubr.bf16.mxu0 0
      %1866 = vmatmul.mubr.bf16.gmra.mrb[0].mxu0 %v1790
      %v1867 = vpop.f32.mrb[0].mxu0
      %v1868 = vadd.f32 0.0, %v1867
      %v1869 = vpop.f32.mrb[0].mxu0
      %v1870 = vpop.f32.mrb[0].mxu0
      %v1871 = vadd.f32 0.0, %v1870
      %v1872 = vpop.f32.mrb[0].mxu0
      %1873 = vmatprep.mubr.bf16.mxu0 0
      %1874 = vmatmul.mubr.bf16.gmra.mrb[0].mxu0 %v1793
      %v1875 = vpop.f32.mrb[0].mxu0
      %v1876 = vadd.f32 0.0, %v1875
      %v1877 = vpop.f32.mrb[0].mxu0
      %v1878 = vpop.f32.mrb[0].mxu0
      %v1879 = vadd.f32 0.0, %v1878
      %v1880 = vpop.f32.mrb[0].mxu0
      %1881 = vmatprep.mubr.bf16.mxu0 0
      %1882 = vmatmul.mubr.bf16.gmra.mrb[0].mxu0 %v1796
      %v1883 = vpop.f32.mrb[0].mxu0
      %v1884 = vadd.f32 0.0, %v1883
      %v1885 = vpop.f32.mrb[0].mxu0
      %v1886 = vpop.f32.mrb[0].mxu0
      %v1887 = vadd.f32 0.0, %v1886
      %v1888 = vpop.f32.mrb[0].mxu0
      %1889 = vmatprep.mubr.bf16.mxu0 0
      %1890 = vmatmul.mubr.bf16.gmra.mrb[0].mxu0 %v1799
      %v1891 = vpop.f32.mrb[0].mxu0
      %v1892 = vadd.f32 0.0, %v1891
      %v1893 = vpop.f32.mrb[0].mxu0
      %v1894 = vpop.f32.mrb[0].mxu0
      %v1895 = vadd.f32 0.0, %v1894
      %v1896 = vpop.f32.mrb[0].mxu0
      %1897 = vdwg.mxu0
      %v1898 = vadd.f32 %v1600, %v1836
      %v1899 = vadd.f32 %v1603, %v1839
      %v1900 = vadd.f32 %v1608, %v1844
      %v1901 = vadd.f32 %v1611, %v1847
      %v1902 = vadd.f32 %v1616, %v1852
      %v1903 = vadd.f32 %v1619, %v1855
      %v1904 = vadd.f32 %v1624, %v1860
      %v1905 = vadd.f32 %v1627, %v1863
      %v1906 = vadd.f32 %v1632, %v1868
      %v1907 = vadd.f32 %v1635, %v1871
      %v1908 = vadd.f32 %v1640, %v1876
      %v1909 = vadd.f32 %v1643, %v1879
      %v1910 = vadd.f32 %v1648, %v1884
      %v1911 = vadd.f32 %v1651, %v1887
      %v1912 = vadd.f32 %v1656, %v1892
      %v1913 = vadd.f32 %v1659, %v1895
      %v1914 = vld [vmem:[%s823] sm:$0xf]
      %v1915 = vld [vmem:[%s823 + $0x4] sm:$0xf]
      %v1916 = vld [vmem:[%s823 + $0xc] sm:$0xf]
      %v1917 = vld [vmem:[%s823 + $0x10] sm:$0xf]
      %v1918 = vld [vmem:[%s823 + $0x18] sm:$0xf]
      %v1919 = vld [vmem:[%s823 + $0x1c] sm:$0xf]
      %v1920 = vld [vmem:[%s823 + $0x24] sm:$0xf]
      %v1921 = vld [vmem:[%s823 + $0x28] sm:$0xf]
      %v1922 = vld [vmem:[%s823 + $0x30] sm:$0xf]
      %v1923 = vld [vmem:[%s823 + $0x34] sm:$0xf]
      %v1924 = vld [vmem:[%s823 + $0x3c] sm:$0xf]
      %v1925 = vld [vmem:[%s823 + $0x40] sm:$0xf]
      %v1926 = vld [vmem:[%s823 + $0x48] sm:$0xf]
      %v1927 = vld [vmem:[%s823 + $0x4c] sm:$0xf]
      %v1928 = vld [vmem:[%s823 + $0x54] sm:$0xf]
      %v1929 = vld [vmem:[%s823 + $0x58] sm:$0xf]
      %v1930 = vld [vmem:[%s3 + $0x18] sm:$0xf]
      %v1931 = vld [vmem:[%s3 + $0x1c] sm:$0xf]
      %v1948 = vunpack.c.l.b16 %v1914
      %v1949 = vunpack.c.l.b16 %v1915
      %v1950 = vunpack.c.l.b16 %v1916
      %v1951 = vunpack.c.l.b16 %v1917
      %v1952 = vunpack.c.l.b16 %v1918
      %v1953 = vunpack.c.l.b16 %v1919
      %v1954 = vunpack.c.l.b16 %v1920
      %v1955 = vunpack.c.l.b16 %v1921
      %v1956 = vunpack.c.l.b16 %v1922
      %v1957 = vunpack.c.l.b16 %v1923
      %v1958 = vunpack.c.l.b16 %v1924
      %v1959 = vunpack.c.l.b16 %v1925
      %v1960 = vunpack.c.l.b16 %v1926
      %v1961 = vunpack.c.l.b16 %v1927
      %v1962 = vunpack.c.l.b16 %v1928
      %v1963 = vunpack.c.l.b16 %v1929
      %v1964 = vpack.c.b16 %v1949, %v1948
      %v1965 = vpack.c.b16 %v1951, %v1950
      %v1966 = vpack.c.b16 %v1953, %v1952
      %v1967 = vpack.c.b16 %v1955, %v1954
      %v1968 = vpack.c.b16 %v1957, %v1956
      %v1969 = vpack.c.b16 %v1959, %v1958
      %v1970 = vpack.c.b16 %v1961, %v1960
      %v1971 = vpack.c.b16 %v1963, %v1962
      %v1974 = vunpack.c.l.b16 %v1930
      %v1975 = vunpack.c.l.b16 %v1931
      %v1976 = vpack.c.b16 %v1975, %v1974
      %v1979 = vsel %vm1373, %v1964, 0
      %v1982 = vsel %vm1373, %v1965, 0
      %v1985 = vsel %vm1373, %v1966, 0
      %v1988 = vsel %vm1373, %v1967, 0
      %v1991 = vsel %vm1373, %v1968, 0
      %v1994 = vsel %vm1373, %v1969, 0
      %v1997 = vsel %vm1373, %v1970, 0
      %v2000 = vsel %vm1373, %v1971, 0
      %2002 = vmatprep.subr.bf16.mxu0 0
      %2003 = vmatpush1.bf16.msra.mxu0 %v1976
      %2004 = vmatprep.subr.bf16.mxu0 0
      %2005 = vmatpush1.bf16.msra.mxu0 0
      %2006 = vmatprep.subr.bf16.mxu0 0
      %2007 = vmatpush1.bf16.msra.mxu0 0
      %2008 = vmatprep.subr.bf16.mxu0 0
      %2009 = vmatpush1.bf16.msra.mxu0 0
      %2010 = vmatprep.subr.bf16.mxu0 0
      %2011 = vmatpush1.bf16.msra.mxu0 0
      %2012 = vmatprep.subr.bf16.mxu0 0
      %2013 = vmatpush1.bf16.msra.mxu0 0
      %2014 = vmatprep.subr.bf16.mxu0 0
      %2015 = vmatpush1.bf16.msra.mxu0 0
      %2016 = vmatprep.subr.bf16.mxu0 0
      %2017 = vmatpush1.bf16.msra.mxu0 0
      %2018 = vmatprep.subr.bf16.mxu0 0
      %2019 = vmatpush1.bf16.msra.mxu0 0
      %2020 = vmatprep.subr.bf16.mxu0 0
      %2021 = vmatpush1.bf16.msra.mxu0 0
      %2022 = vmatprep.subr.bf16.mxu0 0
      %2023 = vmatpush1.bf16.msra.mxu0 0
      %2024 = vmatprep.subr.bf16.mxu0 0
      %2025 = vmatpush1.bf16.msra.mxu0 0
      %2026 = vmatprep.subr.bf16.mxu0 0
      %2027 = vmatpush1.bf16.msra.mxu0 0
      %2028 = vmatprep.subr.bf16.mxu0 0
      %2029 = vmatpush1.bf16.msra.mxu0 0
      %2030 = vmatprep.subr.bf16.mxu0 0
      %2031 = vmatpush1.bf16.msra.mxu0 0
      %2032 = vmatprep.subr.bf16.mxu0 0
      %2033 = vmatpush1.bf16.msra.mxu0 0
      %2034 = vmatprep.mubr.bf16.mxu0 0
      %2035 = vmatmul.mubr.bf16.gmra.mrb[0].mxu0 %v1979
      %v2036 = vpop.f32.mrb[0].mxu0
      %v2037 = vadd.f32 0.0, %v2036
      %v2038 = vpop.f32.mrb[0].mxu0
      %v2039 = vpop.f32.mrb[0].mxu0
      %v2040 = vadd.f32 0.0, %v2039
      %v2041 = vpop.f32.mrb[0].mxu0
      %2042 = vmatprep.mubr.bf16.mxu0 0
      %2043 = vmatmul.mubr.bf16.gmra.mrb[0].mxu0 %v1982
      %v2044 = vpop.f32.mrb[0].mxu0
      %v2045 = vadd.f32 0.0, %v2044
      %v2046 = vpop.f32.mrb[0].mxu0
      %v2047 = vpop.f32.mrb[0].mxu0
      %v2048 = vadd.f32 0.0, %v2047
      %v2049 = vpop.f32.mrb[0].mxu0
      %2050 = vmatprep.mubr.bf16.mxu0 0
      %2051 = vmatmul.mubr.bf16.gmra.mrb[0].mxu0 %v1985
      %v2052 = vpop.f32.mrb[0].mxu0
      %v2053 = vadd.f32 0.0, %v2052
      %v2054 = vpop.f32.mrb[0].mxu0
      %v2055 = vpop.f32.mrb[0].mxu0
      %v2056 = vadd.f32 0.0, %v2055
      %v2057 = vpop.f32.mrb[0].mxu0
      %2058 = vmatprep.mubr.bf16.mxu0 0
      %2059 = vmatmul.mubr.bf16.gmra.mrb[0].mxu0 %v1988
      %v2060 = vpop.f32.mrb[0].mxu0
      %v2061 = vadd.f32 0.0, %v2060
      %v2062 = vpop.f32.mrb[0].mxu0
      %v2063 = vpop.f32.mrb[0].mxu0
      %v2064 = vadd.f32 0.0, %v2063
      %v2065 = vpop.f32.mrb[0].mxu0
      %2066 = vmatprep.mubr.bf16.mxu0 0
      %2067 = vmatmul.mubr.bf16.gmra.mrb[0].mxu0 %v1991
      %v2068 = vpop.f32.mrb[0].mxu0
      %v2069 = vadd.f32 0.0, %v2068
      %v2070 = vpop.f32.mrb[0].mxu0
      %v2071 = vpop.f32.mrb[0].mxu0
      %v2072 = vadd.f32 0.0, %v2071
      %v2073 = vpop.f32.mrb[0].mxu0
      %2074 = vmatprep.mubr.bf16.mxu0 0
      %2075 = vmatmul.mubr.bf16.gmra.mrb[0].mxu0 %v1994
      %v2076 = vpop.f32.mrb[0].mxu0
      %v2077 = vadd.f32 0.0, %v2076
      %v2078 = vpop.f32.mrb[0].mxu0
      %v2079 = vpop.f32.mrb[0].mxu0
      %v2080 = vadd.f32 0.0, %v2079
      %v2081 = vpop.f32.mrb[0].mxu0
      %2082 = vmatprep.mubr.bf16.mxu0 0
      %2083 = vmatmul.mubr.bf16.gmra.mrb[0].mxu0 %v1997
      %v2084 = vpop.f32.mrb[0].mxu0
      %v2085 = vadd.f32 0.0, %v2084
      %v2086 = vpop.f32.mrb[0].mxu0
      %v2087 = vpop.f32.mrb[0].mxu0
      %v2088 = vadd.f32 0.0, %v2087
      %v2089 = vpop.f32.mrb[0].mxu0
      %2090 = vmatprep.mubr.bf16.mxu0 0
      %2091 = vmatmul.mubr.bf16.gmra.mrb[0].mxu0 %v2000
      %v2092 = vpop.f32.mrb[0].mxu0
      %v2093 = vadd.f32 0.0, %v2092
      %v2094 = vpop.f32.mrb[0].mxu0
      %v2095 = vpop.f32.mrb[0].mxu0
      %v2096 = vadd.f32 0.0, %v2095
      %v2097 = vpop.f32.mrb[0].mxu0
      %2098 = vdwg.mxu0
      %v2099 = vadd.f32 %v1898, %v2037
      %v2100 = vadd.f32 %v1899, %v2040
      %v2101 = vadd.f32 %v1900, %v2045
      %v2102 = vadd.f32 %v1901, %v2048
      %v2103 = vadd.f32 %v1902, %v2053
      %v2104 = vadd.f32 %v1903, %v2056
      %v2105 = vadd.f32 %v1904, %v2061
      %v2106 = vadd.f32 %v1905, %v2064
      %v2107 = vadd.f32 %v1906, %v2069
      %v2108 = vadd.f32 %v1907, %v2072
      %v2109 = vadd.f32 %v1908, %v2077
      %v2110 = vadd.f32 %v1909, %v2080
      %v2111 = vadd.f32 %v1910, %v2085
      %v2112 = vadd.f32 %v1911, %v2088
      %v2113 = vadd.f32 %v1912, %v2093
      %v2114 = vadd.f32 %v1913, %v2096
      %v2115 = vld [vmem:[%s823] sm:$0xf]
      %v2116 = vld [vmem:[%s823 + $0x4] sm:$0xf]
      %v2117 = vld [vmem:[%s823 + $0x8] sm:$0x1]
      %v2118 = vld [vmem:[%s823 + $0xc] sm:$0xf]
      %v2119 = vld [vmem:[%s823 + $0x10] sm:$0xf]
      %v2120 = vld [vmem:[%s823 + $0x14] sm:$0x1]
      %v2121 = vld [vmem:[%s823 + $0x18] sm:$0xf]
      %v2122 = vld [vmem:[%s823 + $0x1c] sm:$0xf]
      %v2123 = vld [vmem:[%s823 + $0x20] sm:$0x1]
      %v2124 = vld [vmem:[%s823 + $0x24] sm:$0xf]
      %v2125 = vld [vmem:[%s823 + $0x28] sm:$0xf]
      %v2126 = vld [vmem:[%s823 + $0x2c] sm:$0x1]
      %v2127 = vld [vmem:[%s823 + $0x30] sm:$0xf]
      %v2128 = vld [vmem:[%s823 + $0x34] sm:$0xf]
      %v2129 = vld [vmem:[%s823 + $0x38] sm:$0x1]
      %v2130 = vld [vmem:[%s823 + $0x3c] sm:$0xf]
      %v2131 = vld [vmem:[%s823 + $0x40] sm:$0xf]
      %v2132 = vld [vmem:[%s823 + $0x44] sm:$0x1]
      %v2133 = vld [vmem:[%s823 + $0x48] sm:$0xf]
      %v2134 = vld [vmem:[%s823 + $0x4c] sm:$0xf]
      %v2135 = vld [vmem:[%s823 + $0x50] sm:$0x1]
      %v2136 = vld [vmem:[%s823 + $0x54] sm:$0xf]
      %v2137 = vld [vmem:[%s823 + $0x58] sm:$0xf]
      %v2138 = vld [vmem:[%s823 + $0x5c] sm:$0x1]
      %v2140 = vshrl.u32 %v2115, 16
      %v2142 = vrot.slane %v2140, 4
      %v2143 = vshll.u32 %v2115, 16
      %v2145 = vrot.slane %v2143, 5
      %v2146 = vor.u32 %v2142, %v2145
      %v2147 = vrot.slane %v2146, 4
      %v2149 = vshll.u32 %v2116, 16
      %v2151 = vrot.slane %v2149, 5
      %v2152 = vsel %vm1148, %v2147, %v2151
      %v2153 = vshrl.u32 %v2116, 16
      %v2155 = vrot.slane %v2153, 4
      %v2156 = vor.u32 %v2155, %v2151
      %v2157 = vrot.slane %v2156, 4
      %v2159 = vshll.u32 %v2117, 16
      %v2161 = vrot.slane %v2159, 5
      %v2162 = vsel %vm1148, %v2157, %v2161
      %v2164 = vshrl.u32 %v2118, 16
      %v2166 = vrot.slane %v2164, 4
      %v2167 = vshll.u32 %v2118, 16
      %v2169 = vrot.slane %v2167, 5
      %v2170 = vor.u32 %v2166, %v2169
      %v2171 = vrot.slane %v2170, 4
      %v2173 = vshll.u32 %v2119, 16
      %v2175 = vrot.slane %v2173, 5
      %v2176 = vsel %vm1148, %v2171, %v2175
      %v2177 = vshrl.u32 %v2119, 16
      %v2179 = vrot.slane %v2177, 4
      %v2180 = vor.u32 %v2179, %v2175
      %v2181 = vrot.slane %v2180, 4
      %v2183 = vshll.u32 %v2120, 16
      %v2185 = vrot.slane %v2183, 5
      %v2186 = vsel %vm1148, %v2181, %v2185
      %v2188 = vshrl.u32 %v2121, 16
      %v2190 = vrot.slane %v2188, 4
      %v2191 = vshll.u32 %v2121, 16
      %v2193 = vrot.slane %v2191, 5
      %v2194 = vor.u32 %v2190, %v2193
      %v2195 = vrot.slane %v2194, 4
      %v2197 = vshll.u32 %v2122, 16
      %v2199 = vrot.slane %v2197, 5
      %v2200 = vsel %vm1148, %v2195, %v2199
      %v2201 = vshrl.u32 %v2122, 16
      %v2203 = vrot.slane %v2201, 4
      %v2204 = vor.u32 %v2203, %v2199
      %v2205 = vrot.slane %v2204, 4
      %v2207 = vshll.u32 %v2123, 16
      %v2209 = vrot.slane %v2207, 5
      %v2210 = vsel %vm1148, %v2205, %v2209
      %v2212 = vshrl.u32 %v2124, 16
      %v2214 = vrot.slane %v2212, 4
      %v2215 = vshll.u32 %v2124, 16
      %v2217 = vrot.slane %v2215, 5
      %v2218 = vor.u32 %v2214, %v2217
      %v2219 = vrot.slane %v2218, 4
      %v2221 = vshll.u32 %v2125, 16
      %v2223 = vrot.slane %v2221, 5
      %v2224 = vsel %vm1148, %v2219, %v2223
      %v2225 = vshrl.u32 %v2125, 16
      %v2227 = vrot.slane %v2225, 4
      %v2228 = vor.u32 %v2227, %v2223
      %v2229 = vrot.slane %v2228, 4
      %v2231 = vshll.u32 %v2126, 16
      %v2233 = vrot.slane %v2231, 5
      %v2234 = vsel %vm1148, %v2229, %v2233
      %v2236 = vshrl.u32 %v2127, 16
      %v2238 = vrot.slane %v2236, 4
      %v2239 = vshll.u32 %v2127, 16
      %v2241 = vrot.slane %v2239, 5
      %v2242 = vor.u32 %v2238, %v2241
      %v2243 = vrot.slane %v2242, 4
      %v2245 = vshll.u32 %v2128, 16
      %v2247 = vrot.slane %v2245, 5
      %v2248 = vsel %vm1148, %v2243, %v2247
      %v2249 = vshrl.u32 %v2128, 16
      %v2251 = vrot.slane %v2249, 4
      %v2252 = vor.u32 %v2251, %v2247
      %v2253 = vrot.slane %v2252, 4
      %v2255 = vshll.u32 %v2129, 16
      %v2257 = vrot.slane %v2255, 5
      %v2258 = vsel %vm1148, %v2253, %v2257
      %v2260 = vshrl.u32 %v2130, 16
      %v2262 = vrot.slane %v2260, 4
      %v2263 = vshll.u32 %v2130, 16
      %v2265 = vrot.slane %v2263, 5
      %v2266 = vor.u32 %v2262, %v2265
      %v2267 = vrot.slane %v2266, 4
      %v2269 = vshll.u32 %v2131, 16
      %v2271 = vrot.slane %v2269, 5
      %v2272 = vsel %vm1148, %v2267, %v2271
      %v2273 = vshrl.u32 %v2131, 16
      %v2275 = vrot.slane %v2273, 4
      %v2276 = vor.u32 %v2275, %v2271
      %v2277 = vrot.slane %v2276, 4
      %v2279 = vshll.u32 %v2132, 16
      %v2281 = vrot.slane %v2279, 5
      %v2282 = vsel %vm1148, %v2277, %v2281
      %v2284 = vshrl.u32 %v2133, 16
      %v2286 = vrot.slane %v2284, 4
      %v2287 = vshll.u32 %v2133, 16
      %v2289 = vrot.slane %v2287, 5
      %v2290 = vor.u32 %v2286, %v2289
      %v2291 = vrot.slane %v2290, 4
      %v2293 = vshll.u32 %v2134, 16
      %v2295 = vrot.slane %v2293, 5
      %v2296 = vsel %vm1148, %v2291, %v2295
      %v2297 = vshrl.u32 %v2134, 16
      %v2299 = vrot.slane %v2297, 4
      %v2300 = vor.u32 %v2299, %v2295
      %v2301 = vrot.slane %v2300, 4
      %v2303 = vshll.u32 %v2135, 16
      %v2305 = vrot.slane %v2303, 5
      %v2306 = vsel %vm1148, %v2301, %v2305
      %v2308 = vshrl.u32 %v2136, 16
      %v2310 = vrot.slane %v2308, 4
      %v2311 = vshll.u32 %v2136, 16
      %v2313 = vrot.slane %v2311, 5
      %v2314 = vor.u32 %v2310, %v2313
      %v2315 = vrot.slane %v2314, 4
      %v2317 = vshll.u32 %v2137, 16
      %v2319 = vrot.slane %v2317, 5
      %v2320 = vsel %vm1148, %v2315, %v2319
      %v2321 = vshrl.u32 %v2137, 16
      %v2323 = vrot.slane %v2321, 4
      %v2324 = vor.u32 %v2323, %v2319
      %v2325 = vrot.slane %v2324, 4
      %v2327 = vshll.u32 %v2138, 16
      %v2329 = vrot.slane %v2327, 5
      %v2330 = vsel %vm1148, %v2325, %v2329
      %v2331 = vld [vmem:[%s3 + $0x20] sm:$0xf]
      %v2332 = vld [vmem:[%s3 + $0x24] sm:$0xf]
      %v2333 = vunpack.c.l.b16 %v2152
      %v2334 = vunpack.c.l.b16 %v2162
      %v2335 = vunpack.c.l.b16 %v2176
      %v2336 = vunpack.c.l.b16 %v2186
      %v2337 = vunpack.c.l.b16 %v2200
      %v2338 = vunpack.c.l.b16 %v2210
      %v2339 = vunpack.c.l.b16 %v2224
      %v2340 = vunpack.c.l.b16 %v2234
      %v2341 = vunpack.c.l.b16 %v2248
      %v2342 = vunpack.c.l.b16 %v2258
      %v2343 = vunpack.c.l.b16 %v2272
      %v2344 = vunpack.c.l.b16 %v2282
      %v2345 = vunpack.c.l.b16 %v2296
      %v2346 = vunpack.c.l.b16 %v2306
      %v2347 = vunpack.c.l.b16 %v2320
      %v2348 = vunpack.c.l.b16 %v2330
      %v2349 = vpack.c.b16 %v2334, %v2333
      %v2350 = vpack.c.b16 %v2336, %v2335
      %v2351 = vpack.c.b16 %v2338, %v2337
      %v2352 = vpack.c.b16 %v2340, %v2339
      %v2353 = vpack.c.b16 %v2342, %v2341
      %v2354 = vpack.c.b16 %v2344, %v2343
      %v2355 = vpack.c.b16 %v2346, %v2345
      %v2356 = vpack.c.b16 %v2348, %v2347
      %v2359 = vunpack.c.l.b16 %v2331
      %v2360 = vunpack.c.l.b16 %v2332
      %v2361 = vpack.c.b16 %v2360, %v2359
      %v2364 = vsel %vm1373, %v2349, 0
      %v2367 = vsel %vm1373, %v2350, 0
      %v2370 = vsel %vm1373, %v2351, 0
      %v2373 = vsel %vm1373, %v2352, 0
      %v2376 = vsel %vm1373, %v2353, 0
      %v2379 = vsel %vm1373, %v2354, 0
      %v2382 = vsel %vm1373, %v2355, 0
      %v2385 = vsel %vm1373, %v2356, 0
      %2387 = vmatprep.subr.bf16.mxu0 0
      %2388 = vmatpush1.bf16.msra.mxu0 %v2361
      %2389 = vmatprep.subr.bf16.mxu0 0
      %2390 = vmatpush1.bf16.msra.mxu0 0
      %2391 = vmatprep.subr.bf16.mxu0 0
      %2392 = vmatpush1.bf16.msra.mxu0 0
      %2393 = vmatprep.subr.bf16.mxu0 0
      %2394 = vmatpush1.bf16.msra.mxu0 0
      %2395 = vmatprep.subr.bf16.mxu0 0
      %2396 = vmatpush1.bf16.msra.mxu0 0
      %2397 = vmatprep.subr.bf16.mxu0 0
      %2398 = vmatpush1.bf16.msra.mxu0 0
      %2399 = vmatprep.subr.bf16.mxu0 0
      %2400 = vmatpush1.bf16.msra.mxu0 0
      %2401 = vmatprep.subr.bf16.mxu0 0
      %2402 = vmatpush1.bf16.msra.mxu0 0
      %2403 = vmatprep.subr.bf16.mxu0 0
      %2404 = vmatpush1.bf16.msra.mxu0 0
      %2405 = vmatprep.subr.bf16.mxu0 0
      %2406 = vmatpush1.bf16.msra.mxu0 0
      %2407 = vmatprep.subr.bf16.mxu0 0
      %2408 = vmatpush1.bf16.msra.mxu0 0
      %2409 = vmatprep.subr.bf16.mxu0 0
      %2410 = vmatpush1.bf16.msra.mxu0 0
      %2411 = vmatprep.subr.bf16.mxu0 0
      %2412 = vmatpush1.bf16.msra.mxu0 0
      %2413 = vmatprep.subr.bf16.mxu0 0
      %2414 = vmatpush1.bf16.msra.mxu0 0
      %2415 = vmatprep.subr.bf16.mxu0 0
      %2416 = vmatpush1.bf16.msra.mxu0 0
      %2417 = vmatprep.subr.bf16.mxu0 0
      %2418 = vmatpush1.bf16.msra.mxu0 0
      %2419 = vmatprep.mubr.bf16.mxu0 0
      %2420 = vmatmul.mubr.bf16.gmra.mrb[0].mxu0 %v2364
      %v2421 = vpop.f32.mrb[0].mxu0
      %v2422 = vadd.f32 0.0, %v2421
      %v2423 = vpop.f32.mrb[0].mxu0
      %v2424 = vpop.f32.mrb[0].mxu0
      %v2425 = vadd.f32 0.0, %v2424
      %v2426 = vpop.f32.mrb[0].mxu0
      %2427 = vmatprep.mubr.bf16.mxu0 0
      %2428 = vmatmul.mubr.bf16.gmra.mrb[0].mxu0 %v2367
      %v2429 = vpop.f32.mrb[0].mxu0
      %v2430 = vadd.f32 0.0, %v2429
      %v2431 = vpop.f32.mrb[0].mxu0
      %v2432 = vpop.f32.mrb[0].mxu0
      %v2433 = vadd.f32 0.0, %v2432
      %v2434 = vpop.f32.mrb[0].mxu0
      %2435 = vmatprep.mubr.bf16.mxu0 0
      %2436 = vmatmul.mubr.bf16.gmra.mrb[0].mxu0 %v2370
      %v2437 = vpop.f32.mrb[0].mxu0
      %v2438 = vadd.f32 0.0, %v2437
      %v2439 = vpop.f32.mrb[0].mxu0
      %v2440 = vpop.f32.mrb[0].mxu0
      %v2441 = vadd.f32 0.0, %v2440
      %v2442 = vpop.f32.mrb[0].mxu0
      %2443 = vmatprep.mubr.bf16.mxu0 0
      %2444 = vmatmul.mubr.bf16.gmra.mrb[0].mxu0 %v2373
      %v2445 = vpop.f32.mrb[0].mxu0
      %v2446 = vadd.f32 0.0, %v2445
      %v2447 = vpop.f32.mrb[0].mxu0
      %v2448 = vpop.f32.mrb[0].mxu0
      %v2449 = vadd.f32 0.0, %v2448
      %v2450 = vpop.f32.mrb[0].mxu0
      %2451 = vmatprep.mubr.bf16.mxu0 0
      %2452 = vmatmul.mubr.bf16.gmra.mrb[0].mxu0 %v2376
      %v2453 = vpop.f32.mrb[0].mxu0
      %v2454 = vadd.f32 0.0, %v2453
      %v2455 = vpop.f32.mrb[0].mxu0
      %v2456 = vpop.f32.mrb[0].mxu0
      %v2457 = vadd.f32 0.0, %v2456
      %v2458 = vpop.f32.mrb[0].mxu0
      %2459 = vmatprep.mubr.bf16.mxu0 0
      %2460 = vmatmul.mubr.bf16.gmra.mrb[0].mxu0 %v2379
      %v2461 = vpop.f32.mrb[0].mxu0
      %v2462 = vadd.f32 0.0, %v2461
      %v2463 = vpop.f32.mrb[0].mxu0
      %v2464 = vpop.f32.mrb[0].mxu0
      %v2465 = vadd.f32 0.0, %v2464
      %v2466 = vpop.f32.mrb[0].mxu0
      %2467 = vmatprep.mubr.bf16.mxu0 0
      %2468 = vmatmul.mubr.bf16.gmra.mrb[0].mxu0 %v2382
      %v2469 = vpop.f32.mrb[0].mxu0
      %v2470 = vadd.f32 0.0, %v2469
      %v2471 = vpop.f32.mrb[0].mxu0
      %v2472 = vpop.f32.mrb[0].mxu0
      %v2473 = vadd.f32 0.0, %v2472
      %v2474 = vpop.f32.mrb[0].mxu0
      %2475 = vmatprep.mubr.bf16.mxu0 0
      %2476 = vmatmul.mubr.bf16.gmra.mrb[0].mxu0 %v2385
      %v2477 = vpop.f32.mrb[0].mxu0
      %v2478 = vadd.f32 0.0, %v2477
      %v2479 = vpop.f32.mrb[0].mxu0
      %v2480 = vpop.f32.mrb[0].mxu0
      %v2481 = vadd.f32 0.0, %v2480
      %v2482 = vpop.f32.mrb[0].mxu0
      %2483 = vdwg.mxu0
      %v2484 = vadd.f32 %v2099, %v2422
      %v2485 = vadd.f32 %v2100, %v2425
      %v2486 = vadd.f32 %v2101, %v2430
      %v2487 = vadd.f32 %v2102, %v2433
      %v2488 = vadd.f32 %v2103, %v2438
      %v2489 = vadd.f32 %v2104, %v2441
      %v2490 = vadd.f32 %v2105, %v2446
      %v2491 = vadd.f32 %v2106, %v2449
      %v2492 = vadd.f32 %v2107, %v2454
      %v2493 = vadd.f32 %v2108, %v2457
      %v2494 = vadd.f32 %v2109, %v2462
      %v2495 = vadd.f32 %v2110, %v2465
      %v2496 = vadd.f32 %v2111, %v2470
      %v2497 = vadd.f32 %v2112, %v2473
      %v2498 = vadd.f32 %v2113, %v2478
      %v2499 = vadd.f32 %v2114, %v2481
      %v2500 = vld [vmem:[%s823] sm:$0xe]
      %v2501 = vld [vmem:[%s823 + $0xc] sm:$0xe]
      %v2502 = vld [vmem:[%s823 + $0x18] sm:$0xe]
      %v2503 = vld [vmem:[%s823 + $0x24] sm:$0xe]
      %v2504 = vld [vmem:[%s823 + $0x30] sm:$0xe]
      %v2505 = vld [vmem:[%s823 + $0x3c] sm:$0xe]
      %v2506 = vld [vmem:[%s823 + $0x48] sm:$0xe]
      %v2507 = vld [vmem:[%s823 + $0x54] sm:$0xe]
      %v2532 = vrot.slane %v2500, 5
      %v2533 = vrot.slane %v2532, 4
      %v2534 = vrot.slane %v2116, 5
      %v2535 = vsel %vm1688, %v2533, %v2534
      %v2536 = vrot.slane %v2534, 4
      %v2537 = vrot.slane %v2117, 5
      %v2538 = vsel %vm1688, %v2536, %v2537
      %v2539 = vrot.slane %v2501, 5
      %v2540 = vrot.slane %v2539, 4
      %v2541 = vrot.slane %v2119, 5
      %v2542 = vsel %vm1688, %v2540, %v2541
      %v2543 = vrot.slane %v2541, 4
      %v2544 = vrot.slane %v2120, 5
      %v2545 = vsel %vm1688, %v2543, %v2544
      %v2546 = vrot.slane %v2502, 5
      %v2547 = vrot.slane %v2546, 4
      %v2548 = vrot.slane %v2122, 5
      %v2549 = vsel %vm1688, %v2547, %v2548
      %v2550 = vrot.slane %v2548, 4
      %v2551 = vrot.slane %v2123, 5
      %v2552 = vsel %vm1688, %v2550, %v2551
      %v2553 = vrot.slane %v2503, 5
      %v2554 = vrot.slane %v2553, 4
      %v2555 = vrot.slane %v2125, 5
      %v2556 = vsel %vm1688, %v2554, %v2555
      %v2557 = vrot.slane %v2555, 4
      %v2558 = vrot.slane %v2126, 5
      %v2559 = vsel %vm1688, %v2557, %v2558
      %v2560 = vrot.slane %v2504, 5
      %v2561 = vrot.slane %v2560, 4
      %v2562 = vrot.slane %v2128, 5
      %v2563 = vsel %vm1688, %v2561, %v2562
      %v2564 = vrot.slane %v2562, 4
      %v2565 = vrot.slane %v2129, 5
      %v2566 = vsel %vm1688, %v2564, %v2565
      %v2567 = vrot.slane %v2505, 5
      %v2568 = vrot.slane %v2567, 4
      %v2569 = vrot.slane %v2131, 5
      %v2570 = vsel %vm1688, %v2568, %v2569
      %v2571 = vrot.slane %v2569, 4
      %v2572 = vrot.slane %v2132, 5
      %v2573 = vsel %vm1688, %v2571, %v2572
      %v2574 = vrot.slane %v2506, 5
      %v2575 = vrot.slane %v2574, 4
      %v2576 = vrot.slane %v2134, 5
      %v2577 = vsel %vm1688, %v2575, %v2576
      %v2578 = vrot.slane %v2576, 4
      %v2579 = vrot.slane %v2135, 5
      %v2580 = vsel %vm1688, %v2578, %v2579
      %v2581 = vrot.slane %v2507, 5
      %v2582 = vrot.slane %v2581, 4
      %v2583 = vrot.slane %v2137, 5
      %v2584 = vsel %vm1688, %v2582, %v2583
      %v2585 = vrot.slane %v2583, 4
      %v2586 = vrot.slane %v2138, 5
      %v2587 = vsel %vm1688, %v2585, %v2586
      %v2588 = vld [vmem:[%s3 + $0x28] sm:$0xf]
      %v2589 = vld [vmem:[%s3 + $0x2c] sm:$0xf]
      %v2590 = vunpack.c.l.b16 %v2535
      %v2591 = vunpack.c.l.b16 %v2538
      %v2592 = vunpack.c.l.b16 %v2542
      %v2593 = vunpack.c.l.b16 %v2545
      %v2594 = vunpack.c.l.b16 %v2549
      %v2595 = vunpack.c.l.b16 %v2552
      %v2596 = vunpack.c.l.b16 %v2556
      %v2597 = vunpack.c.l.b16 %v2559
      %v2598 = vunpack.c.l.b16 %v2563
      %v2599 = vunpack.c.l.b16 %v2566
      %v2600 = vunpack.c.l.b16 %v2570
      %v2601 = vunpack.c.l.b16 %v2573
      %v2602 = vunpack.c.l.b16 %v2577
      %v2603 = vunpack.c.l.b16 %v2580
      %v2604 = vunpack.c.l.b16 %v2584
      %v2605 = vunpack.c.l.b16 %v2587
      %v2606 = vpack.c.b16 %v2591, %v2590
      %v2607 = vpack.c.b16 %v2593, %v2592
      %v2608 = vpack.c.b16 %v2595, %v2594
      %v2609 = vpack.c.b16 %v2597, %v2596
      %v2610 = vpack.c.b16 %v2599, %v2598
      %v2611 = vpack.c.b16 %v2601, %v2600
      %v2612 = vpack.c.b16 %v2603, %v2602
      %v2613 = vpack.c.b16 %v2605, %v2604
      %v2616 = vunpack.c.l.b16 %v2588
      %v2617 = vunpack.c.l.b16 %v2589
      %v2618 = vpack.c.b16 %v2617, %v2616
      %v2621 = vsel %vm1373, %v2606, 0
      %v2624 = vsel %vm1373, %v2607, 0
      %v2627 = vsel %vm1373, %v2608, 0
      %v2630 = vsel %vm1373, %v2609, 0
      %v2633 = vsel %vm1373, %v2610, 0
      %v2636 = vsel %vm1373, %v2611, 0
      %v2639 = vsel %vm1373, %v2612, 0
      %v2642 = vsel %vm1373, %v2613, 0
      %2644 = vmatprep.subr.bf16.mxu0 0
      %2645 = vmatpush1.bf16.msra.mxu0 %v2618
      %2646 = vmatprep.subr.bf16.mxu0 0
      %2647 = vmatpush1.bf16.msra.mxu0 0
      %2648 = vmatprep.subr.bf16.mxu0 0
      %2649 = vmatpush1.bf16.msra.mxu0 0
      %2650 = vmatprep.subr.bf16.mxu0 0
      %2651 = vmatpush1.bf16.msra.mxu0 0
      %2652 = vmatprep.subr.bf16.mxu0 0
      %2653 = vmatpush1.bf16.msra.mxu0 0
      %2654 = vmatprep.subr.bf16.mxu0 0
      %2655 = vmatpush1.bf16.msra.mxu0 0
      %2656 = vmatprep.subr.bf16.mxu0 0
      %2657 = vmatpush1.bf16.msra.mxu0 0
      %2658 = vmatprep.subr.bf16.mxu0 0
      %2659 = vmatpush1.bf16.msra.mxu0 0
      %2660 = vmatprep.subr.bf16.mxu0 0
      %2661 = vmatpush1.bf16.msra.mxu0 0
      %2662 = vmatprep.subr.bf16.mxu0 0
      %2663 = vmatpush1.bf16.msra.mxu0 0
      %2664 = vmatprep.subr.bf16.mxu0 0
      %2665 = vmatpush1.bf16.msra.mxu0 0
      %2666 = vmatprep.subr.bf16.mxu0 0
      %2667 = vmatpush1.bf16.msra.mxu0 0
      %2668 = vmatprep.subr.bf16.mxu0 0
      %2669 = vmatpush1.bf16.msra.mxu0 0
      %2670 = vmatprep.subr.bf16.mxu0 0
      %2671 = vmatpush1.bf16.msra.mxu0 0
      %2672 = vmatprep.subr.bf16.mxu0 0
      %2673 = vmatpush1.bf16.msra.mxu0 0
      %2674 = vmatprep.subr.bf16.mxu0 0
      %2675 = vmatpush1.bf16.msra.mxu0 0
      %2676 = vmatprep.mubr.bf16.mxu0 0
      %2677 = vmatmul.mubr.bf16.gmra.mrb[0].mxu0 %v2621
      %v2678 = vpop.f32.mrb[0].mxu0
      %v2679 = vadd.f32 0.0, %v2678
      %v2680 = vpop.f32.mrb[0].mxu0
      %v2681 = vpop.f32.mrb[0].mxu0
      %v2682 = vadd.f32 0.0, %v2681
      %v2683 = vpop.f32.mrb[0].mxu0
      %2684 = vmatprep.mubr.bf16.mxu0 0
      %2685 = vmatmul.mubr.bf16.gmra.mrb[0].mxu0 %v2624
      %v2686 = vpop.f32.mrb[0].mxu0
      %v2687 = vadd.f32 0.0, %v2686
      %v2688 = vpop.f32.mrb[0].mxu0
      %v2689 = vpop.f32.mrb[0].mxu0
      %v2690 = vadd.f32 0.0, %v2689
      %v2691 = vpop.f32.mrb[0].mxu0
      %2692 = vmatprep.mubr.bf16.mxu0 0
      %2693 = vmatmul.mubr.bf16.gmra.mrb[0].mxu0 %v2627
      %v2694 = vpop.f32.mrb[0].mxu0
      %v2695 = vadd.f32 0.0, %v2694
      %v2696 = vpop.f32.mrb[0].mxu0
      %v2697 = vpop.f32.mrb[0].mxu0
      %v2698 = vadd.f32 0.0, %v2697
      %v2699 = vpop.f32.mrb[0].mxu0
      %2700 = vmatprep.mubr.bf16.mxu0 0
      %2701 = vmatmul.mubr.bf16.gmra.mrb[0].mxu0 %v2630
      %v2702 = vpop.f32.mrb[0].mxu0
      %v2703 = vadd.f32 0.0, %v2702
      %v2704 = vpop.f32.mrb[0].mxu0
      %v2705 = vpop.f32.mrb[0].mxu0
      %v2706 = vadd.f32 0.0, %v2705
      %v2707 = vpop.f32.mrb[0].mxu0
      %2708 = vmatprep.mubr.bf16.mxu0 0
      %2709 = vmatmul.mubr.bf16.gmra.mrb[0].mxu0 %v2633
      %v2710 = vpop.f32.mrb[0].mxu0
      %v2711 = vadd.f32 0.0, %v2710
      %v2712 = vpop.f32.mrb[0].mxu0
      %v2713 = vpop.f32.mrb[0].mxu0
      %v2714 = vadd.f32 0.0, %v2713
      %v2715 = vpop.f32.mrb[0].mxu0
      %2716 = vmatprep.mubr.bf16.mxu0 0
      %2717 = vmatmul.mubr.bf16.gmra.mrb[0].mxu0 %v2636
      %v2718 = vpop.f32.mrb[0].mxu0
      %v2719 = vadd.f32 0.0, %v2718
      %v2720 = vpop.f32.mrb[0].mxu0
      %v2721 = vpop.f32.mrb[0].mxu0
      %v2722 = vadd.f32 0.0, %v2721
      %v2723 = vpop.f32.mrb[0].mxu0
      %2724 = vmatprep.mubr.bf16.mxu0 0
      %2725 = vmatmul.mubr.bf16.gmra.mrb[0].mxu0 %v2639
      %v2726 = vpop.f32.mrb[0].mxu0
      %v2727 = vadd.f32 0.0, %v2726
      %v2728 = vpop.f32.mrb[0].mxu0
      %v2729 = vpop.f32.mrb[0].mxu0
      %v2730 = vadd.f32 0.0, %v2729
      %v2731 = vpop.f32.mrb[0].mxu0
      %2732 = vmatprep.mubr.bf16.mxu0 0
      %2733 = vmatmul.mubr.bf16.gmra.mrb[0].mxu0 %v2642
      %v2734 = vpop.f32.mrb[0].mxu0
      %v2735 = vadd.f32 0.0, %v2734
      %v2736 = vpop.f32.mrb[0].mxu0
      %v2737 = vpop.f32.mrb[0].mxu0
      %v2738 = vadd.f32 0.0, %v2737
      %v2739 = vpop.f32.mrb[0].mxu0
      %2740 = vdwg.mxu0
      %v2741 = vadd.f32 %v2484, %v2679
      %v2742 = vadd.f32 %v2485, %v2682
      %v2743 = vadd.f32 %v2486, %v2687
      %v2744 = vadd.f32 %v2487, %v2690
      %v2745 = vadd.f32 %v2488, %v2695
      %v2746 = vadd.f32 %v2489, %v2698
      %v2747 = vadd.f32 %v2490, %v2703
      %v2748 = vadd.f32 %v2491, %v2706
      %v2749 = vadd.f32 %v2492, %v2711
      %v2750 = vadd.f32 %v2493, %v2714
      %v2751 = vadd.f32 %v2494, %v2719
      %v2752 = vadd.f32 %v2495, %v2722
      %v2753 = vadd.f32 %v2496, %v2727
      %v2754 = vadd.f32 %v2497, %v2730
      %v2755 = vadd.f32 %v2498, %v2735
      %v2756 = vadd.f32 %v2499, %v2738
      %s2757 = scalar_lea.vmem [#allocation2], 24
      %v2758 = vld [vmem:[%s2757] sm:$0xf]
      %v2759 = vld [vmem:[%s2757 + $0x4] sm:$0xf]
      %v2760 = vld [vmem:[%s2757 + $0xc] sm:$0xf]
      %v2761 = vld [vmem:[%s2757 + $0x10] sm:$0xf]
      %v2762 = vld [vmem:[%s2757 + $0x18] sm:$0xf]
      %v2763 = vld [vmem:[%s2757 + $0x1c] sm:$0xf]
      %v2764 = vld [vmem:[%s2757 + $0x24] sm:$0xf]
      %v2765 = vld [vmem:[%s2757 + $0x28] sm:$0xf]
      %v2766 = vld [vmem:[%s2757 + $0x30] sm:$0xf]
      %v2767 = vld [vmem:[%s2757 + $0x34] sm:$0xf]
      %v2768 = vld [vmem:[%s2757 + $0x3c] sm:$0xf]
      %v2769 = vld [vmem:[%s2757 + $0x40] sm:$0xf]
      %v2770 = vld [vmem:[%s2757 + $0x48] sm:$0xf]
      %v2771 = vld [vmem:[%s2757 + $0x4c] sm:$0xf]
      %v2772 = vld [vmem:[%s2757 + $0x54] sm:$0xf]
      %v2773 = vld [vmem:[%s2757 + $0x58] sm:$0xf]
      %v2774 = vld [vmem:[%s3 + $0x30] sm:$0xf]
      %v2775 = vld [vmem:[%s3 + $0x34] sm:$0xf]
      %v2792 = vunpack.c.l.b16 %v2758
      %v2793 = vunpack.c.l.b16 %v2759
      %v2794 = vunpack.c.l.b16 %v2760
      %v2795 = vunpack.c.l.b16 %v2761
      %v2796 = vunpack.c.l.b16 %v2762
      %v2797 = vunpack.c.l.b16 %v2763
      %v2798 = vunpack.c.l.b16 %v2764
      %v2799 = vunpack.c.l.b16 %v2765
      %v2800 = vunpack.c.l.b16 %v2766
      %v2801 = vunpack.c.l.b16 %v2767
      %v2802 = vunpack.c.l.b16 %v2768
      %v2803 = vunpack.c.l.b16 %v2769
      %v2804 = vunpack.c.l.b16 %v2770
      %v2805 = vunpack.c.l.b16 %v2771
      %v2806 = vunpack.c.l.b16 %v2772
      %v2807 = vunpack.c.l.b16 %v2773
      %v2808 = vpack.c.b16 %v2793, %v2792
      %v2809 = vpack.c.b16 %v2795, %v2794
      %v2810 = vpack.c.b16 %v2797, %v2796
      %v2811 = vpack.c.b16 %v2799, %v2798
      %v2812 = vpack.c.b16 %v2801, %v2800
      %v2813 = vpack.c.b16 %v2803, %v2802
      %v2814 = vpack.c.b16 %v2805, %v2804
      %v2815 = vpack.c.b16 %v2807, %v2806
      %v2818 = vunpack.c.l.b16 %v2774
      %v2819 = vunpack.c.l.b16 %v2775
      %v2820 = vpack.c.b16 %v2819, %v2818
      %v2823 = vsel %vm1373, %v2808, 0
      %v2826 = vsel %vm1373, %v2809, 0
      %v2829 = vsel %vm1373, %v2810, 0
      %v2832 = vsel %vm1373, %v2811, 0
      %v2835 = vsel %vm1373, %v2812, 0
      %v2838 = vsel %vm1373, %v2813, 0
      %v2841 = vsel %vm1373, %v2814, 0
      %v2844 = vsel %vm1373, %v2815, 0
      %2846 = vmatprep.subr.bf16.mxu0 0
      %2847 = vmatpush1.bf16.msra.mxu0 %v2820
      %2848 = vmatprep.subr.bf16.mxu0 0
      %2849 = vmatpush1.bf16.msra.mxu0 0
      %2850 = vmatprep.subr.bf16.mxu0 0
      %2851 = vmatpush1.bf16.msra.mxu0 0
      %2852 = vmatprep.subr.bf16.mxu0 0
      %2853 = vmatpush1.bf16.msra.mxu0 0
      %2854 = vmatprep.subr.bf16.mxu0 0
      %2855 = vmatpush1.bf16.msra.mxu0 0
      %2856 = vmatprep.subr.bf16.mxu0 0
      %2857 = vmatpush1.bf16.msra.mxu0 0
      %2858 = vmatprep.subr.bf16.mxu0 0
      %2859 = vmatpush1.bf16.msra.mxu0 0
      %2860 = vmatprep.subr.bf16.mxu0 0
      %2861 = vmatpush1.bf16.msra.mxu0 0
      %2862 = vmatprep.subr.bf16.mxu0 0
      %2863 = vmatpush1.bf16.msra.mxu0 0
      %2864 = vmatprep.subr.bf16.mxu0 0
      %2865 = vmatpush1.bf16.msra.mxu0 0
      %2866 = vmatprep.subr.bf16.mxu0 0
      %2867 = vmatpush1.bf16.msra.mxu0 0
      %2868 = vmatprep.subr.bf16.mxu0 0
      %2869 = vmatpush1.bf16.msra.mxu0 0
      %2870 = vmatprep.subr.bf16.mxu0 0
      %2871 = vmatpush1.bf16.msra.mxu0 0
      %2872 = vmatprep.subr.bf16.mxu0 0
      %2873 = vmatpush1.bf16.msra.mxu0 0
      %2874 = vmatprep.subr.bf16.mxu0 0
      %2875 = vmatpush1.bf16.msra.mxu0 0
      %2876 = vmatprep.subr.bf16.mxu0 0
      %2877 = vmatpush1.bf16.msra.mxu0 0
      %2878 = vmatprep.mubr.bf16.mxu0 0
      %2879 = vmatmul.mubr.bf16.gmra.mrb[0].mxu0 %v2823
      %v2880 = vpop.f32.mrb[0].mxu0
      %v2881 = vadd.f32 0.0, %v2880
      %v2882 = vpop.f32.mrb[0].mxu0
      %v2883 = vpop.f32.mrb[0].mxu0
      %v2884 = vadd.f32 0.0, %v2883
      %v2885 = vpop.f32.mrb[0].mxu0
      %2886 = vmatprep.mubr.bf16.mxu0 0
      %2887 = vmatmul.mubr.bf16.gmra.mrb[0].mxu0 %v2826
      %v2888 = vpop.f32.mrb[0].mxu0
      %v2889 = vadd.f32 0.0, %v2888
      %v2890 = vpop.f32.mrb[0].mxu0
      %v2891 = vpop.f32.mrb[0].mxu0
      %v2892 = vadd.f32 0.0, %v2891
      %v2893 = vpop.f32.mrb[0].mxu0
      %2894 = vmatprep.mubr.bf16.mxu0 0
      %2895 = vmatmul.mubr.bf16.gmra.mrb[0].mxu0 %v2829
      %v2896 = vpop.f32.mrb[0].mxu0
      %v2897 = vadd.f32 0.0, %v2896
      %v2898 = vpop.f32.mrb[0].mxu0
      %v2899 = vpop.f32.mrb[0].mxu0
      %v2900 = vadd.f32 0.0, %v2899
      %v2901 = vpop.f32.mrb[0].mxu0
      %2902 = vmatprep.mubr.bf16.mxu0 0
      %2903 = vmatmul.mubr.bf16.gmra.mrb[0].mxu0 %v2832
      %v2904 = vpop.f32.mrb[0].mxu0
      %v2905 = vadd.f32 0.0, %v2904
      %v2906 = vpop.f32.mrb[0].mxu0
      %v2907 = vpop.f32.mrb[0].mxu0
      %v2908 = vadd.f32 0.0, %v2907
      %v2909 = vpop.f32.mrb[0].mxu0
      %2910 = vmatprep.mubr.bf16.mxu0 0
      %2911 = vmatmul.mubr.bf16.gmra.mrb[0].mxu0 %v2835
      %v2912 = vpop.f32.mrb[0].mxu0
      %v2913 = vadd.f32 0.0, %v2912
      %v2914 = vpop.f32.mrb[0].mxu0
      %v2915 = vpop.f32.mrb[0].mxu0
      %v2916 = vadd.f32 0.0, %v2915
      %v2917 = vpop.f32.mrb[0].mxu0
      %2918 = vmatprep.mubr.bf16.mxu0 0
      %2919 = vmatmul.mubr.bf16.gmra.mrb[0].mxu0 %v2838
      %v2920 = vpop.f32.mrb[0].mxu0
      %v2921 = vadd.f32 0.0, %v2920
      %v2922 = vpop.f32.mrb[0].mxu0
      %v2923 = vpop.f32.mrb[0].mxu0
      %v2924 = vadd.f32 0.0, %v2923
      %v2925 = vpop.f32.mrb[0].mxu0
      %2926 = vmatprep.mubr.bf16.mxu0 0
      %2927 = vmatmul.mubr.bf16.gmra.mrb[0].mxu0 %v2841
      %v2928 = vpop.f32.mrb[0].mxu0
      %v2929 = vadd.f32 0.0, %v2928
      %v2930 = vpop.f32.mrb[0].mxu0
      %v2931 = vpop.f32.mrb[0].mxu0
      %v2932 = vadd.f32 0.0, %v2931
      %v2933 = vpop.f32.mrb[0].mxu0
      %2934 = vmatprep.mubr.bf16.mxu0 0
      %2935 = vmatmul.mubr.bf16.gmra.mrb[0].mxu0 %v2844
      %v2936 = vpop.f32.mrb[0].mxu0
      %v2937 = vadd.f32 0.0, %v2936
      %v2938 = vpop.f32.mrb[0].mxu0
      %v2939 = vpop.f32.mrb[0].mxu0
      %v2940 = vadd.f32 0.0, %v2939
      %v2941 = vpop.f32.mrb[0].mxu0
      %2942 = vdwg.mxu0
      %v2943 = vadd.f32 %v2741, %v2881
      %v2944 = vadd.f32 %v2742, %v2884
      %v2945 = vadd.f32 %v2743, %v2889
      %v2946 = vadd.f32 %v2744, %v2892
      %v2947 = vadd.f32 %v2745, %v2897
      %v2948 = vadd.f32 %v2746, %v2900
      %v2949 = vadd.f32 %v2747, %v2905
      %v2950 = vadd.f32 %v2748, %v2908
      %v2951 = vadd.f32 %v2749, %v2913
      %v2952 = vadd.f32 %v2750, %v2916
      %v2953 = vadd.f32 %v2751, %v2921
      %v2954 = vadd.f32 %v2752, %v2924
      %v2955 = vadd.f32 %v2753, %v2929
      %v2956 = vadd.f32 %v2754, %v2932
      %v2957 = vadd.f32 %v2755, %v2937
      %v2958 = vadd.f32 %v2756, %v2940
      %v2959 = vld [vmem:[%s2757] sm:$0xf]
      %v2960 = vld [vmem:[%s2757 + $0x4] sm:$0xf]
      %v2961 = vld [vmem:[%s2757 + $0x8] sm:$0x1]
      %v2962 = vld [vmem:[%s2757 + $0xc] sm:$0xf]
      %v2963 = vld [vmem:[%s2757 + $0x10] sm:$0xf]
      %v2964 = vld [vmem:[%s2757 + $0x14] sm:$0x1]
      %v2965 = vld [vmem:[%s2757 + $0x18] sm:$0xf]
      %v2966 = vld [vmem:[%s2757 + $0x1c] sm:$0xf]
      %v2967 = vld [vmem:[%s2757 + $0x20] sm:$0x1]
      %v2968 = vld [vmem:[%s2757 + $0x24] sm:$0xf]
      %v2969 = vld [vmem:[%s2757 + $0x28] sm:$0xf]
      %v2970 = vld [vmem:[%s2757 + $0x2c] sm:$0x1]
      %v2971 = vld [vmem:[%s2757 + $0x30] sm:$0xf]
      %v2972 = vld [vmem:[%s2757 + $0x34] sm:$0xf]
      %v2973 = vld [vmem:[%s2757 + $0x38] sm:$0x1]
      %v2974 = vld [vmem:[%s2757 + $0x3c] sm:$0xf]
      %v2975 = vld [vmem:[%s2757 + $0x40] sm:$0xf]
      %v2976 = vld [vmem:[%s2757 + $0x44] sm:$0x1]
      %v2977 = vld [vmem:[%s2757 + $0x48] sm:$0xf]
      %v2978 = vld [vmem:[%s2757 + $0x4c] sm:$0xf]
      %v2979 = vld [vmem:[%s2757 + $0x50] sm:$0x1]
      %v2980 = vld [vmem:[%s2757 + $0x54] sm:$0xf]
      %v2981 = vld [vmem:[%s2757 + $0x58] sm:$0xf]
      %v2982 = vld [vmem:[%s2757 + $0x5c] sm:$0x1]
      %v2984 = vshrl.u32 %v2959, 16
      %v2986 = vrot.slane %v2984, 4
      %v2987 = vshll.u32 %v2959, 16
      %v2989 = vrot.slane %v2987, 5
      %v2990 = vor.u32 %v2986, %v2989
      %v2991 = vrot.slane %v2990, 4
      %v2993 = vshll.u32 %v2960, 16
      %v2995 = vrot.slane %v2993, 5
      %v2996 = vsel %vm1148, %v2991, %v2995
      %v2997 = vshrl.u32 %v2960, 16
      %v2999 = vrot.slane %v2997, 4
      %v3000 = vor.u32 %v2999, %v2995
      %v3001 = vrot.slane %v3000, 4
      %v3003 = vshll.u32 %v2961, 16
      %v3005 = vrot.slane %v3003, 5
      %v3006 = vsel %vm1148, %v3001, %v3005
      %v3008 = vshrl.u32 %v2962, 16
      %v3010 = vrot.slane %v3008, 4
      %v3011 = vshll.u32 %v2962, 16
      %v3013 = vrot.slane %v3011, 5
      %v3014 = vor.u32 %v3010, %v3013
      %v3015 = vrot.slane %v3014, 4
      %v3017 = vshll.u32 %v2963, 16
      %v3019 = vrot.slane %v3017, 5
      %v3020 = vsel %vm1148, %v3015, %v3019
      %v3021 = vshrl.u32 %v2963, 16
      %v3023 = vrot.slane %v3021, 4
      %v3024 = vor.u32 %v3023, %v3019
      %v3025 = vrot.slane %v3024, 4
      %v3027 = vshll.u32 %v2964, 16
      %v3029 = vrot.slane %v3027, 5
      %v3030 = vsel %vm1148, %v3025, %v3029
      %v3032 = vshrl.u32 %v2965, 16
      %v3034 = vrot.slane %v3032, 4
      %v3035 = vshll.u32 %v2965, 16
      %v3037 = vrot.slane %v3035, 5
      %v3038 = vor.u32 %v3034, %v3037
      %v3039 = vrot.slane %v3038, 4
      %v3041 = vshll.u32 %v2966, 16
      %v3043 = vrot.slane %v3041, 5
      %v3044 = vsel %vm1148, %v3039, %v3043
      %v3045 = vshrl.u32 %v2966, 16
      %v3047 = vrot.slane %v3045, 4
      %v3048 = vor.u32 %v3047, %v3043
      %v3049 = vrot.slane %v3048, 4
      %v3051 = vshll.u32 %v2967, 16
      %v3053 = vrot.slane %v3051, 5
      %v3054 = vsel %vm1148, %v3049, %v3053
      %v3056 = vshrl.u32 %v2968, 16
      %v3058 = vrot.slane %v3056, 4
      %v3059 = vshll.u32 %v2968, 16
      %v3061 = vrot.slane %v3059, 5
      %v3062 = vor.u32 %v3058, %v3061
      %v3063 = vrot.slane %v3062, 4
      %v3065 = vshll.u32 %v2969, 16
      %v3067 = vrot.slane %v3065, 5
      %v3068 = vsel %vm1148, %v3063, %v3067
      %v3069 = vshrl.u32 %v2969, 16
      %v3071 = vrot.slane %v3069, 4
      %v3072 = vor.u32 %v3071, %v3067
      %v3073 = vrot.slane %v3072, 4
      %v3075 = vshll.u32 %v2970, 16
      %v3077 = vrot.slane %v3075, 5
      %v3078 = vsel %vm1148, %v3073, %v3077
      %v3080 = vshrl.u32 %v2971, 16
      %v3082 = vrot.slane %v3080, 4
      %v3083 = vshll.u32 %v2971, 16
      %v3085 = vrot.slane %v3083, 5
      %v3086 = vor.u32 %v3082, %v3085
      %v3087 = vrot.slane %v3086, 4
      %v3089 = vshll.u32 %v2972, 16
      %v3091 = vrot.slane %v3089, 5
      %v3092 = vsel %vm1148, %v3087, %v3091
      %v3093 = vshrl.u32 %v2972, 16
      %v3095 = vrot.slane %v3093, 4
      %v3096 = vor.u32 %v3095, %v3091
      %v3097 = vrot.slane %v3096, 4
      %v3099 = vshll.u32 %v2973, 16
      %v3101 = vrot.slane %v3099, 5
      %v3102 = vsel %vm1148, %v3097, %v3101
      %v3104 = vshrl.u32 %v2974, 16
      %v3106 = vrot.slane %v3104, 4
      %v3107 = vshll.u32 %v2974, 16
      %v3109 = vrot.slane %v3107, 5
      %v3110 = vor.u32 %v3106, %v3109
      %v3111 = vrot.slane %v3110, 4
      %v3113 = vshll.u32 %v2975, 16
      %v3115 = vrot.slane %v3113, 5
      %v3116 = vsel %vm1148, %v3111, %v3115
      %v3117 = vshrl.u32 %v2975, 16
      %v3119 = vrot.slane %v3117, 4
      %v3120 = vor.u32 %v3119, %v3115
      %v3121 = vrot.slane %v3120, 4
      %v3123 = vshll.u32 %v2976, 16
      %v3125 = vrot.slane %v3123, 5
      %v3126 = vsel %vm1148, %v3121, %v3125
      %v3128 = vshrl.u32 %v2977, 16
      %v3130 = vrot.slane %v3128, 4
      %v3131 = vshll.u32 %v2977, 16
      %v3133 = vrot.slane %v3131, 5
      %v3134 = vor.u32 %v3130, %v3133
      %v3135 = vrot.slane %v3134, 4
      %v3137 = vshll.u32 %v2978, 16
      %v3139 = vrot.slane %v3137, 5
      %v3140 = vsel %vm1148, %v3135, %v3139
      %v3141 = vshrl.u32 %v2978, 16
      %v3143 = vrot.slane %v3141, 4
      %v3144 = vor.u32 %v3143, %v3139
      %v3145 = vrot.slane %v3144, 4
      %v3147 = vshll.u32 %v2979, 16
      %v3149 = vrot.slane %v3147, 5
      %v3150 = vsel %vm1148, %v3145, %v3149
      %v3152 = vshrl.u32 %v2980, 16
      %v3154 = vrot.slane %v3152, 4
      %v3155 = vshll.u32 %v2980, 16
      %v3157 = vrot.slane %v3155, 5
      %v3158 = vor.u32 %v3154, %v3157
      %v3159 = vrot.slane %v3158, 4
      %v3161 = vshll.u32 %v2981, 16
      %v3163 = vrot.slane %v3161, 5
      %v3164 = vsel %vm1148, %v3159, %v3163
      %v3165 = vshrl.u32 %v2981, 16
      %v3167 = vrot.slane %v3165, 4
      %v3168 = vor.u32 %v3167, %v3163
      %v3169 = vrot.slane %v3168, 4
      %v3171 = vshll.u32 %v2982, 16
      %v3173 = vrot.slane %v3171, 5
      %v3174 = vsel %vm1148, %v3169, %v3173
      %v3175 = vld [vmem:[%s3 + $0x38] sm:$0xf]
      %v3176 = vld [vmem:[%s3 + $0x3c] sm:$0xf]
      %v3177 = vunpack.c.l.b16 %v2996
      %v3178 = vunpack.c.l.b16 %v3006
      %v3179 = vunpack.c.l.b16 %v3020
      %v3180 = vunpack.c.l.b16 %v3030
      %v3181 = vunpack.c.l.b16 %v3044
      %v3182 = vunpack.c.l.b16 %v3054
      %v3183 = vunpack.c.l.b16 %v3068
      %v3184 = vunpack.c.l.b16 %v3078
      %v3185 = vunpack.c.l.b16 %v3092
      %v3186 = vunpack.c.l.b16 %v3102
      %v3187 = vunpack.c.l.b16 %v3116
      %v3188 = vunpack.c.l.b16 %v3126
      %v3189 = vunpack.c.l.b16 %v3140
      %v3190 = vunpack.c.l.b16 %v3150
      %v3191 = vunpack.c.l.b16 %v3164
      %v3192 = vunpack.c.l.b16 %v3174
      %v3193 = vpack.c.b16 %v3178, %v3177
      %v3194 = vpack.c.b16 %v3180, %v3179
      %v3195 = vpack.c.b16 %v3182, %v3181
      %v3196 = vpack.c.b16 %v3184, %v3183
      %v3197 = vpack.c.b16 %v3186, %v3185
      %v3198 = vpack.c.b16 %v3188, %v3187
      %v3199 = vpack.c.b16 %v3190, %v3189
      %v3200 = vpack.c.b16 %v3192, %v3191
      %v3203 = vunpack.c.l.b16 %v3175
      %v3204 = vunpack.c.l.b16 %v3176
      %v3205 = vpack.c.b16 %v3204, %v3203
      %v3208 = vsel %vm1373, %v3193, 0
      %v3211 = vsel %vm1373, %v3194, 0
      %v3214 = vsel %vm1373, %v3195, 0
      %v3217 = vsel %vm1373, %v3196, 0
      %v3220 = vsel %vm1373, %v3197, 0
      %v3223 = vsel %vm1373, %v3198, 0
      %v3226 = vsel %vm1373, %v3199, 0
      %v3229 = vsel %vm1373, %v3200, 0
      %3231 = vmatprep.subr.bf16.mxu0 0
      %3232 = vmatpush1.bf16.msra.mxu0 %v3205
      %3233 = vmatprep.subr.bf16.mxu0 0
      %3234 = vmatpush1.bf16.msra.mxu0 0
      %3235 = vmatprep.subr.bf16.mxu0 0
      %3236 = vmatpush1.bf16.msra.mxu0 0
      %3237 = vmatprep.subr.bf16.mxu0 0
      %3238 = vmatpush1.bf16.msra.mxu0 0
      %3239 = vmatprep.subr.bf16.mxu0 0
      %3240 = vmatpush1.bf16.msra.mxu0 0
      %3241 = vmatprep.subr.bf16.mxu0 0
      %3242 = vmatpush1.bf16.msra.mxu0 0
      %3243 = vmatprep.subr.bf16.mxu0 0
      %3244 = vmatpush1.bf16.msra.mxu0 0
      %3245 = vmatprep.subr.bf16.mxu0 0
      %3246 = vmatpush1.bf16.msra.mxu0 0
      %3247 = vmatprep.subr.bf16.mxu0 0
      %3248 = vmatpush1.bf16.msra.mxu0 0
      %3249 = vmatprep.subr.bf16.mxu0 0
      %3250 = vmatpush1.bf16.msra.mxu0 0
      %3251 = vmatprep.subr.bf16.mxu0 0
      %3252 = vmatpush1.bf16.msra.mxu0 0
      %3253 = vmatprep.subr.bf16.mxu0 0
      %3254 = vmatpush1.bf16.msra.mxu0 0
      %3255 = vmatprep.subr.bf16.mxu0 0
      %3256 = vmatpush1.bf16.msra.mxu0 0
      %3257 = vmatprep.subr.bf16.mxu0 0
      %3258 = vmatpush1.bf16.msra.mxu0 0
      %3259 = vmatprep.subr.bf16.mxu0 0
      %3260 = vmatpush1.bf16.msra.mxu0 0
      %3261 = vmatprep.subr.bf16.mxu0 0
      %3262 = vmatpush1.bf16.msra.mxu0 0
      %3263 = vmatprep.mubr.bf16.mxu0 0
      %3264 = vmatmul.mubr.bf16.gmra.mrb[0].mxu0 %v3208
      %v3265 = vpop.f32.mrb[0].mxu0
      %v3266 = vadd.f32 0.0, %v3265
      %v3267 = vpop.f32.mrb[0].mxu0
      %v3268 = vpop.f32.mrb[0].mxu0
      %v3269 = vadd.f32 0.0, %v3268
      %v3270 = vpop.f32.mrb[0].mxu0
      %3271 = vmatprep.mubr.bf16.mxu0 0
      %3272 = vmatmul.mubr.bf16.gmra.mrb[0].mxu0 %v3211
      %v3273 = vpop.f32.mrb[0].mxu0
      %v3274 = vadd.f32 0.0, %v3273
      %v3275 = vpop.f32.mrb[0].mxu0
      %v3276 = vpop.f32.mrb[0].mxu0
      %v3277 = vadd.f32 0.0, %v3276
      %v3278 = vpop.f32.mrb[0].mxu0
      %3279 = vmatprep.mubr.bf16.mxu0 0
      %3280 = vmatmul.mubr.bf16.gmra.mrb[0].mxu0 %v3214
      %v3281 = vpop.f32.mrb[0].mxu0
      %v3282 = vadd.f32 0.0, %v3281
      %v3283 = vpop.f32.mrb[0].mxu0
      %v3284 = vpop.f32.mrb[0].mxu0
      %v3285 = vadd.f32 0.0, %v3284
      %v3286 = vpop.f32.mrb[0].mxu0
      %3287 = vmatprep.mubr.bf16.mxu0 0
      %3288 = vmatmul.mubr.bf16.gmra.mrb[0].mxu0 %v3217
      %v3289 = vpop.f32.mrb[0].mxu0
      %v3290 = vadd.f32 0.0, %v3289
      %v3291 = vpop.f32.mrb[0].mxu0
      %v3292 = vpop.f32.mrb[0].mxu0
      %v3293 = vadd.f32 0.0, %v3292
      %v3294 = vpop.f32.mrb[0].mxu0
      %3295 = vmatprep.mubr.bf16.mxu0 0
      %3296 = vmatmul.mubr.bf16.gmra.mrb[0].mxu0 %v3220
      %v3297 = vpop.f32.mrb[0].mxu0
      %v3298 = vadd.f32 0.0, %v3297
      %v3299 = vpop.f32.mrb[0].mxu0
      %v3300 = vpop.f32.mrb[0].mxu0
      %v3301 = vadd.f32 0.0, %v3300
      %v3302 = vpop.f32.mrb[0].mxu0
      %3303 = vmatprep.mubr.bf16.mxu0 0
      %3304 = vmatmul.mubr.bf16.gmra.mrb[0].mxu0 %v3223
      %v3305 = vpop.f32.mrb[0].mxu0
      %v3306 = vadd.f32 0.0, %v3305
      %v3307 = vpop.f32.mrb[0].mxu0
      %v3308 = vpop.f32.mrb[0].mxu0
      %v3309 = vadd.f32 0.0, %v3308
      %v3310 = vpop.f32.mrb[0].mxu0
      %3311 = vmatprep.mubr.bf16.mxu0 0
      %3312 = vmatmul.mubr.bf16.gmra.mrb[0].mxu0 %v3226
      %v3313 = vpop.f32.mrb[0].mxu0
      %v3314 = vadd.f32 0.0, %v3313
      %v3315 = vpop.f32.mrb[0].mxu0
      %v3316 = vpop.f32.mrb[0].mxu0
      %v3317 = vadd.f32 0.0, %v3316
      %v3318 = vpop.f32.mrb[0].mxu0
      %3319 = vmatprep.mubr.bf16.mxu0 0
      %3320 = vmatmul.mubr.bf16.gmra.mrb[0].mxu0 %v3229
      %v3321 = vpop.f32.mrb[0].mxu0
      %v3322 = vadd.f32 0.0, %v3321
      %v3323 = vpop.f32.mrb[0].mxu0
      %v3324 = vpop.f32.mrb[0].mxu0
      %v3325 = vadd.f32 0.0, %v3324
      %v3326 = vpop.f32.mrb[0].mxu0
      %3327 = vdwg.mxu0
      %v3328 = vadd.f32 %v2943, %v3266
      %v3329 = vadd.f32 %v2944, %v3269
      %v3330 = vadd.f32 %v2945, %v3274
      %v3331 = vadd.f32 %v2946, %v3277
      %v3332 = vadd.f32 %v2947, %v3282
      %v3333 = vadd.f32 %v2948, %v3285
      %v3334 = vadd.f32 %v2949, %v3290
      %v3335 = vadd.f32 %v2950, %v3293
      %v3336 = vadd.f32 %v2951, %v3298
      %v3337 = vadd.f32 %v2952, %v3301
      %v3338 = vadd.f32 %v2953, %v3306
      %v3339 = vadd.f32 %v2954, %v3309
      %v3340 = vadd.f32 %v2955, %v3314
      %v3341 = vadd.f32 %v2956, %v3317
      %v3342 = vadd.f32 %v2957, %v3322
      %v3343 = vadd.f32 %v2958, %v3325
      %v3344 = vld [vmem:[%s2757] sm:$0xe]
      %v3345 = vld [vmem:[%s2757 + $0xc] sm:$0xe]
      %v3346 = vld [vmem:[%s2757 + $0x18] sm:$0xe]
      %v3347 = vld [vmem:[%s2757 + $0x24] sm:$0xe]
      %v3348 = vld [vmem:[%s2757 + $0x30] sm:$0xe]
      %v3349 = vld [vmem:[%s2757 + $0x3c] sm:$0xe]
      %v3350 = vld [vmem:[%s2757 + $0x48] sm:$0xe]
      %v3351 = vld [vmem:[%s2757 + $0x54] sm:$0xe]
      %v3376 = vrot.slane %v3344, 5
      %v3377 = vrot.slane %v3376, 4
      %v3378 = vrot.slane %v2960, 5
      %v3379 = vsel %vm1688, %v3377, %v3378
      %v3380 = vrot.slane %v3378, 4
      %v3381 = vrot.slane %v2961, 5
      %v3382 = vsel %vm1688, %v3380, %v3381
      %v3383 = vrot.slane %v3345, 5
      %v3384 = vrot.slane %v3383, 4
      %v3385 = vrot.slane %v2963, 5
      %v3386 = vsel %vm1688, %v3384, %v3385
      %v3387 = vrot.slane %v3385, 4
      %v3388 = vrot.slane %v2964, 5
      %v3389 = vsel %vm1688, %v3387, %v3388
      %v3390 = vrot.slane %v3346, 5
      %v3391 = vrot.slane %v3390, 4
      %v3392 = vrot.slane %v2966, 5
      %v3393 = vsel %vm1688, %v3391, %v3392
      %v3394 = vrot.slane %v3392, 4
      %v3395 = vrot.slane %v2967, 5
      %v3396 = vsel %vm1688, %v3394, %v3395
      %v3397 = vrot.slane %v3347, 5
      %v3398 = vrot.slane %v3397, 4
      %v3399 = vrot.slane %v2969, 5
      %v3400 = vsel %vm1688, %v3398, %v3399
      %v3401 = vrot.slane %v3399, 4
      %v3402 = vrot.slane %v2970, 5
      %v3403 = vsel %vm1688, %v3401, %v3402
      %v3404 = vrot.slane %v3348, 5
      %v3405 = vrot.slane %v3404, 4
      %v3406 = vrot.slane %v2972, 5
      %v3407 = vsel %vm1688, %v3405, %v3406
      %v3408 = vrot.slane %v3406, 4
      %v3409 = vrot.slane %v2973, 5
      %v3410 = vsel %vm1688, %v3408, %v3409
      %v3411 = vrot.slane %v3349, 5
      %v3412 = vrot.slane %v3411, 4
      %v3413 = vrot.slane %v2975, 5
      %v3414 = vsel %vm1688, %v3412, %v3413
      %v3415 = vrot.slane %v3413, 4
      %v3416 = vrot.slane %v2976, 5
      %v3417 = vsel %vm1688, %v3415, %v3416
      %v3418 = vrot.slane %v3350, 5
      %v3419 = vrot.slane %v3418, 4
      %v3420 = vrot.slane %v2978, 5
      %v3421 = vsel %vm1688, %v3419, %v3420
      %v3422 = vrot.slane %v3420, 4
      %v3423 = vrot.slane %v2979, 5
      %v3424 = vsel %vm1688, %v3422, %v3423
      %v3425 = vrot.slane %v3351, 5
      %v3426 = vrot.slane %v3425, 4
      %v3427 = vrot.slane %v2981, 5
      %v3428 = vsel %vm1688, %v3426, %v3427
      %v3429 = vrot.slane %v3427, 4
      %v3430 = vrot.slane %v2982, 5
      %v3431 = vsel %vm1688, %v3429, %v3430
      %v3432 = vld [vmem:[%s3 + $0x40] sm:$0xf]
      %v3433 = vld [vmem:[%s3 + $0x44] sm:$0xf]
      %v3434 = vunpack.c.l.b16 %v3379
      %v3435 = vunpack.c.l.b16 %v3382
      %v3436 = vunpack.c.l.b16 %v3386
      %v3437 = vunpack.c.l.b16 %v3389
      %v3438 = vunpack.c.l.b16 %v3393
      %v3439 = vunpack.c.l.b16 %v3396
      %v3440 = vunpack.c.l.b16 %v3400
      %v3441 = vunpack.c.l.b16 %v3403
      %v3442 = vunpack.c.l.b16 %v3407
      %v3443 = vunpack.c.l.b16 %v3410
      %v3444 = vunpack.c.l.b16 %v3414
      %v3445 = vunpack.c.l.b16 %v3417
      %v3446 = vunpack.c.l.b16 %v3421
      %v3447 = vunpack.c.l.b16 %v3424
      %v3448 = vunpack.c.l.b16 %v3428
      %v3449 = vunpack.c.l.b16 %v3431
      %v3450 = vpack.c.b16 %v3435, %v3434
      %v3451 = vpack.c.b16 %v3437, %v3436
      %v3452 = vpack.c.b16 %v3439, %v3438
      %v3453 = vpack.c.b16 %v3441, %v3440
      %v3454 = vpack.c.b16 %v3443, %v3442
      %v3455 = vpack.c.b16 %v3445, %v3444
      %v3456 = vpack.c.b16 %v3447, %v3446
      %v3457 = vpack.c.b16 %v3449, %v3448
      %v3460 = vunpack.c.l.b16 %v3432
      %v3461 = vunpack.c.l.b16 %v3433
      %v3462 = vpack.c.b16 %v3461, %v3460
      %v3465 = vsel %vm1373, %v3450, 0
      %v3468 = vsel %vm1373, %v3451, 0
      %v3471 = vsel %vm1373, %v3452, 0
      %v3474 = vsel %vm1373, %v3453, 0
      %v3477 = vsel %vm1373, %v3454, 0
      %v3480 = vsel %vm1373, %v3455, 0
      %v3483 = vsel %vm1373, %v3456, 0
      %v3486 = vsel %vm1373, %v3457, 0
      %3488 = vmatprep.subr.bf16.mxu0 0
      %3489 = vmatpush1.bf16.msra.mxu0 %v3462
      %3490 = vmatprep.subr.bf16.mxu0 0
      %3491 = vmatpush1.bf16.msra.mxu0 0
      %3492 = vmatprep.subr.bf16.mxu0 0
      %3493 = vmatpush1.bf16.msra.mxu0 0
      %3494 = vmatprep.subr.bf16.mxu0 0
      %3495 = vmatpush1.bf16.msra.mxu0 0
      %3496 = vmatprep.subr.bf16.mxu0 0
      %3497 = vmatpush1.bf16.msra.mxu0 0
      %3498 = vmatprep.subr.bf16.mxu0 0
      %3499 = vmatpush1.bf16.msra.mxu0 0
      %3500 = vmatprep.subr.bf16.mxu0 0
      %3501 = vmatpush1.bf16.msra.mxu0 0
      %3502 = vmatprep.subr.bf16.mxu0 0
      %3503 = vmatpush1.bf16.msra.mxu0 0
      %3504 = vmatprep.subr.bf16.mxu0 0
      %3505 = vmatpush1.bf16.msra.mxu0 0
      %3506 = vmatprep.subr.bf16.mxu0 0
      %3507 = vmatpush1.bf16.msra.mxu0 0
      %3508 = vmatprep.subr.bf16.mxu0 0
      %3509 = vmatpush1.bf16.msra.mxu0 0
      %3510 = vmatprep.subr.bf16.mxu0 0
      %3511 = vmatpush1.bf16.msra.mxu0 0
      %3512 = vmatprep.subr.bf16.mxu0 0
      %3513 = vmatpush1.bf16.msra.mxu0 0
      %3514 = vmatprep.subr.bf16.mxu0 0
      %3515 = vmatpush1.bf16.msra.mxu0 0
      %3516 = vmatprep.subr.bf16.mxu0 0
      %3517 = vmatpush1.bf16.msra.mxu0 0
      %3518 = vmatprep.subr.bf16.mxu0 0
      %3519 = vmatpush1.bf16.msra.mxu0 0
      %3520 = vmatprep.mubr.bf16.mxu0 0
      %3521 = vmatmul.mubr.bf16.gmra.mrb[0].mxu0 %v3465
      %v3522 = vpop.f32.mrb[0].mxu0
      %v3523 = vadd.f32 0.0, %v3522
      %v3524 = vpop.f32.mrb[0].mxu0
      %v3525 = vpop.f32.mrb[0].mxu0
      %v3526 = vadd.f32 0.0, %v3525
      %v3527 = vpop.f32.mrb[0].mxu0
      %3528 = vmatprep.mubr.bf16.mxu0 0
      %3529 = vmatmul.mubr.bf16.gmra.mrb[0].mxu0 %v3468
      %v3530 = vpop.f32.mrb[0].mxu0
      %v3531 = vadd.f32 0.0, %v3530
      %v3532 = vpop.f32.mrb[0].mxu0
      %v3533 = vpop.f32.mrb[0].mxu0
      %v3534 = vadd.f32 0.0, %v3533
      %v3535 = vpop.f32.mrb[0].mxu0
      %3536 = vmatprep.mubr.bf16.mxu0 0
      %3537 = vmatmul.mubr.bf16.gmra.mrb[0].mxu0 %v3471
      %v3538 = vpop.f32.mrb[0].mxu0
      %v3539 = vadd.f32 0.0, %v3538
      %v3540 = vpop.f32.mrb[0].mxu0
      %v3541 = vpop.f32.mrb[0].mxu0
      %v3542 = vadd.f32 0.0, %v3541
      %v3543 = vpop.f32.mrb[0].mxu0
      %3544 = vmatprep.mubr.bf16.mxu0 0
      %3545 = vmatmul.mubr.bf16.gmra.mrb[0].mxu0 %v3474
      %v3546 = vpop.f32.mrb[0].mxu0
      %v3547 = vadd.f32 0.0, %v3546
      %v3548 = vpop.f32.mrb[0].mxu0
      %v3549 = vpop.f32.mrb[0].mxu0
      %v3550 = vadd.f32 0.0, %v3549
      %v3551 = vpop.f32.mrb[0].mxu0
      %3552 = vmatprep.mubr.bf16.mxu0 0
      %3553 = vmatmul.mubr.bf16.gmra.mrb[0].mxu0 %v3477
      %v3554 = vpop.f32.mrb[0].mxu0
      %v3555 = vadd.f32 0.0, %v3554
      %v3556 = vpop.f32.mrb[0].mxu0
      %v3557 = vpop.f32.mrb[0].mxu0
      %v3558 = vadd.f32 0.0, %v3557
      %v3559 = vpop.f32.mrb[0].mxu0
      %3560 = vmatprep.mubr.bf16.mxu0 0
      %3561 = vmatmul.mubr.bf16.gmra.mrb[0].mxu0 %v3480
      %v3562 = vpop.f32.mrb[0].mxu0
      %v3563 = vadd.f32 0.0, %v3562
      %v3564 = vpop.f32.mrb[0].mxu0
      %v3565 = vpop.f32.mrb[0].mxu0
      %v3566 = vadd.f32 0.0, %v3565
      %v3567 = vpop.f32.mrb[0].mxu0
      %3568 = vmatprep.mubr.bf16.mxu0 0
      %3569 = vmatmul.mubr.bf16.gmra.mrb[0].mxu0 %v3483
      %v3570 = vpop.f32.mrb[0].mxu0
      %v3571 = vadd.f32 0.0, %v3570
      %v3572 = vpop.f32.mrb[0].mxu0
      %v3573 = vpop.f32.mrb[0].mxu0
      %v3574 = vadd.f32 0.0, %v3573
      %v3575 = vpop.f32.mrb[0].mxu0
      %3576 = vmatprep.mubr.bf16.mxu0 0
      %3577 = vmatmul.mubr.bf16.gmra.mrb[0].mxu0 %v3486
      %v3578 = vpop.f32.mrb[0].mxu0
      %v3579 = vadd.f32 0.0, %v3578
      %v3580 = vpop.f32.mrb[0].mxu0
      %v3581 = vpop.f32.mrb[0].mxu0
      %v3582 = vadd.f32 0.0, %v3581
      %v3583 = vpop.f32.mrb[0].mxu0
      %3584 = vdwg.mxu0
      %v3585 = vadd.f32 %v3328, %v3523
      %v3586 = vadd.f32 %v3329, %v3526
      %v3587 = vadd.f32 %v3330, %v3531
      %v3588 = vadd.f32 %v3331, %v3534
      %v3589 = vadd.f32 %v3332, %v3539
      %v3590 = vadd.f32 %v3333, %v3542
      %v3591 = vadd.f32 %v3334, %v3547
      %v3592 = vadd.f32 %v3335, %v3550
      %v3593 = vadd.f32 %v3336, %v3555
      %v3594 = vadd.f32 %v3337, %v3558
      %v3595 = vadd.f32 %v3338, %v3563
      %v3596 = vadd.f32 %v3339, %v3566
      %v3597 = vadd.f32 %v3340, %v3571
      %v3598 = vadd.f32 %v3341, %v3574
      %v3599 = vadd.f32 %v3342, %v3579
      %v3600 = vadd.f32 %v3343, %v3582
      %v3601 = vld [vmem:[%s4] sm:$0x1]
      %v3603 = vlaneseq
      %v3604 = vshrl.u32 %v3603, 7
      %v3605 = vsub.s32 0, %v3604
      %v3606 = vrot.slane %v3601, %v3605
      %v3608 = vadd.f32 %v3585, %v3606
      %v3609 = vadd.f32 %v3586, %v3606
      %v3610 = vadd.f32 %v3587, %v3606
      %v3611 = vadd.f32 %v3588, %v3606
      %v3612 = vadd.f32 %v3589, %v3606
      %v3613 = vadd.f32 %v3590, %v3606
      %v3614 = vadd.f32 %v3591, %v3606
      %v3615 = vadd.f32 %v3592, %v3606
      %v3616 = vadd.f32 %v3593, %v3606
      %v3617 = vadd.f32 %v3594, %v3606
      %v3618 = vadd.f32 %v3595, %v3606
      %v3619 = vadd.f32 %v3596, %v3606
      %v3620 = vadd.f32 %v3597, %v3606
      %v3621 = vadd.f32 %v3598, %v3606
      %v3622 = vadd.f32 %v3599, %v3606
      %v3623 = vadd.f32 %v3600, %v3606
      %v3624 = vmax.f32 %v3608, 0.0
      %v3625 = vmax.f32 %v3609, 0.0
      %v3626 = vmax.f32 %v3610, 0.0
      %v3627 = vmax.f32 %v3611, 0.0
      %v3628 = vmax.f32 %v3612, 0.0
      %v3629 = vmax.f32 %v3613, 0.0
      %v3630 = vmax.f32 %v3614, 0.0
      %v3631 = vmax.f32 %v3615, 0.0
      %v3632 = vmax.f32 %v3616, 0.0
      %v3633 = vmax.f32 %v3617, 0.0
      %v3634 = vmax.f32 %v3618, 0.0
      %v3635 = vmax.f32 %v3619, 0.0
      %v3636 = vmax.f32 %v3620, 0.0
      %v3637 = vmax.f32 %v3621, 0.0
      %v3638 = vmax.f32 %v3622, 0.0
      %v3639 = vmax.f32 %v3623, 0.0
      %v3640 = vpack.c.bf16 %v3625, %v3624
      %v3641 = vpack.c.bf16 %v3627, %v3626
      %v3642 = vpack.c.bf16 %v3629, %v3628
      %v3643 = vpack.c.bf16 %v3631, %v3630
      %v3644 = vpack.c.bf16 %v3633, %v3632
      %v3645 = vpack.c.bf16 %v3635, %v3634
      %v3646 = vpack.c.bf16 %v3637, %v3636
      %v3647 = vpack.c.bf16 %v3639, %v3638
      %v3648 = vld [vmem:[%s5] sm:$0xf]
      %v3649 = vld [vmem:[%s5 + $0x4] sm:$0xf]
      %v3650 = vld [vmem:[%s6] sm:$0x1]
      %v3652 = vlaneseq
      %v3653 = vshrl.u32 %v3652, 7
      %v3654 = vsub.s32 0, %v3653
      %v3655 = vrot.slane %v3650, %v3654
      %v3659 = vunpack.c.l.b16 %v3648
      %v3660 = vunpack.c.l.b16 %v3649
      %v3661 = vpack.c.b16 %v3660, %v3659
      %v3664 = vsel %vm1373, %v3640, 0
      %v3667 = vsel %vm1373, %v3641, 0
      %v3670 = vsel %vm1373, %v3642, 0
      %v3673 = vsel %vm1373, %v3643, 0
      %v3676 = vsel %vm1373, %v3644, 0
      %v3679 = vsel %vm1373, %v3645, 0
      %v3682 = vsel %vm1373, %v3646, 0
      %v3685 = vsel %vm1373, %v3647, 0
      %3687 = vmatprep.subr.bf16.mxu0 0
      %3688 = vmatpush1.bf16.msra.mxu0 %v3661
      %3689 = vmatprep.subr.bf16.mxu0 0
      %3690 = vmatpush1.bf16.msra.mxu0 0
      %3691 = vmatprep.subr.bf16.mxu0 0
      %3692 = vmatpush1.bf16.msra.mxu0 0
      %3693 = vmatprep.subr.bf16.mxu0 0
      %3694 = vmatpush1.bf16.msra.mxu0 0
      %3695 = vmatprep.subr.bf16.mxu0 0
      %3696 = vmatpush1.bf16.msra.mxu0 0
      %3697 = vmatprep.subr.bf16.mxu0 0
      %3698 = vmatpush1.bf16.msra.mxu0 0
      %3699 = vmatprep.subr.bf16.mxu0 0
      %3700 = vmatpush1.bf16.msra.mxu0 0
      %3701 = vmatprep.subr.bf16.mxu0 0
      %3702 = vmatpush1.bf16.msra.mxu0 0
      %3703 = vmatprep.subr.bf16.mxu0 0
      %3704 = vmatpush1.bf16.msra.mxu0 0
      %3705 = vmatprep.subr.bf16.mxu0 0
      %3706 = vmatpush1.bf16.msra.mxu0 0
      %3707 = vmatprep.subr.bf16.mxu0 0
      %3708 = vmatpush1.bf16.msra.mxu0 0
      %3709 = vmatprep.subr.bf16.mxu0 0
      %3710 = vmatpush1.bf16.msra.mxu0 0
      %3711 = vmatprep.subr.bf16.mxu0 0
      %3712 = vmatpush1.bf16.msra.mxu0 0
      %3713 = vmatprep.subr.bf16.mxu0 0
      %3714 = vmatpush1.bf16.msra.mxu0 0
      %3715 = vmatprep.subr.bf16.mxu0 0
      %3716 = vmatpush1.bf16.msra.mxu0 0
      %3717 = vmatprep.subr.bf16.mxu0 0
      %3718 = vmatpush1.bf16.msra.mxu0 0
      %3719 = vmatprep.mubr.bf16.mxu0 0
      %3720 = vmatmul.mubr.bf16.gmra.mrb[0].mxu0 %v3664
      %v3721 = vpop.f32.mrb[0].mxu0
      %v3722 = vadd.f32 %v3655, %v3721
      %v3723 = vpop.f32.mrb[0].mxu0
      %v3724 = vpop.f32.mrb[0].mxu0
      %v3725 = vadd.f32 %v3655, %v3724
      %v3726 = vpop.f32.mrb[0].mxu0
      %3727 = vmatprep.mubr.bf16.mxu0 0
      %3728 = vmatmul.mubr.bf16.gmra.mrb[0].mxu0 %v3667
      %v3729 = vpop.f32.mrb[0].mxu0
      %v3730 = vadd.f32 %v3655, %v3729
      %v3731 = vpop.f32.mrb[0].mxu0
      %v3732 = vpop.f32.mrb[0].mxu0
      %v3733 = vadd.f32 %v3655, %v3732
      %v3734 = vpop.f32.mrb[0].mxu0
      %3735 = vmatprep.mubr.bf16.mxu0 0
      %3736 = vmatmul.mubr.bf16.gmra.mrb[0].mxu0 %v3670
      %v3737 = vpop.f32.mrb[0].mxu0
      %v3738 = vadd.f32 %v3655, %v3737
      %v3739 = vpop.f32.mrb[0].mxu0
      %v3740 = vpop.f32.mrb[0].mxu0
      %v3741 = vadd.f32 %v3655, %v3740
      %v3742 = vpop.f32.mrb[0].mxu0
      %3743 = vmatprep.mubr.bf16.mxu0 0
      %3744 = vmatmul.mubr.bf16.gmra.mrb[0].mxu0 %v3673
      %v3745 = vpop.f32.mrb[0].mxu0
      %v3746 = vadd.f32 %v3655, %v3745
      %v3747 = vpop.f32.mrb[0].mxu0
      %v3748 = vpop.f32.mrb[0].mxu0
      %v3749 = vadd.f32 %v3655, %v3748
      %v3750 = vpop.f32.mrb[0].mxu0
      %3751 = vmatprep.mubr.bf16.mxu0 0
      %3752 = vmatmul.mubr.bf16.gmra.mrb[0].mxu0 %v3676
      %v3753 = vpop.f32.mrb[0].mxu0
      %v3754 = vadd.f32 %v3655, %v3753
      %v3755 = vpop.f32.mrb[0].mxu0
      %v3756 = vpop.f32.mrb[0].mxu0
      %v3757 = vadd.f32 %v3655, %v3756
      %v3758 = vpop.f32.mrb[0].mxu0
      %3759 = vmatprep.mubr.bf16.mxu0 0
      %3760 = vmatmul.mubr.bf16.gmra.mrb[0].mxu0 %v3679
      %v3761 = vpop.f32.mrb[0].mxu0
      %v3762 = vadd.f32 %v3655, %v3761
      %v3763 = vpop.f32.mrb[0].mxu0
      %v3764 = vpop.f32.mrb[0].mxu0
      %v3765 = vadd.f32 %v3655, %v3764
      %v3766 = vpop.f32.mrb[0].mxu0
      %3767 = vmatprep.mubr.bf16.mxu0 0
      %3768 = vmatmul.mubr.bf16.gmra.mrb[0].mxu0 %v3682
      %v3769 = vpop.f32.mrb[0].mxu0
      %v3770 = vadd.f32 %v3655, %v3769
      %v3771 = vpop.f32.mrb[0].mxu0
      %v3772 = vpop.f32.mrb[0].mxu0
      %v3773 = vadd.f32 %v3655, %v3772
      %v3774 = vpop.f32.mrb[0].mxu0
      %3775 = vmatprep.mubr.bf16.mxu0 0
      %3776 = vmatmul.mubr.bf16.gmra.mrb[0].mxu0 %v3685
      %v3777 = vpop.f32.mrb[0].mxu0
      %v3778 = vadd.f32 %v3655, %v3777
      %v3779 = vpop.f32.mrb[0].mxu0
      %v3780 = vpop.f32.mrb[0].mxu0
      %v3781 = vadd.f32 %v3655, %v3780
      %v3782 = vpop.f32.mrb[0].mxu0
      %3783 = vdwg.mxu0
      %v3784 = vld [vmem:[%s394] sm:$0xf]
      %v3785 = vld [vmem:[%s394 + $0x4] sm:$0xf]
      %v3786 = vld [vmem:[%s394 + $0x8] sm:$0xf]
      %v3787 = vld [vmem:[%s394 + $0xc] sm:$0xf]
      %v3788 = vld [vmem:[%s394 + $0x10] sm:$0xf]
      %v3789 = vld [vmem:[%s394 + $0x14] sm:$0xf]
      %v3790 = vld [vmem:[%s394 + $0x18] sm:$0xf]
      %v3791 = vld [vmem:[%s394 + $0x1c] sm:$0xf]
      %v3792 = vld [vmem:[%s394 + $0x20] sm:$0xf]
      %v3793 = vld [vmem:[%s394 + $0x24] sm:$0xf]
      %v3794 = vld [vmem:[%s394 + $0x28] sm:$0xf]
      %v3795 = vld [vmem:[%s394 + $0x2c] sm:$0xf]
      %v3796 = vld [vmem:[%s394 + $0x30] sm:$0xf]
      %v3797 = vld [vmem:[%s394 + $0x34] sm:$0xf]
      %v3798 = vld [vmem:[%s394 + $0x38] sm:$0xf]
      %v3799 = vld [vmem:[%s394 + $0x3c] sm:$0xf]
      %v3800 = vld [vmem:[%s7] sm:$0xf]
      %v3801 = vld [vmem:[%s7 + $0x4] sm:$0xf]
      %v3802 = vld [vmem:[%s7 + $0x8] sm:$0xf]
      %v3803 = vld [vmem:[%s7 + $0xc] sm:$0xf]
      %v3804 = vld [vmem:[%s8] sm:$0x1]
      %v3806 = vlaneseq
      %v3807 = vshrl.u32 %v3806, 7
      %v3808 = vsub.s32 0, %v3807
      %v3809 = vrot.slane %v3804, %v3808
      %v3827 = vunpack.c.l.b16 %v3784
      %v3828 = vunpack.c.l.b16 %v3785
      %v3829 = vunpack.c.l.b16 %v3786
      %v3830 = vunpack.c.l.b16 %v3787
      %v3831 = vunpack.c.l.b16 %v3788
      %v3832 = vunpack.c.l.b16 %v3789
      %v3833 = vunpack.c.l.b16 %v3790
      %v3834 = vunpack.c.l.b16 %v3791
      %v3835 = vunpack.c.l.b16 %v3792
      %v3836 = vunpack.c.l.b16 %v3793
      %v3837 = vunpack.c.l.b16 %v3794
      %v3838 = vunpack.c.l.b16 %v3795
      %v3839 = vunpack.c.l.b16 %v3796
      %v3840 = vunpack.c.l.b16 %v3797
      %v3841 = vunpack.c.l.b16 %v3798
      %v3842 = vunpack.c.l.b16 %v3799
      %v3843 = vpack.c.b16 %v3828, %v3827
      %v3844 = vpack.c.b16 %v3830, %v3829
      %v3845 = vpack.c.b16 %v3832, %v3831
      %v3846 = vpack.c.b16 %v3834, %v3833
      %v3847 = vpack.c.b16 %v3836, %v3835
      %v3848 = vpack.c.b16 %v3838, %v3837
      %v3849 = vpack.c.b16 %v3840, %v3839
      %v3850 = vpack.c.b16 %v3842, %v3841
      %v3855 = vunpack.c.l.b16 %v3800
      %v3856 = vunpack.c.l.b16 %v3801
      %v3857 = vunpack.c.l.b16 %v3802
      %v3858 = vunpack.c.l.b16 %v3803
      %v3859 = vpack.c.b16 %v3856, %v3855
      %v3860 = vpack.c.b16 %v3858, %v3857
      %v3864 = vsel %vm474, %v3843, 0
      %v3867 = vsel %vm474, %v3844, 0
      %v3870 = vsel %vm474, %v3845, 0
      %v3873 = vsel %vm474, %v3846, 0
      %v3876 = vsel %vm474, %v3847, 0
      %v3879 = vsel %vm474, %v3848, 0
      %v3882 = vsel %vm474, %v3849, 0
      %v3885 = vsel %vm474, %v3850, 0
      %3887 = vmatprep.subr.bf16.mxu0 0
      %3888 = vmatpush1.bf16.msra.mxu0 %v3859
      %3889 = vmatprep.subr.bf16.mxu0 0
      %3890 = vmatpush1.bf16.msra.mxu0 %v3860
      %3891 = vmatprep.subr.bf16.mxu0 0
      %3892 = vmatpush1.bf16.msra.mxu0 0
      %3893 = vmatprep.subr.bf16.mxu0 0
      %3894 = vmatpush1.bf16.msra.mxu0 0
      %3895 = vmatprep.subr.bf16.mxu0 0
      %3896 = vmatpush1.bf16.msra.mxu0 0
      %3897 = vmatprep.subr.bf16.mxu0 0
      %3898 = vmatpush1.bf16.msra.mxu0 0
      %3899 = vmatprep.subr.bf16.mxu0 0
      %3900 = vmatpush1.bf16.msra.mxu0 0
      %3901 = vmatprep.subr.bf16.mxu0 0
      %3902 = vmatpush1.bf16.msra.mxu0 0
      %3903 = vmatprep.subr.bf16.mxu0 0
      %3904 = vmatpush1.bf16.msra.mxu0 0
      %3905 = vmatprep.subr.bf16.mxu0 0
      %3906 = vmatpush1.bf16.msra.mxu0 0
      %3907 = vmatprep.subr.bf16.mxu0 0
      %3908 = vmatpush1.bf16.msra.mxu0 0
      %3909 = vmatprep.subr.bf16.mxu0 0
      %3910 = vmatpush1.bf16.msra.mxu0 0
      %3911 = vmatprep.subr.bf16.mxu0 0
      %3912 = vmatpush1.bf16.msra.mxu0 0
      %3913 = vmatprep.subr.bf16.mxu0 0
      %3914 = vmatpush1.bf16.msra.mxu0 0
      %3915 = vmatprep.subr.bf16.mxu0 0
      %3916 = vmatpush1.bf16.msra.mxu0 0
      %3917 = vmatprep.subr.bf16.mxu0 0
      %3918 = vmatpush1.bf16.msra.mxu0 0
      %3919 = vmatprep.mubr.bf16.mxu0 0
      %3920 = vmatmul.mubr.bf16.gmra.mrb[0].mxu0 %v3864
      %v3921 = vpop.f32.mrb[0].mxu0
      %v3922 = vadd.f32 %v3809, %v3921
      %v3923 = vpop.f32.mrb[0].mxu0
      %v3924 = vpop.f32.mrb[0].mxu0
      %v3925 = vadd.f32 %v3809, %v3924
      %v3926 = vpop.f32.mrb[0].mxu0
      %3927 = vmatprep.mubr.bf16.mxu0 0
      %3928 = vmatmul.mubr.bf16.gmra.mrb[0].mxu0 %v3867
      %v3929 = vpop.f32.mrb[0].mxu0
      %v3930 = vadd.f32 %v3809, %v3929
      %v3931 = vpop.f32.mrb[0].mxu0
      %v3932 = vpop.f32.mrb[0].mxu0
      %v3933 = vadd.f32 %v3809, %v3932
      %v3934 = vpop.f32.mrb[0].mxu0
      %3935 = vmatprep.mubr.bf16.mxu0 0
      %3936 = vmatmul.mubr.bf16.gmra.mrb[0].mxu0 %v3870
      %v3937 = vpop.f32.mrb[0].mxu0
      %v3938 = vadd.f32 %v3809, %v3937
      %v3939 = vpop.f32.mrb[0].mxu0
      %v3940 = vpop.f32.mrb[0].mxu0
      %v3941 = vadd.f32 %v3809, %v3940
      %v3942 = vpop.f32.mrb[0].mxu0
      %3943 = vmatprep.mubr.bf16.mxu0 0
      %3944 = vmatmul.mubr.bf16.gmra.mrb[0].mxu0 %v3873
      %v3945 = vpop.f32.mrb[0].mxu0
      %v3946 = vadd.f32 %v3809, %v3945
      %v3947 = vpop.f32.mrb[0].mxu0
      %v3948 = vpop.f32.mrb[0].mxu0
      %v3949 = vadd.f32 %v3809, %v3948
      %v3950 = vpop.f32.mrb[0].mxu0
      %3951 = vmatprep.mubr.bf16.mxu0 0
      %3952 = vmatmul.mubr.bf16.gmra.mrb[0].mxu0 %v3876
      %v3953 = vpop.f32.mrb[0].mxu0
      %v3954 = vadd.f32 %v3809, %v3953
      %v3955 = vpop.f32.mrb[0].mxu0
      %v3956 = vpop.f32.mrb[0].mxu0
      %v3957 = vadd.f32 %v3809, %v3956
      %v3958 = vpop.f32.mrb[0].mxu0
      %3959 = vmatprep.mubr.bf16.mxu0 0
      %3960 = vmatmul.mubr.bf16.gmra.mrb[0].mxu0 %v3879
      %v3961 = vpop.f32.mrb[0].mxu0
      %v3962 = vadd.f32 %v3809, %v3961
      %v3963 = vpop.f32.mrb[0].mxu0
      %v3964 = vpop.f32.mrb[0].mxu0
      %v3965 = vadd.f32 %v3809, %v3964
      %v3966 = vpop.f32.mrb[0].mxu0
      %3967 = vmatprep.mubr.bf16.mxu0 0
      %3968 = vmatmul.mubr.bf16.gmra.mrb[0].mxu0 %v3882
      %v3969 = vpop.f32.mrb[0].mxu0
      %v3970 = vadd.f32 %v3809, %v3969
      %v3971 = vpop.f32.mrb[0].mxu0
      %v3972 = vpop.f32.mrb[0].mxu0
      %v3973 = vadd.f32 %v3809, %v3972
      %v3974 = vpop.f32.mrb[0].mxu0
      %3975 = vmatprep.mubr.bf16.mxu0 0
      %3976 = vmatmul.mubr.bf16.gmra.mrb[0].mxu0 %v3885
      %v3977 = vpop.f32.mrb[0].mxu0
      %v3978 = vadd.f32 %v3809, %v3977
      %v3979 = vpop.f32.mrb[0].mxu0
      %v3980 = vpop.f32.mrb[0].mxu0
      %v3981 = vadd.f32 %v3809, %v3980
      %v3982 = vpop.f32.mrb[0].mxu0
      %3983 = vdwg.mxu0
      %v3984 = vadd.f32 %v3722, %v3922
      %v3985 = vadd.f32 %v3725, %v3925
      %v3986 = vadd.f32 %v3730, %v3930
      %v3987 = vadd.f32 %v3733, %v3933
      %v3988 = vadd.f32 %v3738, %v3938
      %v3989 = vadd.f32 %v3741, %v3941
      %v3990 = vadd.f32 %v3746, %v3946
      %v3991 = vadd.f32 %v3749, %v3949
      %v3992 = vadd.f32 %v3754, %v3954
      %v3993 = vadd.f32 %v3757, %v3957
      %v3994 = vadd.f32 %v3762, %v3962
      %v3995 = vadd.f32 %v3765, %v3965
      %v3996 = vadd.f32 %v3770, %v3970
      %v3997 = vadd.f32 %v3773, %v3973
      %v3998 = vadd.f32 %v3778, %v3978
      %v3999 = vadd.f32 %v3781, %v3981
      %v4000 = vmax.f32 %v3984, 0.0
      %v4001 = vmax.f32 %v3985, 0.0
      %v4002 = vmax.f32 %v3986, 0.0
      %v4003 = vmax.f32 %v3987, 0.0
      %v4004 = vmax.f32 %v3988, 0.0
      %v4005 = vmax.f32 %v3989, 0.0
      %v4006 = vmax.f32 %v3990, 0.0
      %v4007 = vmax.f32 %v3991, 0.0
      %v4008 = vmax.f32 %v3992, 0.0
      %v4009 = vmax.f32 %v3993, 0.0
      %v4010 = vmax.f32 %v3994, 0.0
      %v4011 = vmax.f32 %v3995, 0.0
      %v4012 = vmax.f32 %v3996, 0.0
      %v4013 = vmax.f32 %v3997, 0.0
      %v4014 = vmax.f32 %v3998, 0.0
      %v4015 = vmax.f32 %v3999, 0.0
      %v4016 = vpack.c.bf16 %v4001, %v4000
      %v4017 = vpack.c.bf16 %v4003, %v4002
      %v4018 = vpack.c.bf16 %v4005, %v4004
      %v4019 = vpack.c.bf16 %v4007, %v4006
      %v4020 = vpack.c.bf16 %v4009, %v4008
      %v4021 = vpack.c.bf16 %v4011, %v4010
      %v4022 = vpack.c.bf16 %v4013, %v4012
      %v4023 = vpack.c.bf16 %v4015, %v4014
      %v4032 = vunpack.c.l.b16 %v4016
      %v4033 = vunpack.c.h.b16 %v4016
      %v4034 = vunpack.c.l.b16 %v4017
      %v4035 = vunpack.c.h.b16 %v4017
      %v4036 = vunpack.c.l.b16 %v4018
      %v4037 = vunpack.c.h.b16 %v4018
      %v4038 = vunpack.c.l.b16 %v4019
      %v4039 = vunpack.c.h.b16 %v4019
      %v4040 = vunpack.c.l.b16 %v4020
      %v4041 = vunpack.c.h.b16 %v4020
      %v4042 = vunpack.c.l.b16 %v4021
      %v4043 = vunpack.c.h.b16 %v4021
      %v4044 = vunpack.c.l.b16 %v4022
      %v4045 = vunpack.c.h.b16 %v4022
      %v4046 = vunpack.c.l.b16 %v4023
      %v4047 = vunpack.c.h.b16 %v4023
      %v4048 = vpack.c.b16 %v4032, %v4032
      %v4049 = vpack.c.b16 %v4033, %v4033
      %v4050 = vpack.c.b16 %v4034, %v4034
      %v4051 = vpack.c.b16 %v4035, %v4035
      %v4052 = vpack.c.b16 %v4036, %v4036
      %v4053 = vpack.c.b16 %v4037, %v4037
      %v4054 = vpack.c.b16 %v4038, %v4038
      %v4055 = vpack.c.b16 %v4039, %v4039
      %v4056 = vpack.c.b16 %v4040, %v4040
      %v4057 = vpack.c.b16 %v4041, %v4041
      %v4058 = vpack.c.b16 %v4042, %v4042
      %v4059 = vpack.c.b16 %v4043, %v4043
      %v4060 = vpack.c.b16 %v4044, %v4044
      %v4061 = vpack.c.b16 %v4045, %v4045
      %v4062 = vpack.c.b16 %v4046, %v4046
      %v4063 = vpack.c.b16 %v4047, %v4047
      %vm4080 = vcmask 519168
      %4081 = vst.msk [vmem:[%s356] sm:$0xf] %vm4080, %v4048
      %4082 = vst.msk [vmem:[%s356 + $0x4] sm:$0xf] %vm4080, %v4049
      %4083 = vst.msk [vmem:[%s356 + $0x8] sm:$0xf] %vm4080, %v4050
      %4084 = vst.msk [vmem:[%s356 + $0xc] sm:$0xf] %vm4080, %v4051
      %4085 = vst.msk [vmem:[%s356 + $0x10] sm:$0xf] %vm4080, %v4052
      %4086 = vst.msk [vmem:[%s356 + $0x14] sm:$0xf] %vm4080, %v4053
      %4087 = vst.msk [vmem:[%s356 + $0x18] sm:$0xf] %vm4080, %v4054
      %4088 = vst.msk [vmem:[%s356 + $0x1c] sm:$0xf] %vm4080, %v4055
      %4089 = vst.msk [vmem:[%s356 + $0x20] sm:$0xf] %vm4080, %v4056
      %4090 = vst.msk [vmem:[%s356 + $0x24] sm:$0xf] %vm4080, %v4057
      %4091 = vst.msk [vmem:[%s356 + $0x28] sm:$0xf] %vm4080, %v4058
      %4092 = vst.msk [vmem:[%s356 + $0x2c] sm:$0xf] %vm4080, %v4059
      %4093 = vst.msk [vmem:[%s356 + $0x30] sm:$0xf] %vm4080, %v4060
      %4094 = vst.msk [vmem:[%s356 + $0x34] sm:$0xf] %vm4080, %v4061
      %4095 = vst.msk [vmem:[%s356 + $0x38] sm:$0xf] %vm4080, %v4062
      %4096 = vst.msk [vmem:[%s356 + $0x3c] sm:$0xf] %vm4080, %v4063
      %s4097 = smul.u32 8, %s25
      %p4098 = scmp.lt.s32.totalorder %s24, 1
      %s4099 = scalar_select %p4098, %s24, 1
      %p4100 = scmp.lt.s32.totalorder %s4097, 15
      %s4101 = scalar_select %p4100, %s4097, 15
      %s4102 = smul.addr %s4101, 2
      %s4103 = smul.addr %s4099, 32
      %s4104 = sadd.s32 %s4102, %s4103
      %s4105 = smul.addr %s4104, 4
      %s4106 = scalar_lea.vmem %s9, %s4105
      // Predicated region
      $region65: #{run.2} parent=55 // pred_check
        %p4107 = pneg %p246
      $region66: #{run.2} parent=55 // pred_check_branch
        %4109 = sbr.rel (%p4107) target = $region68
      $region67: #{run.2} parent=55 // pred_region
        %s4110 = smul.u32 8, %s25
      $region68: #{run.2} parent=55 // pred_fallthru
        _
    $region56: #{run.2} parent=5 // pred_fallthru
      _
    %p4111 = scmp.le.s32.totalorder 2, %s15
    // Predicated region
    $region69: #{run.2} parent=5 // pred_check
      %p4112 = pneg %p4111
    $region70: #{run.2} parent=5 // pred_check_branch
      %4114 = sbr.rel (%p4112) target = $region72
    $region71: #{run.2} parent=5 // pred_region
      %s4115 = ssub.s32 %s15, 2
      // Predicated region
      $region73: #{run.2} parent=71 // pred_check
        %p4116 = pneg %p252
      $region74: #{run.2} parent=71 // pred_check_branch
        %4118 = sbr.rel (%p4116) target = $region76
      $region75: #{run.2} parent=71 // pred_region
        %s4119 = smul.u32 8, %s27
        %p4120 = scmp.lt.s32.totalorder %s26, 1
        %s4121 = scalar_select %p4120, %s26, 1
        %p4122 = scmp.lt.s32.totalorder %s4119, 15
        %s4123 = scalar_select %p4122, %s4119, 15
        %s4124 = smul.addr %s4123, 2
        %s4125 = smul.addr %s4121, 32
        %s4126 = sadd.s32 %s4124, %s4125
        %s4127 = smul.addr %s4126, 4
        %s4128 = scalar_lea.vmem %s9, %s4127
      $region76: #{run.2} parent=71 // pred_fallthru
        _
    $region72: #{run.2} parent=5 // pred_fallthru
      _
  $region6: #{run.2} parent=0 // loop_footer
    %s19 = sadd.s32 1, %s15
  $region7: #{run.2} parent=0 // loop_footer_branch
    %14 = sbr.rel target = $region3
  $region8: #{run.2} parent=0 // loop_exit
    _

</llo_original>
